<compile_context>
chip_gen: v7x
topology: tpu7x:2x2x1
jax: 0.10.0
libtpu: 0.0.40
codegen_flags: <defaults>
</compile_context>

<pallas_src>
import functools

import numpy as np
import jax
import jax.numpy as jnp
from jax.experimental import pallas as pl
from jax.experimental.pallas import tpu as pltpu

_VMEM_LIMIT = 32 * 1024 * 1024   # valid on v5e/v6e/v7x (v7x physical VMEM = 64 MiB)


def _cost(flops, operands, outs, transcendentals=0):
    nbytes = sum(int(np.prod(o.shape)) * o.dtype.itemsize for o in operands)
    nbytes += sum(int(np.prod(s.shape)) * np.dtype(s.dtype).itemsize for s in outs)
    return pl.CostEstimate(flops=int(flops), transcendentals=int(transcendentals),
                           bytes_accessed=int(nbytes))


# ----------------------------------------------------------------------------
# Pallas kernels
# ----------------------------------------------------------------------------
def stem_pool_kernel(p_ref, w_ref, b_ref, o_ref, *, taps, rows):
    """Fused stem conv(7x7,s2,p3)+BN+ReLU + maxpool(3x3,s2,p1) for one image.

    p_ref holds im2col patches ordered tap-major: for each of the 9 pool taps,
    one patch row per pooled output position. Out-of-range pool taps were
    clipped to the window centre in glue (a no-op under max, since max over a
    multiset ignores duplicates). relu(max) == max(relu) since ReLU is monotone.
    """
    w = w_ref[...]
    b = b_ref[...]
    best = None
    for t in range(taps):
        acc = jnp.dot(p_ref[t * rows:(t + 1) * rows, :], w,
                      preferred_element_type=jnp.float32)
        acc = jnp.maximum(acc + b, 0.0)          # folded conv-bias + BN, then ReLU
        best = acc if best is None else jnp.maximum(best, acc)
    o_ref[...] = best


def layer_kernel(p1_ref, w1_ref, b1_ref, w2_ref, b2_ref, m_ref, o_ref, hpad_ref,
                 *, n, h, w, c, halo, pool, tap_info):
    """One _make_layer block: conv1(3x3,s)+BN+ReLU -> conv2(3x3,s1,p1)+BN (no ReLU).

    conv1 is an im2col matmul. Its output (flattened rows, (N*H*W, C)) is
    written into a zero-padded VMEM scratch; conv2 is accumulated from 9
    statically shifted row windows with per-tap validity masks that zero rows
    whose tap crosses a W / H / batch boundary (equivalent to zero padding).
    Optionally fuses the global average pool (AdaptiveAvgPool2d((1,1))).
    """
    m_rows = n * h * w
    acc1 = jnp.dot(p1_ref[...], w1_ref[...], preferred_element_type=jnp.float32)
    h1 = jnp.maximum(acc1 + b1_ref[...], 0.0)

    hpad_ref[...] = jnp.zeros_like(hpad_ref)
    hpad_ref[halo:halo + m_rows, :] = h1.astype(jnp.bfloat16)

    acc2 = jnp.zeros((m_rows, c), jnp.float32)
    for t, delta, mode in tap_info:           # static (trace-time) tap schedule
        if mode == 0:                         # tap never valid (e.g. 1x1 spatial)
            continue
        rows = hpad_ref[halo + delta:halo + delta + m_rows, :]
        if mode == 1:                         # partially valid: mask boundary rows
            rows = rows * m_ref[t]
        acc2 = acc2 + jnp.dot(rows, w2_ref[t], preferred_element_type=jnp.float32)

    out = acc2 + b2_ref[...]                  # second BN folded; NO ReLU (matches torch)
    if pool and h * w > 1:
        out = jnp.mean(out.reshape(n, h * w, c), axis=1)
    o_ref[...] = out


def fc_head_kernel(x_ref, w1_ref, b1_ref, w2_ref, b2_ref, w3_ref, b3_ref,
                   sm_ref, o_ref):
    """Fused bbox head: fc1+ReLU -> fc2+ReLU -> fc3, sigmoid on confidence cols."""
    x = x_ref[...].astype(jnp.bfloat16)
    hdn = jnp.dot(x, w1_ref[...], preferred_element_type=jnp.float32) + b1_ref[...]
    hdn = jnp.maximum(hdn, 0.0).astype(jnp.bfloat16)
    # TODO(synk): Dropout(0.5) is a no-op in eval mode; train-mode masking not implemented.
    hdn = jnp.dot(hdn, w2_ref[...], preferred_element_type=jnp.float32) + b2_ref[...]
    hdn = jnp.maximum(hdn, 0.0).astype(jnp.bfloat16)
    out = jnp.dot(hdn, w3_ref[...], preferred_element_type=jnp.float32) + b3_ref[...]
    o_ref[...] = jnp.where(sm_ref[...] != 0.0, jax.nn.sigmoid(out), out)


# ----------------------------------------------------------------------------
# Glue: im2col / pooled-tap index construction (static slicing & gathers only)
# ----------------------------------------------------------------------------
def extract_patches(x, k, stride, pad):
    """x: (N,H,W,C) -> (N, Ho, Wo, k*k*C) im2col patches, taps ordered (kh, kw, c)."""
    N, H, W, C = x.shape
    xp = jnp.pad(x, ((0, 0), (pad, pad), (pad, pad), (0, 0)))
    Ho = (H + 2 * pad - k) // stride + 1
    Wo = (W + 2 * pad - k) // stride + 1
    cols = []
    for kh in range(k):
        for kw in range(k):
            cols.append(xp[:, kh:kh + stride * (Ho - 1) + 1:stride,
                           kw:kw + stride * (Wo - 1) + 1:stride, :])
    p = jnp.stack(cols, axis=3)               # (N, Ho, Wo, k*k, C)
    return p.reshape(N, Ho, Wo, k * k * C)


def stem_pool_forward(x_nhwc, sp):
    """Stem conv(7x7,s2,p3)+BN+ReLU + maxpool(3x3,s2,p1) -> (N, Hp, Wp, 64) f32."""
    N = x_nhwc.shape[0]
    patches = extract_patches(x_nhwc, 7, 2, 3)            # (N, Hc, Wc, 147)
    Hc, Wc, K = patches.shape[1], patches.shape[2], patches.shape[3]
    Hp = (Hc + 2 - 3) // 2 + 1
    Wp = (Wc + 2 - 3) // 2 + 1
    Cout = sp['w'].shape[1]

    # Pool-tap expansion indices (static numpy). OOB taps clipped to the window
    # centre (always in range); harmless duplicate under max().
    idx_h = np.zeros((9, Hp, Wp), np.int32)
    idx_w = np.zeros((9, Hp, Wp), np.int32)
    ch = np.broadcast_to(2 * np.arange(Hp)[:, None], (Hp, Wp))
    cw = np.broadcast_to(2 * np.arange(Wp)[None, :], (Hp, Wp))
    for dh in range(3):
        for dw in range(3):
            t = dh * 3 + dw
            hh = np.broadcast_to(2 * np.arange(Hp)[:, None] + dh - 1, (Hp, Wp))
            ww = np.broadcast_to(2 * np.arange(Wp)[None, :] + dw - 1, (Hp, Wp))
            bad = (hh < 0) | (hh >= Hc) | (ww < 0) | (ww >= Wc)
            idx_h[t] = np.where(bad, ch, hh)
            idx_w[t] = np.where(bad, cw, ww)

    exp = patches[:, idx_h, idx_w, :]                      # (N, 9, Hp, Wp, K)
    exp = exp.reshape(N * 9 * Hp * Wp, K).astype(jnp.bfloat16)

    rows = Hp * Wp
    out_sd = jax.ShapeDtypeStruct((N * rows, Cout), jnp.float32)
    flops = 2 * N * 9 * rows * K * Cout
    out = pl.pallas_call(
        functools.partial(stem_pool_kernel, taps=9, rows=rows),
        out_shape=out_sd,
        grid=(N,),
        in_specs=[
            pl.BlockSpec((9 * rows, K), lambda i: (i, 0)),
            pl.BlockSpec((K, Cout), lambda i: (0, 0)),
            pl.BlockSpec((1, Cout), lambda i: (0, 0)),
        ],
        out_specs=pl.BlockSpec((rows, Cout), lambda i: (i, 0)),
        compiler_params=pltpu.CompilerParams(
            dimension_semantics=("parallel",), vmem_limit_bytes=_VMEM_LIMIT),
        cost_estimate=_cost(flops, [exp, sp['w'], sp['b']], [out_sd]),
    )(exp, sp['w'], sp['b'])
    return out.reshape(N, Hp, Wp, Cout)


def _conv2_tap_info(n, h, w):
    """Static per-tap validity for the in-kernel 3x3/s1/p1 conv over flattened rows."""
    hh = np.repeat(np.arange(h), w)
    ww = np.tile(np.arange(w), h)
    masks = np.zeros((9, n * h * w, 1), np.float32)
    info = []
    for dh in (-1, 0, 1):
        for dw in (-1, 0, 1):
            t = (dh + 1) * 3 + (dw + 1)
            valid = ((hh + dh >= 0) & (hh + dh < h) &
                     (ww + dw >= 0) & (ww + dw < w))
            vfull = np.tile(valid, n)
            masks[t, :, 0] = vfull.astype(np.float32)
            if not vfull.any():
                mode = 0        # skip tap entirely
            elif vfull.all():
                mode = 2        # no masking needed
            else:
                mode = 1        # mask boundary rows
            info.append((int(t), int(dh * w + dw), int(mode)))
    return masks, tuple(info)


def layer_forward(x_nhwc, lp, *, stride, pool=False):
    """One _make_layer block (optionally fused with the global average pool)."""
    N, H, W, Cin = x_nhwc.shape
    patches = extract_patches(x_nhwc.astype(jnp.bfloat16), 3, stride, 1)
    H1, W1 = patches.shape[1], patches.shape[2]
    M = N * H1 * W1
    K = 9 * Cin
    p1 = patches.reshape(M, K)
    Cout = lp['w1'].shape[1]

    masks_np, tap_info = _conv2_tap_info(N, H1, W1)
    masks = jnp.asarray(masks_np, dtype=jnp.bfloat16)
    halo = ((W1 + 1 + 7) // 8) * 8
    out_rows = N if pool else M
    out_sd = jax.ShapeDtypeStruct((out_rows, Cout), jnp.float32)
    n_taps = sum(1 for _, _, m in tap_info if m != 0)
    flops = 2 * M * K * Cout + 2 * M * Cout * Cout * n_taps

    kernel = functools.partial(layer_kernel, n=N, h=H1, w=W1, c=Cout,
                               halo=halo, pool=pool, tap_info=tap_info)
    out = pl.pallas_call(
        kernel,
        out_shape=out_sd,
        grid=(1,),
        in_specs=[
            pl.BlockSpec((M, K), lambda i: (0, 0)),
            pl.BlockSpec((K, Cout), lambda i: (0, 0)),
            pl.BlockSpec((1, Cout), lambda i: (0, 0)),
            pl.BlockSpec((9, Cout, Cout), lambda i: (0, 0, 0)),
            pl.BlockSpec((1, Cout), lambda i: (0, 0)),
            pl.BlockSpec((9, M, 1), lambda i: (0, 0, 0)),
        ],
        out_specs=pl.BlockSpec((out_rows, Cout), lambda i: (0, 0)),
        scratch_shapes=[pltpu.VMEM((M + 2 * halo, Cout), jnp.bfloat16)],
        compiler_params=pltpu.CompilerParams(
            dimension_semantics=("arbitrary",), vmem_limit_bytes=_VMEM_LIMIT),
        cost_estimate=_cost(flops,
                            [p1, lp['w1'], lp['b1'], lp['w2'], lp['b2'], masks],
                            [out_sd]),
    )(p1, lp['w1'], lp['b1'], lp['w2'], lp['b2'], masks)
    if pool:
        return out                                   # (N, Cout)
    return out.reshape(N, H1, W1, Cout)


def fc_head_forward(feat, fc1, fc2, fc3):
    """Fused fc1+ReLU -> fc2+ReLU -> fc3 with in-kernel sigmoid on confidence cols."""
    N, C = feat.shape
    out_cols = fc3['w'].shape[1]
    sig_mask_np = np.zeros((1, out_cols), np.float32)
    sig_mask_np[0, 0::5] = 1.0                       # confidence = col 0 of each box
    sig_mask = jnp.asarray(sig_mask_np)
    out_sd = jax.ShapeDtypeStruct((N, out_cols), jnp.float32)
    flops = 2 * N * (C * fc1['w'].shape[1]
                     + fc1['w'].shape[1] * fc2['w'].shape[1]
                     + fc2['w'].shape[1] * out_cols)
    operands = [feat, fc1['w'], fc1['b'], fc2['w'], fc2['b'],
                fc3['w'], fc3['b'], sig_mask]
    return pl.pallas_call(
        fc_head_kernel,
        out_shape=out_sd,
        grid=(1,),
        in_specs=[
            pl.BlockSpec((N, C), lambda i: (0, 0)),
            pl.BlockSpec(fc1['w'].shape, lambda i: (0, 0)),
            pl.BlockSpec(fc1['b'].shape, lambda i: (0, 0)),
            pl.BlockSpec(fc2['w'].shape, lambda i: (0, 0)),
            pl.BlockSpec(fc2['b'].shape, lambda i: (0, 0)),
            pl.BlockSpec(fc3['w'].shape, lambda i: (0, 0)),
            pl.BlockSpec(fc3['b'].shape, lambda i: (0, 0)),
            pl.BlockSpec((1, out_cols), lambda i: (0, 0)),
        ],
        out_specs=pl.BlockSpec((N, out_cols), lambda i: (0, 0)),
        compiler_params=pltpu.CompilerParams(
            dimension_semantics=("arbitrary",), vmem_limit_bytes=_VMEM_LIMIT),
        cost_estimate=_cost(flops, operands, [out_sd],
                            transcendentals=N * out_cols),
    )(feat, fc1['w'], fc1['b'], fc2['w'], fc2['b'], fc3['w'], fc3['b'], sig_mask)


# ----------------------------------------------------------------------------
# Deterministic synthetic parameters (BN folded into weights at build time)
# ----------------------------------------------------------------------------
def _fold_bn(w, b, gamma, beta, mean, var, eps=1e-5):
    scale = gamma / jnp.sqrt(var + eps)
    return w * scale, beta + scale * (b - mean)


def make_conv_bn(key, k, cin, cout, *, per_tap=False):
    ks = jax.random.split(key, 6)
    w = jax.random.normal(ks[0], (k, k, cin, cout), jnp.float32) / np.sqrt(k * k * cin)
    b = 0.05 * jax.random.normal(ks[1], (cout,), jnp.float32)
    gamma = 1.0 + 0.1 * jax.random.normal(ks[2], (cout,), jnp.float32)
    beta = 0.1 * jax.random.normal(ks[3], (cout,), jnp.float32)
    mean = 0.1 * jax.random.normal(ks[4], (cout,), jnp.float32)
    var = 1.0 + 0.1 * jnp.abs(jax.random.normal(ks[5], (cout,), jnp.float32))
    w_f, shift = _fold_bn(w, b, gamma, beta, mean, var)
    if per_tap:
        w_out = w_f.reshape(k * k, cin, cout).astype(jnp.bfloat16)
    else:
        w_out = w_f.reshape(k * k * cin, cout).astype(jnp.bfloat16)
    return {'w': w_out, 'b': shift.reshape(1, cout).astype(jnp.float32)}


def make_linear(key, cin, cout):
    k1, k2 = jax.random.split(key)
    w = (jax.random.normal(k1, (cin, cout), jnp.float32) / np.sqrt(cin)).astype(jnp.bfloat16)
    b = (0.05 * jax.random.normal(k2, (cout,), jnp.float32)).reshape(1, cout)
    return {'w': w, 'b': b}


def make_layer(key, cin, cout):
    k1, k2 = jax.random.split(key)
    c1 = make_conv_bn(k1, 3, cin, cout)
    c2 = make_conv_bn(k2, 3, cout, cout, per_tap=True)
    return {'w1': c1['w'], 'b1': c1['b'], 'w2': c2['w'], 'b2': c2['b']}


def make_params(key, max_boxes=4):
    keys = jax.random.split(key, 7)
    return {
        'stem': make_conv_bn(keys[0], 7, 3, 64),
        'layer1': make_layer(keys[1], 64, 128),
        'layer2': make_layer(keys[2], 128, 256),
        'layer3': make_layer(keys[3], 256, 512),
        'fc1': make_linear(keys[4], 512, 256),
        'fc2': make_linear(keys[5], 256, 128),
        'fc3': make_linear(keys[6], 128, max_boxes * 5),
    }


# ----------------------------------------------------------------------------
# Forward pass
# ----------------------------------------------------------------------------
def palm_forward(params, x_nchw, max_boxes=4):
    N = x_nchw.shape[0]
    x = jnp.transpose(x_nchw.astype(jnp.float32), (0, 2, 3, 1))     # NCHW -> NHWC

    x = stem_pool_forward(x, params['stem'])                        # (N, 8, 8, 64)
    x = layer_forward(x, params['layer1'], stride=2)                # (N, 4, 4, 128)
    x = layer_forward(x, params['layer2'], stride=2)                # (N, 2, 2, 256)
    feat = layer_forward(x, params['layer3'], stride=2, pool=True)  # (N, 512)

    head = fc_head_forward(feat, params['fc1'], params['fc2'], params['fc3'])
    out = head.reshape(N, max_boxes, 5)
    confidence = out[..., 0]          # sigmoid already applied in-kernel
    bbox = out[..., 1:]
    return confidence, bbox


if __name__ == "__main__":
    key = jax.random.PRNGKey(0)
    pkey, xkey = jax.random.split(key)

    max_boxes = 4
    params = make_params(pkey, max_boxes=max_boxes)

    # small input consistent with the module: batch=2, 3 channels, 32x32 spatial
    x = jax.random.normal(xkey, (2, 3, 32, 32), jnp.float32)

    fwd = jax.jit(functools.partial(palm_forward, max_boxes=max_boxes))
    confidence, bbox = fwd(params, x)
    jax.block_until_ready((confidence, bbox))

    assert confidence.shape == (2, max_boxes)
    assert bbox.shape == (2, max_boxes, 4)
    assert bool(jnp.all(jnp.isfinite(confidence)))
    assert bool(jnp.all(jnp.isfinite(bbox)))
    assert bool(jnp.all((confidence >= 0.0) & (confidence <= 1.0)))
    print("KERNEL_OK")
</pallas_src>

<mosaic_0001>
module attributes {stable_mosaic.version = 11 : i64} {
  func.func @stem_pool_kernel(%arg0: i32, %arg1: memref<576x147xbf16, #tpu.memory_space<vmem>>, %arg2: memref<147x64xbf16, #tpu.memory_space<vmem>>, %arg3: memref<1x64xf32, #tpu.memory_space<vmem>>, %arg4: memref<64x64xf32, #tpu.memory_space<vmem>>) attributes {dimension_semantics = [#tpu.dimension_semantics<parallel>], iteration_bounds = array<i64: 2>, scalar_prefetch = 0 : i64, scratch_operands = 0 : i64, tpu.core_type = #tpu.core_type<tc>, window_params = [{transform_indices = @transform_0, window_bounds = array<i64: 576, 147>}, {pipeline_mode = #tpu.pipeline_mode<synchronous>, transform_indices = @transform_1, window_bounds = array<i64: 147, 64>}, {pipeline_mode = #tpu.pipeline_mode<synchronous>, transform_indices = @transform_2, window_bounds = array<i64: 1, 64>}, {transform_indices = @transform_3, window_bounds = array<i64: 64, 64>}]} {
    %c0 = arith.constant 0 : index
    %c0_0 = arith.constant 0 : index
    %0 = vector.load %arg2[%c0, %c0_0] : memref<147x64xbf16, #tpu.memory_space<vmem>>, vector<147x64xbf16>
    %c0_1 = arith.constant 0 : index
    %c0_2 = arith.constant 0 : index
    %1 = vector.load %arg3[%c0_1, %c0_2] : memref<1x64xf32, #tpu.memory_space<vmem>>, vector<1x64xf32>
    %c0_3 = arith.constant 0 : index
    %c0_4 = arith.constant 0 : index
    %2 = vector.load %arg1[%c0_3, %c0_4] : memref<576x147xbf16, #tpu.memory_space<vmem>>, vector<64x147xbf16>
    %cst = arith.constant dense<0.000000e+00> : vector<64x64xf32>
    %3 = tpu.matmul %2, %0, %cst {dimension_numbers = #tpu.dot_dimension_numbers<[1], [0], [0], [1], [0, 0, 1, 1], [], []>} : vector<64x147xbf16>, vector<147x64xbf16>, vector<64x64xf32> -> vector<64x64xf32>
    %4 = vector.broadcast %1 : vector<1x64xf32> to vector<64x64xf32>
    %5 = arith.addf %3, %4 : vector<64x64xf32>
    %cst_5 = arith.constant 0.000000e+00 : f32
    %6 = vector.broadcast %cst_5 : f32 to vector<64x64xf32>
    %7 = arith.maximumf %5, %6 : vector<64x64xf32>
    %c64 = arith.constant 64 : index
    %c0_6 = arith.constant 0 : index
    %8 = vector.load %arg1[%c64, %c0_6] : memref<576x147xbf16, #tpu.memory_space<vmem>>, vector<64x147xbf16>
    %cst_7 = arith.constant dense<0.000000e+00> : vector<64x64xf32>
    %9 = tpu.matmul %8, %0, %cst_7 {dimension_numbers = #tpu.dot_dimension_numbers<[1], [0], [0], [1], [0, 0, 1, 1], [], []>} : vector<64x147xbf16>, vector<147x64xbf16>, vector<64x64xf32> -> vector<64x64xf32>
    %10 = vector.broadcast %1 : vector<1x64xf32> to vector<64x64xf32>
    %11 = arith.addf %9, %10 : vector<64x64xf32>
    %cst_8 = arith.constant 0.000000e+00 : f32
    %12 = vector.broadcast %cst_8 : f32 to vector<64x64xf32>
    %13 = arith.maximumf %11, %12 : vector<64x64xf32>
    %14 = arith.maximumf %7, %13 : vector<64x64xf32>
    %c128 = arith.constant 128 : index
    %c0_9 = arith.constant 0 : index
    %15 = vector.load %arg1[%c128, %c0_9] : memref<576x147xbf16, #tpu.memory_space<vmem>>, vector<64x147xbf16>
    %cst_10 = arith.constant dense<0.000000e+00> : vector<64x64xf32>
    %16 = tpu.matmul %15, %0, %cst_10 {dimension_numbers = #tpu.dot_dimension_numbers<[1], [0], [0], [1], [0, 0, 1, 1], [], []>} : vector<64x147xbf16>, vector<147x64xbf16>, vector<64x64xf32> -> vector<64x64xf32>
    %17 = vector.broadcast %1 : vector<1x64xf32> to vector<64x64xf32>
    %18 = arith.addf %16, %17 : vector<64x64xf32>
    %cst_11 = arith.constant 0.000000e+00 : f32
    %19 = vector.broadcast %cst_11 : f32 to vector<64x64xf32>
    %20 = arith.maximumf %18, %19 : vector<64x64xf32>
    %21 = arith.maximumf %14, %20 : vector<64x64xf32>
    %c192 = arith.constant 192 : index
    %c0_12 = arith.constant 0 : index
    %22 = vector.load %arg1[%c192, %c0_12] : memref<576x147xbf16, #tpu.memory_space<vmem>>, vector<64x147xbf16>
    %cst_13 = arith.constant dense<0.000000e+00> : vector<64x64xf32>
    %23 = tpu.matmul %22, %0, %cst_13 {dimension_numbers = #tpu.dot_dimension_numbers<[1], [0], [0], [1], [0, 0, 1, 1], [], []>} : vector<64x147xbf16>, vector<147x64xbf16>, vector<64x64xf32> -> vector<64x64xf32>
    %24 = vector.broadcast %1 : vector<1x64xf32> to vector<64x64xf32>
    %25 = arith.addf %23, %24 : vector<64x64xf32>
    %cst_14 = arith.constant 0.000000e+00 : f32
    %26 = vector.broadcast %cst_14 : f32 to vector<64x64xf32>
    %27 = arith.maximumf %25, %26 : vector<64x64xf32>
    %28 = arith.maximumf %21, %27 : vector<64x64xf32>
    %c256 = arith.constant 256 : index
    %c0_15 = arith.constant 0 : index
    %29 = vector.load %arg1[%c256, %c0_15] : memref<576x147xbf16, #tpu.memory_space<vmem>>, vector<64x147xbf16>
    %cst_16 = arith.constant dense<0.000000e+00> : vector<64x64xf32>
    %30 = tpu.matmul %29, %0, %cst_16 {dimension_numbers = #tpu.dot_dimension_numbers<[1], [0], [0], [1], [0, 0, 1, 1], [], []>} : vector<64x147xbf16>, vector<147x64xbf16>, vector<64x64xf32> -> vector<64x64xf32>
    %31 = vector.broadcast %1 : vector<1x64xf32> to vector<64x64xf32>
    %32 = arith.addf %30, %31 : vector<64x64xf32>
    %cst_17 = arith.constant 0.000000e+00 : f32
    %33 = vector.broadcast %cst_17 : f32 to vector<64x64xf32>
    %34 = arith.maximumf %32, %33 : vector<64x64xf32>
    %35 = arith.maximumf %28, %34 : vector<64x64xf32>
    %c320 = arith.constant 320 : index
    %c0_18 = arith.constant 0 : index
    %36 = vector.load %arg1[%c320, %c0_18] : memref<576x147xbf16, #tpu.memory_space<vmem>>, vector<64x147xbf16>
    %cst_19 = arith.constant dense<0.000000e+00> : vector<64x64xf32>
    %37 = tpu.matmul %36, %0, %cst_19 {dimension_numbers = #tpu.dot_dimension_numbers<[1], [0], [0], [1], [0, 0, 1, 1], [], []>} : vector<64x147xbf16>, vector<147x64xbf16>, vector<64x64xf32> -> vector<64x64xf32>
    %38 = vector.broadcast %1 : vector<1x64xf32> to vector<64x64xf32>
    %39 = arith.addf %37, %38 : vector<64x64xf32>
    %cst_20 = arith.constant 0.000000e+00 : f32
    %40 = vector.broadcast %cst_20 : f32 to vector<64x64xf32>
    %41 = arith.maximumf %39, %40 : vector<64x64xf32>
    %42 = arith.maximumf %35, %41 : vector<64x64xf32>
    %c384 = arith.constant 384 : index
    %c0_21 = arith.constant 0 : index
    %43 = vector.load %arg1[%c384, %c0_21] : memref<576x147xbf16, #tpu.memory_space<vmem>>, vector<64x147xbf16>
    %cst_22 = arith.constant dense<0.000000e+00> : vector<64x64xf32>
    %44 = tpu.matmul %43, %0, %cst_22 {dimension_numbers = #tpu.dot_dimension_numbers<[1], [0], [0], [1], [0, 0, 1, 1], [], []>} : vector<64x147xbf16>, vector<147x64xbf16>, vector<64x64xf32> -> vector<64x64xf32>
    %45 = vector.broadcast %1 : vector<1x64xf32> to vector<64x64xf32>
    %46 = arith.addf %44, %45 : vector<64x64xf32>
    %cst_23 = arith.constant 0.000000e+00 : f32
    %47 = vector.broadcast %cst_23 : f32 to vector<64x64xf32>
    %48 = arith.maximumf %46, %47 : vector<64x64xf32>
    %49 = arith.maximumf %42, %48 : vector<64x64xf32>
    %c448 = arith.constant 448 : index
    %c0_24 = arith.constant 0 : index
    %50 = vector.load %arg1[%c448, %c0_24] : memref<576x147xbf16, #tpu.memory_space<vmem>>, vector<64x147xbf16>
    %cst_25 = arith.constant dense<0.000000e+00> : vector<64x64xf32>
    %51 = tpu.matmul %50, %0, %cst_25 {dimension_numbers = #tpu.dot_dimension_numbers<[1], [0], [0], [1], [0, 0, 1, 1], [], []>} : vector<64x147xbf16>, vector<147x64xbf16>, vector<64x64xf32> -> vector<64x64xf32>
    %52 = vector.broadcast %1 : vector<1x64xf32> to vector<64x64xf32>
    %53 = arith.addf %51, %52 : vector<64x64xf32>
    %cst_26 = arith.constant 0.000000e+00 : f32
    %54 = vector.broadcast %cst_26 : f32 to vector<64x64xf32>
    %55 = arith.maximumf %53, %54 : vector<64x64xf32>
    %56 = arith.maximumf %49, %55 : vector<64x64xf32>
    %c512 = arith.constant 512 : index
    %c0_27 = arith.constant 0 : index
    %57 = vector.load %arg1[%c512, %c0_27] : memref<576x147xbf16, #tpu.memory_space<vmem>>, vector<64x147xbf16>
    %cst_28 = arith.constant dense<0.000000e+00> : vector<64x64xf32>
    %58 = tpu.matmul %57, %0, %cst_28 {dimension_numbers = #tpu.dot_dimension_numbers<[1], [0], [0], [1], [0, 0, 1, 1], [], []>} : vector<64x147xbf16>, vector<147x64xbf16>, vector<64x64xf32> -> vector<64x64xf32>
    %59 = vector.broadcast %1 : vector<1x64xf32> to vector<64x64xf32>
    %60 = arith.addf %58, %59 : vector<64x64xf32>
    %cst_29 = arith.constant 0.000000e+00 : f32
    %61 = vector.broadcast %cst_29 : f32 to vector<64x64xf32>
    %62 = arith.maximumf %60, %61 : vector<64x64xf32>
    %63 = arith.maximumf %56, %62 : vector<64x64xf32>
    %c0_30 = arith.constant 0 : index
    %c0_31 = arith.constant 0 : index
    %64 = vector.load %arg4[%c0_30, %c0_31] : memref<64x64xf32, #tpu.memory_space<vmem>>, vector<64x64xf32>
    tpu.vector_store %arg4[%c0_30, %c0_31], %63 {strides = array<i32>} : memref<64x64xf32, #tpu.memory_space<vmem>>, vector<64x64xf32>,
    return
  }
  func.func @transform_0(%arg0: i32) -> (i32, i32) {
    %c0_i32 = arith.constant 0 : i32
    %c0_i32_0 = arith.constant 0 : i32
    return %arg0, %c0_i32 : i32, i32
  }
  func.func @transform_1(%arg0: i32) -> (i32, i32) {
    %c0_i32 = arith.constant 0 : i32
    %c0_i32_0 = arith.constant 0 : i32
    %c0_i32_1 = arith.constant 0 : i32
    return %c0_i32, %c0_i32_0 : i32, i32
  }
  func.func @transform_2(%arg0: i32) -> (i32, i32) {
    %c0_i32 = arith.constant 0 : i32
    %c0_i32_0 = arith.constant 0 : i32
    %c0_i32_1 = arith.constant 0 : i32
    return %c0_i32, %c0_i32_0 : i32, i32
  }
  func.func @transform_3(%arg0: i32) -> (i32, i32) {
    %c0_i32 = arith.constant 0 : i32
    %c0_i32_0 = arith.constant 0 : i32
    return %arg0, %c0_i32 : i32, i32
  }
}

module attributes {stable_mosaic.version = 11 : i64} {
  func.func @layer_kernel(%arg0: i32, %arg1: memref<32x576xbf16, #tpu.memory_space<vmem>>, %arg2: memref<576x128xbf16, #tpu.memory_space<vmem>>, %arg3: memref<1x128xf32, #tpu.memory_space<vmem>>, %arg4: memref<9x128x128xbf16, #tpu.memory_space<vmem>>, %arg5: memref<1x128xf32, #tpu.memory_space<vmem>>, %arg6: memref<9x32x1xbf16, #tpu.memory_space<vmem>>, %arg7: memref<32x128xf32, #tpu.memory_space<vmem>>, %arg8: memref<48x128xbf16, #tpu.memory_space<vmem>>) attributes {dimension_semantics = [#tpu.dimension_semantics<arbitrary>], iteration_bounds = array<i64: 1>, scalar_prefetch = 0 : i64, scratch_operands = 1 : i64, tpu.core_type = #tpu.core_type<tc>, window_params = [{pipeline_mode = #tpu.pipeline_mode<synchronous>, transform_indices = @transform_0, window_bounds = array<i64: 32, 576>}, {pipeline_mode = #tpu.pipeline_mode<synchronous>, transform_indices = @transform_1, window_bounds = array<i64: 576, 128>}, {pipeline_mode = #tpu.pipeline_mode<synchronous>, transform_indices = @transform_2, window_bounds = array<i64: 1, 128>}, {pipeline_mode = #tpu.pipeline_mode<synchronous>, transform_indices = @transform_3, window_bounds = array<i64: 9, 128, 128>}, {pipeline_mode = #tpu.pipeline_mode<synchronous>, transform_indices = @transform_4, window_bounds = array<i64: 1, 128>}, {pipeline_mode = #tpu.pipeline_mode<synchronous>, transform_indices = @transform_5, window_bounds = array<i64: 9, 32, 1>}, {pipeline_mode = #tpu.pipeline_mode<synchronous>, transform_indices = @transform_6, window_bounds = array<i64: 32, 128>}]} {
    %c0 = arith.constant 0 : index
    %c0_0 = arith.constant 0 : index
    %0 = vector.load %arg1[%c0, %c0_0] : memref<32x576xbf16, #tpu.memory_space<vmem>>, vector<32x576xbf16>
    %c0_1 = arith.constant 0 : index
    %c0_2 = arith.constant 0 : index
    %1 = vector.load %arg2[%c0_1, %c0_2] : memref<576x128xbf16, #tpu.memory_space<vmem>>, vector<576x128xbf16>
    %cst = arith.constant dense<0.000000e+00> : vector<32x128xf32>
    %2 = tpu.matmul %0, %1, %cst {dimension_numbers = #tpu.dot_dimension_numbers<[1], [0], [0], [1], [0, 0, 1, 1], [], []>} : vector<32x576xbf16>, vector<576x128xbf16>, vector<32x128xf32> -> vector<32x128xf32>
    %c0_3 = arith.constant 0 : index
    %c0_4 = arith.constant 0 : index
    %3 = vector.load %arg3[%c0_3, %c0_4] : memref<1x128xf32, #tpu.memory_space<vmem>>, vector<1x128xf32>
    %4 = vector.broadcast %3 : vector<1x128xf32> to vector<32x128xf32>
    %5 = arith.addf %2, %4 : vector<32x128xf32>
    %cst_5 = arith.constant 0.000000e+00 : f32
    %6 = vector.broadcast %cst_5 : f32 to vector<32x128xf32>
    %7 = arith.maximumf %5, %6 : vector<32x128xf32>
    %cst_6 = arith.constant 0.000000e+00 : bf16
    %8 = vector.broadcast %cst_6 : bf16 to vector<48x128xbf16>
    %c0_7 = arith.constant 0 : index
    %c0_8 = arith.constant 0 : index
    %9 = vector.load %arg8[%c0_7, %c0_8] : memref<48x128xbf16, #tpu.memory_space<vmem>>, vector<48x128xbf16>
    tpu.vector_store %arg8[%c0_7, %c0_8], %8 {strides = array<i32>} : memref<48x128xbf16, #tpu.memory_space<vmem>>, vector<48x128xbf16>,
    %10 = arith.truncf %7 : vector<32x128xf32> to vector<32x128xbf16>
    %c8 = arith.constant 8 : index
    %c0_9 = arith.constant 0 : index
    %11 = vector.load %arg8[%c8, %c0_9] : memref<48x128xbf16, #tpu.memory_space<vmem>>, vector<32x128xbf16>
    tpu.vector_store %arg8[%c8, %c0_9], %10 {strides = array<i32>} : memref<48x128xbf16, #tpu.memory_space<vmem>>, vector<32x128xbf16>,
    %cst_10 = arith.constant 0.000000e+00 : f32
    %12 = vector.broadcast %cst_10 : f32 to vector<32x128xf32>
    %c3 = arith.constant 3 : index
    %c0_11 = arith.constant 0 : index
    %13 = vector.load %arg8[%c3, %c0_11] : memref<48x128xbf16, #tpu.memory_space<vmem>>, vector<32x128xbf16>
    %c0_12 = arith.constant 0 : index
    %c0_13 = arith.constant 0 : index
    %c0_14 = arith.constant 0 : index
    %14 = vector.load %arg6[%c0_12, %c0_13, %c0_14] : memref<9x32x1xbf16, #tpu.memory_space<vmem>>, vector<1x32x1xbf16>
    %15 = vector.shape_cast %14 : vector<1x32x1xbf16> to vector<32x1xbf16>
    %16 = vector.broadcast %15 : vector<32x1xbf16> to vector<32x128xbf16>
    %17 = arith.mulf %13, %16 : vector<32x128xbf16>
    %c0_15 = arith.constant 0 : index
    %c0_16 = arith.constant 0 : index
    %c0_17 = arith.constant 0 : index
    %18 = vector.load %arg4[%c0_15, %c0_16, %c0_17] : memref<9x128x128xbf16, #tpu.memory_space<vmem>>, vector<1x128x128xbf16>
    %19 = vector.shape_cast %18 : vector<1x128x128xbf16> to vector<128x128xbf16>
    %cst_18 = arith.constant dense<0.000000e+00> : vector<32x128xf32>
    %20 = tpu.matmul %17, %19, %cst_18 {dimension_numbers = #tpu.dot_dimension_numbers<[1], [0], [0], [1], [0, 0, 1, 1], [], []>} : vector<32x128xbf16>, vector<128x128xbf16>, vector<32x128xf32> -> vector<32x128xf32>
    %21 = arith.addf %12, %20 : vector<32x128xf32>
    %c4 = arith.constant 4 : index
    %c0_19 = arith.constant 0 : index
    %22 = vector.load %arg8[%c4, %c0_19] : memref<48x128xbf16, #tpu.memory_space<vmem>>, vector<32x128xbf16>
    %c1 = arith.constant 1 : index
    %c0_20 = arith.constant 0 : index
    %c0_21 = arith.constant 0 : index
    %23 = vector.load %arg6[%c1, %c0_20, %c0_21] : memref<9x32x1xbf16, #tpu.memory_space<vmem>>, vector<1x32x1xbf16>
    %24 = vector.shape_cast %23 : vector<1x32x1xbf16> to vector<32x1xbf16>
    %25 = vector.broadcast %24 : vector<32x1xbf16> to vector<32x128xbf16>
    %26 = arith.mulf %22, %25 : vector<32x128xbf16>
    %c1_22 = arith.constant 1 : index
    %c0_23 = arith.constant 0 : index
    %c0_24 = arith.constant 0 : index
    %27 = vector.load %arg4[%c1_22, %c0_23, %c0_24] : memref<9x128x128xbf16, #tpu.memory_space<vmem>>, vector<1x128x128xbf16>
    %28 = vector.shape_cast %27 : vector<1x128x128xbf16> to vector<128x128xbf16>
    %cst_25 = arith.constant dense<0.000000e+00> : vector<32x128xf32>
    %29 = tpu.matmul %26, %28, %cst_25 {dimension_numbers = #tpu.dot_dimension_numbers<[1], [0], [0], [1], [0, 0, 1, 1], [], []>} : vector<32x128xbf16>, vector<128x128xbf16>, vector<32x128xf32> -> vector<32x128xf32>
    %30 = arith.addf %21, %29 : vector<32x128xf32>
    %c5 = arith.constant 5 : index
    %c0_26 = arith.constant 0 : index
    %31 = vector.load %arg8[%c5, %c0_26] : memref<48x128xbf16, #tpu.memory_space<vmem>>, vector<32x128xbf16>
    %c2 = arith.constant 2 : index
    %c0_27 = arith.constant 0 : index
    %c0_28 = arith.constant 0 : index
    %32 = vector.load %arg6[%c2, %c0_27, %c0_28] : memref<9x32x1xbf16, #tpu.memory_space<vmem>>, vector<1x32x1xbf16>
    %33 = vector.shape_cast %32 : vector<1x32x1xbf16> to vector<32x1xbf16>
    %34 = vector.broadcast %33 : vector<32x1xbf16> to vector<32x128xbf16>
    %35 = arith.mulf %31, %34 : vector<32x128xbf16>
    %c2_29 = arith.constant 2 : index
    %c0_30 = arith.constant 0 : index
    %c0_31 = arith.constant 0 : index
    %36 = vector.load %arg4[%c2_29, %c0_30, %c0_31] : memref<9x128x128xbf16, #tpu.memory_space<vmem>>, vector<1x128x128xbf16>
    %37 = vector.shape_cast %36 : vector<1x128x128xbf16> to vector<128x128xbf16>
    %cst_32 = arith.constant dense<0.000000e+00> : vector<32x128xf32>
    %38 = tpu.matmul %35, %37, %cst_32 {dimension_numbers = #tpu.dot_dimension_numbers<[1], [0], [0], [1], [0, 0, 1, 1], [], []>} : vector<32x128xbf16>, vector<128x128xbf16>, vector<32x128xf32> -> vector<32x128xf32>
    %39 = arith.addf %30, %38 : vector<32x128xf32>
    %c7 = arith.constant 7 : index
    %c0_33 = arith.constant 0 : index
    %40 = vector.load %arg8[%c7, %c0_33] : memref<48x128xbf16, #tpu.memory_space<vmem>>, vector<32x128xbf16>
    %c3_34 = arith.constant 3 : index
    %c0_35 = arith.constant 0 : index
    %c0_36 = arith.constant 0 : index
    %41 = vector.load %arg6[%c3_34, %c0_35, %c0_36] : memref<9x32x1xbf16, #tpu.memory_space<vmem>>, vector<1x32x1xbf16>
    %42 = vector.shape_cast %41 : vector<1x32x1xbf16> to vector<32x1xbf16>
    %43 = vector.broadcast %42 : vector<32x1xbf16> to vector<32x128xbf16>
    %44 = arith.mulf %40, %43 : vector<32x128xbf16>
    %c3_37 = arith.constant 3 : index
    %c0_38 = arith.constant 0 : index
    %c0_39 = arith.constant 0 : index
    %45 = vector.load %arg4[%c3_37, %c0_38, %c0_39] : memref<9x128x128xbf16, #tpu.memory_space<vmem>>, vector<1x128x128xbf16>
    %46 = vector.shape_cast %45 : vector<1x128x128xbf16> to vector<128x128xbf16>
    %cst_40 = arith.constant dense<0.000000e+00> : vector<32x128xf32>
    %47 = tpu.matmul %44, %46, %cst_40 {dimension_numbers = #tpu.dot_dimension_numbers<[1], [0], [0], [1], [0, 0, 1, 1], [], []>} : vector<32x128xbf16>, vector<128x128xbf16>, vector<32x128xf32> -> vector<32x128xf32>
    %48 = arith.addf %39, %47 : vector<32x128xf32>
    %c8_41 = arith.constant 8 : index
    %c0_42 = arith.constant 0 : index
    %49 = vector.load %arg8[%c8_41, %c0_42] : memref<48x128xbf16, #tpu.memory_space<vmem>>, vector<32x128xbf16>
    %c4_43 = arith.constant 4 : index
    %c0_44 = arith.constant 0 : index
    %c0_45 = arith.constant 0 : index
    %50 = vector.load %arg4[%c4_43, %c0_44, %c0_45] : memref<9x128x128xbf16, #tpu.memory_space<vmem>>, vector<1x128x128xbf16>
    %51 = vector.shape_cast %50 : vector<1x128x128xbf16> to vector<128x128xbf16>
    %cst_46 = arith.constant dense<0.000000e+00> : vector<32x128xf32>
    %52 = tpu.matmul %49, %51, %cst_46 {dimension_numbers = #tpu.dot_dimension_numbers<[1], [0], [0], [1], [0, 0, 1, 1], [], []>} : vector<32x128xbf16>, vector<128x128xbf16>, vector<32x128xf32> -> vector<32x128xf32>
    %53 = arith.addf %48, %52 : vector<32x128xf32>
    %c9 = arith.constant 9 : index
    %c0_47 = arith.constant 0 : index
    %54 = vector.load %arg8[%c9, %c0_47] : memref<48x128xbf16, #tpu.memory_space<vmem>>, vector<32x128xbf16>
    %c5_48 = arith.constant 5 : index
    %c0_49 = arith.constant 0 : index
    %c0_50 = arith.constant 0 : index
    %55 = vector.load %arg6[%c5_48, %c0_49, %c0_50] : memref<9x32x1xbf16, #tpu.memory_space<vmem>>, vector<1x32x1xbf16>
    %56 = vector.shape_cast %55 : vector<1x32x1xbf16> to vector<32x1xbf16>
    %57 = vector.broadcast %56 : vector<32x1xbf16> to vector<32x128xbf16>
    %58 = arith.mulf %54, %57 : vector<32x128xbf16>
    %c5_51 = arith.constant 5 : index
    %c0_52 = arith.constant 0 : index
    %c0_53 = arith.constant 0 : index
    %59 = vector.load %arg4[%c5_51, %c0_52, %c0_53] : memref<9x128x128xbf16, #tpu.memory_space<vmem>>, vector<1x128x128xbf16>
    %60 = vector.shape_cast %59 : vector<1x128x128xbf16> to vector<128x128xbf16>
    %cst_54 = arith.constant dense<0.000000e+00> : vector<32x128xf32>
    %61 = tpu.matmul %58, %60, %cst_54 {dimension_numbers = #tpu.dot_dimension_numbers<[1], [0], [0], [1], [0, 0, 1, 1], [], []>} : vector<32x128xbf16>, vector<128x128xbf16>, vector<32x128xf32> -> vector<32x128xf32>
    %62 = arith.addf %53, %61 : vector<32x128xf32>
    %c11 = arith.constant 11 : index
    %c0_55 = arith.constant 0 : index
    %63 = vector.load %arg8[%c11, %c0_55] : memref<48x128xbf16, #tpu.memory_space<vmem>>, vector<32x128xbf16>
    %c6 = arith.constant 6 : index
    %c0_56 = arith.constant 0 : index
    %c0_57 = arith.constant 0 : index
    %64 = vector.load %arg6[%c6, %c0_56, %c0_57] : memref<9x32x1xbf16, #tpu.memory_space<vmem>>, vector<1x32x1xbf16>
    %65 = vector.shape_cast %64 : vector<1x32x1xbf16> to vector<32x1xbf16>
    %66 = vector.broadcast %65 : vector<32x1xbf16> to vector<32x128xbf16>
    %67 = arith.mulf %63, %66 : vector<32x128xbf16>
    %c6_58 = arith.constant 6 : index
    %c0_59 = arith.constant 0 : index
    %c0_60 = arith.constant 0 : index
    %68 = vector.load %arg4[%c6_58, %c0_59, %c0_60] : memref<9x128x128xbf16, #tpu.memory_space<vmem>>, vector<1x128x128xbf16>
    %69 = vector.shape_cast %68 : vector<1x128x128xbf16> to vector<128x128xbf16>
    %cst_61 = arith.constant dense<0.000000e+00> : vector<32x128xf32>
    %70 = tpu.matmul %67, %69, %cst_61 {dimension_numbers = #tpu.dot_dimension_numbers<[1], [0], [0], [1], [0, 0, 1, 1], [], []>} : vector<32x128xbf16>, vector<128x128xbf16>, vector<32x128xf32> -> vector<32x128xf32>
    %71 = arith.addf %62, %70 : vector<32x128xf32>
    %c12 = arith.constant 12 : index
    %c0_62 = arith.constant 0 : index
    %72 = vector.load %arg8[%c12, %c0_62] : memref<48x128xbf16, #tpu.memory_space<vmem>>, vector<32x128xbf16>
    %c7_63 = arith.constant 7 : index
    %c0_64 = arith.constant 0 : index
    %c0_65 = arith.constant 0 : index
    %73 = vector.load %arg6[%c7_63, %c0_64, %c0_65] : memref<9x32x1xbf16, #tpu.memory_space<vmem>>, vector<1x32x1xbf16>
    %74 = vector.shape_cast %73 : vector<1x32x1xbf16> to vector<32x1xbf16>
    %75 = vector.broadcast %74 : vector<32x1xbf16> to vector<32x128xbf16>
    %76 = arith.mulf %72, %75 : vector<32x128xbf16>
    %c7_66 = arith.constant 7 : index
    %c0_67 = arith.constant 0 : index
    %c0_68 = arith.constant 0 : index
    %77 = vector.load %arg4[%c7_66, %c0_67, %c0_68] : memref<9x128x128xbf16, #tpu.memory_space<vmem>>, vector<1x128x128xbf16>
    %78 = vector.shape_cast %77 : vector<1x128x128xbf16> to vector<128x128xbf16>
    %cst_69 = arith.constant dense<0.000000e+00> : vector<32x128xf32>
    %79 = tpu.matmul %76, %78, %cst_69 {dimension_numbers = #tpu.dot_dimension_numbers<[1], [0], [0], [1], [0, 0, 1, 1], [], []>} : vector<32x128xbf16>, vector<128x128xbf16>, vector<32x128xf32> -> vector<32x128xf32>
    %80 = arith.addf %71, %79 : vector<32x128xf32>
    %c13 = arith.constant 13 : index
    %c0_70 = arith.constant 0 : index
    %81 = vector.load %arg8[%c13, %c0_70] : memref<48x128xbf16, #tpu.memory_space<vmem>>, vector<32x128xbf16>
    %c8_71 = arith.constant 8 : index
    %c0_72 = arith.constant 0 : index
    %c0_73 = arith.constant 0 : index
    %82 = vector.load %arg6[%c8_71, %c0_72, %c0_73] : memref<9x32x1xbf16, #tpu.memory_space<vmem>>, vector<1x32x1xbf16>
    %83 = vector.shape_cast %82 : vector<1x32x1xbf16> to vector<32x1xbf16>
    %84 = vector.broadcast %83 : vector<32x1xbf16> to vector<32x128xbf16>
    %85 = arith.mulf %81, %84 : vector<32x128xbf16>
    %c8_74 = arith.constant 8 : index
    %c0_75 = arith.constant 0 : index
    %c0_76 = arith.constant 0 : index
    %86 = vector.load %arg4[%c8_74, %c0_75, %c0_76] : memref<9x128x128xbf16, #tpu.memory_space<vmem>>, vector<1x128x128xbf16>
    %87 = vector.shape_cast %86 : vector<1x128x128xbf16> to vector<128x128xbf16>
    %cst_77 = arith.constant dense<0.000000e+00> : vector<32x128xf32>
    %88 = tpu.matmul %85, %87, %cst_77 {dimension_numbers = #tpu.dot_dimension_numbers<[1], [0], [0], [1], [0, 0, 1, 1], [], []>} : vector<32x128xbf16>, vector<128x128xbf16>, vector<32x128xf32> -> vector<32x128xf32>
    %89 = arith.addf %80, %88 : vector<32x128xf32>
    %c0_78 = arith.constant 0 : index
    %c0_79 = arith.constant 0 : index
    %90 = vector.load %arg5[%c0_78, %c0_79] : memref<1x128xf32, #tpu.memory_space<vmem>>, vector<1x128xf32>
    %91 = vector.broadcast %90 : vector<1x128xf32> to vector<32x128xf32>
    %92 = arith.addf %89, %91 : vector<32x128xf32>
    %c0_80 = arith.constant 0 : index
    %c0_81 = arith.constant 0 : index
    %93 = vector.load %arg7[%c0_80, %c0_81] : memref<32x128xf32, #tpu.memory_space<vmem>>, vector<32x128xf32>
    tpu.vector_store %arg7[%c0_80, %c0_81], %92 {strides = array<i32>} : memref<32x128xf32, #tpu.memory_space<vmem>>, vector<32x128xf32>,
    return
  }
  func.func @transform_0(%arg0: i32) -> (i32, i32) {
    %c0_i32 = arith.constant 0 : i32
    %c0_i32_0 = arith.constant 0 : i32
    %c0_i32_1 = arith.constant 0 : i32
    return %c0_i32, %c0_i32_0 : i32, i32
  }
  func.func @transform_1(%arg0: i32) -> (i32, i32) {
    %c0_i32 = arith.constant 0 : i32
    %c0_i32_0 = arith.constant 0 : i32
    %c0_i32_1 = arith.constant 0 : i32
    return %c0_i32, %c0_i32_0 : i32, i32
  }
  func.func @transform_2(%arg0: i32) -> (i32, i32) {
    %c0_i32 = arith.constant 0 : i32
    %c0_i32_0 = arith.constant 0 : i32
    %c0_i32_1 = arith.constant 0 : i32
    return %c0_i32, %c0_i32_0 : i32, i32
  }
  func.func @transform_3(%arg0: i32) -> (i32, i32, i32) {
    %c0_i32 = arith.constant 0 : i32
    %c0_i32_0 = arith.constant 0 : i32
    %c0_i32_1 = arith.constant 0 : i32
    %c0_i32_2 = arith.constant 0 : i32
    return %c0_i32, %c0_i32_0, %c0_i32_1 : i32, i32, i32
  }
  func.func @transform_4(%arg0: i32) -> (i32, i32) {
    %c0_i32 = arith.constant 0 : i32
    %c0_i32_0 = arith.constant 0 : i32
    %c0_i32_1 = arith.constant 0 : i32
    return %c0_i32, %c0_i32_0 : i32, i32
  }
  func.func @transform_5(%arg0: i32) -> (i32, i32, i32) {
    %c0_i32 = arith.constant 0 : i32
    %c0_i32_0 = arith.constant 0 : i32
    %c0_i32_1 = arith.constant 0 : i32
    %c0_i32_2 = arith.constant 0 : i32
    return %c0_i32, %c0_i32_0, %c0_i32_1 : i32, i32, i32
  }
  func.func @transform_6(%arg0: i32) -> (i32, i32) {
    %c0_i32 = arith.constant 0 : i32
    %c0_i32_0 = arith.constant 0 : i32
    %c0_i32_1 = arith.constant 0 : i32
    return %c0_i32, %c0_i32_0 : i32, i32
  }
}

module attributes {stable_mosaic.version = 11 : i64} {
  func.func @layer_kernel(%arg0: i32, %arg1: memref<8x1152xbf16, #tpu.memory_space<vmem>>, %arg2: memref<1152x256xbf16, #tpu.memory_space<vmem>>, %arg3: memref<1x256xf32, #tpu.memory_space<vmem>>, %arg4: memref<9x256x256xbf16, #tpu.memory_space<vmem>>, %arg5: memref<1x256xf32, #tpu.memory_space<vmem>>, %arg6: memref<9x8x1xbf16, #tpu.memory_space<vmem>>, %arg7: memref<8x256xf32, #tpu.memory_space<vmem>>, %arg8: memref<24x256xbf16, #tpu.memory_space<vmem>>) attributes {dimension_semantics = [#tpu.dimension_semantics<arbitrary>], iteration_bounds = array<i64: 1>, scalar_prefetch = 0 : i64, scratch_operands = 1 : i64, tpu.core_type = #tpu.core_type<tc>, window_params = [{pipeline_mode = #tpu.pipeline_mode<synchronous>, transform_indices = @transform_0, window_bounds = array<i64: 8, 1152>}, {pipeline_mode = #tpu.pipeline_mode<synchronous>, transform_indices = @transform_1, window_bounds = array<i64: 1152, 256>}, {pipeline_mode = #tpu.pipeline_mode<synchronous>, transform_indices = @transform_2, window_bounds = array<i64: 1, 256>}, {pipeline_mode = #tpu.pipeline_mode<synchronous>, transform_indices = @transform_3, window_bounds = array<i64: 9, 256, 256>}, {pipeline_mode = #tpu.pipeline_mode<synchronous>, transform_indices = @transform_4, window_bounds = array<i64: 1, 256>}, {pipeline_mode = #tpu.pipeline_mode<synchronous>, transform_indices = @transform_5, window_bounds = array<i64: 9, 8, 1>}, {pipeline_mode = #tpu.pipeline_mode<synchronous>, transform_indices = @transform_6, window_bounds = array<i64: 8, 256>}]} {
    %c0 = arith.constant 0 : index
    %c0_0 = arith.constant 0 : index
    %0 = vector.load %arg1[%c0, %c0_0] : memref<8x1152xbf16, #tpu.memory_space<vmem>>, vector<8x1152xbf16>
    %c0_1 = arith.constant 0 : index
    %c0_2 = arith.constant 0 : index
    %1 = vector.load %arg2[%c0_1, %c0_2] : memref<1152x256xbf16, #tpu.memory_space<vmem>>, vector<1152x256xbf16>
    %cst = arith.constant dense<0.000000e+00> : vector<8x256xf32>
    %2 = tpu.matmul %0, %1, %cst {dimension_numbers = #tpu.dot_dimension_numbers<[1], [0], [0], [1], [0, 0, 1, 1], [], []>} : vector<8x1152xbf16>, vector<1152x256xbf16>, vector<8x256xf32> -> vector<8x256xf32>
    %c0_3 = arith.constant 0 : index
    %c0_4 = arith.constant 0 : index
    %3 = vector.load %arg3[%c0_3, %c0_4] : memref<1x256xf32, #tpu.memory_space<vmem>>, vector<1x256xf32>
    %4 = vector.broadcast %3 : vector<1x256xf32> to vector<8x256xf32>
    %5 = arith.addf %2, %4 : vector<8x256xf32>
    %cst_5 = arith.constant 0.000000e+00 : f32
    %6 = vector.broadcast %cst_5 : f32 to vector<8x256xf32>
    %7 = arith.maximumf %5, %6 : vector<8x256xf32>
    %cst_6 = arith.constant 0.000000e+00 : bf16
    %8 = vector.broadcast %cst_6 : bf16 to vector<24x256xbf16>
    %c0_7 = arith.constant 0 : index
    %c0_8 = arith.constant 0 : index
    %9 = vector.load %arg8[%c0_7, %c0_8] : memref<24x256xbf16, #tpu.memory_space<vmem>>, vector<24x256xbf16>
    tpu.vector_store %arg8[%c0_7, %c0_8], %8 {strides = array<i32>} : memref<24x256xbf16, #tpu.memory_space<vmem>>, vector<24x256xbf16>,
    %10 = arith.truncf %7 : vector<8x256xf32> to vector<8x256xbf16>
    %c8 = arith.constant 8 : index
    %c0_9 = arith.constant 0 : index
    %11 = vector.load %arg8[%c8, %c0_9] : memref<24x256xbf16, #tpu.memory_space<vmem>>, vector<8x256xbf16>
    tpu.vector_store %arg8[%c8, %c0_9], %10 {strides = array<i32>} : memref<24x256xbf16, #tpu.memory_space<vmem>>, vector<8x256xbf16>,
    %cst_10 = arith.constant 0.000000e+00 : f32
    %12 = vector.broadcast %cst_10 : f32 to vector<8x256xf32>
    %c5 = arith.constant 5 : index
    %c0_11 = arith.constant 0 : index
    %13 = vector.load %arg8[%c5, %c0_11] : memref<24x256xbf16, #tpu.memory_space<vmem>>, vector<8x256xbf16>
    %c0_12 = arith.constant 0 : index
    %c0_13 = arith.constant 0 : index
    %c0_14 = arith.constant 0 : index
    %14 = vector.load %arg6[%c0_12, %c0_13, %c0_14] : memref<9x8x1xbf16, #tpu.memory_space<vmem>>, vector<1x8x1xbf16>
    %15 = vector.shape_cast %14 : vector<1x8x1xbf16> to vector<8x1xbf16>
    %16 = vector.broadcast %15 : vector<8x1xbf16> to vector<8x256xbf16>
    %17 = arith.mulf %13, %16 : vector<8x256xbf16>
    %c0_15 = arith.constant 0 : index
    %c0_16 = arith.constant 0 : index
    %c0_17 = arith.constant 0 : index
    %18 = vector.load %arg4[%c0_15, %c0_16, %c0_17] : memref<9x256x256xbf16, #tpu.memory_space<vmem>>, vector<1x256x256xbf16>
    %19 = vector.shape_cast %18 : vector<1x256x256xbf16> to vector<256x256xbf16>
    %cst_18 = arith.constant dense<0.000000e+00> : vector<8x256xf32>
    %20 = tpu.matmul %17, %19, %cst_18 {dimension_numbers = #tpu.dot_dimension_numbers<[1], [0], [0], [1], [0, 0, 1, 1], [], []>} : vector<8x256xbf16>, vector<256x256xbf16>, vector<8x256xf32> -> vector<8x256xf32>
    %21 = arith.addf %12, %20 : vector<8x256xf32>
    %c6 = arith.constant 6 : index
    %c0_19 = arith.constant 0 : index
    %22 = vector.load %arg8[%c6, %c0_19] : memref<24x256xbf16, #tpu.memory_space<vmem>>, vector<8x256xbf16>
    %c1 = arith.constant 1 : index
    %c0_20 = arith.constant 0 : index
    %c0_21 = arith.constant 0 : index
    %23 = vector.load %arg6[%c1, %c0_20, %c0_21] : memref<9x8x1xbf16, #tpu.memory_space<vmem>>, vector<1x8x1xbf16>
    %24 = vector.shape_cast %23 : vector<1x8x1xbf16> to vector<8x1xbf16>
    %25 = vector.broadcast %24 : vector<8x1xbf16> to vector<8x256xbf16>
    %26 = arith.mulf %22, %25 : vector<8x256xbf16>
    %c1_22 = arith.constant 1 : index
    %c0_23 = arith.constant 0 : index
    %c0_24 = arith.constant 0 : index
    %27 = vector.load %arg4[%c1_22, %c0_23, %c0_24] : memref<9x256x256xbf16, #tpu.memory_space<vmem>>, vector<1x256x256xbf16>
    %28 = vector.shape_cast %27 : vector<1x256x256xbf16> to vector<256x256xbf16>
    %cst_25 = arith.constant dense<0.000000e+00> : vector<8x256xf32>
    %29 = tpu.matmul %26, %28, %cst_25 {dimension_numbers = #tpu.dot_dimension_numbers<[1], [0], [0], [1], [0, 0, 1, 1], [], []>} : vector<8x256xbf16>, vector<256x256xbf16>, vector<8x256xf32> -> vector<8x256xf32>
    %30 = arith.addf %21, %29 : vector<8x256xf32>
    %c7 = arith.constant 7 : index
    %c0_26 = arith.constant 0 : index
    %31 = vector.load %arg8[%c7, %c0_26] : memref<24x256xbf16, #tpu.memory_space<vmem>>, vector<8x256xbf16>
    %c2 = arith.constant 2 : index
    %c0_27 = arith.constant 0 : index
    %c0_28 = arith.constant 0 : index
    %32 = vector.load %arg6[%c2, %c0_27, %c0_28] : memref<9x8x1xbf16, #tpu.memory_space<vmem>>, vector<1x8x1xbf16>
    %33 = vector.shape_cast %32 : vector<1x8x1xbf16> to vector<8x1xbf16>
    %34 = vector.broadcast %33 : vector<8x1xbf16> to vector<8x256xbf16>
    %35 = arith.mulf %31, %34 : vector<8x256xbf16>
    %c2_29 = arith.constant 2 : index
    %c0_30 = arith.constant 0 : index
    %c0_31 = arith.constant 0 : index
    %36 = vector.load %arg4[%c2_29, %c0_30, %c0_31] : memref<9x256x256xbf16, #tpu.memory_space<vmem>>, vector<1x256x256xbf16>
    %37 = vector.shape_cast %36 : vector<1x256x256xbf16> to vector<256x256xbf16>
    %cst_32 = arith.constant dense<0.000000e+00> : vector<8x256xf32>
    %38 = tpu.matmul %35, %37, %cst_32 {dimension_numbers = #tpu.dot_dimension_numbers<[1], [0], [0], [1], [0, 0, 1, 1], [], []>} : vector<8x256xbf16>, vector<256x256xbf16>, vector<8x256xf32> -> vector<8x256xf32>
    %39 = arith.addf %30, %38 : vector<8x256xf32>
    %c7_33 = arith.constant 7 : index
    %c0_34 = arith.constant 0 : index
    %40 = vector.load %arg8[%c7_33, %c0_34] : memref<24x256xbf16, #tpu.memory_space<vmem>>, vector<8x256xbf16>
    %c3 = arith.constant 3 : index
    %c0_35 = arith.constant 0 : index
    %c0_36 = arith.constant 0 : index
    %41 = vector.load %arg6[%c3, %c0_35, %c0_36] : memref<9x8x1xbf16, #tpu.memory_space<vmem>>, vector<1x8x1xbf16>
    %42 = vector.shape_cast %41 : vector<1x8x1xbf16> to vector<8x1xbf16>
    %43 = vector.broadcast %42 : vector<8x1xbf16> to vector<8x256xbf16>
    %44 = arith.mulf %40, %43 : vector<8x256xbf16>
    %c3_37 = arith.constant 3 : index
    %c0_38 = arith.constant 0 : index
    %c0_39 = arith.constant 0 : index
    %45 = vector.load %arg4[%c3_37, %c0_38, %c0_39] : memref<9x256x256xbf16, #tpu.memory_space<vmem>>, vector<1x256x256xbf16>
    %46 = vector.shape_cast %45 : vector<1x256x256xbf16> to vector<256x256xbf16>
    %cst_40 = arith.constant dense<0.000000e+00> : vector<8x256xf32>
    %47 = tpu.matmul %44, %46, %cst_40 {dimension_numbers = #tpu.dot_dimension_numbers<[1], [0], [0], [1], [0, 0, 1, 1], [], []>} : vector<8x256xbf16>, vector<256x256xbf16>, vector<8x256xf32> -> vector<8x256xf32>
    %48 = arith.addf %39, %47 : vector<8x256xf32>
    %c8_41 = arith.constant 8 : index
    %c0_42 = arith.constant 0 : index
    %49 = vector.load %arg8[%c8_41, %c0_42] : memref<24x256xbf16, #tpu.memory_space<vmem>>, vector<8x256xbf16>
    %c4 = arith.constant 4 : index
    %c0_43 = arith.constant 0 : index
    %c0_44 = arith.constant 0 : index
    %50 = vector.load %arg4[%c4, %c0_43, %c0_44] : memref<9x256x256xbf16, #tpu.memory_space<vmem>>, vector<1x256x256xbf16>
    %51 = vector.shape_cast %50 : vector<1x256x256xbf16> to vector<256x256xbf16>
    %cst_45 = arith.constant dense<0.000000e+00> : vector<8x256xf32>
    %52 = tpu.matmul %49, %51, %cst_45 {dimension_numbers = #tpu.dot_dimension_numbers<[1], [0], [0], [1], [0, 0, 1, 1], [], []>} : vector<8x256xbf16>, vector<256x256xbf16>, vector<8x256xf32> -> vector<8x256xf32>
    %53 = arith.addf %48, %52 : vector<8x256xf32>
    %c9 = arith.constant 9 : index
    %c0_46 = arith.constant 0 : index
    %54 = vector.load %arg8[%c9, %c0_46] : memref<24x256xbf16, #tpu.memory_space<vmem>>, vector<8x256xbf16>
    %c5_47 = arith.constant 5 : index
    %c0_48 = arith.constant 0 : index
    %c0_49 = arith.constant 0 : index
    %55 = vector.load %arg6[%c5_47, %c0_48, %c0_49] : memref<9x8x1xbf16, #tpu.memory_space<vmem>>, vector<1x8x1xbf16>
    %56 = vector.shape_cast %55 : vector<1x8x1xbf16> to vector<8x1xbf16>
    %57 = vector.broadcast %56 : vector<8x1xbf16> to vector<8x256xbf16>
    %58 = arith.mulf %54, %57 : vector<8x256xbf16>
    %c5_50 = arith.constant 5 : index
    %c0_51 = arith.constant 0 : index
    %c0_52 = arith.constant 0 : index
    %59 = vector.load %arg4[%c5_50, %c0_51, %c0_52] : memref<9x256x256xbf16, #tpu.memory_space<vmem>>, vector<1x256x256xbf16>
    %60 = vector.shape_cast %59 : vector<1x256x256xbf16> to vector<256x256xbf16>
    %cst_53 = arith.constant dense<0.000000e+00> : vector<8x256xf32>
    %61 = tpu.matmul %58, %60, %cst_53 {dimension_numbers = #tpu.dot_dimension_numbers<[1], [0], [0], [1], [0, 0, 1, 1], [], []>} : vector<8x256xbf16>, vector<256x256xbf16>, vector<8x256xf32> -> vector<8x256xf32>
    %62 = arith.addf %53, %61 : vector<8x256xf32>
    %c9_54 = arith.constant 9 : index
    %c0_55 = arith.constant 0 : index
    %63 = vector.load %arg8[%c9_54, %c0_55] : memref<24x256xbf16, #tpu.memory_space<vmem>>, vector<8x256xbf16>
    %c6_56 = arith.constant 6 : index
    %c0_57 = arith.constant 0 : index
    %c0_58 = arith.constant 0 : index
    %64 = vector.load %arg6[%c6_56, %c0_57, %c0_58] : memref<9x8x1xbf16, #tpu.memory_space<vmem>>, vector<1x8x1xbf16>
    %65 = vector.shape_cast %64 : vector<1x8x1xbf16> to vector<8x1xbf16>
    %66 = vector.broadcast %65 : vector<8x1xbf16> to vector<8x256xbf16>
    %67 = arith.mulf %63, %66 : vector<8x256xbf16>
    %c6_59 = arith.constant 6 : index
    %c0_60 = arith.constant 0 : index
    %c0_61 = arith.constant 0 : index
    %68 = vector.load %arg4[%c6_59, %c0_60, %c0_61] : memref<9x256x256xbf16, #tpu.memory_space<vmem>>, vector<1x256x256xbf16>
    %69 = vector.shape_cast %68 : vector<1x256x256xbf16> to vector<256x256xbf16>
    %cst_62 = arith.constant dense<0.000000e+00> : vector<8x256xf32>
    %70 = tpu.matmul %67, %69, %cst_62 {dimension_numbers = #tpu.dot_dimension_numbers<[1], [0], [0], [1], [0, 0, 1, 1], [], []>} : vector<8x256xbf16>, vector<256x256xbf16>, vector<8x256xf32> -> vector<8x256xf32>
    %71 = arith.addf %62, %70 : vector<8x256xf32>
    %c10 = arith.constant 10 : index
    %c0_63 = arith.constant 0 : index
    %72 = vector.load %arg8[%c10, %c0_63] : memref<24x256xbf16, #tpu.memory_space<vmem>>, vector<8x256xbf16>
    %c7_64 = arith.constant 7 : index
    %c0_65 = arith.constant 0 : index
    %c0_66 = arith.constant 0 : index
    %73 = vector.load %arg6[%c7_64, %c0_65, %c0_66] : memref<9x8x1xbf16, #tpu.memory_space<vmem>>, vector<1x8x1xbf16>
    %74 = vector.shape_cast %73 : vector<1x8x1xbf16> to vector<8x1xbf16>
    %75 = vector.broadcast %74 : vector<8x1xbf16> to vector<8x256xbf16>
    %76 = arith.mulf %72, %75 : vector<8x256xbf16>
    %c7_67 = arith.constant 7 : index
    %c0_68 = arith.constant 0 : index
    %c0_69 = arith.constant 0 : index
    %77 = vector.load %arg4[%c7_67, %c0_68, %c0_69] : memref<9x256x256xbf16, #tpu.memory_space<vmem>>, vector<1x256x256xbf16>
    %78 = vector.shape_cast %77 : vector<1x256x256xbf16> to vector<256x256xbf16>
    %cst_70 = arith.constant dense<0.000000e+00> : vector<8x256xf32>
    %79 = tpu.matmul %76, %78, %cst_70 {dimension_numbers = #tpu.dot_dimension_numbers<[1], [0], [0], [1], [0, 0, 1, 1], [], []>} : vector<8x256xbf16>, vector<256x256xbf16>, vector<8x256xf32> -> vector<8x256xf32>
    %80 = arith.addf %71, %79 : vector<8x256xf32>
    %c11 = arith.constant 11 : index
    %c0_71 = arith.constant 0 : index
    %81 = vector.load %arg8[%c11, %c0_71] : memref<24x256xbf16, #tpu.memory_space<vmem>>, vector<8x256xbf16>
    %c8_72 = arith.constant 8 : index
    %c0_73 = arith.constant 0 : index
    %c0_74 = arith.constant 0 : index
    %82 = vector.load %arg6[%c8_72, %c0_73, %c0_74] : memref<9x8x1xbf16, #tpu.memory_space<vmem>>, vector<1x8x1xbf16>
    %83 = vector.shape_cast %82 : vector<1x8x1xbf16> to vector<8x1xbf16>
    %84 = vector.broadcast %83 : vector<8x1xbf16> to vector<8x256xbf16>
    %85 = arith.mulf %81, %84 : vector<8x256xbf16>
    %c8_75 = arith.constant 8 : index
    %c0_76 = arith.constant 0 : index
    %c0_77 = arith.constant 0 : index
    %86 = vector.load %arg4[%c8_75, %c0_76, %c0_77] : memref<9x256x256xbf16, #tpu.memory_space<vmem>>, vector<1x256x256xbf16>
    %87 = vector.shape_cast %86 : vector<1x256x256xbf16> to vector<256x256xbf16>
    %cst_78 = arith.constant dense<0.000000e+00> : vector<8x256xf32>
    %88 = tpu.matmul %85, %87, %cst_78 {dimension_numbers = #tpu.dot_dimension_numbers<[1], [0], [0], [1], [0, 0, 1, 1], [], []>} : vector<8x256xbf16>, vector<256x256xbf16>, vector<8x256xf32> -> vector<8x256xf32>
    %89 = arith.addf %80, %88 : vector<8x256xf32>
    %c0_79 = arith.constant 0 : index
    %c0_80 = arith.constant 0 : index
    %90 = vector.load %arg5[%c0_79, %c0_80] : memref<1x256xf32, #tpu.memory_space<vmem>>, vector<1x256xf32>
    %91 = vector.broadcast %90 : vector<1x256xf32> to vector<8x256xf32>
    %92 = arith.addf %89, %91 : vector<8x256xf32>
    %c0_81 = arith.constant 0 : index
    %c0_82 = arith.constant 0 : index
    %93 = vector.load %arg7[%c0_81, %c0_82] : memref<8x256xf32, #tpu.memory_space<vmem>>, vector<8x256xf32>
    tpu.vector_store %arg7[%c0_81, %c0_82], %92 {strides = array<i32>} : memref<8x256xf32, #tpu.memory_space<vmem>>, vector<8x256xf32>,
    return
  }
  func.func @transform_0(%arg0: i32) -> (i32, i32) {
    %c0_i32 = arith.constant 0 : i32
    %c0_i32_0 = arith.constant 0 : i32
    %c0_i32_1 = arith.constant 0 : i32
    return %c0_i32, %c0_i32_0 : i32, i32
  }
  func.func @transform_1(%arg0: i32) -> (i32, i32) {
    %c0_i32 = arith.constant 0 : i32
    %c0_i32_0 = arith.constant 0 : i32
    %c0_i32_1 = arith.constant 0 : i32
    return %c0_i32, %c0_i32_0 : i32, i32
  }
  func.func @transform_2(%arg0: i32) -> (i32, i32) {
    %c0_i32 = arith.constant 0 : i32
    %c0_i32_0 = arith.constant 0 : i32
    %c0_i32_1 = arith.constant 0 : i32
    return %c0_i32, %c0_i32_0 : i32, i32
  }
  func.func @transform_3(%arg0: i32) -> (i32, i32, i32) {
    %c0_i32 = arith.constant 0 : i32
    %c0_i32_0 = arith.constant 0 : i32
    %c0_i32_1 = arith.constant 0 : i32
    %c0_i32_2 = arith.constant 0 : i32
    return %c0_i32, %c0_i32_0, %c0_i32_1 : i32, i32, i32
  }
  func.func @transform_4(%arg0: i32) -> (i32, i32) {
    %c0_i32 = arith.constant 0 : i32
    %c0_i32_0 = arith.constant 0 : i32
    %c0_i32_1 = arith.constant 0 : i32
    return %c0_i32, %c0_i32_0 : i32, i32
  }
  func.func @transform_5(%arg0: i32) -> (i32, i32, i32) {
    %c0_i32 = arith.constant 0 : i32
    %c0_i32_0 = arith.constant 0 : i32
    %c0_i32_1 = arith.constant 0 : i32
    %c0_i32_2 = arith.constant 0 : i32
    return %c0_i32, %c0_i32_0, %c0_i32_1 : i32, i32, i32
  }
  func.func @transform_6(%arg0: i32) -> (i32, i32) {
    %c0_i32 = arith.constant 0 : i32
    %c0_i32_0 = arith.constant 0 : i32
    %c0_i32_1 = arith.constant 0 : i32
    return %c0_i32, %c0_i32_0 : i32, i32
  }
}

module attributes {stable_mosaic.version = 11 : i64} {
  func.func @layer_kernel(%arg0: i32, %arg1: memref<2x2304xbf16, #tpu.memory_space<vmem>>, %arg2: memref<2304x512xbf16, #tpu.memory_space<vmem>>, %arg3: memref<1x512xf32, #tpu.memory_space<vmem>>, %arg4: memref<9x512x512xbf16, #tpu.memory_space<vmem>>, %arg5: memref<1x512xf32, #tpu.memory_space<vmem>>, %arg6: memref<9x2x1xbf16, #tpu.memory_space<vmem>>, %arg7: memref<2x512xf32, #tpu.memory_space<vmem>>, %arg8: memref<18x512xbf16, #tpu.memory_space<vmem>>) attributes {dimension_semantics = [#tpu.dimension_semantics<arbitrary>], iteration_bounds = array<i64: 1>, scalar_prefetch = 0 : i64, scratch_operands = 1 : i64, tpu.core_type = #tpu.core_type<tc>, window_params = [{pipeline_mode = #tpu.pipeline_mode<synchronous>, transform_indices = @transform_0, window_bounds = array<i64: 2, 2304>}, {pipeline_mode = #tpu.pipeline_mode<synchronous>, transform_indices = @transform_1, window_bounds = array<i64: 2304, 512>}, {pipeline_mode = #tpu.pipeline_mode<synchronous>, transform_indices = @transform_2, window_bounds = array<i64: 1, 512>}, {pipeline_mode = #tpu.pipeline_mode<synchronous>, transform_indices = @transform_3, window_bounds = array<i64: 9, 512, 512>}, {pipeline_mode = #tpu.pipeline_mode<synchronous>, transform_indices = @transform_4, window_bounds = array<i64: 1, 512>}, {pipeline_mode = #tpu.pipeline_mode<synchronous>, transform_indices = @transform_5, window_bounds = array<i64: 9, 2, 1>}, {pipeline_mode = #tpu.pipeline_mode<synchronous>, transform_indices = @transform_6, window_bounds = array<i64: 2, 512>}]} {
    %c0 = arith.constant 0 : index
    %c0_0 = arith.constant 0 : index
    %0 = vector.load %arg1[%c0, %c0_0] : memref<2x2304xbf16, #tpu.memory_space<vmem>>, vector<2x2304xbf16>
    %c0_1 = arith.constant 0 : index
    %c0_2 = arith.constant 0 : index
    %1 = vector.load %arg2[%c0_1, %c0_2] : memref<2304x512xbf16, #tpu.memory_space<vmem>>, vector<2304x512xbf16>
    %cst = arith.constant dense<0.000000e+00> : vector<2x512xf32>
    %2 = tpu.matmul %0, %1, %cst {dimension_numbers = #tpu.dot_dimension_numbers<[1], [0], [0], [1], [0, 0, 1, 1], [], []>} : vector<2x2304xbf16>, vector<2304x512xbf16>, vector<2x512xf32> -> vector<2x512xf32>
    %c0_3 = arith.constant 0 : index
    %c0_4 = arith.constant 0 : index
    %3 = vector.load %arg3[%c0_3, %c0_4] : memref<1x512xf32, #tpu.memory_space<vmem>>, vector<1x512xf32>
    %4 = vector.broadcast %3 : vector<1x512xf32> to vector<2x512xf32>
    %5 = arith.addf %2, %4 : vector<2x512xf32>
    %cst_5 = arith.constant 0.000000e+00 : f32
    %6 = vector.broadcast %cst_5 : f32 to vector<2x512xf32>
    %7 = arith.maximumf %5, %6 : vector<2x512xf32>
    %cst_6 = arith.constant 0.000000e+00 : bf16
    %8 = vector.broadcast %cst_6 : bf16 to vector<18x512xbf16>
    %c0_7 = arith.constant 0 : index
    %c0_8 = arith.constant 0 : index
    %9 = vector.load %arg8[%c0_7, %c0_8] : memref<18x512xbf16, #tpu.memory_space<vmem>>, vector<18x512xbf16>
    tpu.vector_store %arg8[%c0_7, %c0_8], %8 {strides = array<i32>} : memref<18x512xbf16, #tpu.memory_space<vmem>>, vector<18x512xbf16>,
    %10 = arith.truncf %7 : vector<2x512xf32> to vector<2x512xbf16>
    %c8 = arith.constant 8 : index
    %c0_9 = arith.constant 0 : index
    %11 = vector.load %arg8[%c8, %c0_9] : memref<18x512xbf16, #tpu.memory_space<vmem>>, vector<2x512xbf16>
    tpu.vector_store %arg8[%c8, %c0_9], %10 {strides = array<i32>} : memref<18x512xbf16, #tpu.memory_space<vmem>>, vector<2x512xbf16>,
    %cst_10 = arith.constant 0.000000e+00 : f32
    %12 = vector.broadcast %cst_10 : f32 to vector<2x512xf32>
    %c8_11 = arith.constant 8 : index
    %c0_12 = arith.constant 0 : index
    %13 = vector.load %arg8[%c8_11, %c0_12] : memref<18x512xbf16, #tpu.memory_space<vmem>>, vector<2x512xbf16>
    %c4 = arith.constant 4 : index
    %c0_13 = arith.constant 0 : index
    %c0_14 = arith.constant 0 : index
    %14 = vector.load %arg4[%c4, %c0_13, %c0_14] : memref<9x512x512xbf16, #tpu.memory_space<vmem>>, vector<1x512x512xbf16>
    %15 = vector.shape_cast %14 : vector<1x512x512xbf16> to vector<512x512xbf16>
    %cst_15 = arith.constant dense<0.000000e+00> : vector<2x512xf32>
    %16 = tpu.matmul %13, %15, %cst_15 {dimension_numbers = #tpu.dot_dimension_numbers<[1], [0], [0], [1], [0, 0, 1, 1], [], []>} : vector<2x512xbf16>, vector<512x512xbf16>, vector<2x512xf32> -> vector<2x512xf32>
    %17 = arith.addf %12, %16 : vector<2x512xf32>
    %c0_16 = arith.constant 0 : index
    %c0_17 = arith.constant 0 : index
    %18 = vector.load %arg5[%c0_16, %c0_17] : memref<1x512xf32, #tpu.memory_space<vmem>>, vector<1x512xf32>
    %19 = vector.broadcast %18 : vector<1x512xf32> to vector<2x512xf32>
    %20 = arith.addf %17, %19 : vector<2x512xf32>
    %c0_18 = arith.constant 0 : index
    %c0_19 = arith.constant 0 : index
    %21 = vector.load %arg7[%c0_18, %c0_19] : memref<2x512xf32, #tpu.memory_space<vmem>>, vector<2x512xf32>
    tpu.vector_store %arg7[%c0_18, %c0_19], %20 {strides = array<i32>} : memref<2x512xf32, #tpu.memory_space<vmem>>, vector<2x512xf32>,
    return
  }
  func.func @transform_0(%arg0: i32) -> (i32, i32) {
    %c0_i32 = arith.constant 0 : i32
    %c0_i32_0 = arith.constant 0 : i32
    %c0_i32_1 = arith.constant 0 : i32
    return %c0_i32, %c0_i32_0 : i32, i32
  }
  func.func @transform_1(%arg0: i32) -> (i32, i32) {
    %c0_i32 = arith.constant 0 : i32
    %c0_i32_0 = arith.constant 0 : i32
    %c0_i32_1 = arith.constant 0 : i32
    return %c0_i32, %c0_i32_0 : i32, i32
  }
  func.func @transform_2(%arg0: i32) -> (i32, i32) {
    %c0_i32 = arith.constant 0 : i32
    %c0_i32_0 = arith.constant 0 : i32
    %c0_i32_1 = arith.constant 0 : i32
    return %c0_i32, %c0_i32_0 : i32, i32
  }
  func.func @transform_3(%arg0: i32) -> (i32, i32, i32) {
    %c0_i32 = arith.constant 0 : i32
    %c0_i32_0 = arith.constant 0 : i32
    %c0_i32_1 = arith.constant 0 : i32
    %c0_i32_2 = arith.constant 0 : i32
    return %c0_i32, %c0_i32_0, %c0_i32_1 : i32, i32, i32
  }
  func.func @transform_4(%arg0: i32) -> (i32, i32) {
    %c0_i32 = arith.constant 0 : i32
    %c0_i32_0 = arith.constant 0 : i32
    %c0_i32_1 = arith.constant 0 : i32
    return %c0_i32, %c0_i32_0 : i32, i32
  }
  func.func @transform_5(%arg0: i32) -> (i32, i32, i32) {
    %c0_i32 = arith.constant 0 : i32
    %c0_i32_0 = arith.constant 0 : i32
    %c0_i32_1 = arith.constant 0 : i32
    %c0_i32_2 = arith.constant 0 : i32
    return %c0_i32, %c0_i32_0, %c0_i32_1 : i32, i32, i32
  }
  func.func @transform_6(%arg0: i32) -> (i32, i32) {
    %c0_i32 = arith.constant 0 : i32
    %c0_i32_0 = arith.constant 0 : i32
    %c0_i32_1 = arith.constant 0 : i32
    return %c0_i32, %c0_i32_0 : i32, i32
  }
}

module attributes {stable_mosaic.version = 11 : i64} {
  func.func @fc_head_kernel(%arg0: i32, %arg1: memref<2x512xf32, #tpu.memory_space<vmem>>, %arg2: memref<512x256xbf16, #tpu.memory_space<vmem>>, %arg3: memref<1x256xf32, #tpu.memory_space<vmem>>, %arg4: memref<256x128xbf16, #tpu.memory_space<vmem>>, %arg5: memref<1x128xf32, #tpu.memory_space<vmem>>, %arg6: memref<128x20xbf16, #tpu.memory_space<vmem>>, %arg7: memref<1x20xf32, #tpu.memory_space<vmem>>, %arg8: memref<1x20xf32, #tpu.memory_space<vmem>>, %arg9: memref<2x20xf32, #tpu.memory_space<vmem>>) attributes {dimension_semantics = [#tpu.dimension_semantics<arbitrary>], iteration_bounds = array<i64: 1>, scalar_prefetch = 0 : i64, scratch_operands = 0 : i64, tpu.core_type = #tpu.core_type<tc>, window_params = [{pipeline_mode = #tpu.pipeline_mode<synchronous>, transform_indices = @transform_0, window_bounds = array<i64: 2, 512>}, {pipeline_mode = #tpu.pipeline_mode<synchronous>, transform_indices = @transform_1, window_bounds = array<i64: 512, 256>}, {pipeline_mode = #tpu.pipeline_mode<synchronous>, transform_indices = @transform_2, window_bounds = array<i64: 1, 256>}, {pipeline_mode = #tpu.pipeline_mode<synchronous>, transform_indices = @transform_3, window_bounds = array<i64: 256, 128>}, {pipeline_mode = #tpu.pipeline_mode<synchronous>, transform_indices = @transform_4, window_bounds = array<i64: 1, 128>}, {pipeline_mode = #tpu.pipeline_mode<synchronous>, transform_indices = @transform_5, window_bounds = array<i64: 128, 20>}, {pipeline_mode = #tpu.pipeline_mode<synchronous>, transform_indices = @transform_6, window_bounds = array<i64: 1, 20>}, {pipeline_mode = #tpu.pipeline_mode<synchronous>, transform_indices = @transform_7, window_bounds = array<i64: 1, 20>}, {pipeline_mode = #tpu.pipeline_mode<synchronous>, transform_indices = @transform_8, window_bounds = array<i64: 2, 20>}]} {
    %c0 = arith.constant 0 : index
    %c0_0 = arith.constant 0 : index
    %0 = vector.load %arg1[%c0, %c0_0] : memref<2x512xf32, #tpu.memory_space<vmem>>, vector<2x512xf32>
    %1 = arith.truncf %0 : vector<2x512xf32> to vector<2x512xbf16>
    %c0_1 = arith.constant 0 : index
    %c0_2 = arith.constant 0 : index
    %2 = vector.load %arg2[%c0_1, %c0_2] : memref<512x256xbf16, #tpu.memory_space<vmem>>, vector<512x256xbf16>
    %cst = arith.constant dense<0.000000e+00> : vector<2x256xf32>
    %3 = tpu.matmul %1, %2, %cst {dimension_numbers = #tpu.dot_dimension_numbers<[1], [0], [0], [1], [0, 0, 1, 1], [], []>} : vector<2x512xbf16>, vector<512x256xbf16>, vector<2x256xf32> -> vector<2x256xf32>
    %c0_3 = arith.constant 0 : index
    %c0_4 = arith.constant 0 : index
    %4 = vector.load %arg3[%c0_3, %c0_4] : memref<1x256xf32, #tpu.memory_space<vmem>>, vector<1x256xf32>
    %5 = vector.broadcast %4 : vector<1x256xf32> to vector<2x256xf32>
    %6 = arith.addf %3, %5 : vector<2x256xf32>
    %cst_5 = arith.constant 0.000000e+00 : f32
    %7 = vector.broadcast %cst_5 : f32 to vector<2x256xf32>
    %8 = arith.maximumf %6, %7 : vector<2x256xf32>
    %9 = arith.truncf %8 : vector<2x256xf32> to vector<2x256xbf16>
    %c0_6 = arith.constant 0 : index
    %c0_7 = arith.constant 0 : index
    %10 = vector.load %arg4[%c0_6, %c0_7] : memref<256x128xbf16, #tpu.memory_space<vmem>>, vector<256x128xbf16>
    %cst_8 = arith.constant dense<0.000000e+00> : vector<2x128xf32>
    %11 = tpu.matmul %9, %10, %cst_8 {dimension_numbers = #tpu.dot_dimension_numbers<[1], [0], [0], [1], [0, 0, 1, 1], [], []>} : vector<2x256xbf16>, vector<256x128xbf16>, vector<2x128xf32> -> vector<2x128xf32>
    %c0_9 = arith.constant 0 : index
    %c0_10 = arith.constant 0 : index
    %12 = vector.load %arg5[%c0_9, %c0_10] : memref<1x128xf32, #tpu.memory_space<vmem>>, vector<1x128xf32>
    %13 = vector.broadcast %12 : vector<1x128xf32> to vector<2x128xf32>
    %14 = arith.addf %11, %13 : vector<2x128xf32>
    %cst_11 = arith.constant 0.000000e+00 : f32
    %15 = vector.broadcast %cst_11 : f32 to vector<2x128xf32>
    %16 = arith.maximumf %14, %15 : vector<2x128xf32>
    %17 = arith.truncf %16 : vector<2x128xf32> to vector<2x128xbf16>
    %c0_12 = arith.constant 0 : index
    %c0_13 = arith.constant 0 : index
    %18 = vector.load %arg6[%c0_12, %c0_13] : memref<128x20xbf16, #tpu.memory_space<vmem>>, vector<128x20xbf16>
    %cst_14 = arith.constant dense<0.000000e+00> : vector<2x20xf32>
    %19 = tpu.matmul %17, %18, %cst_14 {dimension_numbers = #tpu.dot_dimension_numbers<[1], [0], [0], [1], [0, 0, 1, 1], [], []>} : vector<2x128xbf16>, vector<128x20xbf16>, vector<2x20xf32> -> vector<2x20xf32>
    %c0_15 = arith.constant 0 : index
    %c0_16 = arith.constant 0 : index
    %20 = vector.load %arg7[%c0_15, %c0_16] : memref<1x20xf32, #tpu.memory_space<vmem>>, vector<1x20xf32>
    %21 = vector.broadcast %20 : vector<1x20xf32> to vector<2x20xf32>
    %22 = arith.addf %19, %21 : vector<2x20xf32>
    %c0_17 = arith.constant 0 : index
    %c0_18 = arith.constant 0 : index
    %23 = vector.load %arg8[%c0_17, %c0_18] : memref<1x20xf32, #tpu.memory_space<vmem>>, vector<1x20xf32>
    %cst_19 = arith.constant 0.000000e+00 : f32
    %24 = vector.broadcast %cst_19 : f32 to vector<1x20xf32>
    %25 = arith.cmpf one, %23, %24 : vector<1x20xf32>
    %26 = arith.negf %22 : vector<2x20xf32>
    %27 = math.exp %26 : vector<2x20xf32>
    %cst_20 = arith.constant 1.000000e+00 : f32
    %28 = vector.broadcast %cst_20 : f32 to vector<2x20xf32>
    %29 = arith.addf %28, %27 : vector<2x20xf32>
    %30 = arith.divf %28, %29 : vector<2x20xf32>
    %31 = vector.shape_cast %25 : vector<1x20xi1> to vector<1x20xi1>
    %32 = vector.broadcast %31 : vector<1x20xi1> to vector<2x20xi1>
    %33 = arith.select %32, %30, %22 : vector<2x20xi1>, vector<2x20xf32>
    %c0_21 = arith.constant 0 : index
    %c0_22 = arith.constant 0 : index
    %34 = vector.load %arg9[%c0_21, %c0_22] : memref<2x20xf32, #tpu.memory_space<vmem>>, vector<2x20xf32>
    tpu.vector_store %arg9[%c0_21, %c0_22], %33 {strides = array<i32>} : memref<2x20xf32, #tpu.memory_space<vmem>>, vector<2x20xf32>,
    return
  }
  func.func @transform_0(%arg0: i32) -> (i32, i32) {
    %c0_i32 = arith.constant 0 : i32
    %c0_i32_0 = arith.constant 0 : i32
    %c0_i32_1 = arith.constant 0 : i32
    return %c0_i32, %c0_i32_0 : i32, i32
  }
  func.func @transform_1(%arg0: i32) -> (i32, i32) {
    %c0_i32 = arith.constant 0 : i32
    %c0_i32_0 = arith.constant 0 : i32
    %c0_i32_1 = arith.constant 0 : i32
    return %c0_i32, %c0_i32_0 : i32, i32
  }
  func.func @transform_2(%arg0: i32) -> (i32, i32) {
    %c0_i32 = arith.constant 0 : i32
    %c0_i32_0 = arith.constant 0 : i32
    %c0_i32_1 = arith.constant 0 : i32
    return %c0_i32, %c0_i32_0 : i32, i32
  }
  func.func @transform_3(%arg0: i32) -> (i32, i32) {
    %c0_i32 = arith.constant 0 : i32
    %c0_i32_0 = arith.constant 0 : i32
    %c0_i32_1 = arith.constant 0 : i32
    return %c0_i32, %c0_i32_0 : i32, i32
  }
  func.func @transform_4(%arg0: i32) -> (i32, i32) {
    %c0_i32 = arith.constant 0 : i32
    %c0_i32_0 = arith.constant 0 : i32
    %c0_i32_1 = arith.constant 0 : i32
    return %c0_i32, %c0_i32_0 : i32, i32
  }
  func.func @transform_5(%arg0: i32) -> (i32, i32) {
    %c0_i32 = arith.constant 0 : i32
    %c0_i32_0 = arith.constant 0 : i32
    %c0_i32_1 = arith.constant 0 : i32
    return %c0_i32, %c0_i32_0 : i32, i32
  }
  func.func @transform_6(%arg0: i32) -> (i32, i32) {
    %c0_i32 = arith.constant 0 : i32
    %c0_i32_0 = arith.constant 0 : i32
    %c0_i32_1 = arith.constant 0 : i32
    return %c0_i32, %c0_i32_0 : i32, i32
  }
  func.func @transform_7(%arg0: i32) -> (i32, i32) {
    %c0_i32 = arith.constant 0 : i32
    %c0_i32_0 = arith.constant 0 : i32
    %c0_i32_1 = arith.constant 0 : i32
    return %c0_i32, %c0_i32_0 : i32, i32
  }
  func.func @transform_8(%arg0: i32) -> (i32, i32) {
    %c0_i32 = arith.constant 0 : i32
    %c0_i32_0 = arith.constant 0 : i32
    %c0_i32_1 = arith.constant 0 : i32
    return %c0_i32, %c0_i32_0 : i32, i32
  }
}

</mosaic_0001>

<llo_original>
// kernel: palm_forward.5
$region0: #{palm_forward.5}
  #allocation0 [shape = 'u32[]', space=smem, size = 0x4, offset = 0x4, fixed_abs, tag = 'smem constant byte address 0x4 - core index']
  #allocation1 [shape = 'u32[144,128]{1,0:T(1,128)}', space=vmem, size = 0x12000, scoped, tag = 'internal scratch']
  %s0 = inlined_call_operand.vmem [shape: bf16[1152,147], index: 0, kind: input, shape index: {}]
  %s1 = inlined_call_operand.vmem [shape: bf16[147,64], index: 1, kind: input, shape index: {}]
  %s2 = inlined_call_operand.vmem [shape: f32[1,64], index: 2, kind: input, shape index: {}]
  %s3 = inlined_call_operand.vmem [shape: f32[128,64], index: 3, kind: output, shape index: {}]
  %s4 = sld [smem:[#allocation0]]
  $region45: #{palm_forward.5} parent=0
    _
  %s6 = ssub.s32 1, %s4
  %s7 = scalar_select 0, %s6, %s4
  loop: start=0, step=1, limit=4
  $region2: #{palm_forward.5} parent=0 // loop_pre_header
    _
  $region3: #{palm_forward.5} parent=0 // loop_header
    %s9 = sphi 0, %s13
    %p10 = scmp.ge.s32.totalorder %s9, 4
    %s19 = sphi 0, %s21
    %s22 = sphi 0, %s19
    %s23 = sphi 0, %s22
    %s39 = sphi 0, %s23
    %s43 = sphi 0, %s43
    %s45 = sphi 0, %s43
    %s46 = sphi 0, %s45
    %s60 = sphi 0, %s46
    %s64 = sphi 0, %s64
    %s66 = sphi 0, %s64
    %s67 = sphi 0, %s66
    %s81 = sphi 0, %s67
    %s87 = sphi 0, %s89
    %s90 = sphi 0, %s87
    %s91 = sphi 0, %s90
    %s107 = sphi 0, %s91
  $region4: #{palm_forward.5} parent=0 // loop_header_branch
    %12 = sbr.rel (%p10) target = $region8
  $region5: #{palm_forward.5} parent=0 // loop_body
    %s14 = ssub.s32 %s9, 1
    %s15 = ssub.s32 %s9, 2
    %s16 = sadd.s32 %s9, 1
    %s17 = ssub.s32 %s9, %s16
    %p18 = scmp.eq.s32.totalorder %s17, 0
    %s20 = sadd.s32 %s19, 1
    %s21 = scalar_select %p18, %s19, %s20
    %p24 = pneg %p18
    %p25 = scmp.eq.s32.totalorder %s9, 1
    %p26 = por %p24, %p25
    %p27 = scmp.ne.s32.totalorder %s19, %s22
    %p28 = scmp.eq.s32.totalorder %s9, 0
    %p29 = por %p27, %p28
    %p30 = scmp.ne.s32.totalorder %s19, %s22
    %p31 = scmp.eq.s32.totalorder %s14, 1
    %p32 = por %p30, %p31
    %p33 = scmp.ne.s32.totalorder %s22, %s23
    %p34 = scmp.eq.s32.totalorder %s14, 0
    %p35 = por %p33, %p34
    %p36 = scmp.ne.s32.totalorder %s22, %s23
    %p37 = scmp.eq.s32.totalorder %s15, 1
    %p38 = por %p36, %p37
    %p40 = scmp.ne.s32.totalorder %s23, %s39
    %p41 = scmp.eq.s32.totalorder %s15, 0
    %p42 = por %p40, %p41
    %s44 = sadd.s32 %s43, 1
    %p47 = scmp.eq.s32.totalorder %s9, 1
    %p48 = scmp.ne.s32.totalorder %s43, %s45
    %p49 = scmp.eq.s32.totalorder %s9, 0
    %p50 = por %p48, %p49
    %p51 = scmp.ne.s32.totalorder %s43, %s45
    %p52 = scmp.eq.s32.totalorder %s14, 1
    %p53 = por %p51, %p52
    %p54 = scmp.ne.s32.totalorder %s45, %s46
    %p55 = scmp.eq.s32.totalorder %s14, 0
    %p56 = por %p54, %p55
    %p57 = scmp.ne.s32.totalorder %s45, %s46
    %p58 = scmp.eq.s32.totalorder %s15, 1
    %p59 = por %p57, %p58
    %p61 = scmp.ne.s32.totalorder %s46, %s60
    %p62 = scmp.eq.s32.totalorder %s15, 0
    %p63 = por %p61, %p62
    %s65 = sadd.s32 %s64, 1
    %p68 = scmp.eq.s32.totalorder %s9, 1
    %p69 = scmp.ne.s32.totalorder %s64, %s66
    %p70 = scmp.eq.s32.totalorder %s9, 0
    %p71 = por %p69, %p70
    %p72 = scmp.ne.s32.totalorder %s64, %s66
    %p73 = scmp.eq.s32.totalorder %s14, 1
    %p74 = por %p72, %p73
    %p75 = scmp.ne.s32.totalorder %s66, %s67
    %p76 = scmp.eq.s32.totalorder %s14, 0
    %p77 = por %p75, %p76
    %p78 = scmp.ne.s32.totalorder %s66, %s67
    %p79 = scmp.eq.s32.totalorder %s15, 1
    %p80 = por %p78, %p79
    %p82 = scmp.ne.s32.totalorder %s67, %s81
    %p83 = scmp.eq.s32.totalorder %s15, 0
    %p84 = por %p82, %p83
    %s85 = ssub.s32 %s9, %s16
    %p86 = scmp.eq.s32.totalorder %s85, 0
    %s88 = sadd.s32 %s87, 1
    %s89 = scalar_select %p86, %s87, %s88
    %p92 = pneg %p86
    %p93 = scmp.eq.s32.totalorder %s9, 1
    %p94 = por %p92, %p93
    %p95 = scmp.ne.s32.totalorder %s87, %s90
    %p96 = scmp.eq.s32.totalorder %s9, 0
    %p97 = por %p95, %p96
    %p98 = scmp.ne.s32.totalorder %s87, %s90
    %p99 = scmp.eq.s32.totalorder %s14, 1
    %p100 = por %p98, %p99
    %p101 = scmp.ne.s32.totalorder %s90, %s91
    %p102 = scmp.eq.s32.totalorder %s14, 0
    %p103 = por %p101, %p102
    %p104 = scmp.ne.s32.totalorder %s90, %s91
    %p105 = scmp.eq.s32.totalorder %s15, 1
    %p106 = por %p104, %p105
    %p108 = scmp.ne.s32.totalorder %s91, %s107
    %p109 = scmp.eq.s32.totalorder %s15, 0
    %p110 = por %p108, %p109
    %p111 = scmp.le.s32.totalorder 1, %s9
    %p112 = scmp.lt.s32.totalorder %s9, 3
    %p113 = pnand %p111, %p112
    %p114 = pneg %p113
    // Predicated region
    $region9: #{palm_forward.5} parent=5 // pred_check
      _
    $region10: #{palm_forward.5} parent=5 // pred_check_branch
      %116 = sbr.rel (%p113) target = $region12
    $region11: #{palm_forward.5} parent=5 // pred_region
      %s117 = ssub.s32 %s9, 1
      // Predicated region
      $region13: #{palm_forward.5} parent=11 // pred_check
        %p118 = pneg %p56
      $region14: #{palm_forward.5} parent=11 // pred_check_branch
        %120 = sbr.rel (%p118) target = $region16
      $region15: #{palm_forward.5} parent=11 // pred_region
        _
      $region16: #{palm_forward.5} parent=11 // pred_fallthru
        _
      // Predicated region
      $region17: #{palm_forward.5} parent=11 // pred_check
        %p121 = pneg %p77
      $region18: #{palm_forward.5} parent=11 // pred_check_branch
        %123 = sbr.rel (%p121) target = $region20
      $region19: #{palm_forward.5} parent=11 // pred_region
        _
      $region20: #{palm_forward.5} parent=11 // pred_fallthru
        _
    $region12: #{palm_forward.5} parent=5 // pred_fallthru
      _
    %p124 = scmp.lt.s32.totalorder %s9, 2
    // Predicated region
    $region21: #{palm_forward.5} parent=5 // pred_check
      %p125 = pneg %p124
    $region22: #{palm_forward.5} parent=5 // pred_check_branch
      %127 = sbr.rel (%p125) target = $region24
    $region23: #{palm_forward.5} parent=5 // pred_region
      // Predicated region
      $region25: #{palm_forward.5} parent=23 // pred_check
        %p128 = pneg %p29
      $region26: #{palm_forward.5} parent=23 // pred_check_branch
        %130 = sbr.rel (%p128) target = $region28
      $region27: #{palm_forward.5} parent=23 // pred_region
        %s131 = smul.u32 72, %s9
        %p132 = scmp.lt.s32.totalorder %s131, 143
        %s133 = scalar_select %p132, %s131, 143
        %s134 = smul.addr %s133, 2
        %s135 = smul.addr %s134, 4
        %s136 = scalar_lea.vmem %s0, %s135
        %s137 = smul.u32 72, %s9
      $region28: #{palm_forward.5} parent=23 // pred_fallthru
        _
    $region24: #{palm_forward.5} parent=5 // pred_fallthru
      _
    %p138 = scmp.le.s32.totalorder 1, %s9
    %p139 = scmp.lt.s32.totalorder %s9, 3
    %p140 = pnand %p138, %p139
    %p141 = pneg %p140
    // Predicated region
    $region29: #{palm_forward.5} parent=5 // pred_check
      _
    $region30: #{palm_forward.5} parent=5 // pred_check_branch
      %143 = sbr.rel (%p140) target = $region32
    $region31: #{palm_forward.5} parent=5 // pred_region
      %s144 = ssub.s32 %s9, 1
      %s145 = smul.u32 72, %s14
      %p146 = scmp.lt.s32.totalorder %s145, 143
      %s147 = scalar_select %p146, %s145, 143
      %s148 = smul.addr %s147, 2
      %s149 = smul.addr %s148, 4
      %s150 = scalar_lea.vmem %s0, %s149
      %p151 = pneg %p35
      %p152 = pneg %p32
      %p153 = pneg %p56
      %p154 = pneg %p53
      %p155 = pneg %p77
      %p156 = pneg %p74
      %p157 = pneg %p103
      %p158 = pneg %p100
      %s159 = smul.u32 8, %s14
      %p160 = scmp.lt.s32.totalorder %s159, 15
      %s161 = scalar_select %p160, %s159, 15
      %s162 = smul.addr %s161, 8
      %s163 = scalar_lea.vmem %s3, %s162
      %s164 = smul.u32 72, %s14
      %p165 = scmp.lt.s32.totalorder %s164, 143
      %s166 = scalar_select %p165, %s164, 143
      %s167 = smul.addr %s166, 2
      %s168 = smul.addr %s167, 4
      %s169 = scalar_lea.vmem %s0, %s168
      %s170 = smul.u32 72, %s14
      %s171 = smul.u32 8, %s14
      %p172 = scmp.lt.s32.totalorder %s171, 15
      %s173 = scalar_select %p172, %s171, 15
      %s174 = smul.addr %s173, 8
      %s175 = scalar_lea.vmem %s3, %s174
      %s176 = smul.u32 8, %s14
      %v178 = vld [vmem:[%s1] sm:$0xf]
      %v179 = vld [vmem:[%s1 + $0x4] sm:$0xf]
      %v180 = vld [vmem:[%s1 + $0x8] sm:$0xf]
      %v181 = vld [vmem:[%s1 + $0xc] sm:$0xf]
      %v182 = vld [vmem:[%s1 + $0x10] sm:$0xf]
      %v183 = vld [vmem:[%s1 + $0x14] sm:$0xf]
      %v184 = vld [vmem:[%s1 + $0x18] sm:$0xf]
      %v185 = vld [vmem:[%s1 + $0x1c] sm:$0xf]
      %v186 = vld [vmem:[%s1 + $0x20] sm:$0xf]
      %v187 = vld [vmem:[%s1 + $0x24] sm:$0xf]
      %v188 = vld [vmem:[%s1 + $0x28] sm:$0xf]
      %v189 = vld [vmem:[%s1 + $0x2c] sm:$0xf]
      %v190 = vld [vmem:[%s1 + $0x30] sm:$0xf]
      %v191 = vld [vmem:[%s1 + $0x34] sm:$0xf]
      %v192 = vld [vmem:[%s1 + $0x38] sm:$0xf]
      %v193 = vld [vmem:[%s1 + $0x3c] sm:$0xf]
      %v194 = vld [vmem:[%s1 + $0x40] sm:$0xf]
      %v195 = vld [vmem:[%s1 + $0x44] sm:$0xf]
      %v196 = vld [vmem:[%s1 + $0x48] sm:$0x3]
      %v197 = vld [vmem:[%s2] sm:$0x1]
      %v198 = vld [vmem:[%s169] sm:$0xff]
      %v199 = vld [vmem:[%s169 + $0x8] sm:$0xff]
      %v200 = vld [vmem:[%s169 + $0x10] sm:$0xff]
      %v201 = vld [vmem:[%s169 + $0x18] sm:$0xff]
      %v202 = vld [vmem:[%s169 + $0x20] sm:$0xff]
      %v203 = vld [vmem:[%s169 + $0x28] sm:$0xff]
      %v204 = vld [vmem:[%s169 + $0x30] sm:$0xff]
      %v205 = vld [vmem:[%s169 + $0x38] sm:$0xff]
      %v207 = vlaneseq
      %v208 = vshrl.u32 %v207, 7
      %v209 = vsub.s32 0, %v208
      %v210 = vrot.slane %v197, %v209
      %v220 = vunpack.c.l.b16 %v198
      %v221 = vunpack.c.h.b16 %v198
      %v222 = vunpack.c.l.b16 %v199
      %v223 = vunpack.c.h.b16 %v199
      %v224 = vunpack.c.l.b16 %v200
      %v225 = vunpack.c.h.b16 %v200
      %v226 = vunpack.c.l.b16 %v201
      %v227 = vunpack.c.h.b16 %v201
      %v228 = vunpack.c.l.b16 %v202
      %v229 = vunpack.c.h.b16 %v202
      %v230 = vunpack.c.l.b16 %v203
      %v231 = vunpack.c.h.b16 %v203
      %v232 = vunpack.c.l.b16 %v204
      %v233 = vunpack.c.h.b16 %v204
      %v234 = vunpack.c.l.b16 %v205
      %v235 = vunpack.c.h.b16 %v205
      %v236 = vpack.c.b16 %v222, %v220
      %v237 = vpack.c.b16 %v223, %v221
      %v238 = vpack.c.b16 %v226, %v224
      %v239 = vpack.c.b16 %v227, %v225
      %v240 = vpack.c.b16 %v230, %v228
      %v241 = vpack.c.b16 %v231, %v229
      %v242 = vpack.c.b16 %v234, %v232
      %v243 = vpack.c.b16 %v235, %v233
      %v267 = vunpack.c.l.b16 %v178
      %v268 = vunpack.c.l.b16 %v179
      %v269 = vunpack.c.l.b16 %v180
      %v270 = vunpack.c.l.b16 %v181
      %v271 = vunpack.c.l.b16 %v182
      %v272 = vunpack.c.l.b16 %v183
      %v273 = vunpack.c.l.b16 %v184
      %v274 = vunpack.c.l.b16 %v185
      %v275 = vunpack.c.l.b16 %v186
      %v276 = vunpack.c.l.b16 %v187
      %v277 = vunpack.c.l.b16 %v188
      %v278 = vunpack.c.l.b16 %v189
      %v279 = vunpack.c.l.b16 %v190
      %v280 = vunpack.c.l.b16 %v191
      %v281 = vunpack.c.l.b16 %v192
      %v282 = vunpack.c.l.b16 %v193
      %v283 = vunpack.c.l.b16 %v194
      %v284 = vunpack.c.l.b16 %v195
      %v285 = vunpack.c.l.b16 %v196
      %v286 = vpack.c.b16 %v268, %v267
      %v287 = vpack.c.b16 %v270, %v269
      %v288 = vpack.c.b16 %v272, %v271
      %v289 = vpack.c.b16 %v274, %v273
      %v290 = vpack.c.b16 %v276, %v275
      %v291 = vpack.c.b16 %v278, %v277
      %v292 = vpack.c.b16 %v280, %v279
      %v293 = vpack.c.b16 %v282, %v281
      %v294 = vpack.c.b16 %v284, %v283
      %v295 = vpack.c.b16 %v285, %v285
      %vm305 = vcmask 154624
      %v307 = vsel %vm305, %v237, 0
      %v310 = vsel %vm305, %v239, 0
      %v313 = vsel %vm305, %v241, 0
      %v316 = vsel %vm305, %v243, 0
      %vm318 = vcmask 1040384
      %vm319 = vcmask 1041408
      %v320 = vsel %vm318, 4294967295, 65535
      %v321 = vsel %vm319, %v320, 0
      %v323 = vand.u32 %v295, %v321
      %325 = vmatprep.subr.bf16.mxu0 0
      %326 = vmatpush1.bf16.msra.mxu0 %v286
      %327 = vmatprep.subr.bf16.mxu0 0
      %328 = vmatpush1.bf16.msra.mxu0 %v287
      %329 = vmatprep.subr.bf16.mxu0 0
      %330 = vmatpush1.bf16.msra.mxu0 %v288
      %331 = vmatprep.subr.bf16.mxu0 0
      %332 = vmatpush1.bf16.msra.mxu0 %v289
      %333 = vmatprep.subr.bf16.mxu0 0
      %334 = vmatpush1.bf16.msra.mxu0 %v290
      %335 = vmatprep.subr.bf16.mxu0 0
      %336 = vmatpush1.bf16.msra.mxu0 %v291
      %337 = vmatprep.subr.bf16.mxu0 0
      %338 = vmatpush1.bf16.msra.mxu0 %v292
      %339 = vmatprep.subr.bf16.mxu0 0
      %340 = vmatpush1.bf16.msra.mxu0 %v293
      %341 = vmatprep.subr.bf16.mxu0 0
      %342 = vmatpush1.bf16.msra.mxu0 %v294
      %343 = vmatprep.subr.bf16.mxu0 0
      %344 = vmatpush1.bf16.msra.mxu0 %v323
      %345 = vmatprep.subr.bf16.mxu0 0
      %346 = vmatpush1.bf16.msra.mxu0 0
      %347 = vmatprep.subr.bf16.mxu0 0
      %348 = vmatpush1.bf16.msra.mxu0 0
      %349 = vmatprep.subr.bf16.mxu0 0
      %350 = vmatpush1.bf16.msra.mxu0 0
      %351 = vmatprep.subr.bf16.mxu0 0
      %352 = vmatpush1.bf16.msra.mxu0 0
      %353 = vmatprep.subr.bf16.mxu0 0
      %354 = vmatpush1.bf16.msra.mxu0 0
      %355 = vmatprep.subr.bf16.mxu0 0
      %356 = vmatpush1.bf16.msra.mxu0 0
      %357 = vmatprep.mubr.bf16.mxu0 %v307
      %358 = vmatmul.mubr.bf16.gmra.mrb[0].mxu0 %v236
      %v359 = vpop.f32.mrb[0].mxu0
      %v360 = vadd.f32 %v210, %v359
      %v361 = vpop.f32.mrb[0].mxu0
      %v362 = vpop.f32.mrb[0].mxu0
      %v363 = vadd.f32 %v210, %v362
      %v364 = vpop.f32.mrb[0].mxu0
      %365 = vmatprep.mubr.bf16.mxu0 %v310
      %366 = vmatmul.mubr.bf16.gmra.mrb[0].mxu0 %v238
      %v367 = vpop.f32.mrb[0].mxu0
      %v368 = vadd.f32 %v210, %v367
      %v369 = vpop.f32.mrb[0].mxu0
      %v370 = vpop.f32.mrb[0].mxu0
      %v371 = vadd.f32 %v210, %v370
      %v372 = vpop.f32.mrb[0].mxu0
      %373 = vmatprep.mubr.bf16.mxu0 %v313
      %374 = vmatmul.mubr.bf16.gmra.mrb[0].mxu0 %v240
      %v375 = vpop.f32.mrb[0].mxu0
      %v376 = vadd.f32 %v210, %v375
      %v377 = vpop.f32.mrb[0].mxu0
      %v378 = vpop.f32.mrb[0].mxu0
      %v379 = vadd.f32 %v210, %v378
      %v380 = vpop.f32.mrb[0].mxu0
      %381 = vmatprep.mubr.bf16.mxu0 %v316
      %382 = vmatmul.mubr.bf16.gmra.mrb[0].mxu0 %v242
      %v383 = vpop.f32.mrb[0].mxu0
      %v384 = vadd.f32 %v210, %v383
      %v385 = vpop.f32.mrb[0].mxu0
      %v386 = vpop.f32.mrb[0].mxu0
      %v387 = vadd.f32 %v210, %v386
      %v388 = vpop.f32.mrb[0].mxu0
      %389 = vdwg.mxu0
      %v390 = vmax.f32 %v360, 0.0
      %v391 = vmax.f32 %v363, 0.0
      %v392 = vmax.f32 %v368, 0.0
      %v393 = vmax.f32 %v371, 0.0
      %v394 = vmax.f32 %v376, 0.0
      %v395 = vmax.f32 %v379, 0.0
      %v396 = vmax.f32 %v384, 0.0
      %v397 = vmax.f32 %v387, 0.0
      %v398 = vld [vmem:[%s169 + $0x40] sm:$0xff]
      %v399 = vld [vmem:[%s169 + $0x48] sm:$0xff]
      %v400 = vld [vmem:[%s169 + $0x50] sm:$0xff]
      %v401 = vld [vmem:[%s169 + $0x58] sm:$0xff]
      %v402 = vld [vmem:[%s169 + $0x60] sm:$0xff]
      %v403 = vld [vmem:[%s169 + $0x68] sm:$0xff]
      %v404 = vld [vmem:[%s169 + $0x70] sm:$0xff]
      %v405 = vld [vmem:[%s169 + $0x78] sm:$0xff]
      %v414 = vunpack.c.l.b16 %v398
      %v415 = vunpack.c.h.b16 %v398
      %v416 = vunpack.c.l.b16 %v399
      %v417 = vunpack.c.h.b16 %v399
      %v418 = vunpack.c.l.b16 %v400
      %v419 = vunpack.c.h.b16 %v400
      %v420 = vunpack.c.l.b16 %v401
      %v421 = vunpack.c.h.b16 %v401
      %v422 = vunpack.c.l.b16 %v402
      %v423 = vunpack.c.h.b16 %v402
      %v424 = vunpack.c.l.b16 %v403
      %v425 = vunpack.c.h.b16 %v403
      %v426 = vunpack.c.l.b16 %v404
      %v427 = vunpack.c.h.b16 %v404
      %v428 = vunpack.c.l.b16 %v405
      %v429 = vunpack.c.h.b16 %v405
      %v430 = vpack.c.b16 %v416, %v414
      %v431 = vpack.c.b16 %v417, %v415
      %v432 = vpack.c.b16 %v420, %v418
      %v433 = vpack.c.b16 %v421, %v419
      %v434 = vpack.c.b16 %v424, %v422
      %v435 = vpack.c.b16 %v425, %v423
      %v436 = vpack.c.b16 %v428, %v426
      %v437 = vpack.c.b16 %v429, %v427
      %v443 = vsel %vm305, %v431, 0
      %v446 = vsel %vm305, %v433, 0
      %v449 = vsel %vm305, %v435, 0
      %v452 = vsel %vm305, %v437, 0
      %454 = vmatprep.subr.bf16.mxu0 0
      %455 = vmatpush1.bf16.msra.mxu0 %v286
      %456 = vmatprep.subr.bf16.mxu0 0
      %457 = vmatpush1.bf16.msra.mxu0 %v287
      %458 = vmatprep.subr.bf16.mxu0 0
      %459 = vmatpush1.bf16.msra.mxu0 %v288
      %460 = vmatprep.subr.bf16.mxu0 0
      %461 = vmatpush1.bf16.msra.mxu0 %v289
      %462 = vmatprep.subr.bf16.mxu0 0
      %463 = vmatpush1.bf16.msra.mxu0 %v290
      %464 = vmatprep.subr.bf16.mxu0 0
      %465 = vmatpush1.bf16.msra.mxu0 %v291
      %466 = vmatprep.subr.bf16.mxu0 0
      %467 = vmatpush1.bf16.msra.mxu0 %v292
      %468 = vmatprep.subr.bf16.mxu0 0
      %469 = vmatpush1.bf16.msra.mxu0 %v293
      %470 = vmatprep.subr.bf16.mxu0 0
      %471 = vmatpush1.bf16.msra.mxu0 %v294
      %472 = vmatprep.subr.bf16.mxu0 0
      %473 = vmatpush1.bf16.msra.mxu0 %v323
      %474 = vmatprep.subr.bf16.mxu0 0
      %475 = vmatpush1.bf16.msra.mxu0 0
      %476 = vmatprep.subr.bf16.mxu0 0
      %477 = vmatpush1.bf16.msra.mxu0 0
      %478 = vmatprep.subr.bf16.mxu0 0
      %479 = vmatpush1.bf16.msra.mxu0 0
      %480 = vmatprep.subr.bf16.mxu0 0
      %481 = vmatpush1.bf16.msra.mxu0 0
      %482 = vmatprep.subr.bf16.mxu0 0
      %483 = vmatpush1.bf16.msra.mxu0 0
      %484 = vmatprep.subr.bf16.mxu0 0
      %485 = vmatpush1.bf16.msra.mxu0 0
      %486 = vmatprep.mubr.bf16.mxu0 %v443
      %487 = vmatmul.mubr.bf16.gmra.mrb[0].mxu0 %v430
      %v488 = vpop.f32.mrb[0].mxu0
      %v489 = vadd.f32 %v210, %v488
      %v490 = vpop.f32.mrb[0].mxu0
      %v491 = vpop.f32.mrb[0].mxu0
      %v492 = vadd.f32 %v210, %v491
      %v493 = vpop.f32.mrb[0].mxu0
      %494 = vmatprep.mubr.bf16.mxu0 %v446
      %495 = vmatmul.mubr.bf16.gmra.mrb[0].mxu0 %v432
      %v496 = vpop.f32.mrb[0].mxu0
      %v497 = vadd.f32 %v210, %v496
      %v498 = vpop.f32.mrb[0].mxu0
      %v499 = vpop.f32.mrb[0].mxu0
      %v500 = vadd.f32 %v210, %v499
      %v501 = vpop.f32.mrb[0].mxu0
      %502 = vmatprep.mubr.bf16.mxu0 %v449
      %503 = vmatmul.mubr.bf16.gmra.mrb[0].mxu0 %v434
      %v504 = vpop.f32.mrb[0].mxu0
      %v505 = vadd.f32 %v210, %v504
      %v506 = vpop.f32.mrb[0].mxu0
      %v507 = vpop.f32.mrb[0].mxu0
      %v508 = vadd.f32 %v210, %v507
      %v509 = vpop.f32.mrb[0].mxu0
      %510 = vmatprep.mubr.bf16.mxu0 %v452
      %511 = vmatmul.mubr.bf16.gmra.mrb[0].mxu0 %v436
      %v512 = vpop.f32.mrb[0].mxu0
      %v513 = vadd.f32 %v210, %v512
      %v514 = vpop.f32.mrb[0].mxu0
      %v515 = vpop.f32.mrb[0].mxu0
      %v516 = vadd.f32 %v210, %v515
      %v517 = vpop.f32.mrb[0].mxu0
      %518 = vdwg.mxu0
      %v519 = vmax.f32 %v489, 0.0
      %v520 = vmax.f32 %v492, 0.0
      %v521 = vmax.f32 %v497, 0.0
      %v522 = vmax.f32 %v500, 0.0
      %v523 = vmax.f32 %v505, 0.0
      %v524 = vmax.f32 %v508, 0.0
      %v525 = vmax.f32 %v513, 0.0
      %v526 = vmax.f32 %v516, 0.0
      %v527 = vmax.f32 %v390, %v519
      %v528 = vmax.f32 %v391, %v520
      %v529 = vmax.f32 %v392, %v521
      %v530 = vmax.f32 %v393, %v522
      %v531 = vmax.f32 %v394, %v523
      %v532 = vmax.f32 %v395, %v524
      %v533 = vmax.f32 %v396, %v525
      %v534 = vmax.f32 %v397, %v526
      %v535 = vld [vmem:[%s169 + $0x80] sm:$0xff]
      %v536 = vld [vmem:[%s169 + $0x88] sm:$0xff]
      %v537 = vld [vmem:[%s169 + $0x90] sm:$0xff]
      %v538 = vld [vmem:[%s169 + $0x98] sm:$0xff]
      %v539 = vld [vmem:[%s169 + $0xa0] sm:$0xff]
      %v540 = vld [vmem:[%s169 + $0xa8] sm:$0xff]
      %v541 = vld [vmem:[%s169 + $0xb0] sm:$0xff]
      %v542 = vld [vmem:[%s169 + $0xb8] sm:$0xff]
      %v551 = vunpack.c.l.b16 %v535
      %v552 = vunpack.c.h.b16 %v535
      %v553 = vunpack.c.l.b16 %v536
      %v554 = vunpack.c.h.b16 %v536
      %v555 = vunpack.c.l.b16 %v537
      %v556 = vunpack.c.h.b16 %v537
      %v557 = vunpack.c.l.b16 %v538
      %v558 = vunpack.c.h.b16 %v538
      %v559 = vunpack.c.l.b16 %v539
      %v560 = vunpack.c.h.b16 %v539
      %v561 = vunpack.c.l.b16 %v540
      %v562 = vunpack.c.h.b16 %v540
      %v563 = vunpack.c.l.b16 %v541
      %v564 = vunpack.c.h.b16 %v541
      %v565 = vunpack.c.l.b16 %v542
      %v566 = vunpack.c.h.b16 %v542
      %v567 = vpack.c.b16 %v553, %v551
      %v568 = vpack.c.b16 %v554, %v552
      %v569 = vpack.c.b16 %v557, %v555
      %v570 = vpack.c.b16 %v558, %v556
      %v571 = vpack.c.b16 %v561, %v559
      %v572 = vpack.c.b16 %v562, %v560
      %v573 = vpack.c.b16 %v565, %v563
      %v574 = vpack.c.b16 %v566, %v564
      %v580 = vsel %vm305, %v568, 0
      %v583 = vsel %vm305, %v570, 0
      %v586 = vsel %vm305, %v572, 0
      %v589 = vsel %vm305, %v574, 0
      %591 = vmatprep.subr.bf16.mxu0 0
      %592 = vmatpush1.bf16.msra.mxu0 %v286
      %593 = vmatprep.subr.bf16.mxu0 0
      %594 = vmatpush1.bf16.msra.mxu0 %v287
      %595 = vmatprep.subr.bf16.mxu0 0
      %596 = vmatpush1.bf16.msra.mxu0 %v288
      %597 = vmatprep.subr.bf16.mxu0 0
      %598 = vmatpush1.bf16.msra.mxu0 %v289
      %599 = vmatprep.subr.bf16.mxu0 0
      %600 = vmatpush1.bf16.msra.mxu0 %v290
      %601 = vmatprep.subr.bf16.mxu0 0
      %602 = vmatpush1.bf16.msra.mxu0 %v291
      %603 = vmatprep.subr.bf16.mxu0 0
      %604 = vmatpush1.bf16.msra.mxu0 %v292
      %605 = vmatprep.subr.bf16.mxu0 0
      %606 = vmatpush1.bf16.msra.mxu0 %v293
      %607 = vmatprep.subr.bf16.mxu0 0
      %608 = vmatpush1.bf16.msra.mxu0 %v294
      %609 = vmatprep.subr.bf16.mxu0 0
      %610 = vmatpush1.bf16.msra.mxu0 %v323
      %611 = vmatprep.subr.bf16.mxu0 0
      %612 = vmatpush1.bf16.msra.mxu0 0
      %613 = vmatprep.subr.bf16.mxu0 0
      %614 = vmatpush1.bf16.msra.mxu0 0
      %615 = vmatprep.subr.bf16.mxu0 0
      %616 = vmatpush1.bf16.msra.mxu0 0
      %617 = vmatprep.subr.bf16.mxu0 0
      %618 = vmatpush1.bf16.msra.mxu0 0
      %619 = vmatprep.subr.bf16.mxu0 0
      %620 = vmatpush1.bf16.msra.mxu0 0
      %621 = vmatprep.subr.bf16.mxu0 0
      %622 = vmatpush1.bf16.msra.mxu0 0
      %623 = vmatprep.mubr.bf16.mxu0 %v580
      %624 = vmatmul.mubr.bf16.gmra.mrb[0].mxu0 %v567
      %v625 = vpop.f32.mrb[0].mxu0
      %v626 = vadd.f32 %v210, %v625
      %v627 = vpop.f32.mrb[0].mxu0
      %v628 = vpop.f32.mrb[0].mxu0
      %v629 = vadd.f32 %v210, %v628
      %v630 = vpop.f32.mrb[0].mxu0
      %631 = vmatprep.mubr.bf16.mxu0 %v583
      %632 = vmatmul.mubr.bf16.gmra.mrb[0].mxu0 %v569
      %v633 = vpop.f32.mrb[0].mxu0
      %v634 = vadd.f32 %v210, %v633
      %v635 = vpop.f32.mrb[0].mxu0
      %v636 = vpop.f32.mrb[0].mxu0
      %v637 = vadd.f32 %v210, %v636
      %v638 = vpop.f32.mrb[0].mxu0
      %639 = vmatprep.mubr.bf16.mxu0 %v586
      %640 = vmatmul.mubr.bf16.gmra.mrb[0].mxu0 %v571
      %v641 = vpop.f32.mrb[0].mxu0
      %v642 = vadd.f32 %v210, %v641
      %v643 = vpop.f32.mrb[0].mxu0
      %v644 = vpop.f32.mrb[0].mxu0
      %v645 = vadd.f32 %v210, %v644
      %v646 = vpop.f32.mrb[0].mxu0
      %647 = vmatprep.mubr.bf16.mxu0 %v589
      %648 = vmatmul.mubr.bf16.gmra.mrb[0].mxu0 %v573
      %v649 = vpop.f32.mrb[0].mxu0
      %v650 = vadd.f32 %v210, %v649
      %v651 = vpop.f32.mrb[0].mxu0
      %v652 = vpop.f32.mrb[0].mxu0
      %v653 = vadd.f32 %v210, %v652
      %v654 = vpop.f32.mrb[0].mxu0
      %655 = vdwg.mxu0
      %v656 = vmax.f32 %v626, 0.0
      %v657 = vmax.f32 %v629, 0.0
      %v658 = vmax.f32 %v634, 0.0
      %v659 = vmax.f32 %v637, 0.0
      %v660 = vmax.f32 %v642, 0.0
      %v661 = vmax.f32 %v645, 0.0
      %v662 = vmax.f32 %v650, 0.0
      %v663 = vmax.f32 %v653, 0.0
      %v664 = vmax.f32 %v527, %v656
      %v665 = vmax.f32 %v528, %v657
      %v666 = vmax.f32 %v529, %v658
      %v667 = vmax.f32 %v530, %v659
      %v668 = vmax.f32 %v531, %v660
      %v669 = vmax.f32 %v532, %v661
      %v670 = vmax.f32 %v533, %v662
      %v671 = vmax.f32 %v534, %v663
      %v672 = vld [vmem:[%s169 + $0xc0] sm:$0xff]
      %v673 = vld [vmem:[%s169 + $0xc8] sm:$0xff]
      %v674 = vld [vmem:[%s169 + $0xd0] sm:$0xff]
      %v675 = vld [vmem:[%s169 + $0xd8] sm:$0xff]
      %v676 = vld [vmem:[%s169 + $0xe0] sm:$0xff]
      %v677 = vld [vmem:[%s169 + $0xe8] sm:$0xff]
      %v678 = vld [vmem:[%s169 + $0xf0] sm:$0xff]
      %v679 = vld [vmem:[%s169 + $0xf8] sm:$0xff]
      %v688 = vunpack.c.l.b16 %v672
      %v689 = vunpack.c.h.b16 %v672
      %v690 = vunpack.c.l.b16 %v673
      %v691 = vunpack.c.h.b16 %v673
      %v692 = vunpack.c.l.b16 %v674
      %v693 = vunpack.c.h.b16 %v674
      %v694 = vunpack.c.l.b16 %v675
      %v695 = vunpack.c.h.b16 %v675
      %v696 = vunpack.c.l.b16 %v676
      %v697 = vunpack.c.h.b16 %v676
      %v698 = vunpack.c.l.b16 %v677
      %v699 = vunpack.c.h.b16 %v677
      %v700 = vunpack.c.l.b16 %v678
      %v701 = vunpack.c.h.b16 %v678
      %v702 = vunpack.c.l.b16 %v679
      %v703 = vunpack.c.h.b16 %v679
      %v704 = vpack.c.b16 %v690, %v688
      %v705 = vpack.c.b16 %v691, %v689
      %v706 = vpack.c.b16 %v694, %v692
      %v707 = vpack.c.b16 %v695, %v693
      %v708 = vpack.c.b16 %v698, %v696
      %v709 = vpack.c.b16 %v699, %v697
      %v710 = vpack.c.b16 %v702, %v700
      %v711 = vpack.c.b16 %v703, %v701
      %v717 = vsel %vm305, %v705, 0
      %v720 = vsel %vm305, %v707, 0
      %v723 = vsel %vm305, %v709, 0
      %v726 = vsel %vm305, %v711, 0
      %728 = vmatprep.subr.bf16.mxu0 0
      %729 = vmatpush1.bf16.msra.mxu0 %v286
      %730 = vmatprep.subr.bf16.mxu0 0
      %731 = vmatpush1.bf16.msra.mxu0 %v287
      %732 = vmatprep.subr.bf16.mxu0 0
      %733 = vmatpush1.bf16.msra.mxu0 %v288
      %734 = vmatprep.subr.bf16.mxu0 0
      %735 = vmatpush1.bf16.msra.mxu0 %v289
      %736 = vmatprep.subr.bf16.mxu0 0
      %737 = vmatpush1.bf16.msra.mxu0 %v290
      %738 = vmatprep.subr.bf16.mxu0 0
      %739 = vmatpush1.bf16.msra.mxu0 %v291
      %740 = vmatprep.subr.bf16.mxu0 0
      %741 = vmatpush1.bf16.msra.mxu0 %v292
      %742 = vmatprep.subr.bf16.mxu0 0
      %743 = vmatpush1.bf16.msra.mxu0 %v293
      %744 = vmatprep.subr.bf16.mxu0 0
      %745 = vmatpush1.bf16.msra.mxu0 %v294
      %746 = vmatprep.subr.bf16.mxu0 0
      %747 = vmatpush1.bf16.msra.mxu0 %v323
      %748 = vmatprep.subr.bf16.mxu0 0
      %749 = vmatpush1.bf16.msra.mxu0 0
      %750 = vmatprep.subr.bf16.mxu0 0
      %751 = vmatpush1.bf16.msra.mxu0 0
      %752 = vmatprep.subr.bf16.mxu0 0
      %753 = vmatpush1.bf16.msra.mxu0 0
      %754 = vmatprep.subr.bf16.mxu0 0
      %755 = vmatpush1.bf16.msra.mxu0 0
      %756 = vmatprep.subr.bf16.mxu0 0
      %757 = vmatpush1.bf16.msra.mxu0 0
      %758 = vmatprep.subr.bf16.mxu0 0
      %759 = vmatpush1.bf16.msra.mxu0 0
      %760 = vmatprep.mubr.bf16.mxu0 %v717
      %761 = vmatmul.mubr.bf16.gmra.mrb[0].mxu0 %v704
      %v762 = vpop.f32.mrb[0].mxu0
      %v763 = vadd.f32 %v210, %v762
      %v764 = vpop.f32.mrb[0].mxu0
      %v765 = vpop.f32.mrb[0].mxu0
      %v766 = vadd.f32 %v210, %v765
      %v767 = vpop.f32.mrb[0].mxu0
      %768 = vmatprep.mubr.bf16.mxu0 %v720
      %769 = vmatmul.mubr.bf16.gmra.mrb[0].mxu0 %v706
      %v770 = vpop.f32.mrb[0].mxu0
      %v771 = vadd.f32 %v210, %v770
      %v772 = vpop.f32.mrb[0].mxu0
      %v773 = vpop.f32.mrb[0].mxu0
      %v774 = vadd.f32 %v210, %v773
      %v775 = vpop.f32.mrb[0].mxu0
      %776 = vmatprep.mubr.bf16.mxu0 %v723
      %777 = vmatmul.mubr.bf16.gmra.mrb[0].mxu0 %v708
      %v778 = vpop.f32.mrb[0].mxu0
      %v779 = vadd.f32 %v210, %v778
      %v780 = vpop.f32.mrb[0].mxu0
      %v781 = vpop.f32.mrb[0].mxu0
      %v782 = vadd.f32 %v210, %v781
      %v783 = vpop.f32.mrb[0].mxu0
      %784 = vmatprep.mubr.bf16.mxu0 %v726
      %785 = vmatmul.mubr.bf16.gmra.mrb[0].mxu0 %v710
      %v786 = vpop.f32.mrb[0].mxu0
      %v787 = vadd.f32 %v210, %v786
      %v788 = vpop.f32.mrb[0].mxu0
      %v789 = vpop.f32.mrb[0].mxu0
      %v790 = vadd.f32 %v210, %v789
      %v791 = vpop.f32.mrb[0].mxu0
      %792 = vdwg.mxu0
      %v793 = vmax.f32 %v763, 0.0
      %v794 = vmax.f32 %v766, 0.0
      %v795 = vmax.f32 %v771, 0.0
      %v796 = vmax.f32 %v774, 0.0
      %v797 = vmax.f32 %v779, 0.0
      %v798 = vmax.f32 %v782, 0.0
      %v799 = vmax.f32 %v787, 0.0
      %v800 = vmax.f32 %v790, 0.0
      %v801 = vmax.f32 %v664, %v793
      %v802 = vmax.f32 %v665, %v794
      %v803 = vmax.f32 %v666, %v795
      %v804 = vmax.f32 %v667, %v796
      %v805 = vmax.f32 %v668, %v797
      %v806 = vmax.f32 %v669, %v798
      %v807 = vmax.f32 %v670, %v799
      %v808 = vmax.f32 %v671, %v800
      %v809 = vld [vmem:[%s169 + $0x100] sm:$0xff]
      %v810 = vld [vmem:[%s169 + $0x108] sm:$0xff]
      %v811 = vld [vmem:[%s169 + $0x110] sm:$0xff]
      %v812 = vld [vmem:[%s169 + $0x118] sm:$0xff]
      %v813 = vld [vmem:[%s169 + $0x120] sm:$0xff]
      %v814 = vld [vmem:[%s169 + $0x128] sm:$0xff]
      %v815 = vld [vmem:[%s169 + $0x130] sm:$0xff]
      %v816 = vld [vmem:[%s169 + $0x138] sm:$0xff]
      %v825 = vunpack.c.l.b16 %v809
      %v826 = vunpack.c.h.b16 %v809
      %v827 = vunpack.c.l.b16 %v810
      %v828 = vunpack.c.h.b16 %v810
      %v829 = vunpack.c.l.b16 %v811
      %v830 = vunpack.c.h.b16 %v811
      %v831 = vunpack.c.l.b16 %v812
      %v832 = vunpack.c.h.b16 %v812
      %v833 = vunpack.c.l.b16 %v813
      %v834 = vunpack.c.h.b16 %v813
      %v835 = vunpack.c.l.b16 %v814
      %v836 = vunpack.c.h.b16 %v814
      %v837 = vunpack.c.l.b16 %v815
      %v838 = vunpack.c.h.b16 %v815
      %v839 = vunpack.c.l.b16 %v816
      %v840 = vunpack.c.h.b16 %v816
      %v841 = vpack.c.b16 %v827, %v825
      %v842 = vpack.c.b16 %v828, %v826
      %v843 = vpack.c.b16 %v831, %v829
      %v844 = vpack.c.b16 %v832, %v830
      %v845 = vpack.c.b16 %v835, %v833
      %v846 = vpack.c.b16 %v836, %v834
      %v847 = vpack.c.b16 %v839, %v837
      %v848 = vpack.c.b16 %v840, %v838
      %v854 = vsel %vm305, %v842, 0
      %v857 = vsel %vm305, %v844, 0
      %v860 = vsel %vm305, %v846, 0
      %v863 = vsel %vm305, %v848, 0
      %865 = vmatprep.subr.bf16.mxu0 0
      %866 = vmatpush1.bf16.msra.mxu0 %v286
      %867 = vmatprep.subr.bf16.mxu0 0
      %868 = vmatpush1.bf16.msra.mxu0 %v287
      %869 = vmatprep.subr.bf16.mxu0 0
      %870 = vmatpush1.bf16.msra.mxu0 %v288
      %871 = vmatprep.subr.bf16.mxu0 0
      %872 = vmatpush1.bf16.msra.mxu0 %v289
      %873 = vmatprep.subr.bf16.mxu0 0
      %874 = vmatpush1.bf16.msra.mxu0 %v290
      %875 = vmatprep.subr.bf16.mxu0 0
      %876 = vmatpush1.bf16.msra.mxu0 %v291
      %877 = vmatprep.subr.bf16.mxu0 0
      %878 = vmatpush1.bf16.msra.mxu0 %v292
      %879 = vmatprep.subr.bf16.mxu0 0
      %880 = vmatpush1.bf16.msra.mxu0 %v293
      %881 = vmatprep.subr.bf16.mxu0 0
      %882 = vmatpush1.bf16.msra.mxu0 %v294
      %883 = vmatprep.subr.bf16.mxu0 0
      %884 = vmatpush1.bf16.msra.mxu0 %v323
      %885 = vmatprep.subr.bf16.mxu0 0
      %886 = vmatpush1.bf16.msra.mxu0 0
      %887 = vmatprep.subr.bf16.mxu0 0
      %888 = vmatpush1.bf16.msra.mxu0 0
      %889 = vmatprep.subr.bf16.mxu0 0
      %890 = vmatpush1.bf16.msra.mxu0 0
      %891 = vmatprep.subr.bf16.mxu0 0
      %892 = vmatpush1.bf16.msra.mxu0 0
      %893 = vmatprep.subr.bf16.mxu0 0
      %894 = vmatpush1.bf16.msra.mxu0 0
      %895 = vmatprep.subr.bf16.mxu0 0
      %896 = vmatpush1.bf16.msra.mxu0 0
      %897 = vmatprep.mubr.bf16.mxu0 %v854
      %898 = vmatmul.mubr.bf16.gmra.mrb[0].mxu0 %v841
      %v899 = vpop.f32.mrb[0].mxu0
      %v900 = vadd.f32 %v210, %v899
      %v901 = vpop.f32.mrb[0].mxu0
      %v902 = vpop.f32.mrb[0].mxu0
      %v903 = vadd.f32 %v210, %v902
      %v904 = vpop.f32.mrb[0].mxu0
      %905 = vmatprep.mubr.bf16.mxu0 %v857
      %906 = vmatmul.mubr.bf16.gmra.mrb[0].mxu0 %v843
      %v907 = vpop.f32.mrb[0].mxu0
      %v908 = vadd.f32 %v210, %v907
      %v909 = vpop.f32.mrb[0].mxu0
      %v910 = vpop.f32.mrb[0].mxu0
      %v911 = vadd.f32 %v210, %v910
      %v912 = vpop.f32.mrb[0].mxu0
      %913 = vmatprep.mubr.bf16.mxu0 %v860
      %914 = vmatmul.mubr.bf16.gmra.mrb[0].mxu0 %v845
      %v915 = vpop.f32.mrb[0].mxu0
      %v916 = vadd.f32 %v210, %v915
      %v917 = vpop.f32.mrb[0].mxu0
      %v918 = vpop.f32.mrb[0].mxu0
      %v919 = vadd.f32 %v210, %v918
      %v920 = vpop.f32.mrb[0].mxu0
      %921 = vmatprep.mubr.bf16.mxu0 %v863
      %922 = vmatmul.mubr.bf16.gmra.mrb[0].mxu0 %v847
      %v923 = vpop.f32.mrb[0].mxu0
      %v924 = vadd.f32 %v210, %v923
      %v925 = vpop.f32.mrb[0].mxu0
      %v926 = vpop.f32.mrb[0].mxu0
      %v927 = vadd.f32 %v210, %v926
      %v928 = vpop.f32.mrb[0].mxu0
      %929 = vdwg.mxu0
      %v930 = vmax.f32 %v900, 0.0
      %v931 = vmax.f32 %v903, 0.0
      %v932 = vmax.f32 %v908, 0.0
      %v933 = vmax.f32 %v911, 0.0
      %v934 = vmax.f32 %v916, 0.0
      %v935 = vmax.f32 %v919, 0.0
      %v936 = vmax.f32 %v924, 0.0
      %v937 = vmax.f32 %v927, 0.0
      %v938 = vmax.f32 %v801, %v930
      %v939 = vmax.f32 %v802, %v931
      %v940 = vmax.f32 %v803, %v932
      %v941 = vmax.f32 %v804, %v933
      %v942 = vmax.f32 %v805, %v934
      %v943 = vmax.f32 %v806, %v935
      %v944 = vmax.f32 %v807, %v936
      %v945 = vmax.f32 %v808, %v937
      %v946 = vld [vmem:[%s169 + $0x140] sm:$0xff]
      %v947 = vld [vmem:[%s169 + $0x148] sm:$0xff]
      %v948 = vld [vmem:[%s169 + $0x150] sm:$0xff]
      %v949 = vld [vmem:[%s169 + $0x158] sm:$0xff]
      %v950 = vld [vmem:[%s169 + $0x160] sm:$0xff]
      %v951 = vld [vmem:[%s169 + $0x168] sm:$0xff]
      %v952 = vld [vmem:[%s169 + $0x170] sm:$0xff]
      %v953 = vld [vmem:[%s169 + $0x178] sm:$0xff]
      %v962 = vunpack.c.l.b16 %v946
      %v963 = vunpack.c.h.b16 %v946
      %v964 = vunpack.c.l.b16 %v947
      %v965 = vunpack.c.h.b16 %v947
      %v966 = vunpack.c.l.b16 %v948
      %v967 = vunpack.c.h.b16 %v948
      %v968 = vunpack.c.l.b16 %v949
      %v969 = vunpack.c.h.b16 %v949
      %v970 = vunpack.c.l.b16 %v950
      %v971 = vunpack.c.h.b16 %v950
      %v972 = vunpack.c.l.b16 %v951
      %v973 = vunpack.c.h.b16 %v951
      %v974 = vunpack.c.l.b16 %v952
      %v975 = vunpack.c.h.b16 %v952
      %v976 = vunpack.c.l.b16 %v953
      %v977 = vunpack.c.h.b16 %v953
      %v978 = vpack.c.b16 %v964, %v962
      %v979 = vpack.c.b16 %v965, %v963
      %v980 = vpack.c.b16 %v968, %v966
      %v981 = vpack.c.b16 %v969, %v967
      %v982 = vpack.c.b16 %v972, %v970
      %v983 = vpack.c.b16 %v973, %v971
      %v984 = vpack.c.b16 %v976, %v974
      %v985 = vpack.c.b16 %v977, %v975
      %v991 = vsel %vm305, %v979, 0
      %v994 = vsel %vm305, %v981, 0
      %v997 = vsel %vm305, %v983, 0
      %v1000 = vsel %vm305, %v985, 0
      %1002 = vmatprep.subr.bf16.mxu0 0
      %1003 = vmatpush1.bf16.msra.mxu0 %v286
      %1004 = vmatprep.subr.bf16.mxu0 0
      %1005 = vmatpush1.bf16.msra.mxu0 %v287
      %1006 = vmatprep.subr.bf16.mxu0 0
      %1007 = vmatpush1.bf16.msra.mxu0 %v288
      %1008 = vmatprep.subr.bf16.mxu0 0
      %1009 = vmatpush1.bf16.msra.mxu0 %v289
      %1010 = vmatprep.subr.bf16.mxu0 0
      %1011 = vmatpush1.bf16.msra.mxu0 %v290
      %1012 = vmatprep.subr.bf16.mxu0 0
      %1013 = vmatpush1.bf16.msra.mxu0 %v291
      %1014 = vmatprep.subr.bf16.mxu0 0
      %1015 = vmatpush1.bf16.msra.mxu0 %v292
      %1016 = vmatprep.subr.bf16.mxu0 0
      %1017 = vmatpush1.bf16.msra.mxu0 %v293
      %1018 = vmatprep.subr.bf16.mxu0 0
      %1019 = vmatpush1.bf16.msra.mxu0 %v294
      %1020 = vmatprep.subr.bf16.mxu0 0
      %1021 = vmatpush1.bf16.msra.mxu0 %v323
      %1022 = vmatprep.subr.bf16.mxu0 0
      %1023 = vmatpush1.bf16.msra.mxu0 0
      %1024 = vmatprep.subr.bf16.mxu0 0
      %1025 = vmatpush1.bf16.msra.mxu0 0
      %1026 = vmatprep.subr.bf16.mxu0 0
      %1027 = vmatpush1.bf16.msra.mxu0 0
      %1028 = vmatprep.subr.bf16.mxu0 0
      %1029 = vmatpush1.bf16.msra.mxu0 0
      %1030 = vmatprep.subr.bf16.mxu0 0
      %1031 = vmatpush1.bf16.msra.mxu0 0
      %1032 = vmatprep.subr.bf16.mxu0 0
      %1033 = vmatpush1.bf16.msra.mxu0 0
      %1034 = vmatprep.mubr.bf16.mxu0 %v991
      %1035 = vmatmul.mubr.bf16.gmra.mrb[0].mxu0 %v978
      %v1036 = vpop.f32.mrb[0].mxu0
      %v1037 = vadd.f32 %v210, %v1036
      %v1038 = vpop.f32.mrb[0].mxu0
      %v1039 = vpop.f32.mrb[0].mxu0
      %v1040 = vadd.f32 %v210, %v1039
      %v1041 = vpop.f32.mrb[0].mxu0
      %1042 = vmatprep.mubr.bf16.mxu0 %v994
      %1043 = vmatmul.mubr.bf16.gmra.mrb[0].mxu0 %v980
      %v1044 = vpop.f32.mrb[0].mxu0
      %v1045 = vadd.f32 %v210, %v1044
      %v1046 = vpop.f32.mrb[0].mxu0
      %v1047 = vpop.f32.mrb[0].mxu0
      %v1048 = vadd.f32 %v210, %v1047
      %v1049 = vpop.f32.mrb[0].mxu0
      %1050 = vmatprep.mubr.bf16.mxu0 %v997
      %1051 = vmatmul.mubr.bf16.gmra.mrb[0].mxu0 %v982
      %v1052 = vpop.f32.mrb[0].mxu0
      %v1053 = vadd.f32 %v210, %v1052
      %v1054 = vpop.f32.mrb[0].mxu0
      %v1055 = vpop.f32.mrb[0].mxu0
      %v1056 = vadd.f32 %v210, %v1055
      %v1057 = vpop.f32.mrb[0].mxu0
      %1058 = vmatprep.mubr.bf16.mxu0 %v1000
      %1059 = vmatmul.mubr.bf16.gmra.mrb[0].mxu0 %v984
      %v1060 = vpop.f32.mrb[0].mxu0
      %v1061 = vadd.f32 %v210, %v1060
      %v1062 = vpop.f32.mrb[0].mxu0
      %v1063 = vpop.f32.mrb[0].mxu0
      %v1064 = vadd.f32 %v210, %v1063
      %v1065 = vpop.f32.mrb[0].mxu0
      %1066 = vdwg.mxu0
      %v1067 = vmax.f32 %v1037, 0.0
      %v1068 = vmax.f32 %v1040, 0.0
      %v1069 = vmax.f32 %v1045, 0.0
      %v1070 = vmax.f32 %v1048, 0.0
      %v1071 = vmax.f32 %v1053, 0.0
      %v1072 = vmax.f32 %v1056, 0.0
      %v1073 = vmax.f32 %v1061, 0.0
      %v1074 = vmax.f32 %v1064, 0.0
      %v1075 = vmax.f32 %v938, %v1067
      %v1076 = vmax.f32 %v939, %v1068
      %v1077 = vmax.f32 %v940, %v1069
      %v1078 = vmax.f32 %v941, %v1070
      %v1079 = vmax.f32 %v942, %v1071
      %v1080 = vmax.f32 %v943, %v1072
      %v1081 = vmax.f32 %v944, %v1073
      %v1082 = vmax.f32 %v945, %v1074
      %v1083 = vld [vmem:[%s169 + $0x180] sm:$0xff]
      %v1084 = vld [vmem:[%s169 + $0x188] sm:$0xff]
      %v1085 = vld [vmem:[%s169 + $0x190] sm:$0xff]
      %v1086 = vld [vmem:[%s169 + $0x198] sm:$0xff]
      %v1087 = vld [vmem:[%s169 + $0x1a0] sm:$0xff]
      %v1088 = vld [vmem:[%s169 + $0x1a8] sm:$0xff]
      %v1089 = vld [vmem:[%s169 + $0x1b0] sm:$0xff]
      %v1090 = vld [vmem:[%s169 + $0x1b8] sm:$0xff]
      %v1099 = vunpack.c.l.b16 %v1083
      %v1100 = vunpack.c.h.b16 %v1083
      %v1101 = vunpack.c.l.b16 %v1084
      %v1102 = vunpack.c.h.b16 %v1084
      %v1103 = vunpack.c.l.b16 %v1085
      %v1104 = vunpack.c.h.b16 %v1085
      %v1105 = vunpack.c.l.b16 %v1086
      %v1106 = vunpack.c.h.b16 %v1086
      %v1107 = vunpack.c.l.b16 %v1087
      %v1108 = vunpack.c.h.b16 %v1087
      %v1109 = vunpack.c.l.b16 %v1088
      %v1110 = vunpack.c.h.b16 %v1088
      %v1111 = vunpack.c.l.b16 %v1089
      %v1112 = vunpack.c.h.b16 %v1089
      %v1113 = vunpack.c.l.b16 %v1090
      %v1114 = vunpack.c.h.b16 %v1090
      %v1115 = vpack.c.b16 %v1101, %v1099
      %v1116 = vpack.c.b16 %v1102, %v1100
      %v1117 = vpack.c.b16 %v1105, %v1103
      %v1118 = vpack.c.b16 %v1106, %v1104
      %v1119 = vpack.c.b16 %v1109, %v1107
      %v1120 = vpack.c.b16 %v1110, %v1108
      %v1121 = vpack.c.b16 %v1113, %v1111
      %v1122 = vpack.c.b16 %v1114, %v1112
      %v1128 = vsel %vm305, %v1116, 0
      %v1131 = vsel %vm305, %v1118, 0
      %v1134 = vsel %vm305, %v1120, 0
      %v1137 = vsel %vm305, %v1122, 0
      %1139 = vmatprep.subr.bf16.mxu0 0
      %1140 = vmatpush1.bf16.msra.mxu0 %v286
      %1141 = vmatprep.subr.bf16.mxu0 0
      %1142 = vmatpush1.bf16.msra.mxu0 %v287
      %1143 = vmatprep.subr.bf16.mxu0 0
      %1144 = vmatpush1.bf16.msra.mxu0 %v288
      %1145 = vmatprep.subr.bf16.mxu0 0
      %1146 = vmatpush1.bf16.msra.mxu0 %v289
      %1147 = vmatprep.subr.bf16.mxu0 0
      %1148 = vmatpush1.bf16.msra.mxu0 %v290
      %1149 = vmatprep.subr.bf16.mxu0 0
      %1150 = vmatpush1.bf16.msra.mxu0 %v291
      %1151 = vmatprep.subr.bf16.mxu0 0
      %1152 = vmatpush1.bf16.msra.mxu0 %v292
      %1153 = vmatprep.subr.bf16.mxu0 0
      %1154 = vmatpush1.bf16.msra.mxu0 %v293
      %1155 = vmatprep.subr.bf16.mxu0 0
      %1156 = vmatpush1.bf16.msra.mxu0 %v294
      %1157 = vmatprep.subr.bf16.mxu0 0
      %1158 = vmatpush1.bf16.msra.mxu0 %v323
      %1159 = vmatprep.subr.bf16.mxu0 0
      %1160 = vmatpush1.bf16.msra.mxu0 0
      %1161 = vmatprep.subr.bf16.mxu0 0
      %1162 = vmatpush1.bf16.msra.mxu0 0
      %1163 = vmatprep.subr.bf16.mxu0 0
      %1164 = vmatpush1.bf16.msra.mxu0 0
      %1165 = vmatprep.subr.bf16.mxu0 0
      %1166 = vmatpush1.bf16.msra.mxu0 0
      %1167 = vmatprep.subr.bf16.mxu0 0
      %1168 = vmatpush1.bf16.msra.mxu0 0
      %1169 = vmatprep.subr.bf16.mxu0 0
      %1170 = vmatpush1.bf16.msra.mxu0 0
      %1171 = vmatprep.mubr.bf16.mxu0 %v1128
      %1172 = vmatmul.mubr.bf16.gmra.mrb[0].mxu0 %v1115
      %v1173 = vpop.f32.mrb[0].mxu0
      %v1174 = vadd.f32 %v210, %v1173
      %v1175 = vpop.f32.mrb[0].mxu0
      %v1176 = vpop.f32.mrb[0].mxu0
      %v1177 = vadd.f32 %v210, %v1176
      %v1178 = vpop.f32.mrb[0].mxu0
      %1179 = vmatprep.mubr.bf16.mxu0 %v1131
      %1180 = vmatmul.mubr.bf16.gmra.mrb[0].mxu0 %v1117
      %v1181 = vpop.f32.mrb[0].mxu0
      %v1182 = vadd.f32 %v210, %v1181
      %v1183 = vpop.f32.mrb[0].mxu0
      %v1184 = vpop.f32.mrb[0].mxu0
      %v1185 = vadd.f32 %v210, %v1184
      %v1186 = vpop.f32.mrb[0].mxu0
      %1187 = vmatprep.mubr.bf16.mxu0 %v1134
      %1188 = vmatmul.mubr.bf16.gmra.mrb[0].mxu0 %v1119
      %v1189 = vpop.f32.mrb[0].mxu0
      %v1190 = vadd.f32 %v210, %v1189
      %v1191 = vpop.f32.mrb[0].mxu0
      %v1192 = vpop.f32.mrb[0].mxu0
      %v1193 = vadd.f32 %v210, %v1192
      %v1194 = vpop.f32.mrb[0].mxu0
      %1195 = vmatprep.mubr.bf16.mxu0 %v1137
      %1196 = vmatmul.mubr.bf16.gmra.mrb[0].mxu0 %v1121
      %v1197 = vpop.f32.mrb[0].mxu0
      %v1198 = vadd.f32 %v210, %v1197
      %v1199 = vpop.f32.mrb[0].mxu0
      %v1200 = vpop.f32.mrb[0].mxu0
      %v1201 = vadd.f32 %v210, %v1200
      %v1202 = vpop.f32.mrb[0].mxu0
      %1203 = vdwg.mxu0
      %v1204 = vmax.f32 %v1174, 0.0
      %v1205 = vmax.f32 %v1177, 0.0
      %v1206 = vmax.f32 %v1182, 0.0
      %v1207 = vmax.f32 %v1185, 0.0
      %v1208 = vmax.f32 %v1190, 0.0
      %v1209 = vmax.f32 %v1193, 0.0
      %v1210 = vmax.f32 %v1198, 0.0
      %v1211 = vmax.f32 %v1201, 0.0
      %v1212 = vmax.f32 %v1075, %v1204
      %v1213 = vmax.f32 %v1076, %v1205
      %v1214 = vmax.f32 %v1077, %v1206
      %v1215 = vmax.f32 %v1078, %v1207
      %v1216 = vmax.f32 %v1079, %v1208
      %v1217 = vmax.f32 %v1080, %v1209
      %v1218 = vmax.f32 %v1081, %v1210
      %v1219 = vmax.f32 %v1082, %v1211
      %v1220 = vld [vmem:[%s169 + $0x1c0] sm:$0xff]
      %v1221 = vld [vmem:[%s169 + $0x1c8] sm:$0xff]
      %v1222 = vld [vmem:[%s169 + $0x1d0] sm:$0xff]
      %v1223 = vld [vmem:[%s169 + $0x1d8] sm:$0xff]
      %v1224 = vld [vmem:[%s169 + $0x1e0] sm:$0xff]
      %v1225 = vld [vmem:[%s169 + $0x1e8] sm:$0xff]
      %v1226 = vld [vmem:[%s169 + $0x1f0] sm:$0xff]
      %v1227 = vld [vmem:[%s169 + $0x1f8] sm:$0xff]
      %v1236 = vunpack.c.l.b16 %v1220
      %v1237 = vunpack.c.h.b16 %v1220
      %v1238 = vunpack.c.l.b16 %v1221
      %v1239 = vunpack.c.h.b16 %v1221
      %v1240 = vunpack.c.l.b16 %v1222
      %v1241 = vunpack.c.h.b16 %v1222
      %v1242 = vunpack.c.l.b16 %v1223
      %v1243 = vunpack.c.h.b16 %v1223
      %v1244 = vunpack.c.l.b16 %v1224
      %v1245 = vunpack.c.h.b16 %v1224
      %v1246 = vunpack.c.l.b16 %v1225
      %v1247 = vunpack.c.h.b16 %v1225
      %v1248 = vunpack.c.l.b16 %v1226
      %v1249 = vunpack.c.h.b16 %v1226
      %v1250 = vunpack.c.l.b16 %v1227
      %v1251 = vunpack.c.h.b16 %v1227
      %v1252 = vpack.c.b16 %v1238, %v1236
      %v1253 = vpack.c.b16 %v1239, %v1237
      %v1254 = vpack.c.b16 %v1242, %v1240
      %v1255 = vpack.c.b16 %v1243, %v1241
      %v1256 = vpack.c.b16 %v1246, %v1244
      %v1257 = vpack.c.b16 %v1247, %v1245
      %v1258 = vpack.c.b16 %v1250, %v1248
      %v1259 = vpack.c.b16 %v1251, %v1249
      %v1265 = vsel %vm305, %v1253, 0
      %v1268 = vsel %vm305, %v1255, 0
      %v1271 = vsel %vm305, %v1257, 0
      %v1274 = vsel %vm305, %v1259, 0
      %1276 = vmatprep.subr.bf16.mxu0 0
      %1277 = vmatpush1.bf16.msra.mxu0 %v286
      %1278 = vmatprep.subr.bf16.mxu0 0
      %1279 = vmatpush1.bf16.msra.mxu0 %v287
      %1280 = vmatprep.subr.bf16.mxu0 0
      %1281 = vmatpush1.bf16.msra.mxu0 %v288
      %1282 = vmatprep.subr.bf16.mxu0 0
      %1283 = vmatpush1.bf16.msra.mxu0 %v289
      %1284 = vmatprep.subr.bf16.mxu0 0
      %1285 = vmatpush1.bf16.msra.mxu0 %v290
      %1286 = vmatprep.subr.bf16.mxu0 0
      %1287 = vmatpush1.bf16.msra.mxu0 %v291
      %1288 = vmatprep.subr.bf16.mxu0 0
      %1289 = vmatpush1.bf16.msra.mxu0 %v292
      %1290 = vmatprep.subr.bf16.mxu0 0
      %1291 = vmatpush1.bf16.msra.mxu0 %v293
      %1292 = vmatprep.subr.bf16.mxu0 0
      %1293 = vmatpush1.bf16.msra.mxu0 %v294
      %1294 = vmatprep.subr.bf16.mxu0 0
      %1295 = vmatpush1.bf16.msra.mxu0 %v323
      %1296 = vmatprep.subr.bf16.mxu0 0
      %1297 = vmatpush1.bf16.msra.mxu0 0
      %1298 = vmatprep.subr.bf16.mxu0 0
      %1299 = vmatpush1.bf16.msra.mxu0 0
      %1300 = vmatprep.subr.bf16.mxu0 0
      %1301 = vmatpush1.bf16.msra.mxu0 0
      %1302 = vmatprep.subr.bf16.mxu0 0
      %1303 = vmatpush1.bf16.msra.mxu0 0
      %1304 = vmatprep.subr.bf16.mxu0 0
      %1305 = vmatpush1.bf16.msra.mxu0 0
      %1306 = vmatprep.subr.bf16.mxu0 0
      %1307 = vmatpush1.bf16.msra.mxu0 0
      %1308 = vmatprep.mubr.bf16.mxu0 %v1265
      %1309 = vmatmul.mubr.bf16.gmra.mrb[0].mxu0 %v1252
      %v1310 = vpop.f32.mrb[0].mxu0
      %v1311 = vadd.f32 %v210, %v1310
      %v1312 = vpop.f32.mrb[0].mxu0
      %v1313 = vpop.f32.mrb[0].mxu0
      %v1314 = vadd.f32 %v210, %v1313
      %v1315 = vpop.f32.mrb[0].mxu0
      %1316 = vmatprep.mubr.bf16.mxu0 %v1268
      %1317 = vmatmul.mubr.bf16.gmra.mrb[0].mxu0 %v1254
      %v1318 = vpop.f32.mrb[0].mxu0
      %v1319 = vadd.f32 %v210, %v1318
      %v1320 = vpop.f32.mrb[0].mxu0
      %v1321 = vpop.f32.mrb[0].mxu0
      %v1322 = vadd.f32 %v210, %v1321
      %v1323 = vpop.f32.mrb[0].mxu0
      %1324 = vmatprep.mubr.bf16.mxu0 %v1271
      %1325 = vmatmul.mubr.bf16.gmra.mrb[0].mxu0 %v1256
      %v1326 = vpop.f32.mrb[0].mxu0
      %v1327 = vadd.f32 %v210, %v1326
      %v1328 = vpop.f32.mrb[0].mxu0
      %v1329 = vpop.f32.mrb[0].mxu0
      %v1330 = vadd.f32 %v210, %v1329
      %v1331 = vpop.f32.mrb[0].mxu0
      %1332 = vmatprep.mubr.bf16.mxu0 %v1274
      %1333 = vmatmul.mubr.bf16.gmra.mrb[0].mxu0 %v1258
      %v1334 = vpop.f32.mrb[0].mxu0
      %v1335 = vadd.f32 %v210, %v1334
      %v1336 = vpop.f32.mrb[0].mxu0
      %v1337 = vpop.f32.mrb[0].mxu0
      %v1338 = vadd.f32 %v210, %v1337
      %v1339 = vpop.f32.mrb[0].mxu0
      %1340 = vdwg.mxu0
      %v1341 = vmax.f32 %v1311, 0.0
      %v1342 = vmax.f32 %v1314, 0.0
      %v1343 = vmax.f32 %v1319, 0.0
      %v1344 = vmax.f32 %v1322, 0.0
      %v1345 = vmax.f32 %v1327, 0.0
      %v1346 = vmax.f32 %v1330, 0.0
      %v1347 = vmax.f32 %v1335, 0.0
      %v1348 = vmax.f32 %v1338, 0.0
      %v1349 = vmax.f32 %v1212, %v1341
      %v1350 = vmax.f32 %v1213, %v1342
      %v1351 = vmax.f32 %v1214, %v1343
      %v1352 = vmax.f32 %v1215, %v1344
      %v1353 = vmax.f32 %v1216, %v1345
      %v1354 = vmax.f32 %v1217, %v1346
      %v1355 = vmax.f32 %v1218, %v1347
      %v1356 = vmax.f32 %v1219, %v1348
      %v1357 = vld [vmem:[%s169 + $0x200] sm:$0xff]
      %v1358 = vld [vmem:[%s169 + $0x208] sm:$0xff]
      %v1359 = vld [vmem:[%s169 + $0x210] sm:$0xff]
      %v1360 = vld [vmem:[%s169 + $0x218] sm:$0xff]
      %v1361 = vld [vmem:[%s169 + $0x220] sm:$0xff]
      %v1362 = vld [vmem:[%s169 + $0x228] sm:$0xff]
      %v1363 = vld [vmem:[%s169 + $0x230] sm:$0xff]
      %v1364 = vld [vmem:[%s169 + $0x238] sm:$0xff]
      %v1373 = vunpack.c.l.b16 %v1357
      %v1374 = vunpack.c.h.b16 %v1357
      %v1375 = vunpack.c.l.b16 %v1358
      %v1376 = vunpack.c.h.b16 %v1358
      %v1377 = vunpack.c.l.b16 %v1359
      %v1378 = vunpack.c.h.b16 %v1359
      %v1379 = vunpack.c.l.b16 %v1360
      %v1380 = vunpack.c.h.b16 %v1360
      %v1381 = vunpack.c.l.b16 %v1361
      %v1382 = vunpack.c.h.b16 %v1361
      %v1383 = vunpack.c.l.b16 %v1362
      %v1384 = vunpack.c.h.b16 %v1362
      %v1385 = vunpack.c.l.b16 %v1363
      %v1386 = vunpack.c.h.b16 %v1363
      %v1387 = vunpack.c.l.b16 %v1364
      %v1388 = vunpack.c.h.b16 %v1364
      %v1389 = vpack.c.b16 %v1375, %v1373
      %v1390 = vpack.c.b16 %v1376, %v1374
      %v1391 = vpack.c.b16 %v1379, %v1377
      %v1392 = vpack.c.b16 %v1380, %v1378
      %v1393 = vpack.c.b16 %v1383, %v1381
      %v1394 = vpack.c.b16 %v1384, %v1382
      %v1395 = vpack.c.b16 %v1387, %v1385
      %v1396 = vpack.c.b16 %v1388, %v1386
      %v1402 = vsel %vm305, %v1390, 0
      %v1405 = vsel %vm305, %v1392, 0
      %v1408 = vsel %vm305, %v1394, 0
      %v1411 = vsel %vm305, %v1396, 0
      %1413 = vmatprep.subr.bf16.mxu0 0
      %1414 = vmatpush1.bf16.msra.mxu0 %v286
      %1415 = vmatprep.subr.bf16.mxu0 0
      %1416 = vmatpush1.bf16.msra.mxu0 %v287
      %1417 = vmatprep.subr.bf16.mxu0 0
      %1418 = vmatpush1.bf16.msra.mxu0 %v288
      %1419 = vmatprep.subr.bf16.mxu0 0
      %1420 = vmatpush1.bf16.msra.mxu0 %v289
      %1421 = vmatprep.subr.bf16.mxu0 0
      %1422 = vmatpush1.bf16.msra.mxu0 %v290
      %1423 = vmatprep.subr.bf16.mxu0 0
      %1424 = vmatpush1.bf16.msra.mxu0 %v291
      %1425 = vmatprep.subr.bf16.mxu0 0
      %1426 = vmatpush1.bf16.msra.mxu0 %v292
      %1427 = vmatprep.subr.bf16.mxu0 0
      %1428 = vmatpush1.bf16.msra.mxu0 %v293
      %1429 = vmatprep.subr.bf16.mxu0 0
      %1430 = vmatpush1.bf16.msra.mxu0 %v294
      %1431 = vmatprep.subr.bf16.mxu0 0
      %1432 = vmatpush1.bf16.msra.mxu0 %v323
      %1433 = vmatprep.subr.bf16.mxu0 0
      %1434 = vmatpush1.bf16.msra.mxu0 0
      %1435 = vmatprep.subr.bf16.mxu0 0
      %1436 = vmatpush1.bf16.msra.mxu0 0
      %1437 = vmatprep.subr.bf16.mxu0 0
      %1438 = vmatpush1.bf16.msra.mxu0 0
      %1439 = vmatprep.subr.bf16.mxu0 0
      %1440 = vmatpush1.bf16.msra.mxu0 0
      %1441 = vmatprep.subr.bf16.mxu0 0
      %1442 = vmatpush1.bf16.msra.mxu0 0
      %1443 = vmatprep.subr.bf16.mxu0 0
      %1444 = vmatpush1.bf16.msra.mxu0 0
      %1445 = vmatprep.mubr.bf16.mxu0 %v1402
      %1446 = vmatmul.mubr.bf16.gmra.mrb[0].mxu0 %v1389
      %v1447 = vpop.f32.mrb[0].mxu0
      %v1448 = vadd.f32 %v210, %v1447
      %v1449 = vpop.f32.mrb[0].mxu0
      %v1450 = vpop.f32.mrb[0].mxu0
      %v1451 = vadd.f32 %v210, %v1450
      %v1452 = vpop.f32.mrb[0].mxu0
      %1453 = vmatprep.mubr.bf16.mxu0 %v1405
      %1454 = vmatmul.mubr.bf16.gmra.mrb[0].mxu0 %v1391
      %v1455 = vpop.f32.mrb[0].mxu0
      %v1456 = vadd.f32 %v210, %v1455
      %v1457 = vpop.f32.mrb[0].mxu0
      %v1458 = vpop.f32.mrb[0].mxu0
      %v1459 = vadd.f32 %v210, %v1458
      %v1460 = vpop.f32.mrb[0].mxu0
      %1461 = vmatprep.mubr.bf16.mxu0 %v1408
      %1462 = vmatmul.mubr.bf16.gmra.mrb[0].mxu0 %v1393
      %v1463 = vpop.f32.mrb[0].mxu0
      %v1464 = vadd.f32 %v210, %v1463
      %v1465 = vpop.f32.mrb[0].mxu0
      %v1466 = vpop.f32.mrb[0].mxu0
      %v1467 = vadd.f32 %v210, %v1466
      %v1468 = vpop.f32.mrb[0].mxu0
      %1469 = vmatprep.mubr.bf16.mxu0 %v1411
      %1470 = vmatmul.mubr.bf16.gmra.mrb[0].mxu0 %v1395
      %v1471 = vpop.f32.mrb[0].mxu0
      %v1472 = vadd.f32 %v210, %v1471
      %v1473 = vpop.f32.mrb[0].mxu0
      %v1474 = vpop.f32.mrb[0].mxu0
      %v1475 = vadd.f32 %v210, %v1474
      %v1476 = vpop.f32.mrb[0].mxu0
      %1477 = vdwg.mxu0
      %v1478 = vmax.f32 %v1448, 0.0
      %v1479 = vmax.f32 %v1451, 0.0
      %v1480 = vmax.f32 %v1456, 0.0
      %v1481 = vmax.f32 %v1459, 0.0
      %v1482 = vmax.f32 %v1464, 0.0
      %v1483 = vmax.f32 %v1467, 0.0
      %v1484 = vmax.f32 %v1472, 0.0
      %v1485 = vmax.f32 %v1475, 0.0
      %v1486 = vmax.f32 %v1349, %v1478
      %v1487 = vmax.f32 %v1350, %v1479
      %v1488 = vmax.f32 %v1351, %v1480
      %v1489 = vmax.f32 %v1352, %v1481
      %v1490 = vmax.f32 %v1353, %v1482
      %v1491 = vmax.f32 %v1354, %v1483
      %v1492 = vmax.f32 %v1355, %v1484
      %v1493 = vmax.f32 %v1356, %v1485
      %vm1494 = vcmask 523264
      %1495 = vst.msk [vmem:[%s175] sm:$0xff] %vm1494, %v1486
      %1496 = vst.msk [vmem:[%s175 + $0x8] sm:$0xff] %vm1494, %v1487
      %1497 = vst.msk [vmem:[%s175 + $0x10] sm:$0xff] %vm1494, %v1488
      %1498 = vst.msk [vmem:[%s175 + $0x18] sm:$0xff] %vm1494, %v1489
      %1499 = vst.msk [vmem:[%s175 + $0x20] sm:$0xff] %vm1494, %v1490
      %1500 = vst.msk [vmem:[%s175 + $0x28] sm:$0xff] %vm1494, %v1491
      %1501 = vst.msk [vmem:[%s175 + $0x30] sm:$0xff] %vm1494, %v1492
      %1502 = vst.msk [vmem:[%s175 + $0x38] sm:$0xff] %vm1494, %v1493
      %s1503 = smul.u32 8, %s14
      %p1504 = scmp.lt.s32.totalorder %s1503, 15
      %s1505 = scalar_select %p1504, %s1503, 15
      %s1506 = smul.addr %s1505, 8
      %s1507 = scalar_lea.vmem %s3, %s1506
      // Predicated region
      $region33: #{palm_forward.5} parent=31 // pred_check
        %p1508 = pneg %p100
      $region34: #{palm_forward.5} parent=31 // pred_check_branch
        %1510 = sbr.rel (%p1508) target = $region36
      $region35: #{palm_forward.5} parent=31 // pred_region
        %s1511 = smul.u32 8, %s14
      $region36: #{palm_forward.5} parent=31 // pred_fallthru
        _
    $region32: #{palm_forward.5} parent=5 // pred_fallthru
      _
    %p1512 = scmp.le.s32.totalorder 2, %s9
    // Predicated region
    $region37: #{palm_forward.5} parent=5 // pred_check
      %p1513 = pneg %p1512
    $region38: #{palm_forward.5} parent=5 // pred_check_branch
      %1515 = sbr.rel (%p1513) target = $region40
    $region39: #{palm_forward.5} parent=5 // pred_region
      %s1516 = ssub.s32 %s9, 2
      // Predicated region
      $region41: #{palm_forward.5} parent=39 // pred_check
        %p1517 = pneg %p106
      $region42: #{palm_forward.5} parent=39 // pred_check_branch
        %1519 = sbr.rel (%p1517) target = $region44
      $region43: #{palm_forward.5} parent=39 // pred_region
        %s1520 = smul.u32 8, %s15
        %p1521 = scmp.lt.s32.totalorder %s1520, 15
        %s1522 = scalar_select %p1521, %s1520, 15
        %s1523 = smul.addr %s1522, 8
        %s1524 = scalar_lea.vmem %s3, %s1523
      $region44: #{palm_forward.5} parent=39 // pred_fallthru
        _
    $region40: #{palm_forward.5} parent=5 // pred_fallthru
      _
  $region6: #{palm_forward.5} parent=0 // loop_footer
    %s13 = sadd.s32 1, %s9
  $region7: #{palm_forward.5} parent=0 // loop_footer_branch
    %8 = sbr.rel target = $region3
  $region8: #{palm_forward.5} parent=0 // loop_exit
    _

// kernel: palm_forward.6
$region0: #{palm_forward.6}
  #allocation0 [shape = 'u32[]', space=smem, size = 0x4, offset = 0x4, fixed_abs, tag = 'smem constant byte address 0x4 - core index']
  #allocation1 [shape = 'u32[144,128]{1,0:T(1,128)}', space=vmem, size = 0x12000, scoped, tag = 'internal scratch']
  #allocation2 [shape = 'bf16[48,128]{1,0:T(16,128)(2,1)}', space=vmem, size = 0x3000, scoped, tag = 'scratch operand']
  %s0 = inlined_call_operand.vmem [shape: bf16[32,576], index: 0, kind: input, shape index: {}]
  %s1 = inlined_call_operand.vmem [shape: bf16[576,128], index: 1, kind: input, shape index: {}]
  %s2 = inlined_call_operand.vmem [shape: f32[1,128], index: 2, kind: input, shape index: {}]
  %s3 = inlined_call_operand.vmem [shape: bf16[9,128,128], index: 3, kind: input, shape index: {}]
  %s4 = inlined_call_operand.vmem [shape: f32[1,128], index: 4, kind: input, shape index: {}]
  %s5 = inlined_call_operand.vmem [shape: bf16[9,32,1], index: 5, kind: input, shape index: {}]
  %s6 = inlined_call_operand.vmem [shape: f32[32,128], index: 6, kind: output, shape index: {}]
  %s7 = sld [smem:[#allocation0]]
  $region34: #{palm_forward.6} parent=0
    _
  %s9 = ssub.s32 1, %s7
  %s10 = scalar_select 0, %s9, %s7
  // Predicated region
  $region2: #{palm_forward.6} parent=0 // pred_check
    _
  $region3: #{palm_forward.6} parent=0 // pred_check_branch
    %12 = sbr.rel (0) target = $region5
  $region4: #{palm_forward.6} parent=0 // pred_region
    _
  $region5: #{palm_forward.6} parent=0 // pred_fallthru
    _
  // Predicated region
  $region6: #{palm_forward.6} parent=0 // pred_check
    _
  $region7: #{palm_forward.6} parent=0 // pred_check_branch
    %14 = sbr.rel (0) target = $region9
  $region8: #{palm_forward.6} parent=0 // pred_region
    _
  $region9: #{palm_forward.6} parent=0 // pred_fallthru
    _
  // Predicated region
  $region10: #{palm_forward.6} parent=0 // pred_check
    _
  $region11: #{palm_forward.6} parent=0 // pred_check_branch
    %16 = sbr.rel (0) target = $region13
  $region12: #{palm_forward.6} parent=0 // pred_region
    _
  $region13: #{palm_forward.6} parent=0 // pred_fallthru
    _
  // Predicated region
  $region14: #{palm_forward.6} parent=0 // pred_check
    _
  $region15: #{palm_forward.6} parent=0 // pred_check_branch
    %18 = sbr.rel (0) target = $region17
  $region16: #{palm_forward.6} parent=0 // pred_region
    _
  $region17: #{palm_forward.6} parent=0 // pred_fallthru
    _
  // Predicated region
  $region18: #{palm_forward.6} parent=0 // pred_check
    _
  $region19: #{palm_forward.6} parent=0 // pred_check_branch
    %20 = sbr.rel (0) target = $region21
  $region20: #{palm_forward.6} parent=0 // pred_region
    _
  $region21: #{palm_forward.6} parent=0 // pred_fallthru
    _
  // Predicated region
  $region22: #{palm_forward.6} parent=0 // pred_check
    _
  $region23: #{palm_forward.6} parent=0 // pred_check_branch
    %22 = sbr.rel (0) target = $region25
  $region24: #{palm_forward.6} parent=0 // pred_region
    _
  $region25: #{palm_forward.6} parent=0 // pred_fallthru
    _
  %v24 = vld [vmem:[%s0] sm:$0xff]
  %v25 = vld [vmem:[%s0 + $0x8] sm:$0xff]
  %v26 = vld [vmem:[%s0 + $0x10] sm:$0xf]
  %v27 = vld [vmem:[%s0 + $0x14] sm:$0xff]
  %v28 = vld [vmem:[%s0 + $0x1c] sm:$0xff]
  %v29 = vld [vmem:[%s0 + $0x24] sm:$0xf]
  %v30 = vld [vmem:[%s0 + $0x28] sm:$0xff]
  %v31 = vld [vmem:[%s0 + $0x30] sm:$0xff]
  %v32 = vld [vmem:[%s0 + $0x38] sm:$0xf]
  %v33 = vld [vmem:[%s0 + $0x3c] sm:$0xff]
  %v34 = vld [vmem:[%s0 + $0x44] sm:$0xff]
  %v35 = vld [vmem:[%s0 + $0x4c] sm:$0xf]
  %v36 = vld [vmem:[%s1] sm:$0xf]
  %v37 = vld [vmem:[%s1 + $0x4] sm:$0xf]
  %v38 = vld [vmem:[%s1 + $0x8] sm:$0xf]
  %v39 = vld [vmem:[%s1 + $0xc] sm:$0xf]
  %v40 = vld [vmem:[%s1 + $0x10] sm:$0xf]
  %v41 = vld [vmem:[%s1 + $0x14] sm:$0xf]
  %v42 = vld [vmem:[%s1 + $0x18] sm:$0xf]
  %v43 = vld [vmem:[%s1 + $0x1c] sm:$0xf]
  %v44 = vld [vmem:[%s1 + $0x20] sm:$0xf]
  %v45 = vld [vmem:[%s1 + $0x24] sm:$0xf]
  %v46 = vld [vmem:[%s1 + $0x28] sm:$0xf]
  %v47 = vld [vmem:[%s1 + $0x2c] sm:$0xf]
  %v48 = vld [vmem:[%s1 + $0x30] sm:$0xf]
  %v49 = vld [vmem:[%s1 + $0x34] sm:$0xf]
  %v50 = vld [vmem:[%s1 + $0x38] sm:$0xf]
  %v51 = vld [vmem:[%s1 + $0x3c] sm:$0xf]
  %v52 = vld [vmem:[%s1 + $0x40] sm:$0xf]
  %v53 = vld [vmem:[%s1 + $0x44] sm:$0xf]
  %v54 = vld [vmem:[%s1 + $0x48] sm:$0xf]
  %v55 = vld [vmem:[%s1 + $0x4c] sm:$0xf]
  %v56 = vld [vmem:[%s1 + $0x50] sm:$0xf]
  %v57 = vld [vmem:[%s1 + $0x54] sm:$0xf]
  %v58 = vld [vmem:[%s1 + $0x58] sm:$0xf]
  %v59 = vld [vmem:[%s1 + $0x5c] sm:$0xf]
  %v60 = vld [vmem:[%s1 + $0x60] sm:$0xf]
  %v61 = vld [vmem:[%s1 + $0x64] sm:$0xf]
  %v62 = vld [vmem:[%s1 + $0x68] sm:$0xf]
  %v63 = vld [vmem:[%s1 + $0x6c] sm:$0xf]
  %v64 = vld [vmem:[%s1 + $0x70] sm:$0xf]
  %v65 = vld [vmem:[%s1 + $0x74] sm:$0xf]
  %v66 = vld [vmem:[%s1 + $0x78] sm:$0xf]
  %v67 = vld [vmem:[%s1 + $0x7c] sm:$0xf]
  %v68 = vld [vmem:[%s1 + $0x80] sm:$0xf]
  %v69 = vld [vmem:[%s1 + $0x84] sm:$0xf]
  %v70 = vld [vmem:[%s1 + $0x88] sm:$0xf]
  %v71 = vld [vmem:[%s1 + $0x8c] sm:$0xf]
  %v72 = vld [vmem:[%s1 + $0x90] sm:$0xf]
  %v73 = vld [vmem:[%s1 + $0x94] sm:$0xf]
  %v74 = vld [vmem:[%s1 + $0x98] sm:$0xf]
  %v75 = vld [vmem:[%s1 + $0x9c] sm:$0xf]
  %v76 = vld [vmem:[%s1 + $0xa0] sm:$0xf]
  %v77 = vld [vmem:[%s1 + $0xa4] sm:$0xf]
  %v78 = vld [vmem:[%s1 + $0xa8] sm:$0xf]
  %v79 = vld [vmem:[%s1 + $0xac] sm:$0xf]
  %v80 = vld [vmem:[%s1 + $0xb0] sm:$0xf]
  %v81 = vld [vmem:[%s1 + $0xb4] sm:$0xf]
  %v82 = vld [vmem:[%s1 + $0xb8] sm:$0xf]
  %v83 = vld [vmem:[%s1 + $0xbc] sm:$0xf]
  %v84 = vld [vmem:[%s1 + $0xc0] sm:$0xf]
  %v85 = vld [vmem:[%s1 + $0xc4] sm:$0xf]
  %v86 = vld [vmem:[%s1 + $0xc8] sm:$0xf]
  %v87 = vld [vmem:[%s1 + $0xcc] sm:$0xf]
  %v88 = vld [vmem:[%s1 + $0xd0] sm:$0xf]
  %v89 = vld [vmem:[%s1 + $0xd4] sm:$0xf]
  %v90 = vld [vmem:[%s1 + $0xd8] sm:$0xf]
  %v91 = vld [vmem:[%s1 + $0xdc] sm:$0xf]
  %v92 = vld [vmem:[%s1 + $0xe0] sm:$0xf]
  %v93 = vld [vmem:[%s1 + $0xe4] sm:$0xf]
  %v94 = vld [vmem:[%s1 + $0xe8] sm:$0xf]
  %v95 = vld [vmem:[%s1 + $0xec] sm:$0xf]
  %v96 = vld [vmem:[%s1 + $0xf0] sm:$0xf]
  %v97 = vld [vmem:[%s1 + $0xf4] sm:$0xf]
  %v98 = vld [vmem:[%s1 + $0xf8] sm:$0xf]
  %v99 = vld [vmem:[%s1 + $0xfc] sm:$0xf]
  %v100 = vld [vmem:[%s1 + $0x100] sm:$0xf]
  %v101 = vld [vmem:[%s1 + $0x104] sm:$0xf]
  %v102 = vld [vmem:[%s1 + $0x108] sm:$0xf]
  %v103 = vld [vmem:[%s1 + $0x10c] sm:$0xf]
  %v104 = vld [vmem:[%s1 + $0x110] sm:$0xf]
  %v105 = vld [vmem:[%s1 + $0x114] sm:$0xf]
  %v106 = vld [vmem:[%s1 + $0x118] sm:$0xf]
  %v107 = vld [vmem:[%s1 + $0x11c] sm:$0xf]
  %v108 = vld [vmem:[%s2] sm:$0x1]
  %v110 = vlaneseq
  %v111 = vshrl.u32 %v110, 7
  %v112 = vsub.s32 0, %v111
  %v113 = vrot.slane %v108, %v112
  %v127 = vunpack.c.l.b16 %v24
  %v128 = vunpack.c.h.b16 %v24
  %v129 = vunpack.c.l.b16 %v25
  %v130 = vunpack.c.h.b16 %v25
  %v131 = vunpack.c.l.b16 %v26
  %v132 = vunpack.c.l.b16 %v27
  %v133 = vunpack.c.h.b16 %v27
  %v134 = vunpack.c.l.b16 %v28
  %v135 = vunpack.c.h.b16 %v28
  %v136 = vunpack.c.l.b16 %v29
  %v137 = vunpack.c.l.b16 %v30
  %v138 = vunpack.c.h.b16 %v30
  %v139 = vunpack.c.l.b16 %v31
  %v140 = vunpack.c.h.b16 %v31
  %v141 = vunpack.c.l.b16 %v32
  %v142 = vunpack.c.l.b16 %v33
  %v143 = vunpack.c.h.b16 %v33
  %v144 = vunpack.c.l.b16 %v34
  %v145 = vunpack.c.h.b16 %v34
  %v146 = vunpack.c.l.b16 %v35
  %v147 = vpack.c.b16 %v132, %v127
  %v148 = vpack.c.b16 %v133, %v128
  %v149 = vpack.c.b16 %v134, %v129
  %v150 = vpack.c.b16 %v135, %v130
  %v151 = vpack.c.b16 %v136, %v131
  %v152 = vpack.c.b16 %v142, %v137
  %v153 = vpack.c.b16 %v143, %v138
  %v154 = vpack.c.b16 %v144, %v139
  %v155 = vpack.c.b16 %v145, %v140
  %v156 = vpack.c.b16 %v146, %v141
  %v237 = vunpack.c.l.b16 %v36
  %v238 = vunpack.c.l.b16 %v37
  %v239 = vunpack.c.l.b16 %v38
  %v240 = vunpack.c.l.b16 %v39
  %v241 = vunpack.c.l.b16 %v40
  %v242 = vunpack.c.l.b16 %v41
  %v243 = vunpack.c.l.b16 %v42
  %v244 = vunpack.c.l.b16 %v43
  %v245 = vunpack.c.l.b16 %v44
  %v246 = vunpack.c.l.b16 %v45
  %v247 = vunpack.c.l.b16 %v46
  %v248 = vunpack.c.l.b16 %v47
  %v249 = vunpack.c.l.b16 %v48
  %v250 = vunpack.c.l.b16 %v49
  %v251 = vunpack.c.l.b16 %v50
  %v252 = vunpack.c.l.b16 %v51
  %v253 = vunpack.c.l.b16 %v52
  %v254 = vunpack.c.l.b16 %v53
  %v255 = vunpack.c.l.b16 %v54
  %v256 = vunpack.c.l.b16 %v55
  %v257 = vunpack.c.l.b16 %v56
  %v258 = vunpack.c.l.b16 %v57
  %v259 = vunpack.c.l.b16 %v58
  %v260 = vunpack.c.l.b16 %v59
  %v261 = vunpack.c.l.b16 %v60
  %v262 = vunpack.c.l.b16 %v61
  %v263 = vunpack.c.l.b16 %v62
  %v264 = vunpack.c.l.b16 %v63
  %v265 = vunpack.c.l.b16 %v64
  %v266 = vunpack.c.l.b16 %v65
  %v267 = vunpack.c.l.b16 %v66
  %v268 = vunpack.c.l.b16 %v67
  %v269 = vunpack.c.l.b16 %v68
  %v270 = vunpack.c.l.b16 %v69
  %v271 = vunpack.c.l.b16 %v70
  %v272 = vunpack.c.l.b16 %v71
  %v273 = vunpack.c.l.b16 %v72
  %v274 = vunpack.c.l.b16 %v73
  %v275 = vunpack.c.l.b16 %v74
  %v276 = vunpack.c.l.b16 %v75
  %v277 = vunpack.c.l.b16 %v76
  %v278 = vunpack.c.l.b16 %v77
  %v279 = vunpack.c.l.b16 %v78
  %v280 = vunpack.c.l.b16 %v79
  %v281 = vunpack.c.l.b16 %v80
  %v282 = vunpack.c.l.b16 %v81
  %v283 = vunpack.c.l.b16 %v82
  %v284 = vunpack.c.l.b16 %v83
  %v285 = vunpack.c.l.b16 %v84
  %v286 = vunpack.c.l.b16 %v85
  %v287 = vunpack.c.l.b16 %v86
  %v288 = vunpack.c.l.b16 %v87
  %v289 = vunpack.c.l.b16 %v88
  %v290 = vunpack.c.l.b16 %v89
  %v291 = vunpack.c.l.b16 %v90
  %v292 = vunpack.c.l.b16 %v91
  %v293 = vunpack.c.l.b16 %v92
  %v294 = vunpack.c.l.b16 %v93
  %v295 = vunpack.c.l.b16 %v94
  %v296 = vunpack.c.l.b16 %v95
  %v297 = vunpack.c.l.b16 %v96
  %v298 = vunpack.c.l.b16 %v97
  %v299 = vunpack.c.l.b16 %v98
  %v300 = vunpack.c.l.b16 %v99
  %v301 = vunpack.c.l.b16 %v100
  %v302 = vunpack.c.l.b16 %v101
  %v303 = vunpack.c.l.b16 %v102
  %v304 = vunpack.c.l.b16 %v103
  %v305 = vunpack.c.l.b16 %v104
  %v306 = vunpack.c.l.b16 %v105
  %v307 = vunpack.c.l.b16 %v106
  %v308 = vunpack.c.l.b16 %v107
  %v309 = vpack.c.b16 %v238, %v237
  %v310 = vpack.c.b16 %v240, %v239
  %v311 = vpack.c.b16 %v242, %v241
  %v312 = vpack.c.b16 %v244, %v243
  %v313 = vpack.c.b16 %v246, %v245
  %v314 = vpack.c.b16 %v248, %v247
  %v315 = vpack.c.b16 %v250, %v249
  %v316 = vpack.c.b16 %v252, %v251
  %v317 = vpack.c.b16 %v254, %v253
  %v318 = vpack.c.b16 %v256, %v255
  %v319 = vpack.c.b16 %v258, %v257
  %v320 = vpack.c.b16 %v260, %v259
  %v321 = vpack.c.b16 %v262, %v261
  %v322 = vpack.c.b16 %v264, %v263
  %v323 = vpack.c.b16 %v266, %v265
  %v324 = vpack.c.b16 %v268, %v267
  %v325 = vpack.c.b16 %v270, %v269
  %v326 = vpack.c.b16 %v272, %v271
  %v327 = vpack.c.b16 %v274, %v273
  %v328 = vpack.c.b16 %v276, %v275
  %v329 = vpack.c.b16 %v278, %v277
  %v330 = vpack.c.b16 %v280, %v279
  %v331 = vpack.c.b16 %v282, %v281
  %v332 = vpack.c.b16 %v284, %v283
  %v333 = vpack.c.b16 %v286, %v285
  %v334 = vpack.c.b16 %v288, %v287
  %v335 = vpack.c.b16 %v290, %v289
  %v336 = vpack.c.b16 %v292, %v291
  %v337 = vpack.c.b16 %v294, %v293
  %v338 = vpack.c.b16 %v296, %v295
  %v339 = vpack.c.b16 %v298, %v297
  %v340 = vpack.c.b16 %v300, %v299
  %v341 = vpack.c.b16 %v302, %v301
  %v342 = vpack.c.b16 %v304, %v303
  %v343 = vpack.c.b16 %v306, %v305
  %v344 = vpack.c.b16 %v308, %v307
  %vm381 = vcmask 523264
  %v383 = vsel %vm381, %v151, 0
  %v386 = vsel %vm381, %v156, 0
  %388 = vmatprep.subr.bf16.mxu0 0
  %389 = vmatpush1.bf16.msra.mxu0 %v309
  %390 = vmatprep.subr.bf16.mxu0 0
  %391 = vmatpush1.bf16.msra.mxu0 %v310
  %392 = vmatprep.subr.bf16.mxu0 0
  %393 = vmatpush1.bf16.msra.mxu0 %v311
  %394 = vmatprep.subr.bf16.mxu0 0
  %395 = vmatpush1.bf16.msra.mxu0 %v312
  %396 = vmatprep.subr.bf16.mxu0 0
  %397 = vmatpush1.bf16.msra.mxu0 %v313
  %398 = vmatprep.subr.bf16.mxu0 0
  %399 = vmatpush1.bf16.msra.mxu0 %v314
  %400 = vmatprep.subr.bf16.mxu0 0
  %401 = vmatpush1.bf16.msra.mxu0 %v315
  %402 = vmatprep.subr.bf16.mxu0 0
  %403 = vmatpush1.bf16.msra.mxu0 %v316
  %404 = vmatprep.subr.bf16.mxu0 0
  %405 = vmatpush1.bf16.msra.mxu0 %v317
  %406 = vmatprep.subr.bf16.mxu0 0
  %407 = vmatpush1.bf16.msra.mxu0 %v318
  %408 = vmatprep.subr.bf16.mxu0 0
  %409 = vmatpush1.bf16.msra.mxu0 %v319
  %410 = vmatprep.subr.bf16.mxu0 0
  %411 = vmatpush1.bf16.msra.mxu0 %v320
  %412 = vmatprep.subr.bf16.mxu0 0
  %413 = vmatpush1.bf16.msra.mxu0 %v321
  %414 = vmatprep.subr.bf16.mxu0 0
  %415 = vmatpush1.bf16.msra.mxu0 %v322
  %416 = vmatprep.subr.bf16.mxu0 0
  %417 = vmatpush1.bf16.msra.mxu0 %v323
  %418 = vmatprep.subr.bf16.mxu0 0
  %419 = vmatpush1.bf16.msra.mxu0 %v324
  %420 = vmatprep.mubr.bf16.mxu0 %v148
  %421 = vmatmul.mubr.bf16.gmra.mrb[0].mxu0 %v147
  %v422 = vpop.f32.mrb[0].mxu0
  %v423 = vadd.f32 %v113, %v422
  %v424 = vpop.f32.mrb[0].mxu0
  %v425 = vpop.f32.mrb[0].mxu0
  %v426 = vadd.f32 %v113, %v425
  %v427 = vpop.f32.mrb[0].mxu0
  %428 = vmatprep.mubr.bf16.mxu0 %v153
  %429 = vmatmul.mubr.bf16.gmra.mrb[0].mxu0 %v152
  %v430 = vpop.f32.mrb[0].mxu0
  %v431 = vadd.f32 %v113, %v430
  %v432 = vpop.f32.mrb[0].mxu0
  %v433 = vpop.f32.mrb[0].mxu0
  %v434 = vadd.f32 %v113, %v433
  %v435 = vpop.f32.mrb[0].mxu0
  %436 = vdwg.mxu0
  %437 = vmatprep.subr.bf16.mxu0 0
  %438 = vmatpush1.bf16.msra.mxu0 %v325
  %439 = vmatprep.subr.bf16.mxu0 0
  %440 = vmatpush1.bf16.msra.mxu0 %v326
  %441 = vmatprep.subr.bf16.mxu0 0
  %442 = vmatpush1.bf16.msra.mxu0 %v327
  %443 = vmatprep.subr.bf16.mxu0 0
  %444 = vmatpush1.bf16.msra.mxu0 %v328
  %445 = vmatprep.subr.bf16.mxu0 0
  %446 = vmatpush1.bf16.msra.mxu0 %v329
  %447 = vmatprep.subr.bf16.mxu0 0
  %448 = vmatpush1.bf16.msra.mxu0 %v330
  %449 = vmatprep.subr.bf16.mxu0 0
  %450 = vmatpush1.bf16.msra.mxu0 %v331
  %451 = vmatprep.subr.bf16.mxu0 0
  %452 = vmatpush1.bf16.msra.mxu0 %v332
  %453 = vmatprep.subr.bf16.mxu0 0
  %454 = vmatpush1.bf16.msra.mxu0 %v333
  %455 = vmatprep.subr.bf16.mxu0 0
  %456 = vmatpush1.bf16.msra.mxu0 %v334
  %457 = vmatprep.subr.bf16.mxu0 0
  %458 = vmatpush1.bf16.msra.mxu0 %v335
  %459 = vmatprep.subr.bf16.mxu0 0
  %460 = vmatpush1.bf16.msra.mxu0 %v336
  %461 = vmatprep.subr.bf16.mxu0 0
  %462 = vmatpush1.bf16.msra.mxu0 %v337
  %463 = vmatprep.subr.bf16.mxu0 0
  %464 = vmatpush1.bf16.msra.mxu0 %v338
  %465 = vmatprep.subr.bf16.mxu0 0
  %466 = vmatpush1.bf16.msra.mxu0 %v339
  %467 = vmatprep.subr.bf16.mxu0 0
  %468 = vmatpush1.bf16.msra.mxu0 %v340
  %469 = vmatprep.mubr.bf16.mxu0 %v150
  %470 = vmatmul.mubr.bf16.gmra.mrb[0].mxu0 %v149
  %v471 = vpop.f32.mrb[0].mxu0
  %v472 = vadd.f32 %v423, %v471
  %v473 = vpop.f32.mrb[0].mxu0
  %v474 = vpop.f32.mrb[0].mxu0
  %v475 = vadd.f32 %v426, %v474
  %v476 = vpop.f32.mrb[0].mxu0
  %477 = vmatprep.mubr.bf16.mxu0 %v155
  %478 = vmatmul.mubr.bf16.gmra.mrb[0].mxu0 %v154
  %v479 = vpop.f32.mrb[0].mxu0
  %v480 = vadd.f32 %v431, %v479
  %v481 = vpop.f32.mrb[0].mxu0
  %v482 = vpop.f32.mrb[0].mxu0
  %v483 = vadd.f32 %v434, %v482
  %v484 = vpop.f32.mrb[0].mxu0
  %485 = vdwg.mxu0
  %486 = vmatprep.subr.bf16.mxu0 0
  %487 = vmatpush1.bf16.msra.mxu0 %v341
  %488 = vmatprep.subr.bf16.mxu0 0
  %489 = vmatpush1.bf16.msra.mxu0 %v342
  %490 = vmatprep.subr.bf16.mxu0 0
  %491 = vmatpush1.bf16.msra.mxu0 %v343
  %492 = vmatprep.subr.bf16.mxu0 0
  %493 = vmatpush1.bf16.msra.mxu0 %v344
  %494 = vmatprep.subr.bf16.mxu0 0
  %495 = vmatpush1.bf16.msra.mxu0 0
  %496 = vmatprep.subr.bf16.mxu0 0
  %497 = vmatpush1.bf16.msra.mxu0 0
  %498 = vmatprep.subr.bf16.mxu0 0
  %499 = vmatpush1.bf16.msra.mxu0 0
  %500 = vmatprep.subr.bf16.mxu0 0
  %501 = vmatpush1.bf16.msra.mxu0 0
  %502 = vmatprep.subr.bf16.mxu0 0
  %503 = vmatpush1.bf16.msra.mxu0 0
  %504 = vmatprep.subr.bf16.mxu0 0
  %505 = vmatpush1.bf16.msra.mxu0 0
  %506 = vmatprep.subr.bf16.mxu0 0
  %507 = vmatpush1.bf16.msra.mxu0 0
  %508 = vmatprep.subr.bf16.mxu0 0
  %509 = vmatpush1.bf16.msra.mxu0 0
  %510 = vmatprep.subr.bf16.mxu0 0
  %511 = vmatpush1.bf16.msra.mxu0 0
  %512 = vmatprep.subr.bf16.mxu0 0
  %513 = vmatpush1.bf16.msra.mxu0 0
  %514 = vmatprep.subr.bf16.mxu0 0
  %515 = vmatpush1.bf16.msra.mxu0 0
  %516 = vmatprep.subr.bf16.mxu0 0
  %517 = vmatpush1.bf16.msra.mxu0 0
  %518 = vmatprep.mubr.bf16.mxu0 0
  %519 = vmatmul.mubr.bf16.gmra.mrb[0].mxu0 %v383
  %v520 = vpop.f32.mrb[0].mxu0
  %v521 = vadd.f32 %v472, %v520
  %v522 = vpop.f32.mrb[0].mxu0
  %v523 = vpop.f32.mrb[0].mxu0
  %v524 = vadd.f32 %v475, %v523
  %v525 = vpop.f32.mrb[0].mxu0
  %526 = vmatprep.mubr.bf16.mxu0 0
  %527 = vmatmul.mubr.bf16.gmra.mrb[0].mxu0 %v386
  %v528 = vpop.f32.mrb[0].mxu0
  %v529 = vadd.f32 %v480, %v528
  %v530 = vpop.f32.mrb[0].mxu0
  %v531 = vpop.f32.mrb[0].mxu0
  %v532 = vadd.f32 %v483, %v531
  %v533 = vpop.f32.mrb[0].mxu0
  %534 = vdwg.mxu0
  %v535 = vmax.f32 %v521, 0.0
  %v536 = vmax.f32 %v524, 0.0
  %v537 = vmax.f32 %v529, 0.0
  %v538 = vmax.f32 %v532, 0.0
  %539 = vst [vmem:[#allocation2] sm:$0xff] 0
  %540 = vst [vmem:[#allocation2 + $0x8] sm:$0xff] 0
  %541 = vst [vmem:[#allocation2 + $0x10] sm:$0xff] 0
  %v542 = vpack.c.bf16 %v536, %v535
  %v543 = vpack.c.bf16 %v538, %v537
  %vm546 = vcmask 1043456
  %v547 = vrot.slane %v542, 4
  %v548 = vrot.slane %v543, 4
  %v549 = vsel %vm546, %v547, %v548
  %553 = vst [vmem:[#allocation2] sm:$0xf0] %v547
  %554 = vst [vmem:[#allocation2 + $0x8] sm:$0xff] %v549
  %555 = vst [vmem:[#allocation2 + $0x10] sm:$0xf] %v548
  %v556 = vld [vmem:[#allocation2] sm:$0xfe]
  %v557 = vld [vmem:[#allocation2 + $0x8] sm:$0xff]
  %v558 = vld [vmem:[#allocation2 + $0x10] sm:$0x3]
  %v559 = vld [vmem:[%s5] sm:$0xf]
  %v560 = vld [vmem:[%s5 + $0x4] sm:$0xf]
  %v561 = vld [vmem:[%s5 + $0x8] sm:$0xf]
  %v562 = vld [vmem:[%s5 + $0xc] sm:$0xf]
  %564 = vset.pattern.permute.xlu0 0
  %565 = vperm.xlu0 %564, %v559
  %v566 = vpop.permute.xlu0 %565
  %v569 = vunpack.c.l.s4 839922192
  %v570 = vunpack.c.0.s8 %v569
  %v571 = vlaneseq
  %v572 = vshrl.u32 %v571, 7
  %v573 = vsub.s32 %v570, %v572
  %v574 = vrot.slane %v566, %v573
  %576 = vset.pattern.permute.xlu0 0
  %577 = vperm.xlu0 %576, %v560
  %v578 = vpop.permute.xlu0 %577
  %v581 = vunpack.c.l.s4 839922192
  %v582 = vunpack.c.0.s8 %v581
  %v583 = vlaneseq
  %v584 = vshrl.u32 %v583, 7
  %v585 = vsub.s32 %v582, %v584
  %v586 = vrot.slane %v578, %v585
  %588 = vset.pattern.permute.xlu0 0
  %589 = vperm.xlu0 %588, %v561
  %v590 = vpop.permute.xlu0 %589
  %v593 = vunpack.c.l.s4 839922192
  %v594 = vunpack.c.0.s8 %v593
  %v595 = vlaneseq
  %v596 = vshrl.u32 %v595, 7
  %v597 = vsub.s32 %v594, %v596
  %v598 = vrot.slane %v590, %v597
  %600 = vset.pattern.permute.xlu0 0
  %601 = vperm.xlu0 %600, %v562
  %v602 = vpop.permute.xlu0 %601
  %v605 = vunpack.c.l.s4 839922192
  %v606 = vunpack.c.0.s8 %v605
  %v607 = vlaneseq
  %v608 = vshrl.u32 %v607, 7
  %v609 = vsub.s32 %v606, %v608
  %v610 = vrot.slane %v602, %v609
  %v615 = vunpack.c.l.b16 %v574
  %v616 = vunpack.c.l.b16 %v586
  %v617 = vunpack.c.l.b16 %v598
  %v618 = vunpack.c.l.b16 %v610
  %v619 = vpack.c.b16 %v616, %v615
  %v620 = vpack.c.b16 %v618, %v617
  %vm621 = vsmask.f32 1280
  %v623 = vshrl.u32 %v619, 16
  %v625 = vrot.slane %v623, 6
  %v626 = vshll.u32 %v619, 16
  %v628 = vrot.slane %v626, 7
  %v629 = vor.u32 %v625, %v628
  %v631 = vshrl.u32 %v620, 16
  %v633 = vrot.slane %v631, 6
  %v634 = vshll.u32 %v620, 16
  %v636 = vrot.slane %v634, 7
  %v637 = vor.u32 %v633, %v636
  %v638 = vsel %vm621, %v629, %v637
  %v642 = vmul.bf16 %v556, %v629
  %v643 = vmul.bf16 %v557, %v638
  %v644 = vmul.bf16 %v558, %v637
  %v645 = vld [vmem:[%s3] sm:$0xf]
  %v646 = vld [vmem:[%s3 + $0x4] sm:$0xf]
  %v647 = vld [vmem:[%s3 + $0x8] sm:$0xf]
  %v648 = vld [vmem:[%s3 + $0xc] sm:$0xf]
  %v649 = vld [vmem:[%s3 + $0x10] sm:$0xf]
  %v650 = vld [vmem:[%s3 + $0x14] sm:$0xf]
  %v651 = vld [vmem:[%s3 + $0x18] sm:$0xf]
  %v652 = vld [vmem:[%s3 + $0x1c] sm:$0xf]
  %v653 = vld [vmem:[%s3 + $0x20] sm:$0xf]
  %v654 = vld [vmem:[%s3 + $0x24] sm:$0xf]
  %v655 = vld [vmem:[%s3 + $0x28] sm:$0xf]
  %v656 = vld [vmem:[%s3 + $0x2c] sm:$0xf]
  %v657 = vld [vmem:[%s3 + $0x30] sm:$0xf]
  %v658 = vld [vmem:[%s3 + $0x34] sm:$0xf]
  %v659 = vld [vmem:[%s3 + $0x38] sm:$0xf]
  %v660 = vld [vmem:[%s3 + $0x3c] sm:$0xf]
  %v661 = vld [vmem:[#allocation2] sm:$0xfc]
  %s662 = scalar_lea.vmem %s5, 16
  %v663 = vld [vmem:[%s662] sm:$0xf]
  %v664 = vld [vmem:[%s662 + $0x4] sm:$0xf]
  %v665 = vld [vmem:[%s662 + $0x8] sm:$0xf]
  %v666 = vld [vmem:[%s662 + $0xc] sm:$0xf]
  %668 = vset.pattern.permute.xlu0 0
  %669 = vperm.xlu0 %668, %v663
  %v670 = vpop.permute.xlu0 %669
  %v673 = vunpack.c.l.s4 839922192
  %v674 = vunpack.c.0.s8 %v673
  %v675 = vlaneseq
  %v676 = vshrl.u32 %v675, 7
  %v677 = vsub.s32 %v674, %v676
  %v678 = vrot.slane %v670, %v677
  %680 = vset.pattern.permute.xlu0 0
  %681 = vperm.xlu0 %680, %v664
  %v682 = vpop.permute.xlu0 %681
  %v685 = vunpack.c.l.s4 839922192
  %v686 = vunpack.c.0.s8 %v685
  %v687 = vlaneseq
  %v688 = vshrl.u32 %v687, 7
  %v689 = vsub.s32 %v686, %v688
  %v690 = vrot.slane %v682, %v689
  %692 = vset.pattern.permute.xlu0 0
  %693 = vperm.xlu0 %692, %v665
  %v694 = vpop.permute.xlu0 %693
  %v697 = vunpack.c.l.s4 839922192
  %v698 = vunpack.c.0.s8 %v697
  %v699 = vlaneseq
  %v700 = vshrl.u32 %v699, 7
  %v701 = vsub.s32 %v698, %v700
  %v702 = vrot.slane %v694, %v701
  %704 = vset.pattern.permute.xlu0 0
  %705 = vperm.xlu0 %704, %v666
  %v706 = vpop.permute.xlu0 %705
  %v709 = vunpack.c.l.s4 839922192
  %v710 = vunpack.c.0.s8 %v709
  %v711 = vlaneseq
  %v712 = vshrl.u32 %v711, 7
  %v713 = vsub.s32 %v710, %v712
  %v714 = vrot.slane %v706, %v713
  %v719 = vunpack.c.l.b16 %v678
  %v720 = vunpack.c.l.b16 %v690
  %v721 = vunpack.c.l.b16 %v702
  %v722 = vunpack.c.l.b16 %v714
  %v723 = vpack.c.b16 %v720, %v719
  %v724 = vpack.c.b16 %v722, %v721
  %vm725 = vcmask 1041408
  %v726 = vrot.slane %v723, 6
  %v727 = vrot.slane %v724, 6
  %v728 = vsel %vm725, %v726, %v727
  %v732 = vmul.bf16 %v661, %v726
  %v733 = vmul.bf16 %v557, %v728
  %v734 = vmul.bf16 %v558, %v727
  %s735 = scalar_lea.vmem %s3, 64
  %v736 = vld [vmem:[%s735] sm:$0xf]
  %v737 = vld [vmem:[%s735 + $0x4] sm:$0xf]
  %v738 = vld [vmem:[%s735 + $0x8] sm:$0xf]
  %v739 = vld [vmem:[%s735 + $0xc] sm:$0xf]
  %v740 = vld [vmem:[%s735 + $0x10] sm:$0xf]
  %v741 = vld [vmem:[%s735 + $0x14] sm:$0xf]
  %v742 = vld [vmem:[%s735 + $0x18] sm:$0xf]
  %v743 = vld [vmem:[%s735 + $0x1c] sm:$0xf]
  %v744 = vld [vmem:[%s735 + $0x20] sm:$0xf]
  %v745 = vld [vmem:[%s735 + $0x24] sm:$0xf]
  %v746 = vld [vmem:[%s735 + $0x28] sm:$0xf]
  %v747 = vld [vmem:[%s735 + $0x2c] sm:$0xf]
  %v748 = vld [vmem:[%s735 + $0x30] sm:$0xf]
  %v749 = vld [vmem:[%s735 + $0x34] sm:$0xf]
  %v750 = vld [vmem:[%s735 + $0x38] sm:$0xf]
  %v751 = vld [vmem:[%s735 + $0x3c] sm:$0xf]
  %vm755 = vcmask 1045504
  %v756 = vrot.slane %v732, 2
  %v757 = vrot.slane %v733, 2
  %v758 = vsel %vm755, %v756, %v757
  %v759 = vrot.slane %v734, 2
  %v760 = vsel %vm755, %v757, %v759
  %v779 = vunpack.c.l.b16 %v736
  %v780 = vunpack.c.l.b16 %v737
  %v781 = vunpack.c.l.b16 %v738
  %v782 = vunpack.c.l.b16 %v739
  %v783 = vunpack.c.l.b16 %v740
  %v784 = vunpack.c.l.b16 %v741
  %v785 = vunpack.c.l.b16 %v742
  %v786 = vunpack.c.l.b16 %v743
  %v787 = vunpack.c.l.b16 %v744
  %v788 = vunpack.c.l.b16 %v745
  %v789 = vunpack.c.l.b16 %v746
  %v790 = vunpack.c.l.b16 %v747
  %v791 = vunpack.c.l.b16 %v748
  %v792 = vunpack.c.l.b16 %v749
  %v793 = vunpack.c.l.b16 %v750
  %v794 = vunpack.c.l.b16 %v751
  %v795 = vpack.c.b16 %v780, %v779
  %v796 = vpack.c.b16 %v782, %v781
  %v797 = vpack.c.b16 %v784, %v783
  %v798 = vpack.c.b16 %v786, %v785
  %v799 = vpack.c.b16 %v788, %v787
  %v800 = vpack.c.b16 %v790, %v789
  %v801 = vpack.c.b16 %v792, %v791
  %v802 = vpack.c.b16 %v794, %v793
  %811 = vmatprep.subr.bf16.mxu0 0
  %812 = vmatpush1.bf16.msra.mxu0 %v795
  %813 = vmatprep.subr.bf16.mxu0 0
  %814 = vmatpush1.bf16.msra.mxu0 %v796
  %815 = vmatprep.subr.bf16.mxu0 0
  %816 = vmatpush1.bf16.msra.mxu0 %v797
  %817 = vmatprep.subr.bf16.mxu0 0
  %818 = vmatpush1.bf16.msra.mxu0 %v798
  %819 = vmatprep.subr.bf16.mxu0 0
  %820 = vmatpush1.bf16.msra.mxu0 %v799
  %821 = vmatprep.subr.bf16.mxu0 0
  %822 = vmatpush1.bf16.msra.mxu0 %v800
  %823 = vmatprep.subr.bf16.mxu0 0
  %824 = vmatpush1.bf16.msra.mxu0 %v801
  %825 = vmatprep.subr.bf16.mxu0 0
  %826 = vmatpush1.bf16.msra.mxu0 %v802
  %827 = vmatprep.subr.bf16.mxu0 0
  %828 = vmatpush1.bf16.msra.mxu0 0
  %829 = vmatprep.subr.bf16.mxu0 0
  %830 = vmatpush1.bf16.msra.mxu0 0
  %831 = vmatprep.subr.bf16.mxu0 0
  %832 = vmatpush1.bf16.msra.mxu0 0
  %833 = vmatprep.subr.bf16.mxu0 0
  %834 = vmatpush1.bf16.msra.mxu0 0
  %835 = vmatprep.subr.bf16.mxu0 0
  %836 = vmatpush1.bf16.msra.mxu0 0
  %837 = vmatprep.subr.bf16.mxu0 0
  %838 = vmatpush1.bf16.msra.mxu0 0
  %839 = vmatprep.subr.bf16.mxu0 0
  %840 = vmatpush1.bf16.msra.mxu0 0
  %841 = vmatprep.subr.bf16.mxu0 0
  %842 = vmatpush1.bf16.msra.mxu0 0
  %843 = vmatprep.mubr.bf16.mxu0 0
  %844 = vmatmul.mubr.bf16.gmra.mrb[0].mxu0 %v758
  %v845 = vpop.f32.mrb[0].mxu0
  %v846 = vadd.f32 0.0, %v845
  %v847 = vpop.f32.mrb[0].mxu0
  %v848 = vpop.f32.mrb[0].mxu0
  %v849 = vadd.f32 0.0, %v848
  %v850 = vpop.f32.mrb[0].mxu0
  %851 = vmatprep.mubr.bf16.mxu0 0
  %852 = vmatmul.mubr.bf16.gmra.mrb[0].mxu0 %v760
  %v853 = vpop.f32.mrb[0].mxu0
  %v854 = vadd.f32 0.0, %v853
  %v855 = vpop.f32.mrb[0].mxu0
  %v856 = vpop.f32.mrb[0].mxu0
  %v857 = vadd.f32 0.0, %v856
  %v858 = vpop.f32.mrb[0].mxu0
  %859 = vdwg.mxu0
  %vm860 = vsmask.f32 6400
  %v862 = vshrl.u32 %v642, 16
  %v864 = vrot.slane %v862, 1
  %v865 = vshll.u32 %v642, 16
  %v867 = vrot.slane %v865, 2
  %v868 = vor.u32 %v864, %v867
  %v870 = vshrl.u32 %v643, 16
  %v872 = vrot.slane %v870, 1
  %v873 = vshll.u32 %v643, 16
  %v875 = vrot.slane %v873, 2
  %v876 = vor.u32 %v872, %v875
  %v877 = vsel %vm860, %v868, %v876
  %v879 = vshrl.u32 %v644, 16
  %v881 = vrot.slane %v879, 1
  %v882 = vshll.u32 %v644, 16
  %v884 = vrot.slane %v882, 2
  %v885 = vor.u32 %v881, %v884
  %v886 = vsel %vm860, %v876, %v885
  %v905 = vunpack.c.l.b16 %v645
  %v906 = vunpack.c.l.b16 %v646
  %v907 = vunpack.c.l.b16 %v647
  %v908 = vunpack.c.l.b16 %v648
  %v909 = vunpack.c.l.b16 %v649
  %v910 = vunpack.c.l.b16 %v650
  %v911 = vunpack.c.l.b16 %v651
  %v912 = vunpack.c.l.b16 %v652
  %v913 = vunpack.c.l.b16 %v653
  %v914 = vunpack.c.l.b16 %v654
  %v915 = vunpack.c.l.b16 %v655
  %v916 = vunpack.c.l.b16 %v656
  %v917 = vunpack.c.l.b16 %v657
  %v918 = vunpack.c.l.b16 %v658
  %v919 = vunpack.c.l.b16 %v659
  %v920 = vunpack.c.l.b16 %v660
  %v921 = vpack.c.b16 %v906, %v905
  %v922 = vpack.c.b16 %v908, %v907
  %v923 = vpack.c.b16 %v910, %v909
  %v924 = vpack.c.b16 %v912, %v911
  %v925 = vpack.c.b16 %v914, %v913
  %v926 = vpack.c.b16 %v916, %v915
  %v927 = vpack.c.b16 %v918, %v917
  %v928 = vpack.c.b16 %v920, %v919
  %937 = vmatprep.subr.bf16.mxu0 0
  %938 = vmatpush1.bf16.msra.mxu0 %v921
  %939 = vmatprep.subr.bf16.mxu0 0
  %940 = vmatpush1.bf16.msra.mxu0 %v922
  %941 = vmatprep.subr.bf16.mxu0 0
  %942 = vmatpush1.bf16.msra.mxu0 %v923
  %943 = vmatprep.subr.bf16.mxu0 0
  %944 = vmatpush1.bf16.msra.mxu0 %v924
  %945 = vmatprep.subr.bf16.mxu0 0
  %946 = vmatpush1.bf16.msra.mxu0 %v925
  %947 = vmatprep.subr.bf16.mxu0 0
  %948 = vmatpush1.bf16.msra.mxu0 %v926
  %949 = vmatprep.subr.bf16.mxu0 0
  %950 = vmatpush1.bf16.msra.mxu0 %v927
  %951 = vmatprep.subr.bf16.mxu0 0
  %952 = vmatpush1.bf16.msra.mxu0 %v928
  %953 = vmatprep.subr.bf16.mxu0 0
  %954 = vmatpush1.bf16.msra.mxu0 0
  %955 = vmatprep.subr.bf16.mxu0 0
  %956 = vmatpush1.bf16.msra.mxu0 0
  %957 = vmatprep.subr.bf16.mxu0 0
  %958 = vmatpush1.bf16.msra.mxu0 0
  %959 = vmatprep.subr.bf16.mxu0 0
  %960 = vmatpush1.bf16.msra.mxu0 0
  %961 = vmatprep.subr.bf16.mxu0 0
  %962 = vmatpush1.bf16.msra.mxu0 0
  %963 = vmatprep.subr.bf16.mxu0 0
  %964 = vmatpush1.bf16.msra.mxu0 0
  %965 = vmatprep.subr.bf16.mxu0 0
  %966 = vmatpush1.bf16.msra.mxu0 0
  %967 = vmatprep.subr.bf16.mxu0 0
  %968 = vmatpush1.bf16.msra.mxu0 0
  %969 = vmatprep.mubr.bf16.mxu0 0
  %970 = vmatmul.mubr.bf16.gmra.mrb[0].mxu0 %v877
  %v971 = vpop.f32.mrb[0].mxu0
  %v972 = vadd.f32 %v846, %v971
  %v973 = vpop.f32.mrb[0].mxu0
  %v974 = vpop.f32.mrb[0].mxu0
  %v975 = vadd.f32 %v849, %v974
  %v976 = vpop.f32.mrb[0].mxu0
  %977 = vmatprep.mubr.bf16.mxu0 0
  %978 = vmatmul.mubr.bf16.gmra.mrb[0].mxu0 %v886
  %v979 = vpop.f32.mrb[0].mxu0
  %v980 = vadd.f32 %v854, %v979
  %v981 = vpop.f32.mrb[0].mxu0
  %v982 = vpop.f32.mrb[0].mxu0
  %v983 = vadd.f32 %v857, %v982
  %v984 = vpop.f32.mrb[0].mxu0
  %985 = vdwg.mxu0
  %v986 = vld [vmem:[#allocation2 + $0x10] sm:$0x7]
  %s987 = scalar_lea.vmem %s5, 32
  %v988 = vld [vmem:[%s987] sm:$0xf]
  %v989 = vld [vmem:[%s987 + $0x4] sm:$0xf]
  %v990 = vld [vmem:[%s987 + $0x8] sm:$0xf]
  %v991 = vld [vmem:[%s987 + $0xc] sm:$0xf]
  %993 = vset.pattern.permute.xlu0 0
  %994 = vperm.xlu0 %993, %v988
  %v995 = vpop.permute.xlu0 %994
  %v998 = vunpack.c.l.s4 839922192
  %v999 = vunpack.c.0.s8 %v998
  %v1000 = vlaneseq
  %v1001 = vshrl.u32 %v1000, 7
  %v1002 = vsub.s32 %v999, %v1001
  %v1003 = vrot.slane %v995, %v1002
  %1005 = vset.pattern.permute.xlu0 0
  %1006 = vperm.xlu0 %1005, %v989
  %v1007 = vpop.permute.xlu0 %1006
  %v1010 = vunpack.c.l.s4 839922192
  %v1011 = vunpack.c.0.s8 %v1010
  %v1012 = vlaneseq
  %v1013 = vshrl.u32 %v1012, 7
  %v1014 = vsub.s32 %v1011, %v1013
  %v1015 = vrot.slane %v1007, %v1014
  %1017 = vset.pattern.permute.xlu0 0
  %1018 = vperm.xlu0 %1017, %v990
  %v1019 = vpop.permute.xlu0 %1018
  %v1022 = vunpack.c.l.s4 839922192
  %v1023 = vunpack.c.0.s8 %v1022
  %v1024 = vlaneseq
  %v1025 = vshrl.u32 %v1024, 7
  %v1026 = vsub.s32 %v1023, %v1025
  %v1027 = vrot.slane %v1019, %v1026
  %1029 = vset.pattern.permute.xlu0 0
  %1030 = vperm.xlu0 %1029, %v991
  %v1031 = vpop.permute.xlu0 %1030
  %v1034 = vunpack.c.l.s4 839922192
  %v1035 = vunpack.c.0.s8 %v1034
  %v1036 = vlaneseq
  %v1037 = vshrl.u32 %v1036, 7
  %v1038 = vsub.s32 %v1035, %v1037
  %v1039 = vrot.slane %v1031, %v1038
  %v1044 = vunpack.c.l.b16 %v1003
  %v1045 = vunpack.c.l.b16 %v1015
  %v1046 = vunpack.c.l.b16 %v1027
  %v1047 = vunpack.c.l.b16 %v1039
  %v1048 = vpack.c.b16 %v1045, %v1044
  %v1049 = vpack.c.b16 %v1047, %v1046
  %vm1050 = vsmask.f32 2304
  %v1052 = vshrl.u32 %v1048, 16
  %v1054 = vrot.slane %v1052, 5
  %v1055 = vshll.u32 %v1048, 16
  %v1057 = vrot.slane %v1055, 6
  %v1058 = vor.u32 %v1054, %v1057
  %v1060 = vshrl.u32 %v1049, 16
  %v1062 = vrot.slane %v1060, 5
  %v1063 = vshll.u32 %v1049, 16
  %v1065 = vrot.slane %v1063, 6
  %v1066 = vor.u32 %v1062, %v1065
  %v1067 = vsel %vm1050, %v1058, %v1066
  %v1071 = vmul.bf16 %v661, %v1058
  %v1072 = vmul.bf16 %v557, %v1067
  %v1073 = vmul.bf16 %v986, %v1066
  %s1074 = scalar_lea.vmem %s3, 128
  %v1075 = vld [vmem:[%s1074] sm:$0xf]
  %v1076 = vld [vmem:[%s1074 + $0x4] sm:$0xf]
  %v1077 = vld [vmem:[%s1074 + $0x8] sm:$0xf]
  %v1078 = vld [vmem:[%s1074 + $0xc] sm:$0xf]
  %v1079 = vld [vmem:[%s1074 + $0x10] sm:$0xf]
  %v1080 = vld [vmem:[%s1074 + $0x14] sm:$0xf]
  %v1081 = vld [vmem:[%s1074 + $0x18] sm:$0xf]
  %v1082 = vld [vmem:[%s1074 + $0x1c] sm:$0xf]
  %v1083 = vld [vmem:[%s1074 + $0x20] sm:$0xf]
  %v1084 = vld [vmem:[%s1074 + $0x24] sm:$0xf]
  %v1085 = vld [vmem:[%s1074 + $0x28] sm:$0xf]
  %v1086 = vld [vmem:[%s1074 + $0x2c] sm:$0xf]
  %v1087 = vld [vmem:[%s1074 + $0x30] sm:$0xf]
  %v1088 = vld [vmem:[%s1074 + $0x34] sm:$0xf]
  %v1089 = vld [vmem:[%s1074 + $0x38] sm:$0xf]
  %v1090 = vld [vmem:[%s1074 + $0x3c] sm:$0xf]
  %vm1091 = vsmask.f32 5376
  %v1093 = vshrl.u32 %v1071, 16
  %v1095 = vrot.slane %v1093, 2
  %v1096 = vshll.u32 %v1071, 16
  %v1098 = vrot.slane %v1096, 3
  %v1099 = vor.u32 %v1095, %v1098
  %v1101 = vshrl.u32 %v1072, 16
  %v1103 = vrot.slane %v1101, 2
  %v1104 = vshll.u32 %v1072, 16
  %v1106 = vrot.slane %v1104, 3
  %v1107 = vor.u32 %v1103, %v1106
  %v1108 = vsel %vm1091, %v1099, %v1107
  %v1110 = vshrl.u32 %v1073, 16
  %v1112 = vrot.slane %v1110, 2
  %v1113 = vshll.u32 %v1073, 16
  %v1115 = vrot.slane %v1113, 3
  %v1116 = vor.u32 %v1112, %v1115
  %v1117 = vsel %vm1091, %v1107, %v1116
  %v1136 = vunpack.c.l.b16 %v1075
  %v1137 = vunpack.c.l.b16 %v1076
  %v1138 = vunpack.c.l.b16 %v1077
  %v1139 = vunpack.c.l.b16 %v1078
  %v1140 = vunpack.c.l.b16 %v1079
  %v1141 = vunpack.c.l.b16 %v1080
  %v1142 = vunpack.c.l.b16 %v1081
  %v1143 = vunpack.c.l.b16 %v1082
  %v1144 = vunpack.c.l.b16 %v1083
  %v1145 = vunpack.c.l.b16 %v1084
  %v1146 = vunpack.c.l.b16 %v1085
  %v1147 = vunpack.c.l.b16 %v1086
  %v1148 = vunpack.c.l.b16 %v1087
  %v1149 = vunpack.c.l.b16 %v1088
  %v1150 = vunpack.c.l.b16 %v1089
  %v1151 = vunpack.c.l.b16 %v1090
  %v1152 = vpack.c.b16 %v1137, %v1136
  %v1153 = vpack.c.b16 %v1139, %v1138
  %v1154 = vpack.c.b16 %v1141, %v1140
  %v1155 = vpack.c.b16 %v1143, %v1142
  %v1156 = vpack.c.b16 %v1145, %v1144
  %v1157 = vpack.c.b16 %v1147, %v1146
  %v1158 = vpack.c.b16 %v1149, %v1148
  %v1159 = vpack.c.b16 %v1151, %v1150
  %1168 = vmatprep.subr.bf16.mxu0 0
  %1169 = vmatpush1.bf16.msra.mxu0 %v1152
  %1170 = vmatprep.subr.bf16.mxu0 0
  %1171 = vmatpush1.bf16.msra.mxu0 %v1153
  %1172 = vmatprep.subr.bf16.mxu0 0
  %1173 = vmatpush1.bf16.msra.mxu0 %v1154
  %1174 = vmatprep.subr.bf16.mxu0 0
  %1175 = vmatpush1.bf16.msra.mxu0 %v1155
  %1176 = vmatprep.subr.bf16.mxu0 0
  %1177 = vmatpush1.bf16.msra.mxu0 %v1156
  %1178 = vmatprep.subr.bf16.mxu0 0
  %1179 = vmatpush1.bf16.msra.mxu0 %v1157
  %1180 = vmatprep.subr.bf16.mxu0 0
  %1181 = vmatpush1.bf16.msra.mxu0 %v1158
  %1182 = vmatprep.subr.bf16.mxu0 0
  %1183 = vmatpush1.bf16.msra.mxu0 %v1159
  %1184 = vmatprep.subr.bf16.mxu0 0
  %1185 = vmatpush1.bf16.msra.mxu0 0
  %1186 = vmatprep.subr.bf16.mxu0 0
  %1187 = vmatpush1.bf16.msra.mxu0 0
  %1188 = vmatprep.subr.bf16.mxu0 0
  %1189 = vmatpush1.bf16.msra.mxu0 0
  %1190 = vmatprep.subr.bf16.mxu0 0
  %1191 = vmatpush1.bf16.msra.mxu0 0
  %1192 = vmatprep.subr.bf16.mxu0 0
  %1193 = vmatpush1.bf16.msra.mxu0 0
  %1194 = vmatprep.subr.bf16.mxu0 0
  %1195 = vmatpush1.bf16.msra.mxu0 0
  %1196 = vmatprep.subr.bf16.mxu0 0
  %1197 = vmatpush1.bf16.msra.mxu0 0
  %1198 = vmatprep.subr.bf16.mxu0 0
  %1199 = vmatpush1.bf16.msra.mxu0 0
  %1200 = vmatprep.mubr.bf16.mxu0 0
  %1201 = vmatmul.mubr.bf16.gmra.mrb[0].mxu0 %v1108
  %v1202 = vpop.f32.mrb[0].mxu0
  %v1203 = vadd.f32 0.0, %v1202
  %v1204 = vpop.f32.mrb[0].mxu0
  %v1205 = vpop.f32.mrb[0].mxu0
  %v1206 = vadd.f32 0.0, %v1205
  %v1207 = vpop.f32.mrb[0].mxu0
  %1208 = vmatprep.mubr.bf16.mxu0 0
  %1209 = vmatmul.mubr.bf16.gmra.mrb[0].mxu0 %v1117
  %v1210 = vpop.f32.mrb[0].mxu0
  %v1211 = vadd.f32 0.0, %v1210
  %v1212 = vpop.f32.mrb[0].mxu0
  %v1213 = vpop.f32.mrb[0].mxu0
  %v1214 = vadd.f32 0.0, %v1213
  %v1215 = vpop.f32.mrb[0].mxu0
  %1216 = vdwg.mxu0
  %v1217 = vadd.f32 %v972, %v1203
  %v1218 = vadd.f32 %v975, %v1206
  %v1219 = vadd.f32 %v980, %v1211
  %v1220 = vadd.f32 %v983, %v1214
  %v1221 = vld [vmem:[#allocation2] sm:$0xf8]
  %v1222 = vld [vmem:[#allocation2 + $0x10] sm:$0xf]
  %s1223 = scalar_lea.vmem %s5, 48
  %v1224 = vld [vmem:[%s1223] sm:$0xf]
  %v1225 = vld [vmem:[%s1223 + $0x4] sm:$0xf]
  %v1226 = vld [vmem:[%s1223 + $0x8] sm:$0xf]
  %v1227 = vld [vmem:[%s1223 + $0xc] sm:$0xf]
  %1229 = vset.pattern.permute.xlu0 0
  %1230 = vperm.xlu0 %1229, %v1224
  %v1231 = vpop.permute.xlu0 %1230
  %v1234 = vunpack.c.l.s4 839922192
  %v1235 = vunpack.c.0.s8 %v1234
  %v1236 = vlaneseq
  %v1237 = vshrl.u32 %v1236, 7
  %v1238 = vsub.s32 %v1235, %v1237
  %v1239 = vrot.slane %v1231, %v1238
  %1241 = vset.pattern.permute.xlu0 0
  %1242 = vperm.xlu0 %1241, %v1225
  %v1243 = vpop.permute.xlu0 %1242
  %v1246 = vunpack.c.l.s4 839922192
  %v1247 = vunpack.c.0.s8 %v1246
  %v1248 = vlaneseq
  %v1249 = vshrl.u32 %v1248, 7
  %v1250 = vsub.s32 %v1247, %v1249
  %v1251 = vrot.slane %v1243, %v1250
  %1253 = vset.pattern.permute.xlu0 0
  %1254 = vperm.xlu0 %1253, %v1226
  %v1255 = vpop.permute.xlu0 %1254
  %v1258 = vunpack.c.l.s4 839922192
  %v1259 = vunpack.c.0.s8 %v1258
  %v1260 = vlaneseq
  %v1261 = vshrl.u32 %v1260, 7
  %v1262 = vsub.s32 %v1259, %v1261
  %v1263 = vrot.slane %v1255, %v1262
  %1265 = vset.pattern.permute.xlu0 0
  %1266 = vperm.xlu0 %1265, %v1227
  %v1267 = vpop.permute.xlu0 %1266
  %v1270 = vunpack.c.l.s4 839922192
  %v1271 = vunpack.c.0.s8 %v1270
  %v1272 = vlaneseq
  %v1273 = vshrl.u32 %v1272, 7
  %v1274 = vsub.s32 %v1271, %v1273
  %v1275 = vrot.slane %v1267, %v1274
  %v1280 = vunpack.c.l.b16 %v1239
  %v1281 = vunpack.c.l.b16 %v1251
  %v1282 = vunpack.c.l.b16 %v1263
  %v1283 = vunpack.c.l.b16 %v1275
  %v1284 = vpack.c.b16 %v1281, %v1280
  %v1285 = vpack.c.b16 %v1283, %v1282
  %vm1286 = vsmask.f32 3328
  %v1288 = vshrl.u32 %v1284, 16
  %v1290 = vrot.slane %v1288, 4
  %v1291 = vshll.u32 %v1284, 16
  %v1293 = vrot.slane %v1291, 5
  %v1294 = vor.u32 %v1290, %v1293
  %v1296 = vshrl.u32 %v1285, 16
  %v1298 = vrot.slane %v1296, 4
  %v1299 = vshll.u32 %v1285, 16
  %v1301 = vrot.slane %v1299, 5
  %v1302 = vor.u32 %v1298, %v1301
  %v1303 = vsel %vm1286, %v1294, %v1302
  %v1307 = vmul.bf16 %v1221, %v1294
  %v1308 = vmul.bf16 %v557, %v1303
  %v1309 = vmul.bf16 %v1222, %v1302
  %s1310 = scalar_lea.vmem %s3, 192
  %v1311 = vld [vmem:[%s1310] sm:$0xf]
  %v1312 = vld [vmem:[%s1310 + $0x4] sm:$0xf]
  %v1313 = vld [vmem:[%s1310 + $0x8] sm:$0xf]
  %v1314 = vld [vmem:[%s1310 + $0xc] sm:$0xf]
  %v1315 = vld [vmem:[%s1310 + $0x10] sm:$0xf]
  %v1316 = vld [vmem:[%s1310 + $0x14] sm:$0xf]
  %v1317 = vld [vmem:[%s1310 + $0x18] sm:$0xf]
  %v1318 = vld [vmem:[%s1310 + $0x1c] sm:$0xf]
  %v1319 = vld [vmem:[%s1310 + $0x20] sm:$0xf]
  %v1320 = vld [vmem:[%s1310 + $0x24] sm:$0xf]
  %v1321 = vld [vmem:[%s1310 + $0x28] sm:$0xf]
  %v1322 = vld [vmem:[%s1310 + $0x2c] sm:$0xf]
  %v1323 = vld [vmem:[%s1310 + $0x30] sm:$0xf]
  %v1324 = vld [vmem:[%s1310 + $0x34] sm:$0xf]
  %v1325 = vld [vmem:[%s1310 + $0x38] sm:$0xf]
  %v1326 = vld [vmem:[%s1310 + $0x3c] sm:$0xf]
  %vm1327 = vsmask.f32 4352
  %v1329 = vshrl.u32 %v1307, 16
  %v1331 = vrot.slane %v1329, 3
  %v1332 = vshll.u32 %v1307, 16
  %v1334 = vrot.slane %v1332, 4
  %v1335 = vor.u32 %v1331, %v1334
  %v1337 = vshrl.u32 %v1308, 16
  %v1339 = vrot.slane %v1337, 3
  %v1340 = vshll.u32 %v1308, 16
  %v1342 = vrot.slane %v1340, 4
  %v1343 = vor.u32 %v1339, %v1342
  %v1344 = vsel %vm1327, %v1335, %v1343
  %v1346 = vshrl.u32 %v1309, 16
  %v1348 = vrot.slane %v1346, 3
  %v1349 = vshll.u32 %v1309, 16
  %v1351 = vrot.slane %v1349, 4
  %v1352 = vor.u32 %v1348, %v1351
  %v1353 = vsel %vm1327, %v1343, %v1352
  %v1372 = vunpack.c.l.b16 %v1311
  %v1373 = vunpack.c.l.b16 %v1312
  %v1374 = vunpack.c.l.b16 %v1313
  %v1375 = vunpack.c.l.b16 %v1314
  %v1376 = vunpack.c.l.b16 %v1315
  %v1377 = vunpack.c.l.b16 %v1316
  %v1378 = vunpack.c.l.b16 %v1317
  %v1379 = vunpack.c.l.b16 %v1318
  %v1380 = vunpack.c.l.b16 %v1319
  %v1381 = vunpack.c.l.b16 %v1320
  %v1382 = vunpack.c.l.b16 %v1321
  %v1383 = vunpack.c.l.b16 %v1322
  %v1384 = vunpack.c.l.b16 %v1323
  %v1385 = vunpack.c.l.b16 %v1324
  %v1386 = vunpack.c.l.b16 %v1325
  %v1387 = vunpack.c.l.b16 %v1326
  %v1388 = vpack.c.b16 %v1373, %v1372
  %v1389 = vpack.c.b16 %v1375, %v1374
  %v1390 = vpack.c.b16 %v1377, %v1376
  %v1391 = vpack.c.b16 %v1379, %v1378
  %v1392 = vpack.c.b16 %v1381, %v1380
  %v1393 = vpack.c.b16 %v1383, %v1382
  %v1394 = vpack.c.b16 %v1385, %v1384
  %v1395 = vpack.c.b16 %v1387, %v1386
  %1404 = vmatprep.subr.bf16.mxu0 0
  %1405 = vmatpush1.bf16.msra.mxu0 %v1388
  %1406 = vmatprep.subr.bf16.mxu0 0
  %1407 = vmatpush1.bf16.msra.mxu0 %v1389
  %1408 = vmatprep.subr.bf16.mxu0 0
  %1409 = vmatpush1.bf16.msra.mxu0 %v1390
  %1410 = vmatprep.subr.bf16.mxu0 0
  %1411 = vmatpush1.bf16.msra.mxu0 %v1391
  %1412 = vmatprep.subr.bf16.mxu0 0
  %1413 = vmatpush1.bf16.msra.mxu0 %v1392
  %1414 = vmatprep.subr.bf16.mxu0 0
  %1415 = vmatpush1.bf16.msra.mxu0 %v1393
  %1416 = vmatprep.subr.bf16.mxu0 0
  %1417 = vmatpush1.bf16.msra.mxu0 %v1394
  %1418 = vmatprep.subr.bf16.mxu0 0
  %1419 = vmatpush1.bf16.msra.mxu0 %v1395
  %1420 = vmatprep.subr.bf16.mxu0 0
  %1421 = vmatpush1.bf16.msra.mxu0 0
  %1422 = vmatprep.subr.bf16.mxu0 0
  %1423 = vmatpush1.bf16.msra.mxu0 0
  %1424 = vmatprep.subr.bf16.mxu0 0
  %1425 = vmatpush1.bf16.msra.mxu0 0
  %1426 = vmatprep.subr.bf16.mxu0 0
  %1427 = vmatpush1.bf16.msra.mxu0 0
  %1428 = vmatprep.subr.bf16.mxu0 0
  %1429 = vmatpush1.bf16.msra.mxu0 0
  %1430 = vmatprep.subr.bf16.mxu0 0
  %1431 = vmatpush1.bf16.msra.mxu0 0
  %1432 = vmatprep.subr.bf16.mxu0 0
  %1433 = vmatpush1.bf16.msra.mxu0 0
  %1434 = vmatprep.subr.bf16.mxu0 0
  %1435 = vmatpush1.bf16.msra.mxu0 0
  %1436 = vmatprep.mubr.bf16.mxu0 0
  %1437 = vmatmul.mubr.bf16.gmra.mrb[0].mxu0 %v1344
  %v1438 = vpop.f32.mrb[0].mxu0
  %v1439 = vadd.f32 0.0, %v1438
  %v1440 = vpop.f32.mrb[0].mxu0
  %v1441 = vpop.f32.mrb[0].mxu0
  %v1442 = vadd.f32 0.0, %v1441
  %v1443 = vpop.f32.mrb[0].mxu0
  %1444 = vmatprep.mubr.bf16.mxu0 0
  %1445 = vmatmul.mubr.bf16.gmra.mrb[0].mxu0 %v1353
  %v1446 = vpop.f32.mrb[0].mxu0
  %v1447 = vadd.f32 0.0, %v1446
  %v1448 = vpop.f32.mrb[0].mxu0
  %v1449 = vpop.f32.mrb[0].mxu0
  %v1450 = vadd.f32 0.0, %v1449
  %v1451 = vpop.f32.mrb[0].mxu0
  %1452 = vdwg.mxu0
  %v1453 = vadd.f32 %v1217, %v1439
  %v1454 = vadd.f32 %v1218, %v1442
  %v1455 = vadd.f32 %v1219, %v1447
  %v1456 = vadd.f32 %v1220, %v1450
  %v1457 = vld [vmem:[#allocation2] sm:$0xf0]
  %s1458 = scalar_lea.vmem %s3, 256
  %v1459 = vld [vmem:[%s1458] sm:$0xf]
  %v1460 = vld [vmem:[%s1458 + $0x4] sm:$0xf]
  %v1461 = vld [vmem:[%s1458 + $0x8] sm:$0xf]
  %v1462 = vld [vmem:[%s1458 + $0xc] sm:$0xf]
  %v1463 = vld [vmem:[%s1458 + $0x10] sm:$0xf]
  %v1464 = vld [vmem:[%s1458 + $0x14] sm:$0xf]
  %v1465 = vld [vmem:[%s1458 + $0x18] sm:$0xf]
  %v1466 = vld [vmem:[%s1458 + $0x1c] sm:$0xf]
  %v1467 = vld [vmem:[%s1458 + $0x20] sm:$0xf]
  %v1468 = vld [vmem:[%s1458 + $0x24] sm:$0xf]
  %v1469 = vld [vmem:[%s1458 + $0x28] sm:$0xf]
  %v1470 = vld [vmem:[%s1458 + $0x2c] sm:$0xf]
  %v1471 = vld [vmem:[%s1458 + $0x30] sm:$0xf]
  %v1472 = vld [vmem:[%s1458 + $0x34] sm:$0xf]
  %v1473 = vld [vmem:[%s1458 + $0x38] sm:$0xf]
  %v1474 = vld [vmem:[%s1458 + $0x3c] sm:$0xf]
  %v1478 = vrot.slane %v1457, 4
  %v1479 = vrot.slane %v557, 4
  %v1480 = vsel %vm546, %v1478, %v1479
  %v1481 = vrot.slane %v1222, 4
  %v1482 = vsel %vm546, %v1479, %v1481
  %v1501 = vunpack.c.l.b16 %v1459
  %v1502 = vunpack.c.l.b16 %v1460
  %v1503 = vunpack.c.l.b16 %v1461
  %v1504 = vunpack.c.l.b16 %v1462
  %v1505 = vunpack.c.l.b16 %v1463
  %v1506 = vunpack.c.l.b16 %v1464
  %v1507 = vunpack.c.l.b16 %v1465
  %v1508 = vunpack.c.l.b16 %v1466
  %v1509 = vunpack.c.l.b16 %v1467
  %v1510 = vunpack.c.l.b16 %v1468
  %v1511 = vunpack.c.l.b16 %v1469
  %v1512 = vunpack.c.l.b16 %v1470
  %v1513 = vunpack.c.l.b16 %v1471
  %v1514 = vunpack.c.l.b16 %v1472
  %v1515 = vunpack.c.l.b16 %v1473
  %v1516 = vunpack.c.l.b16 %v1474
  %v1517 = vpack.c.b16 %v1502, %v1501
  %v1518 = vpack.c.b16 %v1504, %v1503
  %v1519 = vpack.c.b16 %v1506, %v1505
  %v1520 = vpack.c.b16 %v1508, %v1507
  %v1521 = vpack.c.b16 %v1510, %v1509
  %v1522 = vpack.c.b16 %v1512, %v1511
  %v1523 = vpack.c.b16 %v1514, %v1513
  %v1524 = vpack.c.b16 %v1516, %v1515
  %1533 = vmatprep.subr.bf16.mxu0 0
  %1534 = vmatpush1.bf16.msra.mxu0 %v1517
  %1535 = vmatprep.subr.bf16.mxu0 0
  %1536 = vmatpush1.bf16.msra.mxu0 %v1518
  %1537 = vmatprep.subr.bf16.mxu0 0
  %1538 = vmatpush1.bf16.msra.mxu0 %v1519
  %1539 = vmatprep.subr.bf16.mxu0 0
  %1540 = vmatpush1.bf16.msra.mxu0 %v1520
  %1541 = vmatprep.subr.bf16.mxu0 0
  %1542 = vmatpush1.bf16.msra.mxu0 %v1521
  %1543 = vmatprep.subr.bf16.mxu0 0
  %1544 = vmatpush1.bf16.msra.mxu0 %v1522
  %1545 = vmatprep.subr.bf16.mxu0 0
  %1546 = vmatpush1.bf16.msra.mxu0 %v1523
  %1547 = vmatprep.subr.bf16.mxu0 0
  %1548 = vmatpush1.bf16.msra.mxu0 %v1524
  %1549 = vmatprep.subr.bf16.mxu0 0
  %1550 = vmatpush1.bf16.msra.mxu0 0
  %1551 = vmatprep.subr.bf16.mxu0 0
  %1552 = vmatpush1.bf16.msra.mxu0 0
  %1553 = vmatprep.subr.bf16.mxu0 0
  %1554 = vmatpush1.bf16.msra.mxu0 0
  %1555 = vmatprep.subr.bf16.mxu0 0
  %1556 = vmatpush1.bf16.msra.mxu0 0
  %1557 = vmatprep.subr.bf16.mxu0 0
  %1558 = vmatpush1.bf16.msra.mxu0 0
  %1559 = vmatprep.subr.bf16.mxu0 0
  %1560 = vmatpush1.bf16.msra.mxu0 0
  %1561 = vmatprep.subr.bf16.mxu0 0
  %1562 = vmatpush1.bf16.msra.mxu0 0
  %1563 = vmatprep.subr.bf16.mxu0 0
  %1564 = vmatpush1.bf16.msra.mxu0 0
  %1565 = vmatprep.mubr.bf16.mxu0 0
  %1566 = vmatmul.mubr.bf16.gmra.mrb[0].mxu0 %v1480
  %v1567 = vpop.f32.mrb[0].mxu0
  %v1568 = vadd.f32 0.0, %v1567
  %v1569 = vpop.f32.mrb[0].mxu0
  %v1570 = vpop.f32.mrb[0].mxu0
  %v1571 = vadd.f32 0.0, %v1570
  %v1572 = vpop.f32.mrb[0].mxu0
  %1573 = vmatprep.mubr.bf16.mxu0 0
  %1574 = vmatmul.mubr.bf16.gmra.mrb[0].mxu0 %v1482
  %v1575 = vpop.f32.mrb[0].mxu0
  %v1576 = vadd.f32 0.0, %v1575
  %v1577 = vpop.f32.mrb[0].mxu0
  %v1578 = vpop.f32.mrb[0].mxu0
  %v1579 = vadd.f32 0.0, %v1578
  %v1580 = vpop.f32.mrb[0].mxu0
  %1581 = vdwg.mxu0
  %v1582 = vadd.f32 %v1453, %v1568
  %v1583 = vadd.f32 %v1454, %v1571
  %v1584 = vadd.f32 %v1455, %v1576
  %v1585 = vadd.f32 %v1456, %v1579
  %v1586 = vld [vmem:[#allocation2 + $0x10] sm:$0x1f]
  %s1587 = scalar_lea.vmem %s5, 80
  %v1588 = vld [vmem:[%s1587] sm:$0xf]
  %v1589 = vld [vmem:[%s1587 + $0x4] sm:$0xf]
  %v1590 = vld [vmem:[%s1587 + $0x8] sm:$0xf]
  %v1591 = vld [vmem:[%s1587 + $0xc] sm:$0xf]
  %1593 = vset.pattern.permute.xlu0 0
  %1594 = vperm.xlu0 %1593, %v1588
  %v1595 = vpop.permute.xlu0 %1594
  %v1598 = vunpack.c.l.s4 839922192
  %v1599 = vunpack.c.0.s8 %v1598
  %v1600 = vlaneseq
  %v1601 = vshrl.u32 %v1600, 7
  %v1602 = vsub.s32 %v1599, %v1601
  %v1603 = vrot.slane %v1595, %v1602
  %1605 = vset.pattern.permute.xlu0 0
  %1606 = vperm.xlu0 %1605, %v1589
  %v1607 = vpop.permute.xlu0 %1606
  %v1610 = vunpack.c.l.s4 839922192
  %v1611 = vunpack.c.0.s8 %v1610
  %v1612 = vlaneseq
  %v1613 = vshrl.u32 %v1612, 7
  %v1614 = vsub.s32 %v1611, %v1613
  %v1615 = vrot.slane %v1607, %v1614
  %1617 = vset.pattern.permute.xlu0 0
  %1618 = vperm.xlu0 %1617, %v1590
  %v1619 = vpop.permute.xlu0 %1618
  %v1622 = vunpack.c.l.s4 839922192
  %v1623 = vunpack.c.0.s8 %v1622
  %v1624 = vlaneseq
  %v1625 = vshrl.u32 %v1624, 7
  %v1626 = vsub.s32 %v1623, %v1625
  %v1627 = vrot.slane %v1619, %v1626
  %1629 = vset.pattern.permute.xlu0 0
  %1630 = vperm.xlu0 %1629, %v1591
  %v1631 = vpop.permute.xlu0 %1630
  %v1634 = vunpack.c.l.s4 839922192
  %v1635 = vunpack.c.0.s8 %v1634
  %v1636 = vlaneseq
  %v1637 = vshrl.u32 %v1636, 7
  %v1638 = vsub.s32 %v1635, %v1637
  %v1639 = vrot.slane %v1631, %v1638
  %v1644 = vunpack.c.l.b16 %v1603
  %v1645 = vunpack.c.l.b16 %v1615
  %v1646 = vunpack.c.l.b16 %v1627
  %v1647 = vunpack.c.l.b16 %v1639
  %v1648 = vpack.c.b16 %v1645, %v1644
  %v1649 = vpack.c.b16 %v1647, %v1646
  %v1651 = vshrl.u32 %v1648, 16
  %v1653 = vrot.slane %v1651, 3
  %v1654 = vshll.u32 %v1648, 16
  %v1656 = vrot.slane %v1654, 4
  %v1657 = vor.u32 %v1653, %v1656
  %v1659 = vshrl.u32 %v1649, 16
  %v1661 = vrot.slane %v1659, 3
  %v1662 = vshll.u32 %v1649, 16
  %v1664 = vrot.slane %v1662, 4
  %v1665 = vor.u32 %v1661, %v1664
  %v1666 = vsel %vm1327, %v1657, %v1665
  %v1670 = vmul.bf16 %v1457, %v1657
  %v1671 = vmul.bf16 %v557, %v1666
  %v1672 = vmul.bf16 %v1586, %v1665
  %s1673 = scalar_lea.vmem %s3, 320
  %v1674 = vld [vmem:[%s1673] sm:$0xf]
  %v1675 = vld [vmem:[%s1673 + $0x4] sm:$0xf]
  %v1676 = vld [vmem:[%s1673 + $0x8] sm:$0xf]
  %v1677 = vld [vmem:[%s1673 + $0xc] sm:$0xf]
  %v1678 = vld [vmem:[%s1673 + $0x10] sm:$0xf]
  %v1679 = vld [vmem:[%s1673 + $0x14] sm:$0xf]
  %v1680 = vld [vmem:[%s1673 + $0x18] sm:$0xf]
  %v1681 = vld [vmem:[%s1673 + $0x1c] sm:$0xf]
  %v1682 = vld [vmem:[%s1673 + $0x20] sm:$0xf]
  %v1683 = vld [vmem:[%s1673 + $0x24] sm:$0xf]
  %v1684 = vld [vmem:[%s1673 + $0x28] sm:$0xf]
  %v1685 = vld [vmem:[%s1673 + $0x2c] sm:$0xf]
  %v1686 = vld [vmem:[%s1673 + $0x30] sm:$0xf]
  %v1687 = vld [vmem:[%s1673 + $0x34] sm:$0xf]
  %v1688 = vld [vmem:[%s1673 + $0x38] sm:$0xf]
  %v1689 = vld [vmem:[%s1673 + $0x3c] sm:$0xf]
  %v1691 = vshrl.u32 %v1670, 16
  %v1693 = vrot.slane %v1691, 4
  %v1694 = vshll.u32 %v1670, 16
  %v1696 = vrot.slane %v1694, 5
  %v1697 = vor.u32 %v1693, %v1696
  %v1699 = vshrl.u32 %v1671, 16
  %v1701 = vrot.slane %v1699, 4
  %v1702 = vshll.u32 %v1671, 16
  %v1704 = vrot.slane %v1702, 5
  %v1705 = vor.u32 %v1701, %v1704
  %v1706 = vsel %vm1286, %v1697, %v1705
  %v1708 = vshrl.u32 %v1672, 16
  %v1710 = vrot.slane %v1708, 4
  %v1711 = vshll.u32 %v1672, 16
  %v1713 = vrot.slane %v1711, 5
  %v1714 = vor.u32 %v1710, %v1713
  %v1715 = vsel %vm1286, %v1705, %v1714
  %v1734 = vunpack.c.l.b16 %v1674
  %v1735 = vunpack.c.l.b16 %v1675
  %v1736 = vunpack.c.l.b16 %v1676
  %v1737 = vunpack.c.l.b16 %v1677
  %v1738 = vunpack.c.l.b16 %v1678
  %v1739 = vunpack.c.l.b16 %v1679
  %v1740 = vunpack.c.l.b16 %v1680
  %v1741 = vunpack.c.l.b16 %v1681
  %v1742 = vunpack.c.l.b16 %v1682
  %v1743 = vunpack.c.l.b16 %v1683
  %v1744 = vunpack.c.l.b16 %v1684
  %v1745 = vunpack.c.l.b16 %v1685
  %v1746 = vunpack.c.l.b16 %v1686
  %v1747 = vunpack.c.l.b16 %v1687
  %v1748 = vunpack.c.l.b16 %v1688
  %v1749 = vunpack.c.l.b16 %v1689
  %v1750 = vpack.c.b16 %v1735, %v1734
  %v1751 = vpack.c.b16 %v1737, %v1736
  %v1752 = vpack.c.b16 %v1739, %v1738
  %v1753 = vpack.c.b16 %v1741, %v1740
  %v1754 = vpack.c.b16 %v1743, %v1742
  %v1755 = vpack.c.b16 %v1745, %v1744
  %v1756 = vpack.c.b16 %v1747, %v1746
  %v1757 = vpack.c.b16 %v1749, %v1748
  %1766 = vmatprep.subr.bf16.mxu0 0
  %1767 = vmatpush1.bf16.msra.mxu0 %v1750
  %1768 = vmatprep.subr.bf16.mxu0 0
  %1769 = vmatpush1.bf16.msra.mxu0 %v1751
  %1770 = vmatprep.subr.bf16.mxu0 0
  %1771 = vmatpush1.bf16.msra.mxu0 %v1752
  %1772 = vmatprep.subr.bf16.mxu0 0
  %1773 = vmatpush1.bf16.msra.mxu0 %v1753
  %1774 = vmatprep.subr.bf16.mxu0 0
  %1775 = vmatpush1.bf16.msra.mxu0 %v1754
  %1776 = vmatprep.subr.bf16.mxu0 0
  %1777 = vmatpush1.bf16.msra.mxu0 %v1755
  %1778 = vmatprep.subr.bf16.mxu0 0
  %1779 = vmatpush1.bf16.msra.mxu0 %v1756
  %1780 = vmatprep.subr.bf16.mxu0 0
  %1781 = vmatpush1.bf16.msra.mxu0 %v1757
  %1782 = vmatprep.subr.bf16.mxu0 0
  %1783 = vmatpush1.bf16.msra.mxu0 0
  %1784 = vmatprep.subr.bf16.mxu0 0
  %1785 = vmatpush1.bf16.msra.mxu0 0
  %1786 = vmatprep.subr.bf16.mxu0 0
  %1787 = vmatpush1.bf16.msra.mxu0 0
  %1788 = vmatprep.subr.bf16.mxu0 0
  %1789 = vmatpush1.bf16.msra.mxu0 0
  %1790 = vmatprep.subr.bf16.mxu0 0
  %1791 = vmatpush1.bf16.msra.mxu0 0
  %1792 = vmatprep.subr.bf16.mxu0 0
  %1793 = vmatpush1.bf16.msra.mxu0 0
  %1794 = vmatprep.subr.bf16.mxu0 0
  %1795 = vmatpush1.bf16.msra.mxu0 0
  %1796 = vmatprep.subr.bf16.mxu0 0
  %1797 = vmatpush1.bf16.msra.mxu0 0
  %1798 = vmatprep.mubr.bf16.mxu0 0
  %1799 = vmatmul.mubr.bf16.gmra.mrb[0].mxu0 %v1706
  %v1800 = vpop.f32.mrb[0].mxu0
  %v1801 = vadd.f32 0.0, %v1800
  %v1802 = vpop.f32.mrb[0].mxu0
  %v1803 = vpop.f32.mrb[0].mxu0
  %v1804 = vadd.f32 0.0, %v1803
  %v1805 = vpop.f32.mrb[0].mxu0
  %1806 = vmatprep.mubr.bf16.mxu0 0
  %1807 = vmatmul.mubr.bf16.gmra.mrb[0].mxu0 %v1715
  %v1808 = vpop.f32.mrb[0].mxu0
  %v1809 = vadd.f32 0.0, %v1808
  %v1810 = vpop.f32.mrb[0].mxu0
  %v1811 = vpop.f32.mrb[0].mxu0
  %v1812 = vadd.f32 0.0, %v1811
  %v1813 = vpop.f32.mrb[0].mxu0
  %1814 = vdwg.mxu0
  %v1815 = vadd.f32 %v1582, %v1801
  %v1816 = vadd.f32 %v1583, %v1804
  %v1817 = vadd.f32 %v1584, %v1809
  %v1818 = vadd.f32 %v1585, %v1812
  %v1819 = vld [vmem:[#allocation2] sm:$0xe0]
  %v1820 = vld [vmem:[#allocation2 + $0x10] sm:$0x3f]
  %s1821 = scalar_lea.vmem %s5, 96
  %v1822 = vld [vmem:[%s1821] sm:$0xf]
  %v1823 = vld [vmem:[%s1821 + $0x4] sm:$0xf]
  %v1824 = vld [vmem:[%s1821 + $0x8] sm:$0xf]
  %v1825 = vld [vmem:[%s1821 + $0xc] sm:$0xf]
  %1827 = vset.pattern.permute.xlu0 0
  %1828 = vperm.xlu0 %1827, %v1822
  %v1829 = vpop.permute.xlu0 %1828
  %v1832 = vunpack.c.l.s4 839922192
  %v1833 = vunpack.c.0.s8 %v1832
  %v1834 = vlaneseq
  %v1835 = vshrl.u32 %v1834, 7
  %v1836 = vsub.s32 %v1833, %v1835
  %v1837 = vrot.slane %v1829, %v1836
  %1839 = vset.pattern.permute.xlu0 0
  %1840 = vperm.xlu0 %1839, %v1823
  %v1841 = vpop.permute.xlu0 %1840
  %v1844 = vunpack.c.l.s4 839922192
  %v1845 = vunpack.c.0.s8 %v1844
  %v1846 = vlaneseq
  %v1847 = vshrl.u32 %v1846, 7
  %v1848 = vsub.s32 %v1845, %v1847
  %v1849 = vrot.slane %v1841, %v1848
  %1851 = vset.pattern.permute.xlu0 0
  %1852 = vperm.xlu0 %1851, %v1824
  %v1853 = vpop.permute.xlu0 %1852
  %v1856 = vunpack.c.l.s4 839922192
  %v1857 = vunpack.c.0.s8 %v1856
  %v1858 = vlaneseq
  %v1859 = vshrl.u32 %v1858, 7
  %v1860 = vsub.s32 %v1857, %v1859
  %v1861 = vrot.slane %v1853, %v1860
  %1863 = vset.pattern.permute.xlu0 0
  %1864 = vperm.xlu0 %1863, %v1825
  %v1865 = vpop.permute.xlu0 %1864
  %v1868 = vunpack.c.l.s4 839922192
  %v1869 = vunpack.c.0.s8 %v1868
  %v1870 = vlaneseq
  %v1871 = vshrl.u32 %v1870, 7
  %v1872 = vsub.s32 %v1869, %v1871
  %v1873 = vrot.slane %v1865, %v1872
  %v1878 = vunpack.c.l.b16 %v1837
  %v1879 = vunpack.c.l.b16 %v1849
  %v1880 = vunpack.c.l.b16 %v1861
  %v1881 = vunpack.c.l.b16 %v1873
  %v1882 = vpack.c.b16 %v1879, %v1878
  %v1883 = vpack.c.b16 %v1881, %v1880
  %v1885 = vshrl.u32 %v1882, 16
  %v1887 = vrot.slane %v1885, 2
  %v1888 = vshll.u32 %v1882, 16
  %v1890 = vrot.slane %v1888, 3
  %v1891 = vor.u32 %v1887, %v1890
  %v1893 = vshrl.u32 %v1883, 16
  %v1895 = vrot.slane %v1893, 2
  %v1896 = vshll.u32 %v1883, 16
  %v1898 = vrot.slane %v1896, 3
  %v1899 = vor.u32 %v1895, %v1898
  %v1900 = vsel %vm1091, %v1891, %v1899
  %v1904 = vmul.bf16 %v1819, %v1891
  %v1905 = vmul.bf16 %v557, %v1900
  %v1906 = vmul.bf16 %v1820, %v1899
  %s1907 = scalar_lea.vmem %s3, 384
  %v1908 = vld [vmem:[%s1907] sm:$0xf]
  %v1909 = vld [vmem:[%s1907 + $0x4] sm:$0xf]
  %v1910 = vld [vmem:[%s1907 + $0x8] sm:$0xf]
  %v1911 = vld [vmem:[%s1907 + $0xc] sm:$0xf]
  %v1912 = vld [vmem:[%s1907 + $0x10] sm:$0xf]
  %v1913 = vld [vmem:[%s1907 + $0x14] sm:$0xf]
  %v1914 = vld [vmem:[%s1907 + $0x18] sm:$0xf]
  %v1915 = vld [vmem:[%s1907 + $0x1c] sm:$0xf]
  %v1916 = vld [vmem:[%s1907 + $0x20] sm:$0xf]
  %v1917 = vld [vmem:[%s1907 + $0x24] sm:$0xf]
  %v1918 = vld [vmem:[%s1907 + $0x28] sm:$0xf]
  %v1919 = vld [vmem:[%s1907 + $0x2c] sm:$0xf]
  %v1920 = vld [vmem:[%s1907 + $0x30] sm:$0xf]
  %v1921 = vld [vmem:[%s1907 + $0x34] sm:$0xf]
  %v1922 = vld [vmem:[%s1907 + $0x38] sm:$0xf]
  %v1923 = vld [vmem:[%s1907 + $0x3c] sm:$0xf]
  %v1925 = vshrl.u32 %v1904, 16
  %v1927 = vrot.slane %v1925, 5
  %v1928 = vshll.u32 %v1904, 16
  %v1930 = vrot.slane %v1928, 6
  %v1931 = vor.u32 %v1927, %v1930
  %v1933 = vshrl.u32 %v1905, 16
  %v1935 = vrot.slane %v1933, 5
  %v1936 = vshll.u32 %v1905, 16
  %v1938 = vrot.slane %v1936, 6
  %v1939 = vor.u32 %v1935, %v1938
  %v1940 = vsel %vm1050, %v1931, %v1939
  %v1942 = vshrl.u32 %v1906, 16
  %v1944 = vrot.slane %v1942, 5
  %v1945 = vshll.u32 %v1906, 16
  %v1947 = vrot.slane %v1945, 6
  %v1948 = vor.u32 %v1944, %v1947
  %v1949 = vsel %vm1050, %v1939, %v1948
  %v1968 = vunpack.c.l.b16 %v1908
  %v1969 = vunpack.c.l.b16 %v1909
  %v1970 = vunpack.c.l.b16 %v1910
  %v1971 = vunpack.c.l.b16 %v1911
  %v1972 = vunpack.c.l.b16 %v1912
  %v1973 = vunpack.c.l.b16 %v1913
  %v1974 = vunpack.c.l.b16 %v1914
  %v1975 = vunpack.c.l.b16 %v1915
  %v1976 = vunpack.c.l.b16 %v1916
  %v1977 = vunpack.c.l.b16 %v1917
  %v1978 = vunpack.c.l.b16 %v1918
  %v1979 = vunpack.c.l.b16 %v1919
  %v1980 = vunpack.c.l.b16 %v1920
  %v1981 = vunpack.c.l.b16 %v1921
  %v1982 = vunpack.c.l.b16 %v1922
  %v1983 = vunpack.c.l.b16 %v1923
  %v1984 = vpack.c.b16 %v1969, %v1968
  %v1985 = vpack.c.b16 %v1971, %v1970
  %v1986 = vpack.c.b16 %v1973, %v1972
  %v1987 = vpack.c.b16 %v1975, %v1974
  %v1988 = vpack.c.b16 %v1977, %v1976
  %v1989 = vpack.c.b16 %v1979, %v1978
  %v1990 = vpack.c.b16 %v1981, %v1980
  %v1991 = vpack.c.b16 %v1983, %v1982
  %2000 = vmatprep.subr.bf16.mxu0 0
  %2001 = vmatpush1.bf16.msra.mxu0 %v1984
  %2002 = vmatprep.subr.bf16.mxu0 0
  %2003 = vmatpush1.bf16.msra.mxu0 %v1985
  %2004 = vmatprep.subr.bf16.mxu0 0
  %2005 = vmatpush1.bf16.msra.mxu0 %v1986
  %2006 = vmatprep.subr.bf16.mxu0 0
  %2007 = vmatpush1.bf16.msra.mxu0 %v1987
  %2008 = vmatprep.subr.bf16.mxu0 0
  %2009 = vmatpush1.bf16.msra.mxu0 %v1988
  %2010 = vmatprep.subr.bf16.mxu0 0
  %2011 = vmatpush1.bf16.msra.mxu0 %v1989
  %2012 = vmatprep.subr.bf16.mxu0 0
  %2013 = vmatpush1.bf16.msra.mxu0 %v1990
  %2014 = vmatprep.subr.bf16.mxu0 0
  %2015 = vmatpush1.bf16.msra.mxu0 %v1991
  %2016 = vmatprep.subr.bf16.mxu0 0
  %2017 = vmatpush1.bf16.msra.mxu0 0
  %2018 = vmatprep.subr.bf16.mxu0 0
  %2019 = vmatpush1.bf16.msra.mxu0 0
  %2020 = vmatprep.subr.bf16.mxu0 0
  %2021 = vmatpush1.bf16.msra.mxu0 0
  %2022 = vmatprep.subr.bf16.mxu0 0
  %2023 = vmatpush1.bf16.msra.mxu0 0
  %2024 = vmatprep.subr.bf16.mxu0 0
  %2025 = vmatpush1.bf16.msra.mxu0 0
  %2026 = vmatprep.subr.bf16.mxu0 0
  %2027 = vmatpush1.bf16.msra.mxu0 0
  %2028 = vmatprep.subr.bf16.mxu0 0
  %2029 = vmatpush1.bf16.msra.mxu0 0
  %2030 = vmatprep.subr.bf16.mxu0 0
  %2031 = vmatpush1.bf16.msra.mxu0 0
  %2032 = vmatprep.mubr.bf16.mxu0 0
  %2033 = vmatmul.mubr.bf16.gmra.mrb[0].mxu0 %v1940
  %v2034 = vpop.f32.mrb[0].mxu0
  %v2035 = vadd.f32 0.0, %v2034
  %v2036 = vpop.f32.mrb[0].mxu0
  %v2037 = vpop.f32.mrb[0].mxu0
  %v2038 = vadd.f32 0.0, %v2037
  %v2039 = vpop.f32.mrb[0].mxu0
  %2040 = vmatprep.mubr.bf16.mxu0 0
  %2041 = vmatmul.mubr.bf16.gmra.mrb[0].mxu0 %v1949
  %v2042 = vpop.f32.mrb[0].mxu0
  %v2043 = vadd.f32 0.0, %v2042
  %v2044 = vpop.f32.mrb[0].mxu0
  %v2045 = vpop.f32.mrb[0].mxu0
  %v2046 = vadd.f32 0.0, %v2045
  %v2047 = vpop.f32.mrb[0].mxu0
  %2048 = vdwg.mxu0
  %v2049 = vadd.f32 %v1815, %v2035
  %v2050 = vadd.f32 %v1816, %v2038
  %v2051 = vadd.f32 %v1817, %v2043
  %v2052 = vadd.f32 %v1818, %v2046
  %v2053 = vld [vmem:[#allocation2] sm:$0xc0]
  %s2054 = scalar_lea.vmem %s5, 112
  %v2055 = vld [vmem:[%s2054] sm:$0xf]
  %v2056 = vld [vmem:[%s2054 + $0x4] sm:$0xf]
  %v2057 = vld [vmem:[%s2054 + $0x8] sm:$0xf]
  %v2058 = vld [vmem:[%s2054 + $0xc] sm:$0xf]
  %2060 = vset.pattern.permute.xlu0 0
  %2061 = vperm.xlu0 %2060, %v2055
  %v2062 = vpop.permute.xlu0 %2061
  %v2065 = vunpack.c.l.s4 839922192
  %v2066 = vunpack.c.0.s8 %v2065
  %v2067 = vlaneseq
  %v2068 = vshrl.u32 %v2067, 7
  %v2069 = vsub.s32 %v2066, %v2068
  %v2070 = vrot.slane %v2062, %v2069
  %2072 = vset.pattern.permute.xlu0 0
  %2073 = vperm.xlu0 %2072, %v2056
  %v2074 = vpop.permute.xlu0 %2073
  %v2077 = vunpack.c.l.s4 839922192
  %v2078 = vunpack.c.0.s8 %v2077
  %v2079 = vlaneseq
  %v2080 = vshrl.u32 %v2079, 7
  %v2081 = vsub.s32 %v2078, %v2080
  %v2082 = vrot.slane %v2074, %v2081
  %2084 = vset.pattern.permute.xlu0 0
  %2085 = vperm.xlu0 %2084, %v2057
  %v2086 = vpop.permute.xlu0 %2085
  %v2089 = vunpack.c.l.s4 839922192
  %v2090 = vunpack.c.0.s8 %v2089
  %v2091 = vlaneseq
  %v2092 = vshrl.u32 %v2091, 7
  %v2093 = vsub.s32 %v2090, %v2092
  %v2094 = vrot.slane %v2086, %v2093
  %2096 = vset.pattern.permute.xlu0 0
  %2097 = vperm.xlu0 %2096, %v2058
  %v2098 = vpop.permute.xlu0 %2097
  %v2101 = vunpack.c.l.s4 839922192
  %v2102 = vunpack.c.0.s8 %v2101
  %v2103 = vlaneseq
  %v2104 = vshrl.u32 %v2103, 7
  %v2105 = vsub.s32 %v2102, %v2104
  %v2106 = vrot.slane %v2098, %v2105
  %v2111 = vunpack.c.l.b16 %v2070
  %v2112 = vunpack.c.l.b16 %v2082
  %v2113 = vunpack.c.l.b16 %v2094
  %v2114 = vunpack.c.l.b16 %v2106
  %v2115 = vpack.c.b16 %v2112, %v2111
  %v2116 = vpack.c.b16 %v2114, %v2113
  %v2117 = vrot.slane %v2115, 2
  %v2118 = vrot.slane %v2116, 2
  %v2119 = vsel %vm755, %v2117, %v2118
  %v2123 = vmul.bf16 %v2053, %v2117
  %v2124 = vmul.bf16 %v557, %v2119
  %v2125 = vmul.bf16 %v1820, %v2118
  %s2126 = scalar_lea.vmem %s3, 448
  %v2127 = vld [vmem:[%s2126] sm:$0xf]
  %v2128 = vld [vmem:[%s2126 + $0x4] sm:$0xf]
  %v2129 = vld [vmem:[%s2126 + $0x8] sm:$0xf]
  %v2130 = vld [vmem:[%s2126 + $0xc] sm:$0xf]
  %v2131 = vld [vmem:[%s2126 + $0x10] sm:$0xf]
  %v2132 = vld [vmem:[%s2126 + $0x14] sm:$0xf]
  %v2133 = vld [vmem:[%s2126 + $0x18] sm:$0xf]
  %v2134 = vld [vmem:[%s2126 + $0x1c] sm:$0xf]
  %v2135 = vld [vmem:[%s2126 + $0x20] sm:$0xf]
  %v2136 = vld [vmem:[%s2126 + $0x24] sm:$0xf]
  %v2137 = vld [vmem:[%s2126 + $0x28] sm:$0xf]
  %v2138 = vld [vmem:[%s2126 + $0x2c] sm:$0xf]
  %v2139 = vld [vmem:[%s2126 + $0x30] sm:$0xf]
  %v2140 = vld [vmem:[%s2126 + $0x34] sm:$0xf]
  %v2141 = vld [vmem:[%s2126 + $0x38] sm:$0xf]
  %v2142 = vld [vmem:[%s2126 + $0x3c] sm:$0xf]
  %v2146 = vrot.slane %v2123, 6
  %v2147 = vrot.slane %v2124, 6
  %v2148 = vsel %vm725, %v2146, %v2147
  %v2149 = vrot.slane %v2125, 6
  %v2150 = vsel %vm725, %v2147, %v2149
  %v2169 = vunpack.c.l.b16 %v2127
  %v2170 = vunpack.c.l.b16 %v2128
  %v2171 = vunpack.c.l.b16 %v2129
  %v2172 = vunpack.c.l.b16 %v2130
  %v2173 = vunpack.c.l.b16 %v2131
  %v2174 = vunpack.c.l.b16 %v2132
  %v2175 = vunpack.c.l.b16 %v2133
  %v2176 = vunpack.c.l.b16 %v2134
  %v2177 = vunpack.c.l.b16 %v2135
  %v2178 = vunpack.c.l.b16 %v2136
  %v2179 = vunpack.c.l.b16 %v2137
  %v2180 = vunpack.c.l.b16 %v2138
  %v2181 = vunpack.c.l.b16 %v2139
  %v2182 = vunpack.c.l.b16 %v2140
  %v2183 = vunpack.c.l.b16 %v2141
  %v2184 = vunpack.c.l.b16 %v2142
  %v2185 = vpack.c.b16 %v2170, %v2169
  %v2186 = vpack.c.b16 %v2172, %v2171
  %v2187 = vpack.c.b16 %v2174, %v2173
  %v2188 = vpack.c.b16 %v2176, %v2175
  %v2189 = vpack.c.b16 %v2178, %v2177
  %v2190 = vpack.c.b16 %v2180, %v2179
  %v2191 = vpack.c.b16 %v2182, %v2181
  %v2192 = vpack.c.b16 %v2184, %v2183
  %2201 = vmatprep.subr.bf16.mxu0 0
  %2202 = vmatpush1.bf16.msra.mxu0 %v2185
  %2203 = vmatprep.subr.bf16.mxu0 0
  %2204 = vmatpush1.bf16.msra.mxu0 %v2186
  %2205 = vmatprep.subr.bf16.mxu0 0
  %2206 = vmatpush1.bf16.msra.mxu0 %v2187
  %2207 = vmatprep.subr.bf16.mxu0 0
  %2208 = vmatpush1.bf16.msra.mxu0 %v2188
  %2209 = vmatprep.subr.bf16.mxu0 0
  %2210 = vmatpush1.bf16.msra.mxu0 %v2189
  %2211 = vmatprep.subr.bf16.mxu0 0
  %2212 = vmatpush1.bf16.msra.mxu0 %v2190
  %2213 = vmatprep.subr.bf16.mxu0 0
  %2214 = vmatpush1.bf16.msra.mxu0 %v2191
  %2215 = vmatprep.subr.bf16.mxu0 0
  %2216 = vmatpush1.bf16.msra.mxu0 %v2192
  %2217 = vmatprep.subr.bf16.mxu0 0
  %2218 = vmatpush1.bf16.msra.mxu0 0
  %2219 = vmatprep.subr.bf16.mxu0 0
  %2220 = vmatpush1.bf16.msra.mxu0 0
  %2221 = vmatprep.subr.bf16.mxu0 0
  %2222 = vmatpush1.bf16.msra.mxu0 0
  %2223 = vmatprep.subr.bf16.mxu0 0
  %2224 = vmatpush1.bf16.msra.mxu0 0
  %2225 = vmatprep.subr.bf16.mxu0 0
  %2226 = vmatpush1.bf16.msra.mxu0 0
  %2227 = vmatprep.subr.bf16.mxu0 0
  %2228 = vmatpush1.bf16.msra.mxu0 0
  %2229 = vmatprep.subr.bf16.mxu0 0
  %2230 = vmatpush1.bf16.msra.mxu0 0
  %2231 = vmatprep.subr.bf16.mxu0 0
  %2232 = vmatpush1.bf16.msra.mxu0 0
  %2233 = vmatprep.mubr.bf16.mxu0 0
  %2234 = vmatmul.mubr.bf16.gmra.mrb[0].mxu0 %v2148
  %v2235 = vpop.f32.mrb[0].mxu0
  %v2236 = vadd.f32 0.0, %v2235
  %v2237 = vpop.f32.mrb[0].mxu0
  %v2238 = vpop.f32.mrb[0].mxu0
  %v2239 = vadd.f32 0.0, %v2238
  %v2240 = vpop.f32.mrb[0].mxu0
  %2241 = vmatprep.mubr.bf16.mxu0 0
  %2242 = vmatmul.mubr.bf16.gmra.mrb[0].mxu0 %v2150
  %v2243 = vpop.f32.mrb[0].mxu0
  %v2244 = vadd.f32 0.0, %v2243
  %v2245 = vpop.f32.mrb[0].mxu0
  %v2246 = vpop.f32.mrb[0].mxu0
  %v2247 = vadd.f32 0.0, %v2246
  %v2248 = vpop.f32.mrb[0].mxu0
  %2249 = vdwg.mxu0
  %v2250 = vadd.f32 %v2049, %v2236
  %v2251 = vadd.f32 %v2050, %v2239
  %v2252 = vadd.f32 %v2051, %v2244
  %v2253 = vadd.f32 %v2052, %v2247
  %v2254 = vld [vmem:[#allocation2 + $0x10] sm:$0x7f]
  %s2255 = scalar_lea.vmem %s5, 128
  %v2256 = vld [vmem:[%s2255] sm:$0xf]
  %v2257 = vld [vmem:[%s2255 + $0x4] sm:$0xf]
  %v2258 = vld [vmem:[%s2255 + $0x8] sm:$0xf]
  %v2259 = vld [vmem:[%s2255 + $0xc] sm:$0xf]
  %2261 = vset.pattern.permute.xlu0 0
  %2262 = vperm.xlu0 %2261, %v2256
  %v2263 = vpop.permute.xlu0 %2262
  %v2266 = vunpack.c.l.s4 839922192
  %v2267 = vunpack.c.0.s8 %v2266
  %v2268 = vlaneseq
  %v2269 = vshrl.u32 %v2268, 7
  %v2270 = vsub.s32 %v2267, %v2269
  %v2271 = vrot.slane %v2263, %v2270
  %2273 = vset.pattern.permute.xlu0 0
  %2274 = vperm.xlu0 %2273, %v2257
  %v2275 = vpop.permute.xlu0 %2274
  %v2278 = vunpack.c.l.s4 839922192
  %v2279 = vunpack.c.0.s8 %v2278
  %v2280 = vlaneseq
  %v2281 = vshrl.u32 %v2280, 7
  %v2282 = vsub.s32 %v2279, %v2281
  %v2283 = vrot.slane %v2275, %v2282
  %2285 = vset.pattern.permute.xlu0 0
  %2286 = vperm.xlu0 %2285, %v2258
  %v2287 = vpop.permute.xlu0 %2286
  %v2290 = vunpack.c.l.s4 839922192
  %v2291 = vunpack.c.0.s8 %v2290
  %v2292 = vlaneseq
  %v2293 = vshrl.u32 %v2292, 7
  %v2294 = vsub.s32 %v2291, %v2293
  %v2295 = vrot.slane %v2287, %v2294
  %2297 = vset.pattern.permute.xlu0 0
  %2298 = vperm.xlu0 %2297, %v2259
  %v2299 = vpop.permute.xlu0 %2298
  %v2302 = vunpack.c.l.s4 839922192
  %v2303 = vunpack.c.0.s8 %v2302
  %v2304 = vlaneseq
  %v2305 = vshrl.u32 %v2304, 7
  %v2306 = vsub.s32 %v2303, %v2305
  %v2307 = vrot.slane %v2299, %v2306
  %v2312 = vunpack.c.l.b16 %v2271
  %v2313 = vunpack.c.l.b16 %v2283
  %v2314 = vunpack.c.l.b16 %v2295
  %v2315 = vunpack.c.l.b16 %v2307
  %v2316 = vpack.c.b16 %v2313, %v2312
  %v2317 = vpack.c.b16 %v2315, %v2314
  %v2319 = vshrl.u32 %v2316, 16
  %v2321 = vrot.slane %v2319, 1
  %v2322 = vshll.u32 %v2316, 16
  %v2324 = vrot.slane %v2322, 2
  %v2325 = vor.u32 %v2321, %v2324
  %v2327 = vshrl.u32 %v2317, 16
  %v2329 = vrot.slane %v2327, 1
  %v2330 = vshll.u32 %v2317, 16
  %v2332 = vrot.slane %v2330, 2
  %v2333 = vor.u32 %v2329, %v2332
  %v2334 = vsel %vm860, %v2325, %v2333
  %v2338 = vmul.bf16 %v2053, %v2325
  %v2339 = vmul.bf16 %v557, %v2334
  %v2340 = vmul.bf16 %v2254, %v2333
  %s2341 = scalar_lea.vmem %s3, 512
  %v2342 = vld [vmem:[%s2341] sm:$0xf]
  %v2343 = vld [vmem:[%s2341 + $0x4] sm:$0xf]
  %v2344 = vld [vmem:[%s2341 + $0x8] sm:$0xf]
  %v2345 = vld [vmem:[%s2341 + $0xc] sm:$0xf]
  %v2346 = vld [vmem:[%s2341 + $0x10] sm:$0xf]
  %v2347 = vld [vmem:[%s2341 + $0x14] sm:$0xf]
  %v2348 = vld [vmem:[%s2341 + $0x18] sm:$0xf]
  %v2349 = vld [vmem:[%s2341 + $0x1c] sm:$0xf]
  %v2350 = vld [vmem:[%s2341 + $0x20] sm:$0xf]
  %v2351 = vld [vmem:[%s2341 + $0x24] sm:$0xf]
  %v2352 = vld [vmem:[%s2341 + $0x28] sm:$0xf]
  %v2353 = vld [vmem:[%s2341 + $0x2c] sm:$0xf]
  %v2354 = vld [vmem:[%s2341 + $0x30] sm:$0xf]
  %v2355 = vld [vmem:[%s2341 + $0x34] sm:$0xf]
  %v2356 = vld [vmem:[%s2341 + $0x38] sm:$0xf]
  %v2357 = vld [vmem:[%s2341 + $0x3c] sm:$0xf]
  %v2359 = vshrl.u32 %v2338, 16
  %v2361 = vrot.slane %v2359, 6
  %v2362 = vshll.u32 %v2338, 16
  %v2364 = vrot.slane %v2362, 7
  %v2365 = vor.u32 %v2361, %v2364
  %v2367 = vshrl.u32 %v2339, 16
  %v2369 = vrot.slane %v2367, 6
  %v2370 = vshll.u32 %v2339, 16
  %v2372 = vrot.slane %v2370, 7
  %v2373 = vor.u32 %v2369, %v2372
  %v2374 = vsel %vm621, %v2365, %v2373
  %v2376 = vshrl.u32 %v2340, 16
  %v2378 = vrot.slane %v2376, 6
  %v2379 = vshll.u32 %v2340, 16
  %v2381 = vrot.slane %v2379, 7
  %v2382 = vor.u32 %v2378, %v2381
  %v2383 = vsel %vm621, %v2373, %v2382
  %v2402 = vunpack.c.l.b16 %v2342
  %v2403 = vunpack.c.l.b16 %v2343
  %v2404 = vunpack.c.l.b16 %v2344
  %v2405 = vunpack.c.l.b16 %v2345
  %v2406 = vunpack.c.l.b16 %v2346
  %v2407 = vunpack.c.l.b16 %v2347
  %v2408 = vunpack.c.l.b16 %v2348
  %v2409 = vunpack.c.l.b16 %v2349
  %v2410 = vunpack.c.l.b16 %v2350
  %v2411 = vunpack.c.l.b16 %v2351
  %v2412 = vunpack.c.l.b16 %v2352
  %v2413 = vunpack.c.l.b16 %v2353
  %v2414 = vunpack.c.l.b16 %v2354
  %v2415 = vunpack.c.l.b16 %v2355
  %v2416 = vunpack.c.l.b16 %v2356
  %v2417 = vunpack.c.l.b16 %v2357
  %v2418 = vpack.c.b16 %v2403, %v2402
  %v2419 = vpack.c.b16 %v2405, %v2404
  %v2420 = vpack.c.b16 %v2407, %v2406
  %v2421 = vpack.c.b16 %v2409, %v2408
  %v2422 = vpack.c.b16 %v2411, %v2410
  %v2423 = vpack.c.b16 %v2413, %v2412
  %v2424 = vpack.c.b16 %v2415, %v2414
  %v2425 = vpack.c.b16 %v2417, %v2416
  %2434 = vmatprep.subr.bf16.mxu0 0
  %2435 = vmatpush1.bf16.msra.mxu0 %v2418
  %2436 = vmatprep.subr.bf16.mxu0 0
  %2437 = vmatpush1.bf16.msra.mxu0 %v2419
  %2438 = vmatprep.subr.bf16.mxu0 0
  %2439 = vmatpush1.bf16.msra.mxu0 %v2420
  %2440 = vmatprep.subr.bf16.mxu0 0
  %2441 = vmatpush1.bf16.msra.mxu0 %v2421
  %2442 = vmatprep.subr.bf16.mxu0 0
  %2443 = vmatpush1.bf16.msra.mxu0 %v2422
  %2444 = vmatprep.subr.bf16.mxu0 0
  %2445 = vmatpush1.bf16.msra.mxu0 %v2423
  %2446 = vmatprep.subr.bf16.mxu0 0
  %2447 = vmatpush1.bf16.msra.mxu0 %v2424
  %2448 = vmatprep.subr.bf16.mxu0 0
  %2449 = vmatpush1.bf16.msra.mxu0 %v2425
  %2450 = vmatprep.subr.bf16.mxu0 0
  %2451 = vmatpush1.bf16.msra.mxu0 0
  %2452 = vmatprep.subr.bf16.mxu0 0
  %2453 = vmatpush1.bf16.msra.mxu0 0
  %2454 = vmatprep.subr.bf16.mxu0 0
  %2455 = vmatpush1.bf16.msra.mxu0 0
  %2456 = vmatprep.subr.bf16.mxu0 0
  %2457 = vmatpush1.bf16.msra.mxu0 0
  %2458 = vmatprep.subr.bf16.mxu0 0
  %2459 = vmatpush1.bf16.msra.mxu0 0
  %2460 = vmatprep.subr.bf16.mxu0 0
  %2461 = vmatpush1.bf16.msra.mxu0 0
  %2462 = vmatprep.subr.bf16.mxu0 0
  %2463 = vmatpush1.bf16.msra.mxu0 0
  %2464 = vmatprep.subr.bf16.mxu0 0
  %2465 = vmatpush1.bf16.msra.mxu0 0
  %2466 = vmatprep.mubr.bf16.mxu0 0
  %2467 = vmatmul.mubr.bf16.gmra.mrb[0].mxu0 %v2374
  %v2468 = vpop.f32.mrb[0].mxu0
  %v2469 = vadd.f32 0.0, %v2468
  %v2470 = vpop.f32.mrb[0].mxu0
  %v2471 = vpop.f32.mrb[0].mxu0
  %v2472 = vadd.f32 0.0, %v2471
  %v2473 = vpop.f32.mrb[0].mxu0
  %2474 = vmatprep.mubr.bf16.mxu0 0
  %2475 = vmatmul.mubr.bf16.gmra.mrb[0].mxu0 %v2383
  %v2476 = vpop.f32.mrb[0].mxu0
  %v2477 = vadd.f32 0.0, %v2476
  %v2478 = vpop.f32.mrb[0].mxu0
  %v2479 = vpop.f32.mrb[0].mxu0
  %v2480 = vadd.f32 0.0, %v2479
  %v2481 = vpop.f32.mrb[0].mxu0
  %2482 = vdwg.mxu0
  %v2483 = vadd.f32 %v2250, %v2469
  %v2484 = vadd.f32 %v2251, %v2472
  %v2485 = vadd.f32 %v2252, %v2477
  %v2486 = vadd.f32 %v2253, %v2480
  %v2487 = vld [vmem:[%s4] sm:$0x1]
  %v2489 = vlaneseq
  %v2490 = vshrl.u32 %v2489, 7
  %v2491 = vsub.s32 0, %v2490
  %v2492 = vrot.slane %v2487, %v2491
  %v2494 = vadd.f32 %v2483, %v2492
  %v2495 = vadd.f32 %v2484, %v2492
  %v2496 = vadd.f32 %v2485, %v2492
  %v2497 = vadd.f32 %v2486, %v2492
  %2498 = vst [vmem:[%s6] sm:$0xff] %v2494
  %2499 = vst [vmem:[%s6 + $0x8] sm:$0xff] %v2495
  %2500 = vst [vmem:[%s6 + $0x10] sm:$0xff] %v2496
  %2501 = vst [vmem:[%s6 + $0x18] sm:$0xff] %v2497
  // Predicated region
  $region26: #{palm_forward.6} parent=0 // pred_check
    _
  $region27: #{palm_forward.6} parent=0 // pred_check_branch
    %2503 = sbr.rel (0) target = $region29
  $region28: #{palm_forward.6} parent=0 // pred_region
    _
  $region29: #{palm_forward.6} parent=0 // pred_fallthru
    _
  // Predicated region
  $region30: #{palm_forward.6} parent=0 // pred_check
    _
  $region31: #{palm_forward.6} parent=0 // pred_check_branch
    %2505 = sbr.rel (0) target = $region33
  $region32: #{palm_forward.6} parent=0 // pred_region
    _
  $region33: #{palm_forward.6} parent=0 // pred_fallthru
    _

// kernel: palm_forward.9
$region0: #{palm_forward.9}
  #allocation0 [shape = 'u32[]', space=smem, size = 0x4, offset = 0x4, fixed_abs, tag = 'smem constant byte address 0x4 - core index']
  #allocation1 [shape = 'u32[144,128]{1,0:T(1,128)}', space=vmem, size = 0x12000, scoped, tag = 'internal scratch']
  %s0 = inlined_call_operand.vmem [shape: f32[2,512], index: 0, kind: input, shape index: {}]
  %s1 = inlined_call_operand.vmem [shape: bf16[512,256], index: 1, kind: input, shape index: {}]
  %s2 = inlined_call_operand.vmem [shape: f32[1,256], index: 2, kind: input, shape index: {}]
  %s3 = inlined_call_operand.vmem [shape: bf16[256,128], index: 3, kind: input, shape index: {}]
  %s4 = inlined_call_operand.vmem [shape: f32[1,128], index: 4, kind: input, shape index: {}]
  %s5 = inlined_call_operand.vmem [shape: bf16[128,20], index: 5, kind: input, shape index: {}]
  %s6 = inlined_call_operand.vmem [shape: f32[1,20], index: 6, kind: input, shape index: {}]
  %s7 = inlined_call_operand.vmem [shape: f32[1,20], index: 7, kind: input, shape index: {}]
  %s8 = inlined_call_operand.vmem [shape: f32[2,20], index: 8, kind: output, shape index: {}]
  %s9 = sld [smem:[#allocation0]]
  $region42: #{palm_forward.9} parent=0
    _
  %s11 = ssub.s32 1, %s9
  %s12 = scalar_select 0, %s11, %s9
  // Predicated region
  $region2: #{palm_forward.9} parent=0 // pred_check
    _
  $region3: #{palm_forward.9} parent=0 // pred_check_branch
    %14 = sbr.rel (0) target = $region5
  $region4: #{palm_forward.9} parent=0 // pred_region
    _
  $region5: #{palm_forward.9} parent=0 // pred_fallthru
    _
  // Predicated region
  $region6: #{palm_forward.9} parent=0 // pred_check
    _
  $region7: #{palm_forward.9} parent=0 // pred_check_branch
    %16 = sbr.rel (0) target = $region9
  $region8: #{palm_forward.9} parent=0 // pred_region
    _
  $region9: #{palm_forward.9} parent=0 // pred_fallthru
    _
  // Predicated region
  $region10: #{palm_forward.9} parent=0 // pred_check
    _
  $region11: #{palm_forward.9} parent=0 // pred_check_branch
    %18 = sbr.rel (0) target = $region13
  $region12: #{palm_forward.9} parent=0 // pred_region
    _
  $region13: #{palm_forward.9} parent=0 // pred_fallthru
    _
  // Predicated region
  $region14: #{palm_forward.9} parent=0 // pred_check
    _
  $region15: #{palm_forward.9} parent=0 // pred_check_branch
    %20 = sbr.rel (0) target = $region17
  $region16: #{palm_forward.9} parent=0 // pred_region
    _
  $region17: #{palm_forward.9} parent=0 // pred_fallthru
    _
  // Predicated region
  $region18: #{palm_forward.9} parent=0 // pred_check
    _
  $region19: #{palm_forward.9} parent=0 // pred_check_branch
    %22 = sbr.rel (0) target = $region21
  $region20: #{palm_forward.9} parent=0 // pred_region
    _
  $region21: #{palm_forward.9} parent=0 // pred_fallthru
    _
  // Predicated region
  $region22: #{palm_forward.9} parent=0 // pred_check
    _
  $region23: #{palm_forward.9} parent=0 // pred_check_branch
    %24 = sbr.rel (0) target = $region25
  $region24: #{palm_forward.9} parent=0 // pred_region
    _
  $region25: #{palm_forward.9} parent=0 // pred_fallthru
    _
  // Predicated region
  $region26: #{palm_forward.9} parent=0 // pred_check
    _
  $region27: #{palm_forward.9} parent=0 // pred_check_branch
    %26 = sbr.rel (0) target = $region29
  $region28: #{palm_forward.9} parent=0 // pred_region
    _
  $region29: #{palm_forward.9} parent=0 // pred_fallthru
    _
  // Predicated region
  $region30: #{palm_forward.9} parent=0 // pred_check
    _
  $region31: #{palm_forward.9} parent=0 // pred_check_branch
    %28 = sbr.rel (0) target = $region33
  $region32: #{palm_forward.9} parent=0 // pred_region
    _
  $region33: #{palm_forward.9} parent=0 // pred_fallthru
    _
  %v30 = vld [vmem:[%s0] sm:$0xff]
  %v32 = vcombine.high %v30, %v30
  %v34 = vunpack.c.l.s4 1983009808
  %v35 = vunpack.c.0.s8 %v34
  %v36 = vlaneseq
  %v37 = vshrl.u32 %v36, 7
  %v38 = vsub.s32 %v35, %v37
  %v39 = vrot.slane %v30, %v38
  %v41 = vunpack.c.l.s4 1983009808
  %v42 = vunpack.c.0.s8 %v41
  %v43 = vlaneseq
  %v44 = vshrl.u32 %v43, 7
  %v45 = vsub.s32 %v42, %v44
  %v46 = vrot.slane %v32, %v45
  %v47 = vcombine.high %v39, %v39
  %v48 = vcombine.high %v46, %v46
  %v53 = vpack.c.bf16 %v39, %v39
  %v54 = vpack.c.bf16 %v47, %v47
  %v55 = vpack.c.bf16 %v46, %v46
  %v56 = vpack.c.bf16 %v48, %v48
  %v57 = vld [vmem:[%s1] sm:$0xff]
  %v58 = vld [vmem:[%s1 + $0x8] sm:$0xff]
  %v59 = vld [vmem:[%s1 + $0x10] sm:$0xff]
  %v60 = vld [vmem:[%s1 + $0x18] sm:$0xff]
  %v61 = vld [vmem:[%s1 + $0x20] sm:$0xff]
  %v62 = vld [vmem:[%s1 + $0x28] sm:$0xff]
  %v63 = vld [vmem:[%s1 + $0x30] sm:$0xff]
  %v64 = vld [vmem:[%s1 + $0x38] sm:$0xff]
  %v65 = vld [vmem:[%s1 + $0x40] sm:$0xff]
  %v66 = vld [vmem:[%s1 + $0x48] sm:$0xff]
  %v67 = vld [vmem:[%s1 + $0x50] sm:$0xff]
  %v68 = vld [vmem:[%s1 + $0x58] sm:$0xff]
  %v69 = vld [vmem:[%s1 + $0x60] sm:$0xff]
  %v70 = vld [vmem:[%s1 + $0x68] sm:$0xff]
  %v71 = vld [vmem:[%s1 + $0x70] sm:$0xff]
  %v72 = vld [vmem:[%s1 + $0x78] sm:$0xff]
  %v73 = vld [vmem:[%s1 + $0x80] sm:$0xff]
  %v74 = vld [vmem:[%s1 + $0x88] sm:$0xff]
  %v75 = vld [vmem:[%s1 + $0x90] sm:$0xff]
  %v76 = vld [vmem:[%s1 + $0x98] sm:$0xff]
  %v77 = vld [vmem:[%s1 + $0xa0] sm:$0xff]
  %v78 = vld [vmem:[%s1 + $0xa8] sm:$0xff]
  %v79 = vld [vmem:[%s1 + $0xb0] sm:$0xff]
  %v80 = vld [vmem:[%s1 + $0xb8] sm:$0xff]
  %v81 = vld [vmem:[%s1 + $0xc0] sm:$0xff]
  %v82 = vld [vmem:[%s1 + $0xc8] sm:$0xff]
  %v83 = vld [vmem:[%s1 + $0xd0] sm:$0xff]
  %v84 = vld [vmem:[%s1 + $0xd8] sm:$0xff]
  %v85 = vld [vmem:[%s1 + $0xe0] sm:$0xff]
  %v86 = vld [vmem:[%s1 + $0xe8] sm:$0xff]
  %v87 = vld [vmem:[%s1 + $0xf0] sm:$0xff]
  %v88 = vld [vmem:[%s1 + $0xf8] sm:$0xff]
  %v89 = vld [vmem:[%s1 + $0x100] sm:$0xff]
  %v90 = vld [vmem:[%s1 + $0x108] sm:$0xff]
  %v91 = vld [vmem:[%s1 + $0x110] sm:$0xff]
  %v92 = vld [vmem:[%s1 + $0x118] sm:$0xff]
  %v93 = vld [vmem:[%s1 + $0x120] sm:$0xff]
  %v94 = vld [vmem:[%s1 + $0x128] sm:$0xff]
  %v95 = vld [vmem:[%s1 + $0x130] sm:$0xff]
  %v96 = vld [vmem:[%s1 + $0x138] sm:$0xff]
  %v97 = vld [vmem:[%s1 + $0x140] sm:$0xff]
  %v98 = vld [vmem:[%s1 + $0x148] sm:$0xff]
  %v99 = vld [vmem:[%s1 + $0x150] sm:$0xff]
  %v100 = vld [vmem:[%s1 + $0x158] sm:$0xff]
  %v101 = vld [vmem:[%s1 + $0x160] sm:$0xff]
  %v102 = vld [vmem:[%s1 + $0x168] sm:$0xff]
  %v103 = vld [vmem:[%s1 + $0x170] sm:$0xff]
  %v104 = vld [vmem:[%s1 + $0x178] sm:$0xff]
  %v105 = vld [vmem:[%s1 + $0x180] sm:$0xff]
  %v106 = vld [vmem:[%s1 + $0x188] sm:$0xff]
  %v107 = vld [vmem:[%s1 + $0x190] sm:$0xff]
  %v108 = vld [vmem:[%s1 + $0x198] sm:$0xff]
  %v109 = vld [vmem:[%s1 + $0x1a0] sm:$0xff]
  %v110 = vld [vmem:[%s1 + $0x1a8] sm:$0xff]
  %v111 = vld [vmem:[%s1 + $0x1b0] sm:$0xff]
  %v112 = vld [vmem:[%s1 + $0x1b8] sm:$0xff]
  %v113 = vld [vmem:[%s1 + $0x1c0] sm:$0xff]
  %v114 = vld [vmem:[%s1 + $0x1c8] sm:$0xff]
  %v115 = vld [vmem:[%s1 + $0x1d0] sm:$0xff]
  %v116 = vld [vmem:[%s1 + $0x1d8] sm:$0xff]
  %v117 = vld [vmem:[%s1 + $0x1e0] sm:$0xff]
  %v118 = vld [vmem:[%s1 + $0x1e8] sm:$0xff]
  %v119 = vld [vmem:[%s1 + $0x1f0] sm:$0xff]
  %v120 = vld [vmem:[%s1 + $0x1f8] sm:$0xff]
  %v121 = vld [vmem:[%s2] sm:$0x3]
  %v123 = vlaneseq
  %v124 = vshrl.u32 %v123, 7
  %v125 = vsub.s32 0, %v124
  %v126 = vrot.slane %v121, %v125
  %v127 = vlaneseq
  %v128 = vshrl.u32 %v127, 7
  %v129 = vsub.s32 1, %v128
  %v130 = vrot.slane %v121, %v129
  %v197 = vunpack.c.l.b16 %v57
  %v198 = vunpack.c.h.b16 %v57
  %v199 = vunpack.c.l.b16 %v58
  %v200 = vunpack.c.h.b16 %v58
  %v201 = vunpack.c.l.b16 %v59
  %v202 = vunpack.c.h.b16 %v59
  %v203 = vunpack.c.l.b16 %v60
  %v204 = vunpack.c.h.b16 %v60
  %v205 = vunpack.c.l.b16 %v61
  %v206 = vunpack.c.h.b16 %v61
  %v207 = vunpack.c.l.b16 %v62
  %v208 = vunpack.c.h.b16 %v62
  %v209 = vunpack.c.l.b16 %v63
  %v210 = vunpack.c.h.b16 %v63
  %v211 = vunpack.c.l.b16 %v64
  %v212 = vunpack.c.h.b16 %v64
  %v213 = vunpack.c.l.b16 %v65
  %v214 = vunpack.c.h.b16 %v65
  %v215 = vunpack.c.l.b16 %v66
  %v216 = vunpack.c.h.b16 %v66
  %v217 = vunpack.c.l.b16 %v67
  %v218 = vunpack.c.h.b16 %v67
  %v219 = vunpack.c.l.b16 %v68
  %v220 = vunpack.c.h.b16 %v68
  %v221 = vunpack.c.l.b16 %v69
  %v222 = vunpack.c.h.b16 %v69
  %v223 = vunpack.c.l.b16 %v70
  %v224 = vunpack.c.h.b16 %v70
  %v225 = vunpack.c.l.b16 %v71
  %v226 = vunpack.c.h.b16 %v71
  %v227 = vunpack.c.l.b16 %v72
  %v228 = vunpack.c.h.b16 %v72
  %v229 = vunpack.c.l.b16 %v73
  %v230 = vunpack.c.h.b16 %v73
  %v231 = vunpack.c.l.b16 %v74
  %v232 = vunpack.c.h.b16 %v74
  %v233 = vunpack.c.l.b16 %v75
  %v234 = vunpack.c.h.b16 %v75
  %v235 = vunpack.c.l.b16 %v76
  %v236 = vunpack.c.h.b16 %v76
  %v237 = vunpack.c.l.b16 %v77
  %v238 = vunpack.c.h.b16 %v77
  %v239 = vunpack.c.l.b16 %v78
  %v240 = vunpack.c.h.b16 %v78
  %v241 = vunpack.c.l.b16 %v79
  %v242 = vunpack.c.h.b16 %v79
  %v243 = vunpack.c.l.b16 %v80
  %v244 = vunpack.c.h.b16 %v80
  %v245 = vunpack.c.l.b16 %v81
  %v246 = vunpack.c.h.b16 %v81
  %v247 = vunpack.c.l.b16 %v82
  %v248 = vunpack.c.h.b16 %v82
  %v249 = vunpack.c.l.b16 %v83
  %v250 = vunpack.c.h.b16 %v83
  %v251 = vunpack.c.l.b16 %v84
  %v252 = vunpack.c.h.b16 %v84
  %v253 = vunpack.c.l.b16 %v85
  %v254 = vunpack.c.h.b16 %v85
  %v255 = vunpack.c.l.b16 %v86
  %v256 = vunpack.c.h.b16 %v86
  %v257 = vunpack.c.l.b16 %v87
  %v258 = vunpack.c.h.b16 %v87
  %v259 = vunpack.c.l.b16 %v88
  %v260 = vunpack.c.h.b16 %v88
  %v261 = vunpack.c.l.b16 %v89
  %v262 = vunpack.c.h.b16 %v89
  %v263 = vunpack.c.l.b16 %v90
  %v264 = vunpack.c.h.b16 %v90
  %v265 = vunpack.c.l.b16 %v91
  %v266 = vunpack.c.h.b16 %v91
  %v267 = vunpack.c.l.b16 %v92
  %v268 = vunpack.c.h.b16 %v92
  %v269 = vunpack.c.l.b16 %v93
  %v270 = vunpack.c.h.b16 %v93
  %v271 = vunpack.c.l.b16 %v94
  %v272 = vunpack.c.h.b16 %v94
  %v273 = vunpack.c.l.b16 %v95
  %v274 = vunpack.c.h.b16 %v95
  %v275 = vunpack.c.l.b16 %v96
  %v276 = vunpack.c.h.b16 %v96
  %v277 = vunpack.c.l.b16 %v97
  %v278 = vunpack.c.h.b16 %v97
  %v279 = vunpack.c.l.b16 %v98
  %v280 = vunpack.c.h.b16 %v98
  %v281 = vunpack.c.l.b16 %v99
  %v282 = vunpack.c.h.b16 %v99
  %v283 = vunpack.c.l.b16 %v100
  %v284 = vunpack.c.h.b16 %v100
  %v285 = vunpack.c.l.b16 %v101
  %v286 = vunpack.c.h.b16 %v101
  %v287 = vunpack.c.l.b16 %v102
  %v288 = vunpack.c.h.b16 %v102
  %v289 = vunpack.c.l.b16 %v103
  %v290 = vunpack.c.h.b16 %v103
  %v291 = vunpack.c.l.b16 %v104
  %v292 = vunpack.c.h.b16 %v104
  %v293 = vunpack.c.l.b16 %v105
  %v294 = vunpack.c.h.b16 %v105
  %v295 = vunpack.c.l.b16 %v106
  %v296 = vunpack.c.h.b16 %v106
  %v297 = vunpack.c.l.b16 %v107
  %v298 = vunpack.c.h.b16 %v107
  %v299 = vunpack.c.l.b16 %v108
  %v300 = vunpack.c.h.b16 %v108
  %v301 = vunpack.c.l.b16 %v109
  %v302 = vunpack.c.h.b16 %v109
  %v303 = vunpack.c.l.b16 %v110
  %v304 = vunpack.c.h.b16 %v110
  %v305 = vunpack.c.l.b16 %v111
  %v306 = vunpack.c.h.b16 %v111
  %v307 = vunpack.c.l.b16 %v112
  %v308 = vunpack.c.h.b16 %v112
  %v309 = vunpack.c.l.b16 %v113
  %v310 = vunpack.c.h.b16 %v113
  %v311 = vunpack.c.l.b16 %v114
  %v312 = vunpack.c.h.b16 %v114
  %v313 = vunpack.c.l.b16 %v115
  %v314 = vunpack.c.h.b16 %v115
  %v315 = vunpack.c.l.b16 %v116
  %v316 = vunpack.c.h.b16 %v116
  %v317 = vunpack.c.l.b16 %v117
  %v318 = vunpack.c.h.b16 %v117
  %v319 = vunpack.c.l.b16 %v118
  %v320 = vunpack.c.h.b16 %v118
  %v321 = vunpack.c.l.b16 %v119
  %v322 = vunpack.c.h.b16 %v119
  %v323 = vunpack.c.l.b16 %v120
  %v324 = vunpack.c.h.b16 %v120
  %v325 = vpack.c.b16 %v199, %v197
  %v326 = vpack.c.b16 %v200, %v198
  %v327 = vpack.c.b16 %v203, %v201
  %v328 = vpack.c.b16 %v204, %v202
  %v329 = vpack.c.b16 %v207, %v205
  %v330 = vpack.c.b16 %v208, %v206
  %v331 = vpack.c.b16 %v211, %v209
  %v332 = vpack.c.b16 %v212, %v210
  %v333 = vpack.c.b16 %v215, %v213
  %v334 = vpack.c.b16 %v216, %v214
  %v335 = vpack.c.b16 %v219, %v217
  %v336 = vpack.c.b16 %v220, %v218
  %v337 = vpack.c.b16 %v223, %v221
  %v338 = vpack.c.b16 %v224, %v222
  %v339 = vpack.c.b16 %v227, %v225
  %v340 = vpack.c.b16 %v228, %v226
  %v341 = vpack.c.b16 %v231, %v229
  %v342 = vpack.c.b16 %v232, %v230
  %v343 = vpack.c.b16 %v235, %v233
  %v344 = vpack.c.b16 %v236, %v234
  %v345 = vpack.c.b16 %v239, %v237
  %v346 = vpack.c.b16 %v240, %v238
  %v347 = vpack.c.b16 %v243, %v241
  %v348 = vpack.c.b16 %v244, %v242
  %v349 = vpack.c.b16 %v247, %v245
  %v350 = vpack.c.b16 %v248, %v246
  %v351 = vpack.c.b16 %v251, %v249
  %v352 = vpack.c.b16 %v252, %v250
  %v353 = vpack.c.b16 %v255, %v253
  %v354 = vpack.c.b16 %v256, %v254
  %v355 = vpack.c.b16 %v259, %v257
  %v356 = vpack.c.b16 %v260, %v258
  %v357 = vpack.c.b16 %v263, %v261
  %v358 = vpack.c.b16 %v264, %v262
  %v359 = vpack.c.b16 %v267, %v265
  %v360 = vpack.c.b16 %v268, %v266
  %v361 = vpack.c.b16 %v271, %v269
  %v362 = vpack.c.b16 %v272, %v270
  %v363 = vpack.c.b16 %v275, %v273
  %v364 = vpack.c.b16 %v276, %v274
  %v365 = vpack.c.b16 %v279, %v277
  %v366 = vpack.c.b16 %v280, %v278
  %v367 = vpack.c.b16 %v283, %v281
  %v368 = vpack.c.b16 %v284, %v282
  %v369 = vpack.c.b16 %v287, %v285
  %v370 = vpack.c.b16 %v288, %v286
  %v371 = vpack.c.b16 %v291, %v289
  %v372 = vpack.c.b16 %v292, %v290
  %v373 = vpack.c.b16 %v295, %v293
  %v374 = vpack.c.b16 %v296, %v294
  %v375 = vpack.c.b16 %v299, %v297
  %v376 = vpack.c.b16 %v300, %v298
  %v377 = vpack.c.b16 %v303, %v301
  %v378 = vpack.c.b16 %v304, %v302
  %v379 = vpack.c.b16 %v307, %v305
  %v380 = vpack.c.b16 %v308, %v306
  %v381 = vpack.c.b16 %v311, %v309
  %v382 = vpack.c.b16 %v312, %v310
  %v383 = vpack.c.b16 %v315, %v313
  %v384 = vpack.c.b16 %v316, %v314
  %v385 = vpack.c.b16 %v319, %v317
  %v386 = vpack.c.b16 %v320, %v318
  %v387 = vpack.c.b16 %v323, %v321
  %v388 = vpack.c.b16 %v324, %v322
  %453 = vmatprep.subr.bf16.mxu0 %v326
  %454 = vmatpush1.bf16.msra.mxu0 %v325
  %455 = vmatprep.subr.bf16.mxu0 %v328
  %456 = vmatpush1.bf16.msra.mxu0 %v327
  %457 = vmatprep.subr.bf16.mxu0 %v330
  %458 = vmatpush1.bf16.msra.mxu0 %v329
  %459 = vmatprep.subr.bf16.mxu0 %v332
  %460 = vmatpush1.bf16.msra.mxu0 %v331
  %461 = vmatprep.subr.bf16.mxu0 %v334
  %462 = vmatpush1.bf16.msra.mxu0 %v333
  %463 = vmatprep.subr.bf16.mxu0 %v336
  %464 = vmatpush1.bf16.msra.mxu0 %v335
  %465 = vmatprep.subr.bf16.mxu0 %v338
  %466 = vmatpush1.bf16.msra.mxu0 %v337
  %467 = vmatprep.subr.bf16.mxu0 %v340
  %468 = vmatpush1.bf16.msra.mxu0 %v339
  %469 = vmatprep.subr.bf16.mxu0 %v342
  %470 = vmatpush1.bf16.msra.mxu0 %v341
  %471 = vmatprep.subr.bf16.mxu0 %v344
  %472 = vmatpush1.bf16.msra.mxu0 %v343
  %473 = vmatprep.subr.bf16.mxu0 %v346
  %474 = vmatpush1.bf16.msra.mxu0 %v345
  %475 = vmatprep.subr.bf16.mxu0 %v348
  %476 = vmatpush1.bf16.msra.mxu0 %v347
  %477 = vmatprep.subr.bf16.mxu0 %v350
  %478 = vmatpush1.bf16.msra.mxu0 %v349
  %479 = vmatprep.subr.bf16.mxu0 %v352
  %480 = vmatpush1.bf16.msra.mxu0 %v351
  %481 = vmatprep.subr.bf16.mxu0 %v354
  %482 = vmatpush1.bf16.msra.mxu0 %v353
  %483 = vmatprep.subr.bf16.mxu0 %v356
  %484 = vmatpush1.bf16.msra.mxu0 %v355
  %485 = vmatprep.mubr.bf16.mxu0 %v54
  %486 = vmatmul.mubr.bf16.gmra.mrb[0].mxu0 %v53
  %v487 = vpop.f32.mrb[0].mxu0
  %v488 = vadd.f32 %v126, %v487
  %v489 = vpop.f32.mrb[0].mxu0
  %v490 = vadd.f32 %v130, %v489
  %v491 = vpop.f32.mrb[0].mxu0
  %v492 = vpop.f32.mrb[0].mxu0
  %493 = vdwg.mxu0
  %494 = vmatprep.subr.bf16.mxu0 %v358
  %495 = vmatpush1.bf16.msra.mxu0 %v357
  %496 = vmatprep.subr.bf16.mxu0 %v360
  %497 = vmatpush1.bf16.msra.mxu0 %v359
  %498 = vmatprep.subr.bf16.mxu0 %v362
  %499 = vmatpush1.bf16.msra.mxu0 %v361
  %500 = vmatprep.subr.bf16.mxu0 %v364
  %501 = vmatpush1.bf16.msra.mxu0 %v363
  %502 = vmatprep.subr.bf16.mxu0 %v366
  %503 = vmatpush1.bf16.msra.mxu0 %v365
  %504 = vmatprep.subr.bf16.mxu0 %v368
  %505 = vmatpush1.bf16.msra.mxu0 %v367
  %506 = vmatprep.subr.bf16.mxu0 %v370
  %507 = vmatpush1.bf16.msra.mxu0 %v369
  %508 = vmatprep.subr.bf16.mxu0 %v372
  %509 = vmatpush1.bf16.msra.mxu0 %v371
  %510 = vmatprep.subr.bf16.mxu0 %v374
  %511 = vmatpush1.bf16.msra.mxu0 %v373
  %512 = vmatprep.subr.bf16.mxu0 %v376
  %513 = vmatpush1.bf16.msra.mxu0 %v375
  %514 = vmatprep.subr.bf16.mxu0 %v378
  %515 = vmatpush1.bf16.msra.mxu0 %v377
  %516 = vmatprep.subr.bf16.mxu0 %v380
  %517 = vmatpush1.bf16.msra.mxu0 %v379
  %518 = vmatprep.subr.bf16.mxu0 %v382
  %519 = vmatpush1.bf16.msra.mxu0 %v381
  %520 = vmatprep.subr.bf16.mxu0 %v384
  %521 = vmatpush1.bf16.msra.mxu0 %v383
  %522 = vmatprep.subr.bf16.mxu0 %v386
  %523 = vmatpush1.bf16.msra.mxu0 %v385
  %524 = vmatprep.subr.bf16.mxu0 %v388
  %525 = vmatpush1.bf16.msra.mxu0 %v387
  %526 = vmatprep.mubr.bf16.mxu0 %v56
  %527 = vmatmul.mubr.bf16.gmra.mrb[0].mxu0 %v55
  %v528 = vpop.f32.mrb[0].mxu0
  %v529 = vadd.f32 %v488, %v528
  %v530 = vpop.f32.mrb[0].mxu0
  %v531 = vadd.f32 %v490, %v530
  %v532 = vpop.f32.mrb[0].mxu0
  %v533 = vpop.f32.mrb[0].mxu0
  %534 = vdwg.mxu0
  %v535 = vmax.f32 %v529, 0.0
  %v536 = vmax.f32 %v531, 0.0
  %v537 = vpack.c.bf16 %v535, %v535
  %v538 = vpack.c.bf16 %v536, %v536
  %v539 = vld [vmem:[%s3] sm:$0xf]
  %v540 = vld [vmem:[%s3 + $0x4] sm:$0xf]
  %v541 = vld [vmem:[%s3 + $0x8] sm:$0xf]
  %v542 = vld [vmem:[%s3 + $0xc] sm:$0xf]
  %v543 = vld [vmem:[%s3 + $0x10] sm:$0xf]
  %v544 = vld [vmem:[%s3 + $0x14] sm:$0xf]
  %v545 = vld [vmem:[%s3 + $0x18] sm:$0xf]
  %v546 = vld [vmem:[%s3 + $0x1c] sm:$0xf]
  %v547 = vld [vmem:[%s3 + $0x20] sm:$0xf]
  %v548 = vld [vmem:[%s3 + $0x24] sm:$0xf]
  %v549 = vld [vmem:[%s3 + $0x28] sm:$0xf]
  %v550 = vld [vmem:[%s3 + $0x2c] sm:$0xf]
  %v551 = vld [vmem:[%s3 + $0x30] sm:$0xf]
  %v552 = vld [vmem:[%s3 + $0x34] sm:$0xf]
  %v553 = vld [vmem:[%s3 + $0x38] sm:$0xf]
  %v554 = vld [vmem:[%s3 + $0x3c] sm:$0xf]
  %v555 = vld [vmem:[%s3 + $0x40] sm:$0xf]
  %v556 = vld [vmem:[%s3 + $0x44] sm:$0xf]
  %v557 = vld [vmem:[%s3 + $0x48] sm:$0xf]
  %v558 = vld [vmem:[%s3 + $0x4c] sm:$0xf]
  %v559 = vld [vmem:[%s3 + $0x50] sm:$0xf]
  %v560 = vld [vmem:[%s3 + $0x54] sm:$0xf]
  %v561 = vld [vmem:[%s3 + $0x58] sm:$0xf]
  %v562 = vld [vmem:[%s3 + $0x5c] sm:$0xf]
  %v563 = vld [vmem:[%s3 + $0x60] sm:$0xf]
  %v564 = vld [vmem:[%s3 + $0x64] sm:$0xf]
  %v565 = vld [vmem:[%s3 + $0x68] sm:$0xf]
  %v566 = vld [vmem:[%s3 + $0x6c] sm:$0xf]
  %v567 = vld [vmem:[%s3 + $0x70] sm:$0xf]
  %v568 = vld [vmem:[%s3 + $0x74] sm:$0xf]
  %v569 = vld [vmem:[%s3 + $0x78] sm:$0xf]
  %v570 = vld [vmem:[%s3 + $0x7c] sm:$0xf]
  %v571 = vld [vmem:[%s4] sm:$0x1]
  %v573 = vlaneseq
  %v574 = vshrl.u32 %v573, 7
  %v575 = vsub.s32 0, %v574
  %v576 = vrot.slane %v571, %v575
  %v610 = vunpack.c.l.b16 %v539
  %v611 = vunpack.c.l.b16 %v540
  %v612 = vunpack.c.l.b16 %v541
  %v613 = vunpack.c.l.b16 %v542
  %v614 = vunpack.c.l.b16 %v543
  %v615 = vunpack.c.l.b16 %v544
  %v616 = vunpack.c.l.b16 %v545
  %v617 = vunpack.c.l.b16 %v546
  %v618 = vunpack.c.l.b16 %v547
  %v619 = vunpack.c.l.b16 %v548
  %v620 = vunpack.c.l.b16 %v549
  %v621 = vunpack.c.l.b16 %v550
  %v622 = vunpack.c.l.b16 %v551
  %v623 = vunpack.c.l.b16 %v552
  %v624 = vunpack.c.l.b16 %v553
  %v625 = vunpack.c.l.b16 %v554
  %v626 = vunpack.c.l.b16 %v555
  %v627 = vunpack.c.l.b16 %v556
  %v628 = vunpack.c.l.b16 %v557
  %v629 = vunpack.c.l.b16 %v558
  %v630 = vunpack.c.l.b16 %v559
  %v631 = vunpack.c.l.b16 %v560
  %v632 = vunpack.c.l.b16 %v561
  %v633 = vunpack.c.l.b16 %v562
  %v634 = vunpack.c.l.b16 %v563
  %v635 = vunpack.c.l.b16 %v564
  %v636 = vunpack.c.l.b16 %v565
  %v637 = vunpack.c.l.b16 %v566
  %v638 = vunpack.c.l.b16 %v567
  %v639 = vunpack.c.l.b16 %v568
  %v640 = vunpack.c.l.b16 %v569
  %v641 = vunpack.c.l.b16 %v570
  %v642 = vpack.c.b16 %v611, %v610
  %v643 = vpack.c.b16 %v613, %v612
  %v644 = vpack.c.b16 %v615, %v614
  %v645 = vpack.c.b16 %v617, %v616
  %v646 = vpack.c.b16 %v619, %v618
  %v647 = vpack.c.b16 %v621, %v620
  %v648 = vpack.c.b16 %v623, %v622
  %v649 = vpack.c.b16 %v625, %v624
  %v650 = vpack.c.b16 %v627, %v626
  %v651 = vpack.c.b16 %v629, %v628
  %v652 = vpack.c.b16 %v631, %v630
  %v653 = vpack.c.b16 %v633, %v632
  %v654 = vpack.c.b16 %v635, %v634
  %v655 = vpack.c.b16 %v637, %v636
  %v656 = vpack.c.b16 %v639, %v638
  %v657 = vpack.c.b16 %v641, %v640
  %674 = vmatprep.subr.bf16.mxu0 0
  %675 = vmatpush1.bf16.msra.mxu0 %v642
  %676 = vmatprep.subr.bf16.mxu0 0
  %677 = vmatpush1.bf16.msra.mxu0 %v643
  %678 = vmatprep.subr.bf16.mxu0 0
  %679 = vmatpush1.bf16.msra.mxu0 %v644
  %680 = vmatprep.subr.bf16.mxu0 0
  %681 = vmatpush1.bf16.msra.mxu0 %v645
  %682 = vmatprep.subr.bf16.mxu0 0
  %683 = vmatpush1.bf16.msra.mxu0 %v646
  %684 = vmatprep.subr.bf16.mxu0 0
  %685 = vmatpush1.bf16.msra.mxu0 %v647
  %686 = vmatprep.subr.bf16.mxu0 0
  %687 = vmatpush1.bf16.msra.mxu0 %v648
  %688 = vmatprep.subr.bf16.mxu0 0
  %689 = vmatpush1.bf16.msra.mxu0 %v649
  %690 = vmatprep.subr.bf16.mxu0 0
  %691 = vmatpush1.bf16.msra.mxu0 %v650
  %692 = vmatprep.subr.bf16.mxu0 0
  %693 = vmatpush1.bf16.msra.mxu0 %v651
  %694 = vmatprep.subr.bf16.mxu0 0
  %695 = vmatpush1.bf16.msra.mxu0 %v652
  %696 = vmatprep.subr.bf16.mxu0 0
  %697 = vmatpush1.bf16.msra.mxu0 %v653
  %698 = vmatprep.subr.bf16.mxu0 0
  %699 = vmatpush1.bf16.msra.mxu0 %v654
  %700 = vmatprep.subr.bf16.mxu0 0
  %701 = vmatpush1.bf16.msra.mxu0 %v655
  %702 = vmatprep.subr.bf16.mxu0 0
  %703 = vmatpush1.bf16.msra.mxu0 %v656
  %704 = vmatprep.subr.bf16.mxu0 0
  %705 = vmatpush1.bf16.msra.mxu0 %v657
  %706 = vmatprep.mubr.bf16.mxu0 %v538
  %707 = vmatmul.mubr.bf16.gmra.mrb[0].mxu0 %v537
  %v708 = vpop.f32.mrb[0].mxu0
  %v709 = vadd.f32 %v576, %v708
  %v710 = vpop.f32.mrb[0].mxu0
  %v711 = vpop.f32.mrb[0].mxu0
  %v712 = vpop.f32.mrb[0].mxu0
  %713 = vdwg.mxu0
  %v714 = vmax.f32 %v709, 0.0
  %v715 = vpack.c.bf16 %v714, %v714
  %v716 = vld [vmem:[%s5] sm:$0xf]
  %v717 = vld [vmem:[%s5 + $0x4] sm:$0xf]
  %v718 = vld [vmem:[%s5 + $0x8] sm:$0xf]
  %v719 = vld [vmem:[%s5 + $0xc] sm:$0xf]
  %v720 = vld [vmem:[%s5 + $0x10] sm:$0xf]
  %v721 = vld [vmem:[%s5 + $0x14] sm:$0xf]
  %v722 = vld [vmem:[%s5 + $0x18] sm:$0xf]
  %v723 = vld [vmem:[%s5 + $0x1c] sm:$0xf]
  %v724 = vld [vmem:[%s5 + $0x20] sm:$0xf]
  %v725 = vld [vmem:[%s5 + $0x24] sm:$0xf]
  %v726 = vld [vmem:[%s5 + $0x28] sm:$0xf]
  %v727 = vld [vmem:[%s5 + $0x2c] sm:$0xf]
  %v728 = vld [vmem:[%s5 + $0x30] sm:$0xf]
  %v729 = vld [vmem:[%s5 + $0x34] sm:$0xf]
  %v730 = vld [vmem:[%s5 + $0x38] sm:$0xf]
  %v731 = vld [vmem:[%s5 + $0x3c] sm:$0xf]
  %v732 = vld [vmem:[%s6] sm:$0x1]
  %v734 = vlaneseq
  %v735 = vshrl.u32 %v734, 7
  %v736 = vsub.s32 0, %v735
  %v737 = vrot.slane %v732, %v736
  %v755 = vunpack.c.l.b16 %v716
  %v756 = vunpack.c.l.b16 %v717
  %v757 = vunpack.c.l.b16 %v718
  %v758 = vunpack.c.l.b16 %v719
  %v759 = vunpack.c.l.b16 %v720
  %v760 = vunpack.c.l.b16 %v721
  %v761 = vunpack.c.l.b16 %v722
  %v762 = vunpack.c.l.b16 %v723
  %v763 = vunpack.c.l.b16 %v724
  %v764 = vunpack.c.l.b16 %v725
  %v765 = vunpack.c.l.b16 %v726
  %v766 = vunpack.c.l.b16 %v727
  %v767 = vunpack.c.l.b16 %v728
  %v768 = vunpack.c.l.b16 %v729
  %v769 = vunpack.c.l.b16 %v730
  %v770 = vunpack.c.l.b16 %v731
  %v771 = vpack.c.b16 %v756, %v755
  %v772 = vpack.c.b16 %v758, %v757
  %v773 = vpack.c.b16 %v760, %v759
  %v774 = vpack.c.b16 %v762, %v761
  %v775 = vpack.c.b16 %v764, %v763
  %v776 = vpack.c.b16 %v766, %v765
  %v777 = vpack.c.b16 %v768, %v767
  %v778 = vpack.c.b16 %v770, %v769
  %787 = vmatprep.subr.bf16.mxu0 0
  %788 = vmatpush1.bf16.msra.mxu0 %v771
  %789 = vmatprep.subr.bf16.mxu0 0
  %790 = vmatpush1.bf16.msra.mxu0 %v772
  %791 = vmatprep.subr.bf16.mxu0 0
  %792 = vmatpush1.bf16.msra.mxu0 %v773
  %793 = vmatprep.subr.bf16.mxu0 0
  %794 = vmatpush1.bf16.msra.mxu0 %v774
  %795 = vmatprep.subr.bf16.mxu0 0
  %796 = vmatpush1.bf16.msra.mxu0 %v775
  %797 = vmatprep.subr.bf16.mxu0 0
  %798 = vmatpush1.bf16.msra.mxu0 %v776
  %799 = vmatprep.subr.bf16.mxu0 0
  %800 = vmatpush1.bf16.msra.mxu0 %v777
  %801 = vmatprep.subr.bf16.mxu0 0
  %802 = vmatpush1.bf16.msra.mxu0 %v778
  %803 = vmatprep.subr.bf16.mxu0 0
  %804 = vmatpush1.bf16.msra.mxu0 0
  %805 = vmatprep.subr.bf16.mxu0 0
  %806 = vmatpush1.bf16.msra.mxu0 0
  %807 = vmatprep.subr.bf16.mxu0 0
  %808 = vmatpush1.bf16.msra.mxu0 0
  %809 = vmatprep.subr.bf16.mxu0 0
  %810 = vmatpush1.bf16.msra.mxu0 0
  %811 = vmatprep.subr.bf16.mxu0 0
  %812 = vmatpush1.bf16.msra.mxu0 0
  %813 = vmatprep.subr.bf16.mxu0 0
  %814 = vmatpush1.bf16.msra.mxu0 0
  %815 = vmatprep.subr.bf16.mxu0 0
  %816 = vmatpush1.bf16.msra.mxu0 0
  %817 = vmatprep.subr.bf16.mxu0 0
  %818 = vmatpush1.bf16.msra.mxu0 0
  %819 = vmatprep.mubr.bf16.mxu0 0
  %820 = vmatmul.mubr.bf16.gmra.mrb[0].mxu0 %v715
  %v821 = vpop.f32.mrb[0].mxu0
  %v822 = vadd.f32 %v737, %v821
  %v823 = vpop.f32.mrb[0].mxu0
  %v824 = vpop.f32.mrb[0].mxu0
  %v825 = vpop.f32.mrb[0].mxu0
  %826 = vdwg.mxu0
  %v827 = vld [vmem:[%s7] sm:$0x1]
  %vm828 = vcmp.ne.f32.partialorder %v827, 0.0
  %v829 = vxor.u32 %v822, 2147483648
  %v830 = vmul.f32 %v829, 1.442695
  %v831 = vpow.pop %v830
  %v832 = vadd.f32 %v831, 1.0
  %v833 = vrcp.pop %v832
  %v834 = vmul.f32 1.0, %v833
  %v835 = vsel %vm828, 1, 0
  %v836 = vlaneseq
  %v837 = vshrl.u32 %v836, 7
  %v838 = vsub.s32 0, %v837
  %v839 = vrot.slane %v835, %v838
  %vm840 = vcmp.eq.s32.totalorder %v839, 1
  %v841 = vsel %vm840, %v834, %v822
  %vm842 = vcmask 156672
  %843 = vst.msk [vmem:[%s8] sm:$0x3] %vm842, %v841
  // Predicated region
  $region34: #{palm_forward.9} parent=0 // pred_check
    _
  $region35: #{palm_forward.9} parent=0 // pred_check_branch
    %845 = sbr.rel (0) target = $region37
  $region36: #{palm_forward.9} parent=0 // pred_region
    _
  $region37: #{palm_forward.9} parent=0 // pred_fallthru
    _
  // Predicated region
  $region38: #{palm_forward.9} parent=0 // pred_check
    _
  $region39: #{palm_forward.9} parent=0 // pred_check_branch
    %847 = sbr.rel (0) target = $region41
  $region40: #{palm_forward.9} parent=0 // pred_region
    _
  $region41: #{palm_forward.9} parent=0 // pred_fallthru
    _

// kernel: palm_forward.7
$region0: #{palm_forward.7}
  #allocation0 [shape = 'u32[]', space=smem, size = 0x4, offset = 0x4, fixed_abs, tag = 'smem constant byte address 0x4 - core index']
  #allocation1 [shape = 'u32[144,128]{1,0:T(1,128)}', space=vmem, size = 0x12000, scoped, tag = 'internal scratch']
  #allocation2 [shape = 'bf16[24,256]{1,0:T(8,128)(2,1)}', space=vmem, size = 0x3000, scoped, tag = 'scratch operand']
  %s0 = inlined_call_operand.vmem [shape: bf16[8,1152], index: 0, kind: input, shape index: {}]
  %s1 = inlined_call_operand.vmem [shape: bf16[1152,256], index: 1, kind: input, shape index: {}]
  %s2 = inlined_call_operand.vmem [shape: f32[1,256], index: 2, kind: input, shape index: {}]
  %s3 = inlined_call_operand.vmem [shape: bf16[9,256,256], index: 3, kind: input, shape index: {}]
  %s4 = inlined_call_operand.vmem [shape: f32[1,256], index: 4, kind: input, shape index: {}]
  %s5 = inlined_call_operand.vmem [shape: bf16[9,8,1], index: 5, kind: input, shape index: {}]
  %s6 = inlined_call_operand.vmem [shape: f32[8,256], index: 6, kind: output, shape index: {}]
  %s7 = sld [smem:[#allocation0]]
  $region34: #{palm_forward.7} parent=0
    _
  %s9 = ssub.s32 1, %s7
  %s10 = scalar_select 0, %s9, %s7
  // Predicated region
  $region2: #{palm_forward.7} parent=0 // pred_check
    _
  $region3: #{palm_forward.7} parent=0 // pred_check_branch
    %12 = sbr.rel (0) target = $region5
  $region4: #{palm_forward.7} parent=0 // pred_region
    _
  $region5: #{palm_forward.7} parent=0 // pred_fallthru
    _
  // Predicated region
  $region6: #{palm_forward.7} parent=0 // pred_check
    _
  $region7: #{palm_forward.7} parent=0 // pred_check_branch
    %14 = sbr.rel (0) target = $region9
  $region8: #{palm_forward.7} parent=0 // pred_region
    _
  $region9: #{palm_forward.7} parent=0 // pred_fallthru
    _
  // Predicated region
  $region10: #{palm_forward.7} parent=0 // pred_check
    _
  $region11: #{palm_forward.7} parent=0 // pred_check_branch
    %16 = sbr.rel (0) target = $region13
  $region12: #{palm_forward.7} parent=0 // pred_region
    _
  $region13: #{palm_forward.7} parent=0 // pred_fallthru
    _
  // Predicated region
  $region14: #{palm_forward.7} parent=0 // pred_check
    _
  $region15: #{palm_forward.7} parent=0 // pred_check_branch
    %18 = sbr.rel (0) target = $region17
  $region16: #{palm_forward.7} parent=0 // pred_region
    _
  $region17: #{palm_forward.7} parent=0 // pred_fallthru
    _
  // Predicated region
  $region18: #{palm_forward.7} parent=0 // pred_check
    _
  $region19: #{palm_forward.7} parent=0 // pred_check_branch
    %20 = sbr.rel (0) target = $region21
  $region20: #{palm_forward.7} parent=0 // pred_region
    _
  $region21: #{palm_forward.7} parent=0 // pred_fallthru
    _
  // Predicated region
  $region22: #{palm_forward.7} parent=0 // pred_check
    _
  $region23: #{palm_forward.7} parent=0 // pred_check_branch
    %22 = sbr.rel (0) target = $region25
  $region24: #{palm_forward.7} parent=0 // pred_region
    _
  $region25: #{palm_forward.7} parent=0 // pred_fallthru
    _
  %v24 = vld [vmem:[%s0] sm:$0xff]
  %v25 = vld [vmem:[%s0 + $0x8] sm:$0xff]
  %v26 = vld [vmem:[%s0 + $0x10] sm:$0xff]
  %v27 = vld [vmem:[%s0 + $0x18] sm:$0xff]
  %v28 = vld [vmem:[%s0 + $0x20] sm:$0xf]
  %v29 = vld [vmem:[%s1] sm:$0xff]
  %v30 = vld [vmem:[%s1 + $0x8] sm:$0xff]
  %v31 = vld [vmem:[%s1 + $0x10] sm:$0xff]
  %v32 = vld [vmem:[%s1 + $0x18] sm:$0xff]
  %v33 = vld [vmem:[%s1 + $0x20] sm:$0xff]
  %v34 = vld [vmem:[%s1 + $0x28] sm:$0xff]
  %v35 = vld [vmem:[%s1 + $0x30] sm:$0xff]
  %v36 = vld [vmem:[%s1 + $0x38] sm:$0xff]
  %v37 = vld [vmem:[%s1 + $0x40] sm:$0xff]
  %v38 = vld [vmem:[%s1 + $0x48] sm:$0xff]
  %v39 = vld [vmem:[%s1 + $0x50] sm:$0xff]
  %v40 = vld [vmem:[%s1 + $0x58] sm:$0xff]
  %v41 = vld [vmem:[%s1 + $0x60] sm:$0xff]
  %v42 = vld [vmem:[%s1 + $0x68] sm:$0xff]
  %v43 = vld [vmem:[%s1 + $0x70] sm:$0xff]
  %v44 = vld [vmem:[%s1 + $0x78] sm:$0xff]
  %v45 = vld [vmem:[%s1 + $0x80] sm:$0xff]
  %v46 = vld [vmem:[%s1 + $0x88] sm:$0xff]
  %v47 = vld [vmem:[%s1 + $0x90] sm:$0xff]
  %v48 = vld [vmem:[%s1 + $0x98] sm:$0xff]
  %v49 = vld [vmem:[%s1 + $0xa0] sm:$0xff]
  %v50 = vld [vmem:[%s1 + $0xa8] sm:$0xff]
  %v51 = vld [vmem:[%s1 + $0xb0] sm:$0xff]
  %v52 = vld [vmem:[%s1 + $0xb8] sm:$0xff]
  %v53 = vld [vmem:[%s1 + $0xc0] sm:$0xff]
  %v54 = vld [vmem:[%s1 + $0xc8] sm:$0xff]
  %v55 = vld [vmem:[%s1 + $0xd0] sm:$0xff]
  %v56 = vld [vmem:[%s1 + $0xd8] sm:$0xff]
  %v57 = vld [vmem:[%s1 + $0xe0] sm:$0xff]
  %v58 = vld [vmem:[%s1 + $0xe8] sm:$0xff]
  %v59 = vld [vmem:[%s1 + $0xf0] sm:$0xff]
  %v60 = vld [vmem:[%s1 + $0xf8] sm:$0xff]
  %v61 = vld [vmem:[%s1 + $0x100] sm:$0xff]
  %v62 = vld [vmem:[%s1 + $0x108] sm:$0xff]
  %v63 = vld [vmem:[%s1 + $0x110] sm:$0xff]
  %v64 = vld [vmem:[%s1 + $0x118] sm:$0xff]
  %v65 = vld [vmem:[%s1 + $0x120] sm:$0xff]
  %v66 = vld [vmem:[%s1 + $0x128] sm:$0xff]
  %v67 = vld [vmem:[%s1 + $0x130] sm:$0xff]
  %v68 = vld [vmem:[%s1 + $0x138] sm:$0xff]
  %v69 = vld [vmem:[%s1 + $0x140] sm:$0xff]
  %v70 = vld [vmem:[%s1 + $0x148] sm:$0xff]
  %v71 = vld [vmem:[%s1 + $0x150] sm:$0xff]
  %v72 = vld [vmem:[%s1 + $0x158] sm:$0xff]
  %v73 = vld [vmem:[%s1 + $0x160] sm:$0xff]
  %v74 = vld [vmem:[%s1 + $0x168] sm:$0xff]
  %v75 = vld [vmem:[%s1 + $0x170] sm:$0xff]
  %v76 = vld [vmem:[%s1 + $0x178] sm:$0xff]
  %v77 = vld [vmem:[%s1 + $0x180] sm:$0xff]
  %v78 = vld [vmem:[%s1 + $0x188] sm:$0xff]
  %v79 = vld [vmem:[%s1 + $0x190] sm:$0xff]
  %v80 = vld [vmem:[%s1 + $0x198] sm:$0xff]
  %v81 = vld [vmem:[%s1 + $0x1a0] sm:$0xff]
  %v82 = vld [vmem:[%s1 + $0x1a8] sm:$0xff]
  %v83 = vld [vmem:[%s1 + $0x1b0] sm:$0xff]
  %v84 = vld [vmem:[%s1 + $0x1b8] sm:$0xff]
  %v85 = vld [vmem:[%s1 + $0x1c0] sm:$0xff]
  %v86 = vld [vmem:[%s1 + $0x1c8] sm:$0xff]
  %v87 = vld [vmem:[%s1 + $0x1d0] sm:$0xff]
  %v88 = vld [vmem:[%s1 + $0x1d8] sm:$0xff]
  %v89 = vld [vmem:[%s1 + $0x1e0] sm:$0xff]
  %v90 = vld [vmem:[%s1 + $0x1e8] sm:$0xff]
  %v91 = vld [vmem:[%s1 + $0x1f0] sm:$0xff]
  %v92 = vld [vmem:[%s1 + $0x1f8] sm:$0xff]
  %v93 = vld [vmem:[%s1 + $0x200] sm:$0xff]
  %v94 = vld [vmem:[%s1 + $0x208] sm:$0xff]
  %v95 = vld [vmem:[%s1 + $0x210] sm:$0xff]
  %v96 = vld [vmem:[%s1 + $0x218] sm:$0xff]
  %v97 = vld [vmem:[%s1 + $0x220] sm:$0xff]
  %v98 = vld [vmem:[%s1 + $0x228] sm:$0xff]
  %v99 = vld [vmem:[%s1 + $0x230] sm:$0xff]
  %v100 = vld [vmem:[%s1 + $0x238] sm:$0xff]
  %v101 = vld [vmem:[%s1 + $0x240] sm:$0xff]
  %v102 = vld [vmem:[%s1 + $0x248] sm:$0xff]
  %v103 = vld [vmem:[%s1 + $0x250] sm:$0xff]
  %v104 = vld [vmem:[%s1 + $0x258] sm:$0xff]
  %v105 = vld [vmem:[%s1 + $0x260] sm:$0xff]
  %v106 = vld [vmem:[%s1 + $0x268] sm:$0xff]
  %v107 = vld [vmem:[%s1 + $0x270] sm:$0xff]
  %v108 = vld [vmem:[%s1 + $0x278] sm:$0xff]
  %v109 = vld [vmem:[%s1 + $0x280] sm:$0xff]
  %v110 = vld [vmem:[%s1 + $0x288] sm:$0xff]
  %v111 = vld [vmem:[%s1 + $0x290] sm:$0xff]
  %v112 = vld [vmem:[%s1 + $0x298] sm:$0xff]
  %v113 = vld [vmem:[%s1 + $0x2a0] sm:$0xff]
  %v114 = vld [vmem:[%s1 + $0x2a8] sm:$0xff]
  %v115 = vld [vmem:[%s1 + $0x2b0] sm:$0xff]
  %v116 = vld [vmem:[%s1 + $0x2b8] sm:$0xff]
  %v117 = vld [vmem:[%s1 + $0x2c0] sm:$0xff]
  %v118 = vld [vmem:[%s1 + $0x2c8] sm:$0xff]
  %v119 = vld [vmem:[%s1 + $0x2d0] sm:$0xff]
  %v120 = vld [vmem:[%s1 + $0x2d8] sm:$0xff]
  %v121 = vld [vmem:[%s1 + $0x2e0] sm:$0xff]
  %v122 = vld [vmem:[%s1 + $0x2e8] sm:$0xff]
  %v123 = vld [vmem:[%s1 + $0x2f0] sm:$0xff]
  %v124 = vld [vmem:[%s1 + $0x2f8] sm:$0xff]
  %v125 = vld [vmem:[%s1 + $0x300] sm:$0xff]
  %v126 = vld [vmem:[%s1 + $0x308] sm:$0xff]
  %v127 = vld [vmem:[%s1 + $0x310] sm:$0xff]
  %v128 = vld [vmem:[%s1 + $0x318] sm:$0xff]
  %v129 = vld [vmem:[%s1 + $0x320] sm:$0xff]
  %v130 = vld [vmem:[%s1 + $0x328] sm:$0xff]
  %v131 = vld [vmem:[%s1 + $0x330] sm:$0xff]
  %v132 = vld [vmem:[%s1 + $0x338] sm:$0xff]
  %v133 = vld [vmem:[%s1 + $0x340] sm:$0xff]
  %v134 = vld [vmem:[%s1 + $0x348] sm:$0xff]
  %v135 = vld [vmem:[%s1 + $0x350] sm:$0xff]
  %v136 = vld [vmem:[%s1 + $0x358] sm:$0xff]
  %v137 = vld [vmem:[%s1 + $0x360] sm:$0xff]
  %v138 = vld [vmem:[%s1 + $0x368] sm:$0xff]
  %v139 = vld [vmem:[%s1 + $0x370] sm:$0xff]
  %v140 = vld [vmem:[%s1 + $0x378] sm:$0xff]
  %v141 = vld [vmem:[%s1 + $0x380] sm:$0xff]
  %v142 = vld [vmem:[%s1 + $0x388] sm:$0xff]
  %v143 = vld [vmem:[%s1 + $0x390] sm:$0xff]
  %v144 = vld [vmem:[%s1 + $0x398] sm:$0xff]
  %v145 = vld [vmem:[%s1 + $0x3a0] sm:$0xff]
  %v146 = vld [vmem:[%s1 + $0x3a8] sm:$0xff]
  %v147 = vld [vmem:[%s1 + $0x3b0] sm:$0xff]
  %v148 = vld [vmem:[%s1 + $0x3b8] sm:$0xff]
  %v149 = vld [vmem:[%s1 + $0x3c0] sm:$0xff]
  %v150 = vld [vmem:[%s1 + $0x3c8] sm:$0xff]
  %v151 = vld [vmem:[%s1 + $0x3d0] sm:$0xff]
  %v152 = vld [vmem:[%s1 + $0x3d8] sm:$0xff]
  %v153 = vld [vmem:[%s1 + $0x3e0] sm:$0xff]
  %v154 = vld [vmem:[%s1 + $0x3e8] sm:$0xff]
  %v155 = vld [vmem:[%s1 + $0x3f0] sm:$0xff]
  %v156 = vld [vmem:[%s1 + $0x3f8] sm:$0xff]
  %v157 = vld [vmem:[%s1 + $0x400] sm:$0xff]
  %v158 = vld [vmem:[%s1 + $0x408] sm:$0xff]
  %v159 = vld [vmem:[%s1 + $0x410] sm:$0xff]
  %v160 = vld [vmem:[%s1 + $0x418] sm:$0xff]
  %v161 = vld [vmem:[%s1 + $0x420] sm:$0xff]
  %v162 = vld [vmem:[%s1 + $0x428] sm:$0xff]
  %v163 = vld [vmem:[%s1 + $0x430] sm:$0xff]
  %v164 = vld [vmem:[%s1 + $0x438] sm:$0xff]
  %v165 = vld [vmem:[%s1 + $0x440] sm:$0xff]
  %v166 = vld [vmem:[%s1 + $0x448] sm:$0xff]
  %v167 = vld [vmem:[%s1 + $0x450] sm:$0xff]
  %v168 = vld [vmem:[%s1 + $0x458] sm:$0xff]
  %v169 = vld [vmem:[%s1 + $0x460] sm:$0xff]
  %v170 = vld [vmem:[%s1 + $0x468] sm:$0xff]
  %v171 = vld [vmem:[%s1 + $0x470] sm:$0xff]
  %v172 = vld [vmem:[%s1 + $0x478] sm:$0xff]
  %v173 = vld [vmem:[%s2] sm:$0x3]
  %v175 = vlaneseq
  %v176 = vshrl.u32 %v175, 7
  %v177 = vsub.s32 0, %v176
  %v178 = vrot.slane %v173, %v177
  %v179 = vlaneseq
  %v180 = vshrl.u32 %v179, 7
  %v181 = vsub.s32 1, %v180
  %v182 = vrot.slane %v173, %v181
  %v190 = vunpack.c.l.b16 %v24
  %v191 = vunpack.c.h.b16 %v24
  %v192 = vunpack.c.l.b16 %v25
  %v193 = vunpack.c.h.b16 %v25
  %v194 = vunpack.c.l.b16 %v26
  %v195 = vunpack.c.h.b16 %v26
  %v196 = vunpack.c.l.b16 %v27
  %v197 = vunpack.c.h.b16 %v27
  %v198 = vunpack.c.l.b16 %v28
  %v199 = vpack.c.b16 %v190, %v190
  %v200 = vpack.c.b16 %v191, %v191
  %v201 = vpack.c.b16 %v192, %v192
  %v202 = vpack.c.b16 %v193, %v193
  %v203 = vpack.c.b16 %v194, %v194
  %v204 = vpack.c.b16 %v195, %v195
  %v205 = vpack.c.b16 %v196, %v196
  %v206 = vpack.c.b16 %v197, %v197
  %v207 = vpack.c.b16 %v198, %v198
  %v361 = vunpack.c.l.b16 %v29
  %v362 = vunpack.c.h.b16 %v29
  %v363 = vunpack.c.l.b16 %v30
  %v364 = vunpack.c.h.b16 %v30
  %v365 = vunpack.c.l.b16 %v31
  %v366 = vunpack.c.h.b16 %v31
  %v367 = vunpack.c.l.b16 %v32
  %v368 = vunpack.c.h.b16 %v32
  %v369 = vunpack.c.l.b16 %v33
  %v370 = vunpack.c.h.b16 %v33
  %v371 = vunpack.c.l.b16 %v34
  %v372 = vunpack.c.h.b16 %v34
  %v373 = vunpack.c.l.b16 %v35
  %v374 = vunpack.c.h.b16 %v35
  %v375 = vunpack.c.l.b16 %v36
  %v376 = vunpack.c.h.b16 %v36
  %v377 = vunpack.c.l.b16 %v37
  %v378 = vunpack.c.h.b16 %v37
  %v379 = vunpack.c.l.b16 %v38
  %v380 = vunpack.c.h.b16 %v38
  %v381 = vunpack.c.l.b16 %v39
  %v382 = vunpack.c.h.b16 %v39
  %v383 = vunpack.c.l.b16 %v40
  %v384 = vunpack.c.h.b16 %v40
  %v385 = vunpack.c.l.b16 %v41
  %v386 = vunpack.c.h.b16 %v41
  %v387 = vunpack.c.l.b16 %v42
  %v388 = vunpack.c.h.b16 %v42
  %v389 = vunpack.c.l.b16 %v43
  %v390 = vunpack.c.h.b16 %v43
  %v391 = vunpack.c.l.b16 %v44
  %v392 = vunpack.c.h.b16 %v44
  %v393 = vunpack.c.l.b16 %v45
  %v394 = vunpack.c.h.b16 %v45
  %v395 = vunpack.c.l.b16 %v46
  %v396 = vunpack.c.h.b16 %v46
  %v397 = vunpack.c.l.b16 %v47
  %v398 = vunpack.c.h.b16 %v47
  %v399 = vunpack.c.l.b16 %v48
  %v400 = vunpack.c.h.b16 %v48
  %v401 = vunpack.c.l.b16 %v49
  %v402 = vunpack.c.h.b16 %v49
  %v403 = vunpack.c.l.b16 %v50
  %v404 = vunpack.c.h.b16 %v50
  %v405 = vunpack.c.l.b16 %v51
  %v406 = vunpack.c.h.b16 %v51
  %v407 = vunpack.c.l.b16 %v52
  %v408 = vunpack.c.h.b16 %v52
  %v409 = vunpack.c.l.b16 %v53
  %v410 = vunpack.c.h.b16 %v53
  %v411 = vunpack.c.l.b16 %v54
  %v412 = vunpack.c.h.b16 %v54
  %v413 = vunpack.c.l.b16 %v55
  %v414 = vunpack.c.h.b16 %v55
  %v415 = vunpack.c.l.b16 %v56
  %v416 = vunpack.c.h.b16 %v56
  %v417 = vunpack.c.l.b16 %v57
  %v418 = vunpack.c.h.b16 %v57
  %v419 = vunpack.c.l.b16 %v58
  %v420 = vunpack.c.h.b16 %v58
  %v421 = vunpack.c.l.b16 %v59
  %v422 = vunpack.c.h.b16 %v59
  %v423 = vunpack.c.l.b16 %v60
  %v424 = vunpack.c.h.b16 %v60
  %v425 = vunpack.c.l.b16 %v61
  %v426 = vunpack.c.h.b16 %v61
  %v427 = vunpack.c.l.b16 %v62
  %v428 = vunpack.c.h.b16 %v62
  %v429 = vunpack.c.l.b16 %v63
  %v430 = vunpack.c.h.b16 %v63
  %v431 = vunpack.c.l.b16 %v64
  %v432 = vunpack.c.h.b16 %v64
  %v433 = vunpack.c.l.b16 %v65
  %v434 = vunpack.c.h.b16 %v65
  %v435 = vunpack.c.l.b16 %v66
  %v436 = vunpack.c.h.b16 %v66
  %v437 = vunpack.c.l.b16 %v67
  %v438 = vunpack.c.h.b16 %v67
  %v439 = vunpack.c.l.b16 %v68
  %v440 = vunpack.c.h.b16 %v68
  %v441 = vunpack.c.l.b16 %v69
  %v442 = vunpack.c.h.b16 %v69
  %v443 = vunpack.c.l.b16 %v70
  %v444 = vunpack.c.h.b16 %v70
  %v445 = vunpack.c.l.b16 %v71
  %v446 = vunpack.c.h.b16 %v71
  %v447 = vunpack.c.l.b16 %v72
  %v448 = vunpack.c.h.b16 %v72
  %v449 = vunpack.c.l.b16 %v73
  %v450 = vunpack.c.h.b16 %v73
  %v451 = vunpack.c.l.b16 %v74
  %v452 = vunpack.c.h.b16 %v74
  %v453 = vunpack.c.l.b16 %v75
  %v454 = vunpack.c.h.b16 %v75
  %v455 = vunpack.c.l.b16 %v76
  %v456 = vunpack.c.h.b16 %v76
  %v457 = vunpack.c.l.b16 %v77
  %v458 = vunpack.c.h.b16 %v77
  %v459 = vunpack.c.l.b16 %v78
  %v460 = vunpack.c.h.b16 %v78
  %v461 = vunpack.c.l.b16 %v79
  %v462 = vunpack.c.h.b16 %v79
  %v463 = vunpack.c.l.b16 %v80
  %v464 = vunpack.c.h.b16 %v80
  %v465 = vunpack.c.l.b16 %v81
  %v466 = vunpack.c.h.b16 %v81
  %v467 = vunpack.c.l.b16 %v82
  %v468 = vunpack.c.h.b16 %v82
  %v469 = vunpack.c.l.b16 %v83
  %v470 = vunpack.c.h.b16 %v83
  %v471 = vunpack.c.l.b16 %v84
  %v472 = vunpack.c.h.b16 %v84
  %v473 = vunpack.c.l.b16 %v85
  %v474 = vunpack.c.h.b16 %v85
  %v475 = vunpack.c.l.b16 %v86
  %v476 = vunpack.c.h.b16 %v86
  %v477 = vunpack.c.l.b16 %v87
  %v478 = vunpack.c.h.b16 %v87
  %v479 = vunpack.c.l.b16 %v88
  %v480 = vunpack.c.h.b16 %v88
  %v481 = vunpack.c.l.b16 %v89
  %v482 = vunpack.c.h.b16 %v89
  %v483 = vunpack.c.l.b16 %v90
  %v484 = vunpack.c.h.b16 %v90
  %v485 = vunpack.c.l.b16 %v91
  %v486 = vunpack.c.h.b16 %v91
  %v487 = vunpack.c.l.b16 %v92
  %v488 = vunpack.c.h.b16 %v92
  %v489 = vunpack.c.l.b16 %v93
  %v490 = vunpack.c.h.b16 %v93
  %v491 = vunpack.c.l.b16 %v94
  %v492 = vunpack.c.h.b16 %v94
  %v493 = vunpack.c.l.b16 %v95
  %v494 = vunpack.c.h.b16 %v95
  %v495 = vunpack.c.l.b16 %v96
  %v496 = vunpack.c.h.b16 %v96
  %v497 = vunpack.c.l.b16 %v97
  %v498 = vunpack.c.h.b16 %v97
  %v499 = vunpack.c.l.b16 %v98
  %v500 = vunpack.c.h.b16 %v98
  %v501 = vunpack.c.l.b16 %v99
  %v502 = vunpack.c.h.b16 %v99
  %v503 = vunpack.c.l.b16 %v100
  %v504 = vunpack.c.h.b16 %v100
  %v505 = vunpack.c.l.b16 %v101
  %v506 = vunpack.c.h.b16 %v101
  %v507 = vunpack.c.l.b16 %v102
  %v508 = vunpack.c.h.b16 %v102
  %v509 = vunpack.c.l.b16 %v103
  %v510 = vunpack.c.h.b16 %v103
  %v511 = vunpack.c.l.b16 %v104
  %v512 = vunpack.c.h.b16 %v104
  %v513 = vunpack.c.l.b16 %v105
  %v514 = vunpack.c.h.b16 %v105
  %v515 = vunpack.c.l.b16 %v106
  %v516 = vunpack.c.h.b16 %v106
  %v517 = vunpack.c.l.b16 %v107
  %v518 = vunpack.c.h.b16 %v107
  %v519 = vunpack.c.l.b16 %v108
  %v520 = vunpack.c.h.b16 %v108
  %v521 = vunpack.c.l.b16 %v109
  %v522 = vunpack.c.h.b16 %v109
  %v523 = vunpack.c.l.b16 %v110
  %v524 = vunpack.c.h.b16 %v110
  %v525 = vunpack.c.l.b16 %v111
  %v526 = vunpack.c.h.b16 %v111
  %v527 = vunpack.c.l.b16 %v112
  %v528 = vunpack.c.h.b16 %v112
  %v529 = vunpack.c.l.b16 %v113
  %v530 = vunpack.c.h.b16 %v113
  %v531 = vunpack.c.l.b16 %v114
  %v532 = vunpack.c.h.b16 %v114
  %v533 = vunpack.c.l.b16 %v115
  %v534 = vunpack.c.h.b16 %v115
  %v535 = vunpack.c.l.b16 %v116
  %v536 = vunpack.c.h.b16 %v116
  %v537 = vunpack.c.l.b16 %v117
  %v538 = vunpack.c.h.b16 %v117
  %v539 = vunpack.c.l.b16 %v118
  %v540 = vunpack.c.h.b16 %v118
  %v541 = vunpack.c.l.b16 %v119
  %v542 = vunpack.c.h.b16 %v119
  %v543 = vunpack.c.l.b16 %v120
  %v544 = vunpack.c.h.b16 %v120
  %v545 = vunpack.c.l.b16 %v121
  %v546 = vunpack.c.h.b16 %v121
  %v547 = vunpack.c.l.b16 %v122
  %v548 = vunpack.c.h.b16 %v122
  %v549 = vunpack.c.l.b16 %v123
  %v550 = vunpack.c.h.b16 %v123
  %v551 = vunpack.c.l.b16 %v124
  %v552 = vunpack.c.h.b16 %v124
  %v553 = vunpack.c.l.b16 %v125
  %v554 = vunpack.c.h.b16 %v125
  %v555 = vunpack.c.l.b16 %v126
  %v556 = vunpack.c.h.b16 %v126
  %v557 = vunpack.c.l.b16 %v127
  %v558 = vunpack.c.h.b16 %v127
  %v559 = vunpack.c.l.b16 %v128
  %v560 = vunpack.c.h.b16 %v128
  %v561 = vunpack.c.l.b16 %v129
  %v562 = vunpack.c.h.b16 %v129
  %v563 = vunpack.c.l.b16 %v130
  %v564 = vunpack.c.h.b16 %v130
  %v565 = vunpack.c.l.b16 %v131
  %v566 = vunpack.c.h.b16 %v131
  %v567 = vunpack.c.l.b16 %v132
  %v568 = vunpack.c.h.b16 %v132
  %v569 = vunpack.c.l.b16 %v133
  %v570 = vunpack.c.h.b16 %v133
  %v571 = vunpack.c.l.b16 %v134
  %v572 = vunpack.c.h.b16 %v134
  %v573 = vunpack.c.l.b16 %v135
  %v574 = vunpack.c.h.b16 %v135
  %v575 = vunpack.c.l.b16 %v136
  %v576 = vunpack.c.h.b16 %v136
  %v577 = vunpack.c.l.b16 %v137
  %v578 = vunpack.c.h.b16 %v137
  %v579 = vunpack.c.l.b16 %v138
  %v580 = vunpack.c.h.b16 %v138
  %v581 = vunpack.c.l.b16 %v139
  %v582 = vunpack.c.h.b16 %v139
  %v583 = vunpack.c.l.b16 %v140
  %v584 = vunpack.c.h.b16 %v140
  %v585 = vunpack.c.l.b16 %v141
  %v586 = vunpack.c.h.b16 %v141
  %v587 = vunpack.c.l.b16 %v142
  %v588 = vunpack.c.h.b16 %v142
  %v589 = vunpack.c.l.b16 %v143
  %v590 = vunpack.c.h.b16 %v143
  %v591 = vunpack.c.l.b16 %v144
  %v592 = vunpack.c.h.b16 %v144
  %v593 = vunpack.c.l.b16 %v145
  %v594 = vunpack.c.h.b16 %v145
  %v595 = vunpack.c.l.b16 %v146
  %v596 = vunpack.c.h.b16 %v146
  %v597 = vunpack.c.l.b16 %v147
  %v598 = vunpack.c.h.b16 %v147
  %v599 = vunpack.c.l.b16 %v148
  %v600 = vunpack.c.h.b16 %v148
  %v601 = vunpack.c.l.b16 %v149
  %v602 = vunpack.c.h.b16 %v149
  %v603 = vunpack.c.l.b16 %v150
  %v604 = vunpack.c.h.b16 %v150
  %v605 = vunpack.c.l.b16 %v151
  %v606 = vunpack.c.h.b16 %v151
  %v607 = vunpack.c.l.b16 %v152
  %v608 = vunpack.c.h.b16 %v152
  %v609 = vunpack.c.l.b16 %v153
  %v610 = vunpack.c.h.b16 %v153
  %v611 = vunpack.c.l.b16 %v154
  %v612 = vunpack.c.h.b16 %v154
  %v613 = vunpack.c.l.b16 %v155
  %v614 = vunpack.c.h.b16 %v155
  %v615 = vunpack.c.l.b16 %v156
  %v616 = vunpack.c.h.b16 %v156
  %v617 = vunpack.c.l.b16 %v157
  %v618 = vunpack.c.h.b16 %v157
  %v619 = vunpack.c.l.b16 %v158
  %v620 = vunpack.c.h.b16 %v158
  %v621 = vunpack.c.l.b16 %v159
  %v622 = vunpack.c.h.b16 %v159
  %v623 = vunpack.c.l.b16 %v160
  %v624 = vunpack.c.h.b16 %v160
  %v625 = vunpack.c.l.b16 %v161
  %v626 = vunpack.c.h.b16 %v161
  %v627 = vunpack.c.l.b16 %v162
  %v628 = vunpack.c.h.b16 %v162
  %v629 = vunpack.c.l.b16 %v163
  %v630 = vunpack.c.h.b16 %v163
  %v631 = vunpack.c.l.b16 %v164
  %v632 = vunpack.c.h.b16 %v164
  %v633 = vunpack.c.l.b16 %v165
  %v634 = vunpack.c.h.b16 %v165
  %v635 = vunpack.c.l.b16 %v166
  %v636 = vunpack.c.h.b16 %v166
  %v637 = vunpack.c.l.b16 %v167
  %v638 = vunpack.c.h.b16 %v167
  %v639 = vunpack.c.l.b16 %v168
  %v640 = vunpack.c.h.b16 %v168
  %v641 = vunpack.c.l.b16 %v169
  %v642 = vunpack.c.h.b16 %v169
  %v643 = vunpack.c.l.b16 %v170
  %v644 = vunpack.c.h.b16 %v170
  %v645 = vunpack.c.l.b16 %v171
  %v646 = vunpack.c.h.b16 %v171
  %v647 = vunpack.c.l.b16 %v172
  %v648 = vunpack.c.h.b16 %v172
  %v649 = vpack.c.b16 %v363, %v361
  %v650 = vpack.c.b16 %v364, %v362
  %v651 = vpack.c.b16 %v367, %v365
  %v652 = vpack.c.b16 %v368, %v366
  %v653 = vpack.c.b16 %v371, %v369
  %v654 = vpack.c.b16 %v372, %v370
  %v655 = vpack.c.b16 %v375, %v373
  %v656 = vpack.c.b16 %v376, %v374
  %v657 = vpack.c.b16 %v379, %v377
  %v658 = vpack.c.b16 %v380, %v378
  %v659 = vpack.c.b16 %v383, %v381
  %v660 = vpack.c.b16 %v384, %v382
  %v661 = vpack.c.b16 %v387, %v385
  %v662 = vpack.c.b16 %v388, %v386
  %v663 = vpack.c.b16 %v391, %v389
  %v664 = vpack.c.b16 %v392, %v390
  %v665 = vpack.c.b16 %v395, %v393
  %v666 = vpack.c.b16 %v396, %v394
  %v667 = vpack.c.b16 %v399, %v397
  %v668 = vpack.c.b16 %v400, %v398
  %v669 = vpack.c.b16 %v403, %v401
  %v670 = vpack.c.b16 %v404, %v402
  %v671 = vpack.c.b16 %v407, %v405
  %v672 = vpack.c.b16 %v408, %v406
  %v673 = vpack.c.b16 %v411, %v409
  %v674 = vpack.c.b16 %v412, %v410
  %v675 = vpack.c.b16 %v415, %v413
  %v676 = vpack.c.b16 %v416, %v414
  %v677 = vpack.c.b16 %v419, %v417
  %v678 = vpack.c.b16 %v420, %v418
  %v679 = vpack.c.b16 %v423, %v421
  %v680 = vpack.c.b16 %v424, %v422
  %v681 = vpack.c.b16 %v427, %v425
  %v682 = vpack.c.b16 %v428, %v426
  %v683 = vpack.c.b16 %v431, %v429
  %v684 = vpack.c.b16 %v432, %v430
  %v685 = vpack.c.b16 %v435, %v433
  %v686 = vpack.c.b16 %v436, %v434
  %v687 = vpack.c.b16 %v439, %v437
  %v688 = vpack.c.b16 %v440, %v438
  %v689 = vpack.c.b16 %v443, %v441
  %v690 = vpack.c.b16 %v444, %v442
  %v691 = vpack.c.b16 %v447, %v445
  %v692 = vpack.c.b16 %v448, %v446
  %v693 = vpack.c.b16 %v451, %v449
  %v694 = vpack.c.b16 %v452, %v450
  %v695 = vpack.c.b16 %v455, %v453
  %v696 = vpack.c.b16 %v456, %v454
  %v697 = vpack.c.b16 %v459, %v457
  %v698 = vpack.c.b16 %v460, %v458
  %v699 = vpack.c.b16 %v463, %v461
  %v700 = vpack.c.b16 %v464, %v462
  %v701 = vpack.c.b16 %v467, %v465
  %v702 = vpack.c.b16 %v468, %v466
  %v703 = vpack.c.b16 %v471, %v469
  %v704 = vpack.c.b16 %v472, %v470
  %v705 = vpack.c.b16 %v475, %v473
  %v706 = vpack.c.b16 %v476, %v474
  %v707 = vpack.c.b16 %v479, %v477
  %v708 = vpack.c.b16 %v480, %v478
  %v709 = vpack.c.b16 %v483, %v481
  %v710 = vpack.c.b16 %v484, %v482
  %v711 = vpack.c.b16 %v487, %v485
  %v712 = vpack.c.b16 %v488, %v486
  %v713 = vpack.c.b16 %v491, %v489
  %v714 = vpack.c.b16 %v492, %v490
  %v715 = vpack.c.b16 %v495, %v493
  %v716 = vpack.c.b16 %v496, %v494
  %v717 = vpack.c.b16 %v499, %v497
  %v718 = vpack.c.b16 %v500, %v498
  %v719 = vpack.c.b16 %v503, %v501
  %v720 = vpack.c.b16 %v504, %v502
  %v721 = vpack.c.b16 %v507, %v505
  %v722 = vpack.c.b16 %v508, %v506
  %v723 = vpack.c.b16 %v511, %v509
  %v724 = vpack.c.b16 %v512, %v510
  %v725 = vpack.c.b16 %v515, %v513
  %v726 = vpack.c.b16 %v516, %v514
  %v727 = vpack.c.b16 %v519, %v517
  %v728 = vpack.c.b16 %v520, %v518
  %v729 = vpack.c.b16 %v523, %v521
  %v730 = vpack.c.b16 %v524, %v522
  %v731 = vpack.c.b16 %v527, %v525
  %v732 = vpack.c.b16 %v528, %v526
  %v733 = vpack.c.b16 %v531, %v529
  %v734 = vpack.c.b16 %v532, %v530
  %v735 = vpack.c.b16 %v535, %v533
  %v736 = vpack.c.b16 %v536, %v534
  %v737 = vpack.c.b16 %v539, %v537
  %v738 = vpack.c.b16 %v540, %v538
  %v739 = vpack.c.b16 %v543, %v541
  %v740 = vpack.c.b16 %v544, %v542
  %v741 = vpack.c.b16 %v547, %v545
  %v742 = vpack.c.b16 %v548, %v546
  %v743 = vpack.c.b16 %v551, %v549
  %v744 = vpack.c.b16 %v552, %v550
  %v745 = vpack.c.b16 %v555, %v553
  %v746 = vpack.c.b16 %v556, %v554
  %v747 = vpack.c.b16 %v559, %v557
  %v748 = vpack.c.b16 %v560, %v558
  %v749 = vpack.c.b16 %v563, %v561
  %v750 = vpack.c.b16 %v564, %v562
  %v751 = vpack.c.b16 %v567, %v565
  %v752 = vpack.c.b16 %v568, %v566
  %v753 = vpack.c.b16 %v571, %v569
  %v754 = vpack.c.b16 %v572, %v570
  %v755 = vpack.c.b16 %v575, %v573
  %v756 = vpack.c.b16 %v576, %v574
  %v757 = vpack.c.b16 %v579, %v577
  %v758 = vpack.c.b16 %v580, %v578
  %v759 = vpack.c.b16 %v583, %v581
  %v760 = vpack.c.b16 %v584, %v582
  %v761 = vpack.c.b16 %v587, %v585
  %v762 = vpack.c.b16 %v588, %v586
  %v763 = vpack.c.b16 %v591, %v589
  %v764 = vpack.c.b16 %v592, %v590
  %v765 = vpack.c.b16 %v595, %v593
  %v766 = vpack.c.b16 %v596, %v594
  %v767 = vpack.c.b16 %v599, %v597
  %v768 = vpack.c.b16 %v600, %v598
  %v769 = vpack.c.b16 %v603, %v601
  %v770 = vpack.c.b16 %v604, %v602
  %v771 = vpack.c.b16 %v607, %v605
  %v772 = vpack.c.b16 %v608, %v606
  %v773 = vpack.c.b16 %v611, %v609
  %v774 = vpack.c.b16 %v612, %v610
  %v775 = vpack.c.b16 %v615, %v613
  %v776 = vpack.c.b16 %v616, %v614
  %v777 = vpack.c.b16 %v619, %v617
  %v778 = vpack.c.b16 %v620, %v618
  %v779 = vpack.c.b16 %v623, %v621
  %v780 = vpack.c.b16 %v624, %v622
  %v781 = vpack.c.b16 %v627, %v625
  %v782 = vpack.c.b16 %v628, %v626
  %v783 = vpack.c.b16 %v631, %v629
  %v784 = vpack.c.b16 %v632, %v630
  %v785 = vpack.c.b16 %v635, %v633
  %v786 = vpack.c.b16 %v636, %v634
  %v787 = vpack.c.b16 %v639, %v637
  %v788 = vpack.c.b16 %v640, %v638
  %v789 = vpack.c.b16 %v643, %v641
  %v790 = vpack.c.b16 %v644, %v642
  %v791 = vpack.c.b16 %v647, %v645
  %v792 = vpack.c.b16 %v648, %v646
  %937 = vmatprep.subr.bf16.mxu0 %v650
  %938 = vmatpush1.bf16.msra.mxu0 %v649
  %939 = vmatprep.subr.bf16.mxu0 %v652
  %940 = vmatpush1.bf16.msra.mxu0 %v651
  %941 = vmatprep.subr.bf16.mxu0 %v654
  %942 = vmatpush1.bf16.msra.mxu0 %v653
  %943 = vmatprep.subr.bf16.mxu0 %v656
  %944 = vmatpush1.bf16.msra.mxu0 %v655
  %945 = vmatprep.subr.bf16.mxu0 %v658
  %946 = vmatpush1.bf16.msra.mxu0 %v657
  %947 = vmatprep.subr.bf16.mxu0 %v660
  %948 = vmatpush1.bf16.msra.mxu0 %v659
  %949 = vmatprep.subr.bf16.mxu0 %v662
  %950 = vmatpush1.bf16.msra.mxu0 %v661
  %951 = vmatprep.subr.bf16.mxu0 %v664
  %952 = vmatpush1.bf16.msra.mxu0 %v663
  %953 = vmatprep.subr.bf16.mxu0 %v666
  %954 = vmatpush1.bf16.msra.mxu0 %v665
  %955 = vmatprep.subr.bf16.mxu0 %v668
  %956 = vmatpush1.bf16.msra.mxu0 %v667
  %957 = vmatprep.subr.bf16.mxu0 %v670
  %958 = vmatpush1.bf16.msra.mxu0 %v669
  %959 = vmatprep.subr.bf16.mxu0 %v672
  %960 = vmatpush1.bf16.msra.mxu0 %v671
  %961 = vmatprep.subr.bf16.mxu0 %v674
  %962 = vmatpush1.bf16.msra.mxu0 %v673
  %963 = vmatprep.subr.bf16.mxu0 %v676
  %964 = vmatpush1.bf16.msra.mxu0 %v675
  %965 = vmatprep.subr.bf16.mxu0 %v678
  %966 = vmatpush1.bf16.msra.mxu0 %v677
  %967 = vmatprep.subr.bf16.mxu0 %v680
  %968 = vmatpush1.bf16.msra.mxu0 %v679
  %969 = vmatprep.mubr.bf16.mxu0 %v200
  %970 = vmatmul.mubr.bf16.gmra.mrb[0].mxu0 %v199
  %v971 = vpop.f32.mrb[0].mxu0
  %v972 = vadd.f32 %v178, %v971
  %v973 = vpop.f32.mrb[0].mxu0
  %v974 = vadd.f32 %v182, %v973
  %v975 = vpop.f32.mrb[0].mxu0
  %v976 = vpop.f32.mrb[0].mxu0
  %977 = vdwg.mxu0
  %978 = vmatprep.subr.bf16.mxu0 %v682
  %979 = vmatpush1.bf16.msra.mxu0 %v681
  %980 = vmatprep.subr.bf16.mxu0 %v684
  %981 = vmatpush1.bf16.msra.mxu0 %v683
  %982 = vmatprep.subr.bf16.mxu0 %v686
  %983 = vmatpush1.bf16.msra.mxu0 %v685
  %984 = vmatprep.subr.bf16.mxu0 %v688
  %985 = vmatpush1.bf16.msra.mxu0 %v687
  %986 = vmatprep.subr.bf16.mxu0 %v690
  %987 = vmatpush1.bf16.msra.mxu0 %v689
  %988 = vmatprep.subr.bf16.mxu0 %v692
  %989 = vmatpush1.bf16.msra.mxu0 %v691
  %990 = vmatprep.subr.bf16.mxu0 %v694
  %991 = vmatpush1.bf16.msra.mxu0 %v693
  %992 = vmatprep.subr.bf16.mxu0 %v696
  %993 = vmatpush1.bf16.msra.mxu0 %v695
  %994 = vmatprep.subr.bf16.mxu0 %v698
  %995 = vmatpush1.bf16.msra.mxu0 %v697
  %996 = vmatprep.subr.bf16.mxu0 %v700
  %997 = vmatpush1.bf16.msra.mxu0 %v699
  %998 = vmatprep.subr.bf16.mxu0 %v702
  %999 = vmatpush1.bf16.msra.mxu0 %v701
  %1000 = vmatprep.subr.bf16.mxu0 %v704
  %1001 = vmatpush1.bf16.msra.mxu0 %v703
  %1002 = vmatprep.subr.bf16.mxu0 %v706
  %1003 = vmatpush1.bf16.msra.mxu0 %v705
  %1004 = vmatprep.subr.bf16.mxu0 %v708
  %1005 = vmatpush1.bf16.msra.mxu0 %v707
  %1006 = vmatprep.subr.bf16.mxu0 %v710
  %1007 = vmatpush1.bf16.msra.mxu0 %v709
  %1008 = vmatprep.subr.bf16.mxu0 %v712
  %1009 = vmatpush1.bf16.msra.mxu0 %v711
  %1010 = vmatprep.mubr.bf16.mxu0 %v202
  %1011 = vmatmul.mubr.bf16.gmra.mrb[0].mxu0 %v201
  %v1012 = vpop.f32.mrb[0].mxu0
  %v1013 = vadd.f32 %v972, %v1012
  %v1014 = vpop.f32.mrb[0].mxu0
  %v1015 = vadd.f32 %v974, %v1014
  %v1016 = vpop.f32.mrb[0].mxu0
  %v1017 = vpop.f32.mrb[0].mxu0
  %1018 = vdwg.mxu0
  %1019 = vmatprep.subr.bf16.mxu0 %v714
  %1020 = vmatpush1.bf16.msra.mxu0 %v713
  %1021 = vmatprep.subr.bf16.mxu0 %v716
  %1022 = vmatpush1.bf16.msra.mxu0 %v715
  %1023 = vmatprep.subr.bf16.mxu0 %v718
  %1024 = vmatpush1.bf16.msra.mxu0 %v717
  %1025 = vmatprep.subr.bf16.mxu0 %v720
  %1026 = vmatpush1.bf16.msra.mxu0 %v719
  %1027 = vmatprep.subr.bf16.mxu0 %v722
  %1028 = vmatpush1.bf16.msra.mxu0 %v721
  %1029 = vmatprep.subr.bf16.mxu0 %v724
  %1030 = vmatpush1.bf16.msra.mxu0 %v723
  %1031 = vmatprep.subr.bf16.mxu0 %v726
  %1032 = vmatpush1.bf16.msra.mxu0 %v725
  %1033 = vmatprep.subr.bf16.mxu0 %v728
  %1034 = vmatpush1.bf16.msra.mxu0 %v727
  %1035 = vmatprep.subr.bf16.mxu0 %v730
  %1036 = vmatpush1.bf16.msra.mxu0 %v729
  %1037 = vmatprep.subr.bf16.mxu0 %v732
  %1038 = vmatpush1.bf16.msra.mxu0 %v731
  %1039 = vmatprep.subr.bf16.mxu0 %v734
  %1040 = vmatpush1.bf16.msra.mxu0 %v733
  %1041 = vmatprep.subr.bf16.mxu0 %v736
  %1042 = vmatpush1.bf16.msra.mxu0 %v735
  %1043 = vmatprep.subr.bf16.mxu0 %v738
  %1044 = vmatpush1.bf16.msra.mxu0 %v737
  %1045 = vmatprep.subr.bf16.mxu0 %v740
  %1046 = vmatpush1.bf16.msra.mxu0 %v739
  %1047 = vmatprep.subr.bf16.mxu0 %v742
  %1048 = vmatpush1.bf16.msra.mxu0 %v741
  %1049 = vmatprep.subr.bf16.mxu0 %v744
  %1050 = vmatpush1.bf16.msra.mxu0 %v743
  %1051 = vmatprep.mubr.bf16.mxu0 %v204
  %1052 = vmatmul.mubr.bf16.gmra.mrb[0].mxu0 %v203
  %v1053 = vpop.f32.mrb[0].mxu0
  %v1054 = vadd.f32 %v1013, %v1053
  %v1055 = vpop.f32.mrb[0].mxu0
  %v1056 = vadd.f32 %v1015, %v1055
  %v1057 = vpop.f32.mrb[0].mxu0
  %v1058 = vpop.f32.mrb[0].mxu0
  %1059 = vdwg.mxu0
  %1060 = vmatprep.subr.bf16.mxu0 %v746
  %1061 = vmatpush1.bf16.msra.mxu0 %v745
  %1062 = vmatprep.subr.bf16.mxu0 %v748
  %1063 = vmatpush1.bf16.msra.mxu0 %v747
  %1064 = vmatprep.subr.bf16.mxu0 %v750
  %1065 = vmatpush1.bf16.msra.mxu0 %v749
  %1066 = vmatprep.subr.bf16.mxu0 %v752
  %1067 = vmatpush1.bf16.msra.mxu0 %v751
  %1068 = vmatprep.subr.bf16.mxu0 %v754
  %1069 = vmatpush1.bf16.msra.mxu0 %v753
  %1070 = vmatprep.subr.bf16.mxu0 %v756
  %1071 = vmatpush1.bf16.msra.mxu0 %v755
  %1072 = vmatprep.subr.bf16.mxu0 %v758
  %1073 = vmatpush1.bf16.msra.mxu0 %v757
  %1074 = vmatprep.subr.bf16.mxu0 %v760
  %1075 = vmatpush1.bf16.msra.mxu0 %v759
  %1076 = vmatprep.subr.bf16.mxu0 %v762
  %1077 = vmatpush1.bf16.msra.mxu0 %v761
  %1078 = vmatprep.subr.bf16.mxu0 %v764
  %1079 = vmatpush1.bf16.msra.mxu0 %v763
  %1080 = vmatprep.subr.bf16.mxu0 %v766
  %1081 = vmatpush1.bf16.msra.mxu0 %v765
  %1082 = vmatprep.subr.bf16.mxu0 %v768
  %1083 = vmatpush1.bf16.msra.mxu0 %v767
  %1084 = vmatprep.subr.bf16.mxu0 %v770
  %1085 = vmatpush1.bf16.msra.mxu0 %v769
  %1086 = vmatprep.subr.bf16.mxu0 %v772
  %1087 = vmatpush1.bf16.msra.mxu0 %v771
  %1088 = vmatprep.subr.bf16.mxu0 %v774
  %1089 = vmatpush1.bf16.msra.mxu0 %v773
  %1090 = vmatprep.subr.bf16.mxu0 %v776
  %1091 = vmatpush1.bf16.msra.mxu0 %v775
  %1092 = vmatprep.mubr.bf16.mxu0 %v206
  %1093 = vmatmul.mubr.bf16.gmra.mrb[0].mxu0 %v205
  %v1094 = vpop.f32.mrb[0].mxu0
  %v1095 = vadd.f32 %v1054, %v1094
  %v1096 = vpop.f32.mrb[0].mxu0
  %v1097 = vadd.f32 %v1056, %v1096
  %v1098 = vpop.f32.mrb[0].mxu0
  %v1099 = vpop.f32.mrb[0].mxu0
  %1100 = vdwg.mxu0
  %1101 = vmatprep.subr.bf16.mxu0 %v778
  %1102 = vmatpush1.bf16.msra.mxu0 %v777
  %1103 = vmatprep.subr.bf16.mxu0 %v780
  %1104 = vmatpush1.bf16.msra.mxu0 %v779
  %1105 = vmatprep.subr.bf16.mxu0 %v782
  %1106 = vmatpush1.bf16.msra.mxu0 %v781
  %1107 = vmatprep.subr.bf16.mxu0 %v784
  %1108 = vmatpush1.bf16.msra.mxu0 %v783
  %1109 = vmatprep.subr.bf16.mxu0 %v786
  %1110 = vmatpush1.bf16.msra.mxu0 %v785
  %1111 = vmatprep.subr.bf16.mxu0 %v788
  %1112 = vmatpush1.bf16.msra.mxu0 %v787
  %1113 = vmatprep.subr.bf16.mxu0 %v790
  %1114 = vmatpush1.bf16.msra.mxu0 %v789
  %1115 = vmatprep.subr.bf16.mxu0 %v792
  %1116 = vmatpush1.bf16.msra.mxu0 %v791
  %1117 = vmatprep.subr.bf16.mxu0 0
  %1118 = vmatpush1.bf16.msra.mxu0 0
  %1119 = vmatprep.subr.bf16.mxu0 0
  %1120 = vmatpush1.bf16.msra.mxu0 0
  %1121 = vmatprep.subr.bf16.mxu0 0
  %1122 = vmatpush1.bf16.msra.mxu0 0
  %1123 = vmatprep.subr.bf16.mxu0 0
  %1124 = vmatpush1.bf16.msra.mxu0 0
  %1125 = vmatprep.subr.bf16.mxu0 0
  %1126 = vmatpush1.bf16.msra.mxu0 0
  %1127 = vmatprep.subr.bf16.mxu0 0
  %1128 = vmatpush1.bf16.msra.mxu0 0
  %1129 = vmatprep.subr.bf16.mxu0 0
  %1130 = vmatpush1.bf16.msra.mxu0 0
  %1131 = vmatprep.subr.bf16.mxu0 0
  %1132 = vmatpush1.bf16.msra.mxu0 0
  %1133 = vmatprep.mubr.bf16.mxu0 0
  %1134 = vmatmul.mubr.bf16.gmra.mrb[0].mxu0 %v207
  %v1135 = vpop.f32.mrb[0].mxu0
  %v1136 = vadd.f32 %v1095, %v1135
  %v1137 = vpop.f32.mrb[0].mxu0
  %v1138 = vadd.f32 %v1097, %v1137
  %v1139 = vpop.f32.mrb[0].mxu0
  %v1140 = vpop.f32.mrb[0].mxu0
  %1141 = vdwg.mxu0
  %v1142 = vmax.f32 %v1136, 0.0
  %v1143 = vmax.f32 %v1138, 0.0
  %1144 = vst [vmem:[#allocation2] sm:$0xff] 0
  %1145 = vst [vmem:[#allocation2 + $0x8] sm:$0xff] 0
  %1146 = vst [vmem:[#allocation2 + $0x10] sm:$0xff] 0
  %v1147 = vpack.c.bf16 %v1142, %v1142
  %v1148 = vpack.c.bf16 %v1143, %v1143
  %v1151 = vunpack.c.l.b16 %v1147
  %v1152 = vunpack.c.l.b16 %v1148
  %v1153 = vpack.c.b16 %v1152, %v1151
  %1155 = vst [vmem:[#allocation2 + $0x8] sm:$0xff] %v1153
  %v1156 = vld [vmem:[#allocation2] sm:$0xcc]
  %v1157 = vld [vmem:[#allocation2 + $0x8] sm:$0x77]
  %v1158 = vld [vmem:[%s5] sm:$0xf]
  %1160 = vset.pattern.permute.xlu0 0
  %1161 = vperm.xlu0 %1160, %v1158
  %v1162 = vpop.permute.xlu0 %1161
  %v1165 = vunpack.c.l.s4 839922192
  %v1166 = vunpack.c.0.s8 %v1165
  %v1167 = vlaneseq
  %v1168 = vshrl.u32 %v1167, 7
  %v1169 = vsub.s32 %v1166, %v1168
  %v1170 = vrot.slane %v1162, %v1169
  %v1172 = vshrl.u32 %v1170, 16
  %v1174 = vrot.slane %v1172, 5
  %v1175 = vshll.u32 %v1170, 16
  %v1177 = vrot.slane %v1175, 6
  %v1178 = vor.u32 %v1174, %v1177
  %v1179 = vrot.slane %v1178, 4
  %v1182 = vmul.bf16 %v1156, %v1178
  %v1183 = vmul.bf16 %v1157, %v1179
  %v1184 = vld [vmem:[%s3] sm:$0xff]
  %v1185 = vld [vmem:[%s3 + $0x8] sm:$0xff]
  %v1186 = vld [vmem:[%s3 + $0x10] sm:$0xff]
  %v1187 = vld [vmem:[%s3 + $0x18] sm:$0xff]
  %v1188 = vld [vmem:[%s3 + $0x20] sm:$0xff]
  %v1189 = vld [vmem:[%s3 + $0x28] sm:$0xff]
  %v1190 = vld [vmem:[%s3 + $0x30] sm:$0xff]
  %v1191 = vld [vmem:[%s3 + $0x38] sm:$0xff]
  %v1192 = vld [vmem:[%s3 + $0x40] sm:$0xff]
  %v1193 = vld [vmem:[%s3 + $0x48] sm:$0xff]
  %v1194 = vld [vmem:[%s3 + $0x50] sm:$0xff]
  %v1195 = vld [vmem:[%s3 + $0x58] sm:$0xff]
  %v1196 = vld [vmem:[%s3 + $0x60] sm:$0xff]
  %v1197 = vld [vmem:[%s3 + $0x68] sm:$0xff]
  %v1198 = vld [vmem:[%s3 + $0x70] sm:$0xff]
  %v1199 = vld [vmem:[%s3 + $0x78] sm:$0xff]
  %v1200 = vld [vmem:[%s3 + $0x80] sm:$0xff]
  %v1201 = vld [vmem:[%s3 + $0x88] sm:$0xff]
  %v1202 = vld [vmem:[%s3 + $0x90] sm:$0xff]
  %v1203 = vld [vmem:[%s3 + $0x98] sm:$0xff]
  %v1204 = vld [vmem:[%s3 + $0xa0] sm:$0xff]
  %v1205 = vld [vmem:[%s3 + $0xa8] sm:$0xff]
  %v1206 = vld [vmem:[%s3 + $0xb0] sm:$0xff]
  %v1207 = vld [vmem:[%s3 + $0xb8] sm:$0xff]
  %v1208 = vld [vmem:[%s3 + $0xc0] sm:$0xff]
  %v1209 = vld [vmem:[%s3 + $0xc8] sm:$0xff]
  %v1210 = vld [vmem:[%s3 + $0xd0] sm:$0xff]
  %v1211 = vld [vmem:[%s3 + $0xd8] sm:$0xff]
  %v1212 = vld [vmem:[%s3 + $0xe0] sm:$0xff]
  %v1213 = vld [vmem:[%s3 + $0xe8] sm:$0xff]
  %v1214 = vld [vmem:[%s3 + $0xf0] sm:$0xff]
  %v1215 = vld [vmem:[%s3 + $0xf8] sm:$0xff]
  %v1216 = vld [vmem:[#allocation2] sm:$0x88]
  %s1217 = scalar_lea.vmem %s5, 4
  %v1218 = vld [vmem:[%s1217] sm:$0xf]
  %1220 = vset.pattern.permute.xlu0 0
  %1221 = vperm.xlu0 %1220, %v1218
  %v1222 = vpop.permute.xlu0 %1221
  %v1225 = vunpack.c.l.s4 839922192
  %v1226 = vunpack.c.0.s8 %v1225
  %v1227 = vlaneseq
  %v1228 = vshrl.u32 %v1227, 7
  %v1229 = vsub.s32 %v1226, %v1228
  %v1230 = vrot.slane %v1222, %v1229
  %v1232 = vrot.slane %v1230, 5
  %v1233 = vrot.slane %v1232, 4
  %v1236 = vmul.bf16 %v1216, %v1232
  %v1237 = vmul.bf16 %v1157, %v1233
  %s1238 = scalar_lea.vmem %s3, 256
  %v1239 = vld [vmem:[%s1238] sm:$0xff]
  %v1240 = vld [vmem:[%s1238 + $0x8] sm:$0xff]
  %v1241 = vld [vmem:[%s1238 + $0x10] sm:$0xff]
  %v1242 = vld [vmem:[%s1238 + $0x18] sm:$0xff]
  %v1243 = vld [vmem:[%s1238 + $0x20] sm:$0xff]
  %v1244 = vld [vmem:[%s1238 + $0x28] sm:$0xff]
  %v1245 = vld [vmem:[%s1238 + $0x30] sm:$0xff]
  %v1246 = vld [vmem:[%s1238 + $0x38] sm:$0xff]
  %v1247 = vld [vmem:[%s1238 + $0x40] sm:$0xff]
  %v1248 = vld [vmem:[%s1238 + $0x48] sm:$0xff]
  %v1249 = vld [vmem:[%s1238 + $0x50] sm:$0xff]
  %v1250 = vld [vmem:[%s1238 + $0x58] sm:$0xff]
  %v1251 = vld [vmem:[%s1238 + $0x60] sm:$0xff]
  %v1252 = vld [vmem:[%s1238 + $0x68] sm:$0xff]
  %v1253 = vld [vmem:[%s1238 + $0x70] sm:$0xff]
  %v1254 = vld [vmem:[%s1238 + $0x78] sm:$0xff]
  %v1255 = vld [vmem:[%s1238 + $0x80] sm:$0xff]
  %v1256 = vld [vmem:[%s1238 + $0x88] sm:$0xff]
  %v1257 = vld [vmem:[%s1238 + $0x90] sm:$0xff]
  %v1258 = vld [vmem:[%s1238 + $0x98] sm:$0xff]
  %v1259 = vld [vmem:[%s1238 + $0xa0] sm:$0xff]
  %v1260 = vld [vmem:[%s1238 + $0xa8] sm:$0xff]
  %v1261 = vld [vmem:[%s1238 + $0xb0] sm:$0xff]
  %v1262 = vld [vmem:[%s1238 + $0xb8] sm:$0xff]
  %v1263 = vld [vmem:[%s1238 + $0xc0] sm:$0xff]
  %v1264 = vld [vmem:[%s1238 + $0xc8] sm:$0xff]
  %v1265 = vld [vmem:[%s1238 + $0xd0] sm:$0xff]
  %v1266 = vld [vmem:[%s1238 + $0xd8] sm:$0xff]
  %v1267 = vld [vmem:[%s1238 + $0xe0] sm:$0xff]
  %v1268 = vld [vmem:[%s1238 + $0xe8] sm:$0xff]
  %v1269 = vld [vmem:[%s1238 + $0xf0] sm:$0xff]
  %v1270 = vld [vmem:[%s1238 + $0xf8] sm:$0xff]
  %v1273 = vunpack.c.l.b16 %v1236
  %v1274 = vunpack.c.h.b16 %v1236
  %v1275 = vunpack.c.l.b16 %v1237
  %v1276 = vunpack.c.h.b16 %v1237
  %v1277 = vpack.c.b16 %v1275, %v1273
  %v1278 = vpack.c.b16 %v1276, %v1274
  %v1279 = vrot.slane %v1277, 3
  %v1280 = vrot.slane %v1278, 3
  %v1315 = vunpack.c.l.b16 %v1239
  %v1316 = vunpack.c.h.b16 %v1239
  %v1317 = vunpack.c.l.b16 %v1240
  %v1318 = vunpack.c.h.b16 %v1240
  %v1319 = vunpack.c.l.b16 %v1241
  %v1320 = vunpack.c.h.b16 %v1241
  %v1321 = vunpack.c.l.b16 %v1242
  %v1322 = vunpack.c.h.b16 %v1242
  %v1323 = vunpack.c.l.b16 %v1243
  %v1324 = vunpack.c.h.b16 %v1243
  %v1325 = vunpack.c.l.b16 %v1244
  %v1326 = vunpack.c.h.b16 %v1244
  %v1327 = vunpack.c.l.b16 %v1245
  %v1328 = vunpack.c.h.b16 %v1245
  %v1329 = vunpack.c.l.b16 %v1246
  %v1330 = vunpack.c.h.b16 %v1246
  %v1331 = vunpack.c.l.b16 %v1247
  %v1332 = vunpack.c.h.b16 %v1247
  %v1333 = vunpack.c.l.b16 %v1248
  %v1334 = vunpack.c.h.b16 %v1248
  %v1335 = vunpack.c.l.b16 %v1249
  %v1336 = vunpack.c.h.b16 %v1249
  %v1337 = vunpack.c.l.b16 %v1250
  %v1338 = vunpack.c.h.b16 %v1250
  %v1339 = vunpack.c.l.b16 %v1251
  %v1340 = vunpack.c.h.b16 %v1251
  %v1341 = vunpack.c.l.b16 %v1252
  %v1342 = vunpack.c.h.b16 %v1252
  %v1343 = vunpack.c.l.b16 %v1253
  %v1344 = vunpack.c.h.b16 %v1253
  %v1345 = vunpack.c.l.b16 %v1254
  %v1346 = vunpack.c.h.b16 %v1254
  %v1347 = vunpack.c.l.b16 %v1255
  %v1348 = vunpack.c.h.b16 %v1255
  %v1349 = vunpack.c.l.b16 %v1256
  %v1350 = vunpack.c.h.b16 %v1256
  %v1351 = vunpack.c.l.b16 %v1257
  %v1352 = vunpack.c.h.b16 %v1257
  %v1353 = vunpack.c.l.b16 %v1258
  %v1354 = vunpack.c.h.b16 %v1258
  %v1355 = vunpack.c.l.b16 %v1259
  %v1356 = vunpack.c.h.b16 %v1259
  %v1357 = vunpack.c.l.b16 %v1260
  %v1358 = vunpack.c.h.b16 %v1260
  %v1359 = vunpack.c.l.b16 %v1261
  %v1360 = vunpack.c.h.b16 %v1261
  %v1361 = vunpack.c.l.b16 %v1262
  %v1362 = vunpack.c.h.b16 %v1262
  %v1363 = vunpack.c.l.b16 %v1263
  %v1364 = vunpack.c.h.b16 %v1263
  %v1365 = vunpack.c.l.b16 %v1264
  %v1366 = vunpack.c.h.b16 %v1264
  %v1367 = vunpack.c.l.b16 %v1265
  %v1368 = vunpack.c.h.b16 %v1265
  %v1369 = vunpack.c.l.b16 %v1266
  %v1370 = vunpack.c.h.b16 %v1266
  %v1371 = vunpack.c.l.b16 %v1267
  %v1372 = vunpack.c.h.b16 %v1267
  %v1373 = vunpack.c.l.b16 %v1268
  %v1374 = vunpack.c.h.b16 %v1268
  %v1375 = vunpack.c.l.b16 %v1269
  %v1376 = vunpack.c.h.b16 %v1269
  %v1377 = vunpack.c.l.b16 %v1270
  %v1378 = vunpack.c.h.b16 %v1270
  %v1379 = vpack.c.b16 %v1317, %v1315
  %v1380 = vpack.c.b16 %v1318, %v1316
  %v1381 = vpack.c.b16 %v1321, %v1319
  %v1382 = vpack.c.b16 %v1322, %v1320
  %v1383 = vpack.c.b16 %v1325, %v1323
  %v1384 = vpack.c.b16 %v1326, %v1324
  %v1385 = vpack.c.b16 %v1329, %v1327
  %v1386 = vpack.c.b16 %v1330, %v1328
  %v1387 = vpack.c.b16 %v1333, %v1331
  %v1388 = vpack.c.b16 %v1334, %v1332
  %v1389 = vpack.c.b16 %v1337, %v1335
  %v1390 = vpack.c.b16 %v1338, %v1336
  %v1391 = vpack.c.b16 %v1341, %v1339
  %v1392 = vpack.c.b16 %v1342, %v1340
  %v1393 = vpack.c.b16 %v1345, %v1343
  %v1394 = vpack.c.b16 %v1346, %v1344
  %v1395 = vpack.c.b16 %v1349, %v1347
  %v1396 = vpack.c.b16 %v1350, %v1348
  %v1397 = vpack.c.b16 %v1353, %v1351
  %v1398 = vpack.c.b16 %v1354, %v1352
  %v1399 = vpack.c.b16 %v1357, %v1355
  %v1400 = vpack.c.b16 %v1358, %v1356
  %v1401 = vpack.c.b16 %v1361, %v1359
  %v1402 = vpack.c.b16 %v1362, %v1360
  %v1403 = vpack.c.b16 %v1365, %v1363
  %v1404 = vpack.c.b16 %v1366, %v1364
  %v1405 = vpack.c.b16 %v1369, %v1367
  %v1406 = vpack.c.b16 %v1370, %v1368
  %v1407 = vpack.c.b16 %v1373, %v1371
  %v1408 = vpack.c.b16 %v1374, %v1372
  %v1409 = vpack.c.b16 %v1377, %v1375
  %v1410 = vpack.c.b16 %v1378, %v1376
  %1443 = vmatprep.subr.bf16.mxu0 %v1380
  %1444 = vmatpush1.bf16.msra.mxu0 %v1379
  %1445 = vmatprep.subr.bf16.mxu0 %v1382
  %1446 = vmatpush1.bf16.msra.mxu0 %v1381
  %1447 = vmatprep.subr.bf16.mxu0 %v1384
  %1448 = vmatpush1.bf16.msra.mxu0 %v1383
  %1449 = vmatprep.subr.bf16.mxu0 %v1386
  %1450 = vmatpush1.bf16.msra.mxu0 %v1385
  %1451 = vmatprep.subr.bf16.mxu0 %v1388
  %1452 = vmatpush1.bf16.msra.mxu0 %v1387
  %1453 = vmatprep.subr.bf16.mxu0 %v1390
  %1454 = vmatpush1.bf16.msra.mxu0 %v1389
  %1455 = vmatprep.subr.bf16.mxu0 %v1392
  %1456 = vmatpush1.bf16.msra.mxu0 %v1391
  %1457 = vmatprep.subr.bf16.mxu0 %v1394
  %1458 = vmatpush1.bf16.msra.mxu0 %v1393
  %1459 = vmatprep.subr.bf16.mxu0 %v1396
  %1460 = vmatpush1.bf16.msra.mxu0 %v1395
  %1461 = vmatprep.subr.bf16.mxu0 %v1398
  %1462 = vmatpush1.bf16.msra.mxu0 %v1397
  %1463 = vmatprep.subr.bf16.mxu0 %v1400
  %1464 = vmatpush1.bf16.msra.mxu0 %v1399
  %1465 = vmatprep.subr.bf16.mxu0 %v1402
  %1466 = vmatpush1.bf16.msra.mxu0 %v1401
  %1467 = vmatprep.subr.bf16.mxu0 %v1404
  %1468 = vmatpush1.bf16.msra.mxu0 %v1403
  %1469 = vmatprep.subr.bf16.mxu0 %v1406
  %1470 = vmatpush1.bf16.msra.mxu0 %v1405
  %1471 = vmatprep.subr.bf16.mxu0 %v1408
  %1472 = vmatpush1.bf16.msra.mxu0 %v1407
  %1473 = vmatprep.subr.bf16.mxu0 %v1410
  %1474 = vmatpush1.bf16.msra.mxu0 %v1409
  %1475 = vmatprep.mubr.bf16.mxu0 %v1280
  %1476 = vmatmul.mubr.bf16.gmra.mrb[0].mxu0 %v1279
  %v1477 = vpop.f32.mrb[0].mxu0
  %v1478 = vadd.f32 0.0, %v1477
  %v1479 = vpop.f32.mrb[0].mxu0
  %v1480 = vadd.f32 0.0, %v1479
  %v1481 = vpop.f32.mrb[0].mxu0
  %v1482 = vpop.f32.mrb[0].mxu0
  %1483 = vdwg.mxu0
  %v1486 = vunpack.c.l.b16 %v1182
  %v1487 = vunpack.c.h.b16 %v1182
  %v1488 = vunpack.c.l.b16 %v1183
  %v1489 = vunpack.c.h.b16 %v1183
  %v1490 = vpack.c.b16 %v1488, %v1486
  %v1491 = vpack.c.b16 %v1489, %v1487
  %v1493 = vshrl.u32 %v1490, 16
  %v1495 = vrot.slane %v1493, 2
  %v1496 = vshll.u32 %v1490, 16
  %v1498 = vrot.slane %v1496, 3
  %v1499 = vor.u32 %v1495, %v1498
  %v1501 = vshrl.u32 %v1491, 16
  %v1503 = vrot.slane %v1501, 2
  %v1504 = vshll.u32 %v1491, 16
  %v1506 = vrot.slane %v1504, 3
  %v1507 = vor.u32 %v1503, %v1506
  %v1542 = vunpack.c.l.b16 %v1184
  %v1543 = vunpack.c.h.b16 %v1184
  %v1544 = vunpack.c.l.b16 %v1185
  %v1545 = vunpack.c.h.b16 %v1185
  %v1546 = vunpack.c.l.b16 %v1186
  %v1547 = vunpack.c.h.b16 %v1186
  %v1548 = vunpack.c.l.b16 %v1187
  %v1549 = vunpack.c.h.b16 %v1187
  %v1550 = vunpack.c.l.b16 %v1188
  %v1551 = vunpack.c.h.b16 %v1188
  %v1552 = vunpack.c.l.b16 %v1189
  %v1553 = vunpack.c.h.b16 %v1189
  %v1554 = vunpack.c.l.b16 %v1190
  %v1555 = vunpack.c.h.b16 %v1190
  %v1556 = vunpack.c.l.b16 %v1191
  %v1557 = vunpack.c.h.b16 %v1191
  %v1558 = vunpack.c.l.b16 %v1192
  %v1559 = vunpack.c.h.b16 %v1192
  %v1560 = vunpack.c.l.b16 %v1193
  %v1561 = vunpack.c.h.b16 %v1193
  %v1562 = vunpack.c.l.b16 %v1194
  %v1563 = vunpack.c.h.b16 %v1194
  %v1564 = vunpack.c.l.b16 %v1195
  %v1565 = vunpack.c.h.b16 %v1195
  %v1566 = vunpack.c.l.b16 %v1196
  %v1567 = vunpack.c.h.b16 %v1196
  %v1568 = vunpack.c.l.b16 %v1197
  %v1569 = vunpack.c.h.b16 %v1197
  %v1570 = vunpack.c.l.b16 %v1198
  %v1571 = vunpack.c.h.b16 %v1198
  %v1572 = vunpack.c.l.b16 %v1199
  %v1573 = vunpack.c.h.b16 %v1199
  %v1574 = vunpack.c.l.b16 %v1200
  %v1575 = vunpack.c.h.b16 %v1200
  %v1576 = vunpack.c.l.b16 %v1201
  %v1577 = vunpack.c.h.b16 %v1201
  %v1578 = vunpack.c.l.b16 %v1202
  %v1579 = vunpack.c.h.b16 %v1202
  %v1580 = vunpack.c.l.b16 %v1203
  %v1581 = vunpack.c.h.b16 %v1203
  %v1582 = vunpack.c.l.b16 %v1204
  %v1583 = vunpack.c.h.b16 %v1204
  %v1584 = vunpack.c.l.b16 %v1205
  %v1585 = vunpack.c.h.b16 %v1205
  %v1586 = vunpack.c.l.b16 %v1206
  %v1587 = vunpack.c.h.b16 %v1206
  %v1588 = vunpack.c.l.b16 %v1207
  %v1589 = vunpack.c.h.b16 %v1207
  %v1590 = vunpack.c.l.b16 %v1208
  %v1591 = vunpack.c.h.b16 %v1208
  %v1592 = vunpack.c.l.b16 %v1209
  %v1593 = vunpack.c.h.b16 %v1209
  %v1594 = vunpack.c.l.b16 %v1210
  %v1595 = vunpack.c.h.b16 %v1210
  %v1596 = vunpack.c.l.b16 %v1211
  %v1597 = vunpack.c.h.b16 %v1211
  %v1598 = vunpack.c.l.b16 %v1212
  %v1599 = vunpack.c.h.b16 %v1212
  %v1600 = vunpack.c.l.b16 %v1213
  %v1601 = vunpack.c.h.b16 %v1213
  %v1602 = vunpack.c.l.b16 %v1214
  %v1603 = vunpack.c.h.b16 %v1214
  %v1604 = vunpack.c.l.b16 %v1215
  %v1605 = vunpack.c.h.b16 %v1215
  %v1606 = vpack.c.b16 %v1544, %v1542
  %v1607 = vpack.c.b16 %v1545, %v1543
  %v1608 = vpack.c.b16 %v1548, %v1546
  %v1609 = vpack.c.b16 %v1549, %v1547
  %v1610 = vpack.c.b16 %v1552, %v1550
  %v1611 = vpack.c.b16 %v1553, %v1551
  %v1612 = vpack.c.b16 %v1556, %v1554
  %v1613 = vpack.c.b16 %v1557, %v1555
  %v1614 = vpack.c.b16 %v1560, %v1558
  %v1615 = vpack.c.b16 %v1561, %v1559
  %v1616 = vpack.c.b16 %v1564, %v1562
  %v1617 = vpack.c.b16 %v1565, %v1563
  %v1618 = vpack.c.b16 %v1568, %v1566
  %v1619 = vpack.c.b16 %v1569, %v1567
  %v1620 = vpack.c.b16 %v1572, %v1570
  %v1621 = vpack.c.b16 %v1573, %v1571
  %v1622 = vpack.c.b16 %v1576, %v1574
  %v1623 = vpack.c.b16 %v1577, %v1575
  %v1624 = vpack.c.b16 %v1580, %v1578
  %v1625 = vpack.c.b16 %v1581, %v1579
  %v1626 = vpack.c.b16 %v1584, %v1582
  %v1627 = vpack.c.b16 %v1585, %v1583
  %v1628 = vpack.c.b16 %v1588, %v1586
  %v1629 = vpack.c.b16 %v1589, %v1587
  %v1630 = vpack.c.b16 %v1592, %v1590
  %v1631 = vpack.c.b16 %v1593, %v1591
  %v1632 = vpack.c.b16 %v1596, %v1594
  %v1633 = vpack.c.b16 %v1597, %v1595
  %v1634 = vpack.c.b16 %v1600, %v1598
  %v1635 = vpack.c.b16 %v1601, %v1599
  %v1636 = vpack.c.b16 %v1604, %v1602
  %v1637 = vpack.c.b16 %v1605, %v1603
  %1670 = vmatprep.subr.bf16.mxu0 %v1607
  %1671 = vmatpush1.bf16.msra.mxu0 %v1606
  %1672 = vmatprep.subr.bf16.mxu0 %v1609
  %1673 = vmatpush1.bf16.msra.mxu0 %v1608
  %1674 = vmatprep.subr.bf16.mxu0 %v1611
  %1675 = vmatpush1.bf16.msra.mxu0 %v1610
  %1676 = vmatprep.subr.bf16.mxu0 %v1613
  %1677 = vmatpush1.bf16.msra.mxu0 %v1612
  %1678 = vmatprep.subr.bf16.mxu0 %v1615
  %1679 = vmatpush1.bf16.msra.mxu0 %v1614
  %1680 = vmatprep.subr.bf16.mxu0 %v1617
  %1681 = vmatpush1.bf16.msra.mxu0 %v1616
  %1682 = vmatprep.subr.bf16.mxu0 %v1619
  %1683 = vmatpush1.bf16.msra.mxu0 %v1618
  %1684 = vmatprep.subr.bf16.mxu0 %v1621
  %1685 = vmatpush1.bf16.msra.mxu0 %v1620
  %1686 = vmatprep.subr.bf16.mxu0 %v1623
  %1687 = vmatpush1.bf16.msra.mxu0 %v1622
  %1688 = vmatprep.subr.bf16.mxu0 %v1625
  %1689 = vmatpush1.bf16.msra.mxu0 %v1624
  %1690 = vmatprep.subr.bf16.mxu0 %v1627
  %1691 = vmatpush1.bf16.msra.mxu0 %v1626
  %1692 = vmatprep.subr.bf16.mxu0 %v1629
  %1693 = vmatpush1.bf16.msra.mxu0 %v1628
  %1694 = vmatprep.subr.bf16.mxu0 %v1631
  %1695 = vmatpush1.bf16.msra.mxu0 %v1630
  %1696 = vmatprep.subr.bf16.mxu0 %v1633
  %1697 = vmatpush1.bf16.msra.mxu0 %v1632
  %1698 = vmatprep.subr.bf16.mxu0 %v1635
  %1699 = vmatpush1.bf16.msra.mxu0 %v1634
  %1700 = vmatprep.subr.bf16.mxu0 %v1637
  %1701 = vmatpush1.bf16.msra.mxu0 %v1636
  %1702 = vmatprep.mubr.bf16.mxu0 %v1507
  %1703 = vmatmul.mubr.bf16.gmra.mrb[0].mxu0 %v1499
  %v1704 = vpop.f32.mrb[0].mxu0
  %v1705 = vadd.f32 %v1478, %v1704
  %v1706 = vpop.f32.mrb[0].mxu0
  %v1707 = vadd.f32 %v1480, %v1706
  %v1708 = vpop.f32.mrb[0].mxu0
  %v1709 = vpop.f32.mrb[0].mxu0
  %1710 = vdwg.mxu0
  %v1711 = vld [vmem:[#allocation2 + $0x8] sm:$0xff]
  %s1712 = scalar_lea.vmem %s5, 8
  %v1713 = vld [vmem:[%s1712] sm:$0xf]
  %1715 = vset.pattern.permute.xlu0 0
  %1716 = vperm.xlu0 %1715, %v1713
  %v1717 = vpop.permute.xlu0 %1716
  %v1720 = vunpack.c.l.s4 839922192
  %v1721 = vunpack.c.0.s8 %v1720
  %v1722 = vlaneseq
  %v1723 = vshrl.u32 %v1722, 7
  %v1724 = vsub.s32 %v1721, %v1723
  %v1725 = vrot.slane %v1717, %v1724
  %v1727 = vshll.u32 %v1725, 16
  %v1729 = vrot.slane %v1727, 5
  %v1730 = vshrl.u32 %v1725, 16
  %v1732 = vrot.slane %v1730, 4
  %v1733 = vor.u32 %v1732, %v1729
  %v1734 = vrot.slane %v1733, 4
  %v1737 = vmul.bf16 %v1216, %v1729
  %v1738 = vmul.bf16 %v1711, %v1734
  %s1739 = scalar_lea.vmem %s3, 512
  %v1740 = vld [vmem:[%s1739] sm:$0xff]
  %v1741 = vld [vmem:[%s1739 + $0x8] sm:$0xff]
  %v1742 = vld [vmem:[%s1739 + $0x10] sm:$0xff]
  %v1743 = vld [vmem:[%s1739 + $0x18] sm:$0xff]
  %v1744 = vld [vmem:[%s1739 + $0x20] sm:$0xff]
  %v1745 = vld [vmem:[%s1739 + $0x28] sm:$0xff]
  %v1746 = vld [vmem:[%s1739 + $0x30] sm:$0xff]
  %v1747 = vld [vmem:[%s1739 + $0x38] sm:$0xff]
  %v1748 = vld [vmem:[%s1739 + $0x40] sm:$0xff]
  %v1749 = vld [vmem:[%s1739 + $0x48] sm:$0xff]
  %v1750 = vld [vmem:[%s1739 + $0x50] sm:$0xff]
  %v1751 = vld [vmem:[%s1739 + $0x58] sm:$0xff]
  %v1752 = vld [vmem:[%s1739 + $0x60] sm:$0xff]
  %v1753 = vld [vmem:[%s1739 + $0x68] sm:$0xff]
  %v1754 = vld [vmem:[%s1739 + $0x70] sm:$0xff]
  %v1755 = vld [vmem:[%s1739 + $0x78] sm:$0xff]
  %v1756 = vld [vmem:[%s1739 + $0x80] sm:$0xff]
  %v1757 = vld [vmem:[%s1739 + $0x88] sm:$0xff]
  %v1758 = vld [vmem:[%s1739 + $0x90] sm:$0xff]
  %v1759 = vld [vmem:[%s1739 + $0x98] sm:$0xff]
  %v1760 = vld [vmem:[%s1739 + $0xa0] sm:$0xff]
  %v1761 = vld [vmem:[%s1739 + $0xa8] sm:$0xff]
  %v1762 = vld [vmem:[%s1739 + $0xb0] sm:$0xff]
  %v1763 = vld [vmem:[%s1739 + $0xb8] sm:$0xff]
  %v1764 = vld [vmem:[%s1739 + $0xc0] sm:$0xff]
  %v1765 = vld [vmem:[%s1739 + $0xc8] sm:$0xff]
  %v1766 = vld [vmem:[%s1739 + $0xd0] sm:$0xff]
  %v1767 = vld [vmem:[%s1739 + $0xd8] sm:$0xff]
  %v1768 = vld [vmem:[%s1739 + $0xe0] sm:$0xff]
  %v1769 = vld [vmem:[%s1739 + $0xe8] sm:$0xff]
  %v1770 = vld [vmem:[%s1739 + $0xf0] sm:$0xff]
  %v1771 = vld [vmem:[%s1739 + $0xf8] sm:$0xff]
  %v1774 = vunpack.c.l.b16 %v1737
  %v1775 = vunpack.c.h.b16 %v1737
  %v1776 = vunpack.c.l.b16 %v1738
  %v1777 = vunpack.c.h.b16 %v1738
  %v1778 = vpack.c.b16 %v1776, %v1774
  %v1779 = vpack.c.b16 %v1777, %v1775
  %v1781 = vshrl.u32 %v1778, 16
  %v1783 = vrot.slane %v1781, 3
  %v1784 = vshll.u32 %v1778, 16
  %v1786 = vrot.slane %v1784, 4
  %v1787 = vor.u32 %v1783, %v1786
  %v1789 = vshrl.u32 %v1779, 16
  %v1791 = vrot.slane %v1789, 3
  %v1792 = vshll.u32 %v1779, 16
  %v1794 = vrot.slane %v1792, 4
  %v1795 = vor.u32 %v1791, %v1794
  %v1830 = vunpack.c.l.b16 %v1740
  %v1831 = vunpack.c.h.b16 %v1740
  %v1832 = vunpack.c.l.b16 %v1741
  %v1833 = vunpack.c.h.b16 %v1741
  %v1834 = vunpack.c.l.b16 %v1742
  %v1835 = vunpack.c.h.b16 %v1742
  %v1836 = vunpack.c.l.b16 %v1743
  %v1837 = vunpack.c.h.b16 %v1743
  %v1838 = vunpack.c.l.b16 %v1744
  %v1839 = vunpack.c.h.b16 %v1744
  %v1840 = vunpack.c.l.b16 %v1745
  %v1841 = vunpack.c.h.b16 %v1745
  %v1842 = vunpack.c.l.b16 %v1746
  %v1843 = vunpack.c.h.b16 %v1746
  %v1844 = vunpack.c.l.b16 %v1747
  %v1845 = vunpack.c.h.b16 %v1747
  %v1846 = vunpack.c.l.b16 %v1748
  %v1847 = vunpack.c.h.b16 %v1748
  %v1848 = vunpack.c.l.b16 %v1749
  %v1849 = vunpack.c.h.b16 %v1749
  %v1850 = vunpack.c.l.b16 %v1750
  %v1851 = vunpack.c.h.b16 %v1750
  %v1852 = vunpack.c.l.b16 %v1751
  %v1853 = vunpack.c.h.b16 %v1751
  %v1854 = vunpack.c.l.b16 %v1752
  %v1855 = vunpack.c.h.b16 %v1752
  %v1856 = vunpack.c.l.b16 %v1753
  %v1857 = vunpack.c.h.b16 %v1753
  %v1858 = vunpack.c.l.b16 %v1754
  %v1859 = vunpack.c.h.b16 %v1754
  %v1860 = vunpack.c.l.b16 %v1755
  %v1861 = vunpack.c.h.b16 %v1755
  %v1862 = vunpack.c.l.b16 %v1756
  %v1863 = vunpack.c.h.b16 %v1756
  %v1864 = vunpack.c.l.b16 %v1757
  %v1865 = vunpack.c.h.b16 %v1757
  %v1866 = vunpack.c.l.b16 %v1758
  %v1867 = vunpack.c.h.b16 %v1758
  %v1868 = vunpack.c.l.b16 %v1759
  %v1869 = vunpack.c.h.b16 %v1759
  %v1870 = vunpack.c.l.b16 %v1760
  %v1871 = vunpack.c.h.b16 %v1760
  %v1872 = vunpack.c.l.b16 %v1761
  %v1873 = vunpack.c.h.b16 %v1761
  %v1874 = vunpack.c.l.b16 %v1762
  %v1875 = vunpack.c.h.b16 %v1762
  %v1876 = vunpack.c.l.b16 %v1763
  %v1877 = vunpack.c.h.b16 %v1763
  %v1878 = vunpack.c.l.b16 %v1764
  %v1879 = vunpack.c.h.b16 %v1764
  %v1880 = vunpack.c.l.b16 %v1765
  %v1881 = vunpack.c.h.b16 %v1765
  %v1882 = vunpack.c.l.b16 %v1766
  %v1883 = vunpack.c.h.b16 %v1766
  %v1884 = vunpack.c.l.b16 %v1767
  %v1885 = vunpack.c.h.b16 %v1767
  %v1886 = vunpack.c.l.b16 %v1768
  %v1887 = vunpack.c.h.b16 %v1768
  %v1888 = vunpack.c.l.b16 %v1769
  %v1889 = vunpack.c.h.b16 %v1769
  %v1890 = vunpack.c.l.b16 %v1770
  %v1891 = vunpack.c.h.b16 %v1770
  %v1892 = vunpack.c.l.b16 %v1771
  %v1893 = vunpack.c.h.b16 %v1771
  %v1894 = vpack.c.b16 %v1832, %v1830
  %v1895 = vpack.c.b16 %v1833, %v1831
  %v1896 = vpack.c.b16 %v1836, %v1834
  %v1897 = vpack.c.b16 %v1837, %v1835
  %v1898 = vpack.c.b16 %v1840, %v1838
  %v1899 = vpack.c.b16 %v1841, %v1839
  %v1900 = vpack.c.b16 %v1844, %v1842
  %v1901 = vpack.c.b16 %v1845, %v1843
  %v1902 = vpack.c.b16 %v1848, %v1846
  %v1903 = vpack.c.b16 %v1849, %v1847
  %v1904 = vpack.c.b16 %v1852, %v1850
  %v1905 = vpack.c.b16 %v1853, %v1851
  %v1906 = vpack.c.b16 %v1856, %v1854
  %v1907 = vpack.c.b16 %v1857, %v1855
  %v1908 = vpack.c.b16 %v1860, %v1858
  %v1909 = vpack.c.b16 %v1861, %v1859
  %v1910 = vpack.c.b16 %v1864, %v1862
  %v1911 = vpack.c.b16 %v1865, %v1863
  %v1912 = vpack.c.b16 %v1868, %v1866
  %v1913 = vpack.c.b16 %v1869, %v1867
  %v1914 = vpack.c.b16 %v1872, %v1870
  %v1915 = vpack.c.b16 %v1873, %v1871
  %v1916 = vpack.c.b16 %v1876, %v1874
  %v1917 = vpack.c.b16 %v1877, %v1875
  %v1918 = vpack.c.b16 %v1880, %v1878
  %v1919 = vpack.c.b16 %v1881, %v1879
  %v1920 = vpack.c.b16 %v1884, %v1882
  %v1921 = vpack.c.b16 %v1885, %v1883
  %v1922 = vpack.c.b16 %v1888, %v1886
  %v1923 = vpack.c.b16 %v1889, %v1887
  %v1924 = vpack.c.b16 %v1892, %v1890
  %v1925 = vpack.c.b16 %v1893, %v1891
  %1958 = vmatprep.subr.bf16.mxu0 %v1895
  %1959 = vmatpush1.bf16.msra.mxu0 %v1894
  %1960 = vmatprep.subr.bf16.mxu0 %v1897
  %1961 = vmatpush1.bf16.msra.mxu0 %v1896
  %1962 = vmatprep.subr.bf16.mxu0 %v1899
  %1963 = vmatpush1.bf16.msra.mxu0 %v1898
  %1964 = vmatprep.subr.bf16.mxu0 %v1901
  %1965 = vmatpush1.bf16.msra.mxu0 %v1900
  %1966 = vmatprep.subr.bf16.mxu0 %v1903
  %1967 = vmatpush1.bf16.msra.mxu0 %v1902
  %1968 = vmatprep.subr.bf16.mxu0 %v1905
  %1969 = vmatpush1.bf16.msra.mxu0 %v1904
  %1970 = vmatprep.subr.bf16.mxu0 %v1907
  %1971 = vmatpush1.bf16.msra.mxu0 %v1906
  %1972 = vmatprep.subr.bf16.mxu0 %v1909
  %1973 = vmatpush1.bf16.msra.mxu0 %v1908
  %1974 = vmatprep.subr.bf16.mxu0 %v1911
  %1975 = vmatpush1.bf16.msra.mxu0 %v1910
  %1976 = vmatprep.subr.bf16.mxu0 %v1913
  %1977 = vmatpush1.bf16.msra.mxu0 %v1912
  %1978 = vmatprep.subr.bf16.mxu0 %v1915
  %1979 = vmatpush1.bf16.msra.mxu0 %v1914
  %1980 = vmatprep.subr.bf16.mxu0 %v1917
  %1981 = vmatpush1.bf16.msra.mxu0 %v1916
  %1982 = vmatprep.subr.bf16.mxu0 %v1919
  %1983 = vmatpush1.bf16.msra.mxu0 %v1918
  %1984 = vmatprep.subr.bf16.mxu0 %v1921
  %1985 = vmatpush1.bf16.msra.mxu0 %v1920
  %1986 = vmatprep.subr.bf16.mxu0 %v1923
  %1987 = vmatpush1.bf16.msra.mxu0 %v1922
  %1988 = vmatprep.subr.bf16.mxu0 %v1925
  %1989 = vmatpush1.bf16.msra.mxu0 %v1924
  %1990 = vmatprep.mubr.bf16.mxu0 %v1795
  %1991 = vmatmul.mubr.bf16.gmra.mrb[0].mxu0 %v1787
  %v1992 = vpop.f32.mrb[0].mxu0
  %v1993 = vadd.f32 0.0, %v1992
  %v1994 = vpop.f32.mrb[0].mxu0
  %v1995 = vadd.f32 0.0, %v1994
  %v1996 = vpop.f32.mrb[0].mxu0
  %v1997 = vpop.f32.mrb[0].mxu0
  %1998 = vdwg.mxu0
  %v1999 = vadd.f32 %v1705, %v1993
  %v2000 = vadd.f32 %v1707, %v1995
  %s2001 = scalar_lea.vmem %s5, 12
  %v2002 = vld [vmem:[%s2001] sm:$0xf]
  %2004 = vset.pattern.permute.xlu0 0
  %2005 = vperm.xlu0 %2004, %v2002
  %v2006 = vpop.permute.xlu0 %2005
  %v2009 = vunpack.c.l.s4 839922192
  %v2010 = vunpack.c.0.s8 %v2009
  %v2011 = vlaneseq
  %v2012 = vshrl.u32 %v2011, 7
  %v2013 = vsub.s32 %v2010, %v2012
  %v2014 = vrot.slane %v2006, %v2013
  %v2016 = vshll.u32 %v2014, 16
  %v2018 = vrot.slane %v2016, 5
  %v2019 = vshrl.u32 %v2014, 16
  %v2021 = vrot.slane %v2019, 4
  %v2022 = vor.u32 %v2021, %v2018
  %v2023 = vrot.slane %v2022, 4
  %v2026 = vmul.bf16 %v1216, %v2018
  %v2027 = vmul.bf16 %v1711, %v2023
  %s2028 = scalar_lea.vmem %s3, 768
  %v2029 = vld [vmem:[%s2028] sm:$0xff]
  %v2030 = vld [vmem:[%s2028 + $0x8] sm:$0xff]
  %v2031 = vld [vmem:[%s2028 + $0x10] sm:$0xff]
  %v2032 = vld [vmem:[%s2028 + $0x18] sm:$0xff]
  %v2033 = vld [vmem:[%s2028 + $0x20] sm:$0xff]
  %v2034 = vld [vmem:[%s2028 + $0x28] sm:$0xff]
  %v2035 = vld [vmem:[%s2028 + $0x30] sm:$0xff]
  %v2036 = vld [vmem:[%s2028 + $0x38] sm:$0xff]
  %v2037 = vld [vmem:[%s2028 + $0x40] sm:$0xff]
  %v2038 = vld [vmem:[%s2028 + $0x48] sm:$0xff]
  %v2039 = vld [vmem:[%s2028 + $0x50] sm:$0xff]
  %v2040 = vld [vmem:[%s2028 + $0x58] sm:$0xff]
  %v2041 = vld [vmem:[%s2028 + $0x60] sm:$0xff]
  %v2042 = vld [vmem:[%s2028 + $0x68] sm:$0xff]
  %v2043 = vld [vmem:[%s2028 + $0x70] sm:$0xff]
  %v2044 = vld [vmem:[%s2028 + $0x78] sm:$0xff]
  %v2045 = vld [vmem:[%s2028 + $0x80] sm:$0xff]
  %v2046 = vld [vmem:[%s2028 + $0x88] sm:$0xff]
  %v2047 = vld [vmem:[%s2028 + $0x90] sm:$0xff]
  %v2048 = vld [vmem:[%s2028 + $0x98] sm:$0xff]
  %v2049 = vld [vmem:[%s2028 + $0xa0] sm:$0xff]
  %v2050 = vld [vmem:[%s2028 + $0xa8] sm:$0xff]
  %v2051 = vld [vmem:[%s2028 + $0xb0] sm:$0xff]
  %v2052 = vld [vmem:[%s2028 + $0xb8] sm:$0xff]
  %v2053 = vld [vmem:[%s2028 + $0xc0] sm:$0xff]
  %v2054 = vld [vmem:[%s2028 + $0xc8] sm:$0xff]
  %v2055 = vld [vmem:[%s2028 + $0xd0] sm:$0xff]
  %v2056 = vld [vmem:[%s2028 + $0xd8] sm:$0xff]
  %v2057 = vld [vmem:[%s2028 + $0xe0] sm:$0xff]
  %v2058 = vld [vmem:[%s2028 + $0xe8] sm:$0xff]
  %v2059 = vld [vmem:[%s2028 + $0xf0] sm:$0xff]
  %v2060 = vld [vmem:[%s2028 + $0xf8] sm:$0xff]
  %v2063 = vunpack.c.l.b16 %v2026
  %v2064 = vunpack.c.h.b16 %v2026
  %v2065 = vunpack.c.l.b16 %v2027
  %v2066 = vunpack.c.h.b16 %v2027
  %v2067 = vpack.c.b16 %v2065, %v2063
  %v2068 = vpack.c.b16 %v2066, %v2064
  %v2070 = vshrl.u32 %v2067, 16
  %v2072 = vrot.slane %v2070, 3
  %v2073 = vshll.u32 %v2067, 16
  %v2075 = vrot.slane %v2073, 4
  %v2076 = vor.u32 %v2072, %v2075
  %v2078 = vshrl.u32 %v2068, 16
  %v2080 = vrot.slane %v2078, 3
  %v2081 = vshll.u32 %v2068, 16
  %v2083 = vrot.slane %v2081, 4
  %v2084 = vor.u32 %v2080, %v2083
  %v2119 = vunpack.c.l.b16 %v2029
  %v2120 = vunpack.c.h.b16 %v2029
  %v2121 = vunpack.c.l.b16 %v2030
  %v2122 = vunpack.c.h.b16 %v2030
  %v2123 = vunpack.c.l.b16 %v2031
  %v2124 = vunpack.c.h.b16 %v2031
  %v2125 = vunpack.c.l.b16 %v2032
  %v2126 = vunpack.c.h.b16 %v2032
  %v2127 = vunpack.c.l.b16 %v2033
  %v2128 = vunpack.c.h.b16 %v2033
  %v2129 = vunpack.c.l.b16 %v2034
  %v2130 = vunpack.c.h.b16 %v2034
  %v2131 = vunpack.c.l.b16 %v2035
  %v2132 = vunpack.c.h.b16 %v2035
  %v2133 = vunpack.c.l.b16 %v2036
  %v2134 = vunpack.c.h.b16 %v2036
  %v2135 = vunpack.c.l.b16 %v2037
  %v2136 = vunpack.c.h.b16 %v2037
  %v2137 = vunpack.c.l.b16 %v2038
  %v2138 = vunpack.c.h.b16 %v2038
  %v2139 = vunpack.c.l.b16 %v2039
  %v2140 = vunpack.c.h.b16 %v2039
  %v2141 = vunpack.c.l.b16 %v2040
  %v2142 = vunpack.c.h.b16 %v2040
  %v2143 = vunpack.c.l.b16 %v2041
  %v2144 = vunpack.c.h.b16 %v2041
  %v2145 = vunpack.c.l.b16 %v2042
  %v2146 = vunpack.c.h.b16 %v2042
  %v2147 = vunpack.c.l.b16 %v2043
  %v2148 = vunpack.c.h.b16 %v2043
  %v2149 = vunpack.c.l.b16 %v2044
  %v2150 = vunpack.c.h.b16 %v2044
  %v2151 = vunpack.c.l.b16 %v2045
  %v2152 = vunpack.c.h.b16 %v2045
  %v2153 = vunpack.c.l.b16 %v2046
  %v2154 = vunpack.c.h.b16 %v2046
  %v2155 = vunpack.c.l.b16 %v2047
  %v2156 = vunpack.c.h.b16 %v2047
  %v2157 = vunpack.c.l.b16 %v2048
  %v2158 = vunpack.c.h.b16 %v2048
  %v2159 = vunpack.c.l.b16 %v2049
  %v2160 = vunpack.c.h.b16 %v2049
  %v2161 = vunpack.c.l.b16 %v2050
  %v2162 = vunpack.c.h.b16 %v2050
  %v2163 = vunpack.c.l.b16 %v2051
  %v2164 = vunpack.c.h.b16 %v2051
  %v2165 = vunpack.c.l.b16 %v2052
  %v2166 = vunpack.c.h.b16 %v2052
  %v2167 = vunpack.c.l.b16 %v2053
  %v2168 = vunpack.c.h.b16 %v2053
  %v2169 = vunpack.c.l.b16 %v2054
  %v2170 = vunpack.c.h.b16 %v2054
  %v2171 = vunpack.c.l.b16 %v2055
  %v2172 = vunpack.c.h.b16 %v2055
  %v2173 = vunpack.c.l.b16 %v2056
  %v2174 = vunpack.c.h.b16 %v2056
  %v2175 = vunpack.c.l.b16 %v2057
  %v2176 = vunpack.c.h.b16 %v2057
  %v2177 = vunpack.c.l.b16 %v2058
  %v2178 = vunpack.c.h.b16 %v2058
  %v2179 = vunpack.c.l.b16 %v2059
  %v2180 = vunpack.c.h.b16 %v2059
  %v2181 = vunpack.c.l.b16 %v2060
  %v2182 = vunpack.c.h.b16 %v2060
  %v2183 = vpack.c.b16 %v2121, %v2119
  %v2184 = vpack.c.b16 %v2122, %v2120
  %v2185 = vpack.c.b16 %v2125, %v2123
  %v2186 = vpack.c.b16 %v2126, %v2124
  %v2187 = vpack.c.b16 %v2129, %v2127
  %v2188 = vpack.c.b16 %v2130, %v2128
  %v2189 = vpack.c.b16 %v2133, %v2131
  %v2190 = vpack.c.b16 %v2134, %v2132
  %v2191 = vpack.c.b16 %v2137, %v2135
  %v2192 = vpack.c.b16 %v2138, %v2136
  %v2193 = vpack.c.b16 %v2141, %v2139
  %v2194 = vpack.c.b16 %v2142, %v2140
  %v2195 = vpack.c.b16 %v2145, %v2143
  %v2196 = vpack.c.b16 %v2146, %v2144
  %v2197 = vpack.c.b16 %v2149, %v2147
  %v2198 = vpack.c.b16 %v2150, %v2148
  %v2199 = vpack.c.b16 %v2153, %v2151
  %v2200 = vpack.c.b16 %v2154, %v2152
  %v2201 = vpack.c.b16 %v2157, %v2155
  %v2202 = vpack.c.b16 %v2158, %v2156
  %v2203 = vpack.c.b16 %v2161, %v2159
  %v2204 = vpack.c.b16 %v2162, %v2160
  %v2205 = vpack.c.b16 %v2165, %v2163
  %v2206 = vpack.c.b16 %v2166, %v2164
  %v2207 = vpack.c.b16 %v2169, %v2167
  %v2208 = vpack.c.b16 %v2170, %v2168
  %v2209 = vpack.c.b16 %v2173, %v2171
  %v2210 = vpack.c.b16 %v2174, %v2172
  %v2211 = vpack.c.b16 %v2177, %v2175
  %v2212 = vpack.c.b16 %v2178, %v2176
  %v2213 = vpack.c.b16 %v2181, %v2179
  %v2214 = vpack.c.b16 %v2182, %v2180
  %2247 = vmatprep.subr.bf16.mxu0 %v2184
  %2248 = vmatpush1.bf16.msra.mxu0 %v2183
  %2249 = vmatprep.subr.bf16.mxu0 %v2186
  %2250 = vmatpush1.bf16.msra.mxu0 %v2185
  %2251 = vmatprep.subr.bf16.mxu0 %v2188
  %2252 = vmatpush1.bf16.msra.mxu0 %v2187
  %2253 = vmatprep.subr.bf16.mxu0 %v2190
  %2254 = vmatpush1.bf16.msra.mxu0 %v2189
  %2255 = vmatprep.subr.bf16.mxu0 %v2192
  %2256 = vmatpush1.bf16.msra.mxu0 %v2191
  %2257 = vmatprep.subr.bf16.mxu0 %v2194
  %2258 = vmatpush1.bf16.msra.mxu0 %v2193
  %2259 = vmatprep.subr.bf16.mxu0 %v2196
  %2260 = vmatpush1.bf16.msra.mxu0 %v2195
  %2261 = vmatprep.subr.bf16.mxu0 %v2198
  %2262 = vmatpush1.bf16.msra.mxu0 %v2197
  %2263 = vmatprep.subr.bf16.mxu0 %v2200
  %2264 = vmatpush1.bf16.msra.mxu0 %v2199
  %2265 = vmatprep.subr.bf16.mxu0 %v2202
  %2266 = vmatpush1.bf16.msra.mxu0 %v2201
  %2267 = vmatprep.subr.bf16.mxu0 %v2204
  %2268 = vmatpush1.bf16.msra.mxu0 %v2203
  %2269 = vmatprep.subr.bf16.mxu0 %v2206
  %2270 = vmatpush1.bf16.msra.mxu0 %v2205
  %2271 = vmatprep.subr.bf16.mxu0 %v2208
  %2272 = vmatpush1.bf16.msra.mxu0 %v2207
  %2273 = vmatprep.subr.bf16.mxu0 %v2210
  %2274 = vmatpush1.bf16.msra.mxu0 %v2209
  %2275 = vmatprep.subr.bf16.mxu0 %v2212
  %2276 = vmatpush1.bf16.msra.mxu0 %v2211
  %2277 = vmatprep.subr.bf16.mxu0 %v2214
  %2278 = vmatpush1.bf16.msra.mxu0 %v2213
  %2279 = vmatprep.mubr.bf16.mxu0 %v2084
  %2280 = vmatmul.mubr.bf16.gmra.mrb[0].mxu0 %v2076
  %v2281 = vpop.f32.mrb[0].mxu0
  %v2282 = vadd.f32 0.0, %v2281
  %v2283 = vpop.f32.mrb[0].mxu0
  %v2284 = vadd.f32 0.0, %v2283
  %v2285 = vpop.f32.mrb[0].mxu0
  %v2286 = vpop.f32.mrb[0].mxu0
  %2287 = vdwg.mxu0
  %v2288 = vadd.f32 %v1999, %v2282
  %v2289 = vadd.f32 %v2000, %v2284
  %s2290 = scalar_lea.vmem %s3, 1024
  %v2291 = vld [vmem:[%s2290] sm:$0xff]
  %v2292 = vld [vmem:[%s2290 + $0x8] sm:$0xff]
  %v2293 = vld [vmem:[%s2290 + $0x10] sm:$0xff]
  %v2294 = vld [vmem:[%s2290 + $0x18] sm:$0xff]
  %v2295 = vld [vmem:[%s2290 + $0x20] sm:$0xff]
  %v2296 = vld [vmem:[%s2290 + $0x28] sm:$0xff]
  %v2297 = vld [vmem:[%s2290 + $0x30] sm:$0xff]
  %v2298 = vld [vmem:[%s2290 + $0x38] sm:$0xff]
  %v2299 = vld [vmem:[%s2290 + $0x40] sm:$0xff]
  %v2300 = vld [vmem:[%s2290 + $0x48] sm:$0xff]
  %v2301 = vld [vmem:[%s2290 + $0x50] sm:$0xff]
  %v2302 = vld [vmem:[%s2290 + $0x58] sm:$0xff]
  %v2303 = vld [vmem:[%s2290 + $0x60] sm:$0xff]
  %v2304 = vld [vmem:[%s2290 + $0x68] sm:$0xff]
  %v2305 = vld [vmem:[%s2290 + $0x70] sm:$0xff]
  %v2306 = vld [vmem:[%s2290 + $0x78] sm:$0xff]
  %v2307 = vld [vmem:[%s2290 + $0x80] sm:$0xff]
  %v2308 = vld [vmem:[%s2290 + $0x88] sm:$0xff]
  %v2309 = vld [vmem:[%s2290 + $0x90] sm:$0xff]
  %v2310 = vld [vmem:[%s2290 + $0x98] sm:$0xff]
  %v2311 = vld [vmem:[%s2290 + $0xa0] sm:$0xff]
  %v2312 = vld [vmem:[%s2290 + $0xa8] sm:$0xff]
  %v2313 = vld [vmem:[%s2290 + $0xb0] sm:$0xff]
  %v2314 = vld [vmem:[%s2290 + $0xb8] sm:$0xff]
  %v2315 = vld [vmem:[%s2290 + $0xc0] sm:$0xff]
  %v2316 = vld [vmem:[%s2290 + $0xc8] sm:$0xff]
  %v2317 = vld [vmem:[%s2290 + $0xd0] sm:$0xff]
  %v2318 = vld [vmem:[%s2290 + $0xd8] sm:$0xff]
  %v2319 = vld [vmem:[%s2290 + $0xe0] sm:$0xff]
  %v2320 = vld [vmem:[%s2290 + $0xe8] sm:$0xff]
  %v2321 = vld [vmem:[%s2290 + $0xf0] sm:$0xff]
  %v2322 = vld [vmem:[%s2290 + $0xf8] sm:$0xff]
  %v2324 = vunpack.c.l.b16 %v1711
  %v2325 = vunpack.c.h.b16 %v1711
  %v2326 = vpack.c.b16 %v2324, %v2324
  %v2327 = vpack.c.b16 %v2325, %v2325
  %v2362 = vunpack.c.l.b16 %v2291
  %v2363 = vunpack.c.h.b16 %v2291
  %v2364 = vunpack.c.l.b16 %v2292
  %v2365 = vunpack.c.h.b16 %v2292
  %v2366 = vunpack.c.l.b16 %v2293
  %v2367 = vunpack.c.h.b16 %v2293
  %v2368 = vunpack.c.l.b16 %v2294
  %v2369 = vunpack.c.h.b16 %v2294
  %v2370 = vunpack.c.l.b16 %v2295
  %v2371 = vunpack.c.h.b16 %v2295
  %v2372 = vunpack.c.l.b16 %v2296
  %v2373 = vunpack.c.h.b16 %v2296
  %v2374 = vunpack.c.l.b16 %v2297
  %v2375 = vunpack.c.h.b16 %v2297
  %v2376 = vunpack.c.l.b16 %v2298
  %v2377 = vunpack.c.h.b16 %v2298
  %v2378 = vunpack.c.l.b16 %v2299
  %v2379 = vunpack.c.h.b16 %v2299
  %v2380 = vunpack.c.l.b16 %v2300
  %v2381 = vunpack.c.h.b16 %v2300
  %v2382 = vunpack.c.l.b16 %v2301
  %v2383 = vunpack.c.h.b16 %v2301
  %v2384 = vunpack.c.l.b16 %v2302
  %v2385 = vunpack.c.h.b16 %v2302
  %v2386 = vunpack.c.l.b16 %v2303
  %v2387 = vunpack.c.h.b16 %v2303
  %v2388 = vunpack.c.l.b16 %v2304
  %v2389 = vunpack.c.h.b16 %v2304
  %v2390 = vunpack.c.l.b16 %v2305
  %v2391 = vunpack.c.h.b16 %v2305
  %v2392 = vunpack.c.l.b16 %v2306
  %v2393 = vunpack.c.h.b16 %v2306
  %v2394 = vunpack.c.l.b16 %v2307
  %v2395 = vunpack.c.h.b16 %v2307
  %v2396 = vunpack.c.l.b16 %v2308
  %v2397 = vunpack.c.h.b16 %v2308
  %v2398 = vunpack.c.l.b16 %v2309
  %v2399 = vunpack.c.h.b16 %v2309
  %v2400 = vunpack.c.l.b16 %v2310
  %v2401 = vunpack.c.h.b16 %v2310
  %v2402 = vunpack.c.l.b16 %v2311
  %v2403 = vunpack.c.h.b16 %v2311
  %v2404 = vunpack.c.l.b16 %v2312
  %v2405 = vunpack.c.h.b16 %v2312
  %v2406 = vunpack.c.l.b16 %v2313
  %v2407 = vunpack.c.h.b16 %v2313
  %v2408 = vunpack.c.l.b16 %v2314
  %v2409 = vunpack.c.h.b16 %v2314
  %v2410 = vunpack.c.l.b16 %v2315
  %v2411 = vunpack.c.h.b16 %v2315
  %v2412 = vunpack.c.l.b16 %v2316
  %v2413 = vunpack.c.h.b16 %v2316
  %v2414 = vunpack.c.l.b16 %v2317
  %v2415 = vunpack.c.h.b16 %v2317
  %v2416 = vunpack.c.l.b16 %v2318
  %v2417 = vunpack.c.h.b16 %v2318
  %v2418 = vunpack.c.l.b16 %v2319
  %v2419 = vunpack.c.h.b16 %v2319
  %v2420 = vunpack.c.l.b16 %v2320
  %v2421 = vunpack.c.h.b16 %v2320
  %v2422 = vunpack.c.l.b16 %v2321
  %v2423 = vunpack.c.h.b16 %v2321
  %v2424 = vunpack.c.l.b16 %v2322
  %v2425 = vunpack.c.h.b16 %v2322
  %v2426 = vpack.c.b16 %v2364, %v2362
  %v2427 = vpack.c.b16 %v2365, %v2363
  %v2428 = vpack.c.b16 %v2368, %v2366
  %v2429 = vpack.c.b16 %v2369, %v2367
  %v2430 = vpack.c.b16 %v2372, %v2370
  %v2431 = vpack.c.b16 %v2373, %v2371
  %v2432 = vpack.c.b16 %v2376, %v2374
  %v2433 = vpack.c.b16 %v2377, %v2375
  %v2434 = vpack.c.b16 %v2380, %v2378
  %v2435 = vpack.c.b16 %v2381, %v2379
  %v2436 = vpack.c.b16 %v2384, %v2382
  %v2437 = vpack.c.b16 %v2385, %v2383
  %v2438 = vpack.c.b16 %v2388, %v2386
  %v2439 = vpack.c.b16 %v2389, %v2387
  %v2440 = vpack.c.b16 %v2392, %v2390
  %v2441 = vpack.c.b16 %v2393, %v2391
  %v2442 = vpack.c.b16 %v2396, %v2394
  %v2443 = vpack.c.b16 %v2397, %v2395
  %v2444 = vpack.c.b16 %v2400, %v2398
  %v2445 = vpack.c.b16 %v2401, %v2399
  %v2446 = vpack.c.b16 %v2404, %v2402
  %v2447 = vpack.c.b16 %v2405, %v2403
  %v2448 = vpack.c.b16 %v2408, %v2406
  %v2449 = vpack.c.b16 %v2409, %v2407
  %v2450 = vpack.c.b16 %v2412, %v2410
  %v2451 = vpack.c.b16 %v2413, %v2411
  %v2452 = vpack.c.b16 %v2416, %v2414
  %v2453 = vpack.c.b16 %v2417, %v2415
  %v2454 = vpack.c.b16 %v2420, %v2418
  %v2455 = vpack.c.b16 %v2421, %v2419
  %v2456 = vpack.c.b16 %v2424, %v2422
  %v2457 = vpack.c.b16 %v2425, %v2423
  %2490 = vmatprep.subr.bf16.mxu0 %v2427
  %2491 = vmatpush1.bf16.msra.mxu0 %v2426
  %2492 = vmatprep.subr.bf16.mxu0 %v2429
  %2493 = vmatpush1.bf16.msra.mxu0 %v2428
  %2494 = vmatprep.subr.bf16.mxu0 %v2431
  %2495 = vmatpush1.bf16.msra.mxu0 %v2430
  %2496 = vmatprep.subr.bf16.mxu0 %v2433
  %2497 = vmatpush1.bf16.msra.mxu0 %v2432
  %2498 = vmatprep.subr.bf16.mxu0 %v2435
  %2499 = vmatpush1.bf16.msra.mxu0 %v2434
  %2500 = vmatprep.subr.bf16.mxu0 %v2437
  %2501 = vmatpush1.bf16.msra.mxu0 %v2436
  %2502 = vmatprep.subr.bf16.mxu0 %v2439
  %2503 = vmatpush1.bf16.msra.mxu0 %v2438
  %2504 = vmatprep.subr.bf16.mxu0 %v2441
  %2505 = vmatpush1.bf16.msra.mxu0 %v2440
  %2506 = vmatprep.subr.bf16.mxu0 %v2443
  %2507 = vmatpush1.bf16.msra.mxu0 %v2442
  %2508 = vmatprep.subr.bf16.mxu0 %v2445
  %2509 = vmatpush1.bf16.msra.mxu0 %v2444
  %2510 = vmatprep.subr.bf16.mxu0 %v2447
  %2511 = vmatpush1.bf16.msra.mxu0 %v2446
  %2512 = vmatprep.subr.bf16.mxu0 %v2449
  %2513 = vmatpush1.bf16.msra.mxu0 %v2448
  %2514 = vmatprep.subr.bf16.mxu0 %v2451
  %2515 = vmatpush1.bf16.msra.mxu0 %v2450
  %2516 = vmatprep.subr.bf16.mxu0 %v2453
  %2517 = vmatpush1.bf16.msra.mxu0 %v2452
  %2518 = vmatprep.subr.bf16.mxu0 %v2455
  %2519 = vmatpush1.bf16.msra.mxu0 %v2454
  %2520 = vmatprep.subr.bf16.mxu0 %v2457
  %2521 = vmatpush1.bf16.msra.mxu0 %v2456
  %2522 = vmatprep.mubr.bf16.mxu0 %v2327
  %2523 = vmatmul.mubr.bf16.gmra.mrb[0].mxu0 %v2326
  %v2524 = vpop.f32.mrb[0].mxu0
  %v2525 = vadd.f32 0.0, %v2524
  %v2526 = vpop.f32.mrb[0].mxu0
  %v2527 = vadd.f32 0.0, %v2526
  %v2528 = vpop.f32.mrb[0].mxu0
  %v2529 = vpop.f32.mrb[0].mxu0
  %2530 = vdwg.mxu0
  %v2531 = vadd.f32 %v2288, %v2525
  %v2532 = vadd.f32 %v2289, %v2527
  %v2533 = vld [vmem:[#allocation2 + $0x8] sm:$0xff]
  %v2534 = vld [vmem:[#allocation2 + $0x10] sm:$0x11]
  %s2535 = scalar_lea.vmem %s5, 20
  %v2536 = vld [vmem:[%s2535] sm:$0xf]
  %2538 = vset.pattern.permute.xlu0 0
  %2539 = vperm.xlu0 %2538, %v2536
  %v2540 = vpop.permute.xlu0 %2539
  %v2543 = vunpack.c.l.s4 839922192
  %v2544 = vunpack.c.0.s8 %v2543
  %v2545 = vlaneseq
  %v2546 = vshrl.u32 %v2545, 7
  %v2547 = vsub.s32 %v2544, %v2546
  %v2548 = vrot.slane %v2540, %v2547
  %v2550 = vshrl.u32 %v2548, 16
  %v2552 = vrot.slane %v2550, 7
  %v2553 = vshll.u32 %v2548, 16
  %v2555 = vor.u32 %v2552, %v2553
  %v2556 = vrot.slane %v2552, 4
  %v2559 = vmul.bf16 %v2533, %v2555
  %v2560 = vmul.bf16 %v2534, %v2556
  %s2561 = scalar_lea.vmem %s3, 1280
  %v2562 = vld [vmem:[%s2561] sm:$0xff]
  %v2563 = vld [vmem:[%s2561 + $0x8] sm:$0xff]
  %v2564 = vld [vmem:[%s2561 + $0x10] sm:$0xff]
  %v2565 = vld [vmem:[%s2561 + $0x18] sm:$0xff]
  %v2566 = vld [vmem:[%s2561 + $0x20] sm:$0xff]
  %v2567 = vld [vmem:[%s2561 + $0x28] sm:$0xff]
  %v2568 = vld [vmem:[%s2561 + $0x30] sm:$0xff]
  %v2569 = vld [vmem:[%s2561 + $0x38] sm:$0xff]
  %v2570 = vld [vmem:[%s2561 + $0x40] sm:$0xff]
  %v2571 = vld [vmem:[%s2561 + $0x48] sm:$0xff]
  %v2572 = vld [vmem:[%s2561 + $0x50] sm:$0xff]
  %v2573 = vld [vmem:[%s2561 + $0x58] sm:$0xff]
  %v2574 = vld [vmem:[%s2561 + $0x60] sm:$0xff]
  %v2575 = vld [vmem:[%s2561 + $0x68] sm:$0xff]
  %v2576 = vld [vmem:[%s2561 + $0x70] sm:$0xff]
  %v2577 = vld [vmem:[%s2561 + $0x78] sm:$0xff]
  %v2578 = vld [vmem:[%s2561 + $0x80] sm:$0xff]
  %v2579 = vld [vmem:[%s2561 + $0x88] sm:$0xff]
  %v2580 = vld [vmem:[%s2561 + $0x90] sm:$0xff]
  %v2581 = vld [vmem:[%s2561 + $0x98] sm:$0xff]
  %v2582 = vld [vmem:[%s2561 + $0xa0] sm:$0xff]
  %v2583 = vld [vmem:[%s2561 + $0xa8] sm:$0xff]
  %v2584 = vld [vmem:[%s2561 + $0xb0] sm:$0xff]
  %v2585 = vld [vmem:[%s2561 + $0xb8] sm:$0xff]
  %v2586 = vld [vmem:[%s2561 + $0xc0] sm:$0xff]
  %v2587 = vld [vmem:[%s2561 + $0xc8] sm:$0xff]
  %v2588 = vld [vmem:[%s2561 + $0xd0] sm:$0xff]
  %v2589 = vld [vmem:[%s2561 + $0xd8] sm:$0xff]
  %v2590 = vld [vmem:[%s2561 + $0xe0] sm:$0xff]
  %v2591 = vld [vmem:[%s2561 + $0xe8] sm:$0xff]
  %v2592 = vld [vmem:[%s2561 + $0xf0] sm:$0xff]
  %v2593 = vld [vmem:[%s2561 + $0xf8] sm:$0xff]
  %v2596 = vunpack.c.l.b16 %v2559
  %v2597 = vunpack.c.h.b16 %v2559
  %v2598 = vunpack.c.l.b16 %v2560
  %v2599 = vunpack.c.h.b16 %v2560
  %v2600 = vpack.c.b16 %v2598, %v2596
  %v2601 = vpack.c.b16 %v2599, %v2597
  %v2603 = vshrl.u32 %v2600, 16
  %v2605 = vshll.u32 %v2600, 16
  %v2607 = vrot.slane %v2605, 1
  %v2608 = vor.u32 %v2603, %v2607
  %v2610 = vshrl.u32 %v2601, 16
  %v2612 = vshll.u32 %v2601, 16
  %v2614 = vrot.slane %v2612, 1
  %v2615 = vor.u32 %v2610, %v2614
  %v2650 = vunpack.c.l.b16 %v2562
  %v2651 = vunpack.c.h.b16 %v2562
  %v2652 = vunpack.c.l.b16 %v2563
  %v2653 = vunpack.c.h.b16 %v2563
  %v2654 = vunpack.c.l.b16 %v2564
  %v2655 = vunpack.c.h.b16 %v2564
  %v2656 = vunpack.c.l.b16 %v2565
  %v2657 = vunpack.c.h.b16 %v2565
  %v2658 = vunpack.c.l.b16 %v2566
  %v2659 = vunpack.c.h.b16 %v2566
  %v2660 = vunpack.c.l.b16 %v2567
  %v2661 = vunpack.c.h.b16 %v2567
  %v2662 = vunpack.c.l.b16 %v2568
  %v2663 = vunpack.c.h.b16 %v2568
  %v2664 = vunpack.c.l.b16 %v2569
  %v2665 = vunpack.c.h.b16 %v2569
  %v2666 = vunpack.c.l.b16 %v2570
  %v2667 = vunpack.c.h.b16 %v2570
  %v2668 = vunpack.c.l.b16 %v2571
  %v2669 = vunpack.c.h.b16 %v2571
  %v2670 = vunpack.c.l.b16 %v2572
  %v2671 = vunpack.c.h.b16 %v2572
  %v2672 = vunpack.c.l.b16 %v2573
  %v2673 = vunpack.c.h.b16 %v2573
  %v2674 = vunpack.c.l.b16 %v2574
  %v2675 = vunpack.c.h.b16 %v2574
  %v2676 = vunpack.c.l.b16 %v2575
  %v2677 = vunpack.c.h.b16 %v2575
  %v2678 = vunpack.c.l.b16 %v2576
  %v2679 = vunpack.c.h.b16 %v2576
  %v2680 = vunpack.c.l.b16 %v2577
  %v2681 = vunpack.c.h.b16 %v2577
  %v2682 = vunpack.c.l.b16 %v2578
  %v2683 = vunpack.c.h.b16 %v2578
  %v2684 = vunpack.c.l.b16 %v2579
  %v2685 = vunpack.c.h.b16 %v2579
  %v2686 = vunpack.c.l.b16 %v2580
  %v2687 = vunpack.c.h.b16 %v2580
  %v2688 = vunpack.c.l.b16 %v2581
  %v2689 = vunpack.c.h.b16 %v2581
  %v2690 = vunpack.c.l.b16 %v2582
  %v2691 = vunpack.c.h.b16 %v2582
  %v2692 = vunpack.c.l.b16 %v2583
  %v2693 = vunpack.c.h.b16 %v2583
  %v2694 = vunpack.c.l.b16 %v2584
  %v2695 = vunpack.c.h.b16 %v2584
  %v2696 = vunpack.c.l.b16 %v2585
  %v2697 = vunpack.c.h.b16 %v2585
  %v2698 = vunpack.c.l.b16 %v2586
  %v2699 = vunpack.c.h.b16 %v2586
  %v2700 = vunpack.c.l.b16 %v2587
  %v2701 = vunpack.c.h.b16 %v2587
  %v2702 = vunpack.c.l.b16 %v2588
  %v2703 = vunpack.c.h.b16 %v2588
  %v2704 = vunpack.c.l.b16 %v2589
  %v2705 = vunpack.c.h.b16 %v2589
  %v2706 = vunpack.c.l.b16 %v2590
  %v2707 = vunpack.c.h.b16 %v2590
  %v2708 = vunpack.c.l.b16 %v2591
  %v2709 = vunpack.c.h.b16 %v2591
  %v2710 = vunpack.c.l.b16 %v2592
  %v2711 = vunpack.c.h.b16 %v2592
  %v2712 = vunpack.c.l.b16 %v2593
  %v2713 = vunpack.c.h.b16 %v2593
  %v2714 = vpack.c.b16 %v2652, %v2650
  %v2715 = vpack.c.b16 %v2653, %v2651
  %v2716 = vpack.c.b16 %v2656, %v2654
  %v2717 = vpack.c.b16 %v2657, %v2655
  %v2718 = vpack.c.b16 %v2660, %v2658
  %v2719 = vpack.c.b16 %v2661, %v2659
  %v2720 = vpack.c.b16 %v2664, %v2662
  %v2721 = vpack.c.b16 %v2665, %v2663
  %v2722 = vpack.c.b16 %v2668, %v2666
  %v2723 = vpack.c.b16 %v2669, %v2667
  %v2724 = vpack.c.b16 %v2672, %v2670
  %v2725 = vpack.c.b16 %v2673, %v2671
  %v2726 = vpack.c.b16 %v2676, %v2674
  %v2727 = vpack.c.b16 %v2677, %v2675
  %v2728 = vpack.c.b16 %v2680, %v2678
  %v2729 = vpack.c.b16 %v2681, %v2679
  %v2730 = vpack.c.b16 %v2684, %v2682
  %v2731 = vpack.c.b16 %v2685, %v2683
  %v2732 = vpack.c.b16 %v2688, %v2686
  %v2733 = vpack.c.b16 %v2689, %v2687
  %v2734 = vpack.c.b16 %v2692, %v2690
  %v2735 = vpack.c.b16 %v2693, %v2691
  %v2736 = vpack.c.b16 %v2696, %v2694
  %v2737 = vpack.c.b16 %v2697, %v2695
  %v2738 = vpack.c.b16 %v2700, %v2698
  %v2739 = vpack.c.b16 %v2701, %v2699
  %v2740 = vpack.c.b16 %v2704, %v2702
  %v2741 = vpack.c.b16 %v2705, %v2703
  %v2742 = vpack.c.b16 %v2708, %v2706
  %v2743 = vpack.c.b16 %v2709, %v2707
  %v2744 = vpack.c.b16 %v2712, %v2710
  %v2745 = vpack.c.b16 %v2713, %v2711
  %2778 = vmatprep.subr.bf16.mxu0 %v2715
  %2779 = vmatpush1.bf16.msra.mxu0 %v2714
  %2780 = vmatprep.subr.bf16.mxu0 %v2717
  %2781 = vmatpush1.bf16.msra.mxu0 %v2716
  %2782 = vmatprep.subr.bf16.mxu0 %v2719
  %2783 = vmatpush1.bf16.msra.mxu0 %v2718
  %2784 = vmatprep.subr.bf16.mxu0 %v2721
  %2785 = vmatpush1.bf16.msra.mxu0 %v2720
  %2786 = vmatprep.subr.bf16.mxu0 %v2723
  %2787 = vmatpush1.bf16.msra.mxu0 %v2722
  %2788 = vmatprep.subr.bf16.mxu0 %v2725
  %2789 = vmatpush1.bf16.msra.mxu0 %v2724
  %2790 = vmatprep.subr.bf16.mxu0 %v2727
  %2791 = vmatpush1.bf16.msra.mxu0 %v2726
  %2792 = vmatprep.subr.bf16.mxu0 %v2729
  %2793 = vmatpush1.bf16.msra.mxu0 %v2728
  %2794 = vmatprep.subr.bf16.mxu0 %v2731
  %2795 = vmatpush1.bf16.msra.mxu0 %v2730
  %2796 = vmatprep.subr.bf16.mxu0 %v2733
  %2797 = vmatpush1.bf16.msra.mxu0 %v2732
  %2798 = vmatprep.subr.bf16.mxu0 %v2735
  %2799 = vmatpush1.bf16.msra.mxu0 %v2734
  %2800 = vmatprep.subr.bf16.mxu0 %v2737
  %2801 = vmatpush1.bf16.msra.mxu0 %v2736
  %2802 = vmatprep.subr.bf16.mxu0 %v2739
  %2803 = vmatpush1.bf16.msra.mxu0 %v2738
  %2804 = vmatprep.subr.bf16.mxu0 %v2741
  %2805 = vmatpush1.bf16.msra.mxu0 %v2740
  %2806 = vmatprep.subr.bf16.mxu0 %v2743
  %2807 = vmatpush1.bf16.msra.mxu0 %v2742
  %2808 = vmatprep.subr.bf16.mxu0 %v2745
  %2809 = vmatpush1.bf16.msra.mxu0 %v2744
  %2810 = vmatprep.mubr.bf16.mxu0 %v2615
  %2811 = vmatmul.mubr.bf16.gmra.mrb[0].mxu0 %v2608
  %v2812 = vpop.f32.mrb[0].mxu0
  %v2813 = vadd.f32 0.0, %v2812
  %v2814 = vpop.f32.mrb[0].mxu0
  %v2815 = vadd.f32 0.0, %v2814
  %v2816 = vpop.f32.mrb[0].mxu0
  %v2817 = vpop.f32.mrb[0].mxu0
  %2818 = vdwg.mxu0
  %v2819 = vadd.f32 %v2531, %v2813
  %v2820 = vadd.f32 %v2532, %v2815
  %s2821 = scalar_lea.vmem %s5, 24
  %v2822 = vld [vmem:[%s2821] sm:$0xf]
  %2824 = vset.pattern.permute.xlu0 0
  %2825 = vperm.xlu0 %2824, %v2822
  %v2826 = vpop.permute.xlu0 %2825
  %v2829 = vunpack.c.l.s4 839922192
  %v2830 = vunpack.c.0.s8 %v2829
  %v2831 = vlaneseq
  %v2832 = vshrl.u32 %v2831, 7
  %v2833 = vsub.s32 %v2830, %v2832
  %v2834 = vrot.slane %v2826, %v2833
  %v2836 = vshrl.u32 %v2834, 16
  %v2838 = vrot.slane %v2836, 7
  %v2839 = vshll.u32 %v2834, 16
  %v2841 = vor.u32 %v2838, %v2839
  %v2842 = vrot.slane %v2838, 4
  %v2845 = vmul.bf16 %v2533, %v2841
  %v2846 = vmul.bf16 %v2534, %v2842
  %s2847 = scalar_lea.vmem %s3, 1536
  %v2848 = vld [vmem:[%s2847] sm:$0xff]
  %v2849 = vld [vmem:[%s2847 + $0x8] sm:$0xff]
  %v2850 = vld [vmem:[%s2847 + $0x10] sm:$0xff]
  %v2851 = vld [vmem:[%s2847 + $0x18] sm:$0xff]
  %v2852 = vld [vmem:[%s2847 + $0x20] sm:$0xff]
  %v2853 = vld [vmem:[%s2847 + $0x28] sm:$0xff]
  %v2854 = vld [vmem:[%s2847 + $0x30] sm:$0xff]
  %v2855 = vld [vmem:[%s2847 + $0x38] sm:$0xff]
  %v2856 = vld [vmem:[%s2847 + $0x40] sm:$0xff]
  %v2857 = vld [vmem:[%s2847 + $0x48] sm:$0xff]
  %v2858 = vld [vmem:[%s2847 + $0x50] sm:$0xff]
  %v2859 = vld [vmem:[%s2847 + $0x58] sm:$0xff]
  %v2860 = vld [vmem:[%s2847 + $0x60] sm:$0xff]
  %v2861 = vld [vmem:[%s2847 + $0x68] sm:$0xff]
  %v2862 = vld [vmem:[%s2847 + $0x70] sm:$0xff]
  %v2863 = vld [vmem:[%s2847 + $0x78] sm:$0xff]
  %v2864 = vld [vmem:[%s2847 + $0x80] sm:$0xff]
  %v2865 = vld [vmem:[%s2847 + $0x88] sm:$0xff]
  %v2866 = vld [vmem:[%s2847 + $0x90] sm:$0xff]
  %v2867 = vld [vmem:[%s2847 + $0x98] sm:$0xff]
  %v2868 = vld [vmem:[%s2847 + $0xa0] sm:$0xff]
  %v2869 = vld [vmem:[%s2847 + $0xa8] sm:$0xff]
  %v2870 = vld [vmem:[%s2847 + $0xb0] sm:$0xff]
  %v2871 = vld [vmem:[%s2847 + $0xb8] sm:$0xff]
  %v2872 = vld [vmem:[%s2847 + $0xc0] sm:$0xff]
  %v2873 = vld [vmem:[%s2847 + $0xc8] sm:$0xff]
  %v2874 = vld [vmem:[%s2847 + $0xd0] sm:$0xff]
  %v2875 = vld [vmem:[%s2847 + $0xd8] sm:$0xff]
  %v2876 = vld [vmem:[%s2847 + $0xe0] sm:$0xff]
  %v2877 = vld [vmem:[%s2847 + $0xe8] sm:$0xff]
  %v2878 = vld [vmem:[%s2847 + $0xf0] sm:$0xff]
  %v2879 = vld [vmem:[%s2847 + $0xf8] sm:$0xff]
  %v2882 = vunpack.c.l.b16 %v2845
  %v2883 = vunpack.c.h.b16 %v2845
  %v2884 = vunpack.c.l.b16 %v2846
  %v2885 = vunpack.c.h.b16 %v2846
  %v2886 = vpack.c.b16 %v2884, %v2882
  %v2887 = vpack.c.b16 %v2885, %v2883
  %v2889 = vshrl.u32 %v2886, 16
  %v2891 = vshll.u32 %v2886, 16
  %v2893 = vrot.slane %v2891, 1
  %v2894 = vor.u32 %v2889, %v2893
  %v2896 = vshrl.u32 %v2887, 16
  %v2898 = vshll.u32 %v2887, 16
  %v2900 = vrot.slane %v2898, 1
  %v2901 = vor.u32 %v2896, %v2900
  %v2936 = vunpack.c.l.b16 %v2848
  %v2937 = vunpack.c.h.b16 %v2848
  %v2938 = vunpack.c.l.b16 %v2849
  %v2939 = vunpack.c.h.b16 %v2849
  %v2940 = vunpack.c.l.b16 %v2850
  %v2941 = vunpack.c.h.b16 %v2850
  %v2942 = vunpack.c.l.b16 %v2851
  %v2943 = vunpack.c.h.b16 %v2851
  %v2944 = vunpack.c.l.b16 %v2852
  %v2945 = vunpack.c.h.b16 %v2852
  %v2946 = vunpack.c.l.b16 %v2853
  %v2947 = vunpack.c.h.b16 %v2853
  %v2948 = vunpack.c.l.b16 %v2854
  %v2949 = vunpack.c.h.b16 %v2854
  %v2950 = vunpack.c.l.b16 %v2855
  %v2951 = vunpack.c.h.b16 %v2855
  %v2952 = vunpack.c.l.b16 %v2856
  %v2953 = vunpack.c.h.b16 %v2856
  %v2954 = vunpack.c.l.b16 %v2857
  %v2955 = vunpack.c.h.b16 %v2857
  %v2956 = vunpack.c.l.b16 %v2858
  %v2957 = vunpack.c.h.b16 %v2858
  %v2958 = vunpack.c.l.b16 %v2859
  %v2959 = vunpack.c.h.b16 %v2859
  %v2960 = vunpack.c.l.b16 %v2860
  %v2961 = vunpack.c.h.b16 %v2860
  %v2962 = vunpack.c.l.b16 %v2861
  %v2963 = vunpack.c.h.b16 %v2861
  %v2964 = vunpack.c.l.b16 %v2862
  %v2965 = vunpack.c.h.b16 %v2862
  %v2966 = vunpack.c.l.b16 %v2863
  %v2967 = vunpack.c.h.b16 %v2863
  %v2968 = vunpack.c.l.b16 %v2864
  %v2969 = vunpack.c.h.b16 %v2864
  %v2970 = vunpack.c.l.b16 %v2865
  %v2971 = vunpack.c.h.b16 %v2865
  %v2972 = vunpack.c.l.b16 %v2866
  %v2973 = vunpack.c.h.b16 %v2866
  %v2974 = vunpack.c.l.b16 %v2867
  %v2975 = vunpack.c.h.b16 %v2867
  %v2976 = vunpack.c.l.b16 %v2868
  %v2977 = vunpack.c.h.b16 %v2868
  %v2978 = vunpack.c.l.b16 %v2869
  %v2979 = vunpack.c.h.b16 %v2869
  %v2980 = vunpack.c.l.b16 %v2870
  %v2981 = vunpack.c.h.b16 %v2870
  %v2982 = vunpack.c.l.b16 %v2871
  %v2983 = vunpack.c.h.b16 %v2871
  %v2984 = vunpack.c.l.b16 %v2872
  %v2985 = vunpack.c.h.b16 %v2872
  %v2986 = vunpack.c.l.b16 %v2873
  %v2987 = vunpack.c.h.b16 %v2873
  %v2988 = vunpack.c.l.b16 %v2874
  %v2989 = vunpack.c.h.b16 %v2874
  %v2990 = vunpack.c.l.b16 %v2875
  %v2991 = vunpack.c.h.b16 %v2875
  %v2992 = vunpack.c.l.b16 %v2876
  %v2993 = vunpack.c.h.b16 %v2876
  %v2994 = vunpack.c.l.b16 %v2877
  %v2995 = vunpack.c.h.b16 %v2877
  %v2996 = vunpack.c.l.b16 %v2878
  %v2997 = vunpack.c.h.b16 %v2878
  %v2998 = vunpack.c.l.b16 %v2879
  %v2999 = vunpack.c.h.b16 %v2879
  %v3000 = vpack.c.b16 %v2938, %v2936
  %v3001 = vpack.c.b16 %v2939, %v2937
  %v3002 = vpack.c.b16 %v2942, %v2940
  %v3003 = vpack.c.b16 %v2943, %v2941
  %v3004 = vpack.c.b16 %v2946, %v2944
  %v3005 = vpack.c.b16 %v2947, %v2945
  %v3006 = vpack.c.b16 %v2950, %v2948
  %v3007 = vpack.c.b16 %v2951, %v2949
  %v3008 = vpack.c.b16 %v2954, %v2952
  %v3009 = vpack.c.b16 %v2955, %v2953
  %v3010 = vpack.c.b16 %v2958, %v2956
  %v3011 = vpack.c.b16 %v2959, %v2957
  %v3012 = vpack.c.b16 %v2962, %v2960
  %v3013 = vpack.c.b16 %v2963, %v2961
  %v3014 = vpack.c.b16 %v2966, %v2964
  %v3015 = vpack.c.b16 %v2967, %v2965
  %v3016 = vpack.c.b16 %v2970, %v2968
  %v3017 = vpack.c.b16 %v2971, %v2969
  %v3018 = vpack.c.b16 %v2974, %v2972
  %v3019 = vpack.c.b16 %v2975, %v2973
  %v3020 = vpack.c.b16 %v2978, %v2976
  %v3021 = vpack.c.b16 %v2979, %v2977
  %v3022 = vpack.c.b16 %v2982, %v2980
  %v3023 = vpack.c.b16 %v2983, %v2981
  %v3024 = vpack.c.b16 %v2986, %v2984
  %v3025 = vpack.c.b16 %v2987, %v2985
  %v3026 = vpack.c.b16 %v2990, %v2988
  %v3027 = vpack.c.b16 %v2991, %v2989
  %v3028 = vpack.c.b16 %v2994, %v2992
  %v3029 = vpack.c.b16 %v2995, %v2993
  %v3030 = vpack.c.b16 %v2998, %v2996
  %v3031 = vpack.c.b16 %v2999, %v2997
  %3064 = vmatprep.subr.bf16.mxu0 %v3001
  %3065 = vmatpush1.bf16.msra.mxu0 %v3000
  %3066 = vmatprep.subr.bf16.mxu0 %v3003
  %3067 = vmatpush1.bf16.msra.mxu0 %v3002
  %3068 = vmatprep.subr.bf16.mxu0 %v3005
  %3069 = vmatpush1.bf16.msra.mxu0 %v3004
  %3070 = vmatprep.subr.bf16.mxu0 %v3007
  %3071 = vmatpush1.bf16.msra.mxu0 %v3006
  %3072 = vmatprep.subr.bf16.mxu0 %v3009
  %3073 = vmatpush1.bf16.msra.mxu0 %v3008
  %3074 = vmatprep.subr.bf16.mxu0 %v3011
  %3075 = vmatpush1.bf16.msra.mxu0 %v3010
  %3076 = vmatprep.subr.bf16.mxu0 %v3013
  %3077 = vmatpush1.bf16.msra.mxu0 %v3012
  %3078 = vmatprep.subr.bf16.mxu0 %v3015
  %3079 = vmatpush1.bf16.msra.mxu0 %v3014
  %3080 = vmatprep.subr.bf16.mxu0 %v3017
  %3081 = vmatpush1.bf16.msra.mxu0 %v3016
  %3082 = vmatprep.subr.bf16.mxu0 %v3019
  %3083 = vmatpush1.bf16.msra.mxu0 %v3018
  %3084 = vmatprep.subr.bf16.mxu0 %v3021
  %3085 = vmatpush1.bf16.msra.mxu0 %v3020
  %3086 = vmatprep.subr.bf16.mxu0 %v3023
  %3087 = vmatpush1.bf16.msra.mxu0 %v3022
  %3088 = vmatprep.subr.bf16.mxu0 %v3025
  %3089 = vmatpush1.bf16.msra.mxu0 %v3024
  %3090 = vmatprep.subr.bf16.mxu0 %v3027
  %3091 = vmatpush1.bf16.msra.mxu0 %v3026
  %3092 = vmatprep.subr.bf16.mxu0 %v3029
  %3093 = vmatpush1.bf16.msra.mxu0 %v3028
  %3094 = vmatprep.subr.bf16.mxu0 %v3031
  %3095 = vmatpush1.bf16.msra.mxu0 %v3030
  %3096 = vmatprep.mubr.bf16.mxu0 %v2901
  %3097 = vmatmul.mubr.bf16.gmra.mrb[0].mxu0 %v2894
  %v3098 = vpop.f32.mrb[0].mxu0
  %v3099 = vadd.f32 0.0, %v3098
  %v3100 = vpop.f32.mrb[0].mxu0
  %v3101 = vadd.f32 0.0, %v3100
  %v3102 = vpop.f32.mrb[0].mxu0
  %v3103 = vpop.f32.mrb[0].mxu0
  %3104 = vdwg.mxu0
  %v3105 = vadd.f32 %v2819, %v3099
  %v3106 = vadd.f32 %v2820, %v3101
  %v3107 = vld [vmem:[#allocation2 + $0x8] sm:$0xee]
  %s3108 = scalar_lea.vmem %s5, 28
  %v3109 = vld [vmem:[%s3108] sm:$0xf]
  %3111 = vset.pattern.permute.xlu0 0
  %3112 = vperm.xlu0 %3111, %v3109
  %v3113 = vpop.permute.xlu0 %3112
  %v3116 = vunpack.c.l.s4 839922192
  %v3117 = vunpack.c.0.s8 %v3116
  %v3118 = vlaneseq
  %v3119 = vshrl.u32 %v3118, 7
  %v3120 = vsub.s32 %v3117, %v3119
  %v3121 = vrot.slane %v3113, %v3120
  %v3123 = vrot.slane %v3121, 7
  %v3124 = vrot.slane %v3123, 4
  %v3127 = vmul.bf16 %v3107, %v3123
  %v3128 = vmul.bf16 %v2534, %v3124
  %s3129 = scalar_lea.vmem %s3, 1792
  %v3130 = vld [vmem:[%s3129] sm:$0xff]
  %v3131 = vld [vmem:[%s3129 + $0x8] sm:$0xff]
  %v3132 = vld [vmem:[%s3129 + $0x10] sm:$0xff]
  %v3133 = vld [vmem:[%s3129 + $0x18] sm:$0xff]
  %v3134 = vld [vmem:[%s3129 + $0x20] sm:$0xff]
  %v3135 = vld [vmem:[%s3129 + $0x28] sm:$0xff]
  %v3136 = vld [vmem:[%s3129 + $0x30] sm:$0xff]
  %v3137 = vld [vmem:[%s3129 + $0x38] sm:$0xff]
  %v3138 = vld [vmem:[%s3129 + $0x40] sm:$0xff]
  %v3139 = vld [vmem:[%s3129 + $0x48] sm:$0xff]
  %v3140 = vld [vmem:[%s3129 + $0x50] sm:$0xff]
  %v3141 = vld [vmem:[%s3129 + $0x58] sm:$0xff]
  %v3142 = vld [vmem:[%s3129 + $0x60] sm:$0xff]
  %v3143 = vld [vmem:[%s3129 + $0x68] sm:$0xff]
  %v3144 = vld [vmem:[%s3129 + $0x70] sm:$0xff]
  %v3145 = vld [vmem:[%s3129 + $0x78] sm:$0xff]
  %v3146 = vld [vmem:[%s3129 + $0x80] sm:$0xff]
  %v3147 = vld [vmem:[%s3129 + $0x88] sm:$0xff]
  %v3148 = vld [vmem:[%s3129 + $0x90] sm:$0xff]
  %v3149 = vld [vmem:[%s3129 + $0x98] sm:$0xff]
  %v3150 = vld [vmem:[%s3129 + $0xa0] sm:$0xff]
  %v3151 = vld [vmem:[%s3129 + $0xa8] sm:$0xff]
  %v3152 = vld [vmem:[%s3129 + $0xb0] sm:$0xff]
  %v3153 = vld [vmem:[%s3129 + $0xb8] sm:$0xff]
  %v3154 = vld [vmem:[%s3129 + $0xc0] sm:$0xff]
  %v3155 = vld [vmem:[%s3129 + $0xc8] sm:$0xff]
  %v3156 = vld [vmem:[%s3129 + $0xd0] sm:$0xff]
  %v3157 = vld [vmem:[%s3129 + $0xd8] sm:$0xff]
  %v3158 = vld [vmem:[%s3129 + $0xe0] sm:$0xff]
  %v3159 = vld [vmem:[%s3129 + $0xe8] sm:$0xff]
  %v3160 = vld [vmem:[%s3129 + $0xf0] sm:$0xff]
  %v3161 = vld [vmem:[%s3129 + $0xf8] sm:$0xff]
  %v3164 = vunpack.c.l.b16 %v3127
  %v3165 = vunpack.c.h.b16 %v3127
  %v3166 = vunpack.c.l.b16 %v3128
  %v3167 = vunpack.c.h.b16 %v3128
  %v3168 = vpack.c.b16 %v3166, %v3164
  %v3169 = vpack.c.b16 %v3167, %v3165
  %v3170 = vrot.slane %v3168, 1
  %v3171 = vrot.slane %v3169, 1
  %v3206 = vunpack.c.l.b16 %v3130
  %v3207 = vunpack.c.h.b16 %v3130
  %v3208 = vunpack.c.l.b16 %v3131
  %v3209 = vunpack.c.h.b16 %v3131
  %v3210 = vunpack.c.l.b16 %v3132
  %v3211 = vunpack.c.h.b16 %v3132
  %v3212 = vunpack.c.l.b16 %v3133
  %v3213 = vunpack.c.h.b16 %v3133
  %v3214 = vunpack.c.l.b16 %v3134
  %v3215 = vunpack.c.h.b16 %v3134
  %v3216 = vunpack.c.l.b16 %v3135
  %v3217 = vunpack.c.h.b16 %v3135
  %v3218 = vunpack.c.l.b16 %v3136
  %v3219 = vunpack.c.h.b16 %v3136
  %v3220 = vunpack.c.l.b16 %v3137
  %v3221 = vunpack.c.h.b16 %v3137
  %v3222 = vunpack.c.l.b16 %v3138
  %v3223 = vunpack.c.h.b16 %v3138
  %v3224 = vunpack.c.l.b16 %v3139
  %v3225 = vunpack.c.h.b16 %v3139
  %v3226 = vunpack.c.l.b16 %v3140
  %v3227 = vunpack.c.h.b16 %v3140
  %v3228 = vunpack.c.l.b16 %v3141
  %v3229 = vunpack.c.h.b16 %v3141
  %v3230 = vunpack.c.l.b16 %v3142
  %v3231 = vunpack.c.h.b16 %v3142
  %v3232 = vunpack.c.l.b16 %v3143
  %v3233 = vunpack.c.h.b16 %v3143
  %v3234 = vunpack.c.l.b16 %v3144
  %v3235 = vunpack.c.h.b16 %v3144
  %v3236 = vunpack.c.l.b16 %v3145
  %v3237 = vunpack.c.h.b16 %v3145
  %v3238 = vunpack.c.l.b16 %v3146
  %v3239 = vunpack.c.h.b16 %v3146
  %v3240 = vunpack.c.l.b16 %v3147
  %v3241 = vunpack.c.h.b16 %v3147
  %v3242 = vunpack.c.l.b16 %v3148
  %v3243 = vunpack.c.h.b16 %v3148
  %v3244 = vunpack.c.l.b16 %v3149
  %v3245 = vunpack.c.h.b16 %v3149
  %v3246 = vunpack.c.l.b16 %v3150
  %v3247 = vunpack.c.h.b16 %v3150
  %v3248 = vunpack.c.l.b16 %v3151
  %v3249 = vunpack.c.h.b16 %v3151
  %v3250 = vunpack.c.l.b16 %v3152
  %v3251 = vunpack.c.h.b16 %v3152
  %v3252 = vunpack.c.l.b16 %v3153
  %v3253 = vunpack.c.h.b16 %v3153
  %v3254 = vunpack.c.l.b16 %v3154
  %v3255 = vunpack.c.h.b16 %v3154
  %v3256 = vunpack.c.l.b16 %v3155
  %v3257 = vunpack.c.h.b16 %v3155
  %v3258 = vunpack.c.l.b16 %v3156
  %v3259 = vunpack.c.h.b16 %v3156
  %v3260 = vunpack.c.l.b16 %v3157
  %v3261 = vunpack.c.h.b16 %v3157
  %v3262 = vunpack.c.l.b16 %v3158
  %v3263 = vunpack.c.h.b16 %v3158
  %v3264 = vunpack.c.l.b16 %v3159
  %v3265 = vunpack.c.h.b16 %v3159
  %v3266 = vunpack.c.l.b16 %v3160
  %v3267 = vunpack.c.h.b16 %v3160
  %v3268 = vunpack.c.l.b16 %v3161
  %v3269 = vunpack.c.h.b16 %v3161
  %v3270 = vpack.c.b16 %v3208, %v3206
  %v3271 = vpack.c.b16 %v3209, %v3207
  %v3272 = vpack.c.b16 %v3212, %v3210
  %v3273 = vpack.c.b16 %v3213, %v3211
  %v3274 = vpack.c.b16 %v3216, %v3214
  %v3275 = vpack.c.b16 %v3217, %v3215
  %v3276 = vpack.c.b16 %v3220, %v3218
  %v3277 = vpack.c.b16 %v3221, %v3219
  %v3278 = vpack.c.b16 %v3224, %v3222
  %v3279 = vpack.c.b16 %v3225, %v3223
  %v3280 = vpack.c.b16 %v3228, %v3226
  %v3281 = vpack.c.b16 %v3229, %v3227
  %v3282 = vpack.c.b16 %v3232, %v3230
  %v3283 = vpack.c.b16 %v3233, %v3231
  %v3284 = vpack.c.b16 %v3236, %v3234
  %v3285 = vpack.c.b16 %v3237, %v3235
  %v3286 = vpack.c.b16 %v3240, %v3238
  %v3287 = vpack.c.b16 %v3241, %v3239
  %v3288 = vpack.c.b16 %v3244, %v3242
  %v3289 = vpack.c.b16 %v3245, %v3243
  %v3290 = vpack.c.b16 %v3248, %v3246
  %v3291 = vpack.c.b16 %v3249, %v3247
  %v3292 = vpack.c.b16 %v3252, %v3250
  %v3293 = vpack.c.b16 %v3253, %v3251
  %v3294 = vpack.c.b16 %v3256, %v3254
  %v3295 = vpack.c.b16 %v3257, %v3255
  %v3296 = vpack.c.b16 %v3260, %v3258
  %v3297 = vpack.c.b16 %v3261, %v3259
  %v3298 = vpack.c.b16 %v3264, %v3262
  %v3299 = vpack.c.b16 %v3265, %v3263
  %v3300 = vpack.c.b16 %v3268, %v3266
  %v3301 = vpack.c.b16 %v3269, %v3267
  %3334 = vmatprep.subr.bf16.mxu0 %v3271
  %3335 = vmatpush1.bf16.msra.mxu0 %v3270
  %3336 = vmatprep.subr.bf16.mxu0 %v3273
  %3337 = vmatpush1.bf16.msra.mxu0 %v3272
  %3338 = vmatprep.subr.bf16.mxu0 %v3275
  %3339 = vmatpush1.bf16.msra.mxu0 %v3274
  %3340 = vmatprep.subr.bf16.mxu0 %v3277
  %3341 = vmatpush1.bf16.msra.mxu0 %v3276
  %3342 = vmatprep.subr.bf16.mxu0 %v3279
  %3343 = vmatpush1.bf16.msra.mxu0 %v3278
  %3344 = vmatprep.subr.bf16.mxu0 %v3281
  %3345 = vmatpush1.bf16.msra.mxu0 %v3280
  %3346 = vmatprep.subr.bf16.mxu0 %v3283
  %3347 = vmatpush1.bf16.msra.mxu0 %v3282
  %3348 = vmatprep.subr.bf16.mxu0 %v3285
  %3349 = vmatpush1.bf16.msra.mxu0 %v3284
  %3350 = vmatprep.subr.bf16.mxu0 %v3287
  %3351 = vmatpush1.bf16.msra.mxu0 %v3286
  %3352 = vmatprep.subr.bf16.mxu0 %v3289
  %3353 = vmatpush1.bf16.msra.mxu0 %v3288
  %3354 = vmatprep.subr.bf16.mxu0 %v3291
  %3355 = vmatpush1.bf16.msra.mxu0 %v3290
  %3356 = vmatprep.subr.bf16.mxu0 %v3293
  %3357 = vmatpush1.bf16.msra.mxu0 %v3292
  %3358 = vmatprep.subr.bf16.mxu0 %v3295
  %3359 = vmatpush1.bf16.msra.mxu0 %v3294
  %3360 = vmatprep.subr.bf16.mxu0 %v3297
  %3361 = vmatpush1.bf16.msra.mxu0 %v3296
  %3362 = vmatprep.subr.bf16.mxu0 %v3299
  %3363 = vmatpush1.bf16.msra.mxu0 %v3298
  %3364 = vmatprep.subr.bf16.mxu0 %v3301
  %3365 = vmatpush1.bf16.msra.mxu0 %v3300
  %3366 = vmatprep.mubr.bf16.mxu0 %v3171
  %3367 = vmatmul.mubr.bf16.gmra.mrb[0].mxu0 %v3170
  %v3368 = vpop.f32.mrb[0].mxu0
  %v3369 = vadd.f32 0.0, %v3368
  %v3370 = vpop.f32.mrb[0].mxu0
  %v3371 = vadd.f32 0.0, %v3370
  %v3372 = vpop.f32.mrb[0].mxu0
  %v3373 = vpop.f32.mrb[0].mxu0
  %3374 = vdwg.mxu0
  %v3375 = vadd.f32 %v3105, %v3369
  %v3376 = vadd.f32 %v3106, %v3371
  %v3377 = vld [vmem:[#allocation2 + $0x10] sm:$0x33]
  %s3378 = scalar_lea.vmem %s5, 32
  %v3379 = vld [vmem:[%s3378] sm:$0xf]
  %3381 = vset.pattern.permute.xlu0 0
  %3382 = vperm.xlu0 %3381, %v3379
  %v3383 = vpop.permute.xlu0 %3382
  %v3386 = vunpack.c.l.s4 839922192
  %v3387 = vunpack.c.0.s8 %v3386
  %v3388 = vlaneseq
  %v3389 = vshrl.u32 %v3388, 7
  %v3390 = vsub.s32 %v3387, %v3389
  %v3391 = vrot.slane %v3383, %v3390
  %v3393 = vshrl.u32 %v3391, 16
  %v3395 = vrot.slane %v3393, 6
  %v3396 = vshll.u32 %v3391, 16
  %v3398 = vrot.slane %v3396, 7
  %v3399 = vor.u32 %v3395, %v3398
  %v3400 = vrot.slane %v3399, 4
  %v3403 = vmul.bf16 %v3107, %v3399
  %v3404 = vmul.bf16 %v3377, %v3400
  %s3405 = scalar_lea.vmem %s3, 2048
  %v3406 = vld [vmem:[%s3405] sm:$0xff]
  %v3407 = vld [vmem:[%s3405 + $0x8] sm:$0xff]
  %v3408 = vld [vmem:[%s3405 + $0x10] sm:$0xff]
  %v3409 = vld [vmem:[%s3405 + $0x18] sm:$0xff]
  %v3410 = vld [vmem:[%s3405 + $0x20] sm:$0xff]
  %v3411 = vld [vmem:[%s3405 + $0x28] sm:$0xff]
  %v3412 = vld [vmem:[%s3405 + $0x30] sm:$0xff]
  %v3413 = vld [vmem:[%s3405 + $0x38] sm:$0xff]
  %v3414 = vld [vmem:[%s3405 + $0x40] sm:$0xff]
  %v3415 = vld [vmem:[%s3405 + $0x48] sm:$0xff]
  %v3416 = vld [vmem:[%s3405 + $0x50] sm:$0xff]
  %v3417 = vld [vmem:[%s3405 + $0x58] sm:$0xff]
  %v3418 = vld [vmem:[%s3405 + $0x60] sm:$0xff]
  %v3419 = vld [vmem:[%s3405 + $0x68] sm:$0xff]
  %v3420 = vld [vmem:[%s3405 + $0x70] sm:$0xff]
  %v3421 = vld [vmem:[%s3405 + $0x78] sm:$0xff]
  %v3422 = vld [vmem:[%s3405 + $0x80] sm:$0xff]
  %v3423 = vld [vmem:[%s3405 + $0x88] sm:$0xff]
  %v3424 = vld [vmem:[%s3405 + $0x90] sm:$0xff]
  %v3425 = vld [vmem:[%s3405 + $0x98] sm:$0xff]
  %v3426 = vld [vmem:[%s3405 + $0xa0] sm:$0xff]
  %v3427 = vld [vmem:[%s3405 + $0xa8] sm:$0xff]
  %v3428 = vld [vmem:[%s3405 + $0xb0] sm:$0xff]
  %v3429 = vld [vmem:[%s3405 + $0xb8] sm:$0xff]
  %v3430 = vld [vmem:[%s3405 + $0xc0] sm:$0xff]
  %v3431 = vld [vmem:[%s3405 + $0xc8] sm:$0xff]
  %v3432 = vld [vmem:[%s3405 + $0xd0] sm:$0xff]
  %v3433 = vld [vmem:[%s3405 + $0xd8] sm:$0xff]
  %v3434 = vld [vmem:[%s3405 + $0xe0] sm:$0xff]
  %v3435 = vld [vmem:[%s3405 + $0xe8] sm:$0xff]
  %v3436 = vld [vmem:[%s3405 + $0xf0] sm:$0xff]
  %v3437 = vld [vmem:[%s3405 + $0xf8] sm:$0xff]
  %v3440 = vunpack.c.l.b16 %v3403
  %v3441 = vunpack.c.h.b16 %v3403
  %v3442 = vunpack.c.l.b16 %v3404
  %v3443 = vunpack.c.h.b16 %v3404
  %v3444 = vpack.c.b16 %v3442, %v3440
  %v3445 = vpack.c.b16 %v3443, %v3441
  %v3447 = vshrl.u32 %v3444, 16
  %v3449 = vrot.slane %v3447, 1
  %v3450 = vshll.u32 %v3444, 16
  %v3452 = vrot.slane %v3450, 2
  %v3453 = vor.u32 %v3449, %v3452
  %v3455 = vshrl.u32 %v3445, 16
  %v3457 = vrot.slane %v3455, 1
  %v3458 = vshll.u32 %v3445, 16
  %v3460 = vrot.slane %v3458, 2
  %v3461 = vor.u32 %v3457, %v3460
  %v3496 = vunpack.c.l.b16 %v3406
  %v3497 = vunpack.c.h.b16 %v3406
  %v3498 = vunpack.c.l.b16 %v3407
  %v3499 = vunpack.c.h.b16 %v3407
  %v3500 = vunpack.c.l.b16 %v3408
  %v3501 = vunpack.c.h.b16 %v3408
  %v3502 = vunpack.c.l.b16 %v3409
  %v3503 = vunpack.c.h.b16 %v3409
  %v3504 = vunpack.c.l.b16 %v3410
  %v3505 = vunpack.c.h.b16 %v3410
  %v3506 = vunpack.c.l.b16 %v3411
  %v3507 = vunpack.c.h.b16 %v3411
  %v3508 = vunpack.c.l.b16 %v3412
  %v3509 = vunpack.c.h.b16 %v3412
  %v3510 = vunpack.c.l.b16 %v3413
  %v3511 = vunpack.c.h.b16 %v3413
  %v3512 = vunpack.c.l.b16 %v3414
  %v3513 = vunpack.c.h.b16 %v3414
  %v3514 = vunpack.c.l.b16 %v3415
  %v3515 = vunpack.c.h.b16 %v3415
  %v3516 = vunpack.c.l.b16 %v3416
  %v3517 = vunpack.c.h.b16 %v3416
  %v3518 = vunpack.c.l.b16 %v3417
  %v3519 = vunpack.c.h.b16 %v3417
  %v3520 = vunpack.c.l.b16 %v3418
  %v3521 = vunpack.c.h.b16 %v3418
  %v3522 = vunpack.c.l.b16 %v3419
  %v3523 = vunpack.c.h.b16 %v3419
  %v3524 = vunpack.c.l.b16 %v3420
  %v3525 = vunpack.c.h.b16 %v3420
  %v3526 = vunpack.c.l.b16 %v3421
  %v3527 = vunpack.c.h.b16 %v3421
  %v3528 = vunpack.c.l.b16 %v3422
  %v3529 = vunpack.c.h.b16 %v3422
  %v3530 = vunpack.c.l.b16 %v3423
  %v3531 = vunpack.c.h.b16 %v3423
  %v3532 = vunpack.c.l.b16 %v3424
  %v3533 = vunpack.c.h.b16 %v3424
  %v3534 = vunpack.c.l.b16 %v3425
  %v3535 = vunpack.c.h.b16 %v3425
  %v3536 = vunpack.c.l.b16 %v3426
  %v3537 = vunpack.c.h.b16 %v3426
  %v3538 = vunpack.c.l.b16 %v3427
  %v3539 = vunpack.c.h.b16 %v3427
  %v3540 = vunpack.c.l.b16 %v3428
  %v3541 = vunpack.c.h.b16 %v3428
  %v3542 = vunpack.c.l.b16 %v3429
  %v3543 = vunpack.c.h.b16 %v3429
  %v3544 = vunpack.c.l.b16 %v3430
  %v3545 = vunpack.c.h.b16 %v3430
  %v3546 = vunpack.c.l.b16 %v3431
  %v3547 = vunpack.c.h.b16 %v3431
  %v3548 = vunpack.c.l.b16 %v3432
  %v3549 = vunpack.c.h.b16 %v3432
  %v3550 = vunpack.c.l.b16 %v3433
  %v3551 = vunpack.c.h.b16 %v3433
  %v3552 = vunpack.c.l.b16 %v3434
  %v3553 = vunpack.c.h.b16 %v3434
  %v3554 = vunpack.c.l.b16 %v3435
  %v3555 = vunpack.c.h.b16 %v3435
  %v3556 = vunpack.c.l.b16 %v3436
  %v3557 = vunpack.c.h.b16 %v3436
  %v3558 = vunpack.c.l.b16 %v3437
  %v3559 = vunpack.c.h.b16 %v3437
  %v3560 = vpack.c.b16 %v3498, %v3496
  %v3561 = vpack.c.b16 %v3499, %v3497
  %v3562 = vpack.c.b16 %v3502, %v3500
  %v3563 = vpack.c.b16 %v3503, %v3501
  %v3564 = vpack.c.b16 %v3506, %v3504
  %v3565 = vpack.c.b16 %v3507, %v3505
  %v3566 = vpack.c.b16 %v3510, %v3508
  %v3567 = vpack.c.b16 %v3511, %v3509
  %v3568 = vpack.c.b16 %v3514, %v3512
  %v3569 = vpack.c.b16 %v3515, %v3513
  %v3570 = vpack.c.b16 %v3518, %v3516
  %v3571 = vpack.c.b16 %v3519, %v3517
  %v3572 = vpack.c.b16 %v3522, %v3520
  %v3573 = vpack.c.b16 %v3523, %v3521
  %v3574 = vpack.c.b16 %v3526, %v3524
  %v3575 = vpack.c.b16 %v3527, %v3525
  %v3576 = vpack.c.b16 %v3530, %v3528
  %v3577 = vpack.c.b16 %v3531, %v3529
  %v3578 = vpack.c.b16 %v3534, %v3532
  %v3579 = vpack.c.b16 %v3535, %v3533
  %v3580 = vpack.c.b16 %v3538, %v3536
  %v3581 = vpack.c.b16 %v3539, %v3537
  %v3582 = vpack.c.b16 %v3542, %v3540
  %v3583 = vpack.c.b16 %v3543, %v3541
  %v3584 = vpack.c.b16 %v3546, %v3544
  %v3585 = vpack.c.b16 %v3547, %v3545
  %v3586 = vpack.c.b16 %v3550, %v3548
  %v3587 = vpack.c.b16 %v3551, %v3549
  %v3588 = vpack.c.b16 %v3554, %v3552
  %v3589 = vpack.c.b16 %v3555, %v3553
  %v3590 = vpack.c.b16 %v3558, %v3556
  %v3591 = vpack.c.b16 %v3559, %v3557
  %3624 = vmatprep.subr.bf16.mxu0 %v3561
  %3625 = vmatpush1.bf16.msra.mxu0 %v3560
  %3626 = vmatprep.subr.bf16.mxu0 %v3563
  %3627 = vmatpush1.bf16.msra.mxu0 %v3562
  %3628 = vmatprep.subr.bf16.mxu0 %v3565
  %3629 = vmatpush1.bf16.msra.mxu0 %v3564
  %3630 = vmatprep.subr.bf16.mxu0 %v3567
  %3631 = vmatpush1.bf16.msra.mxu0 %v3566
  %3632 = vmatprep.subr.bf16.mxu0 %v3569
  %3633 = vmatpush1.bf16.msra.mxu0 %v3568
  %3634 = vmatprep.subr.bf16.mxu0 %v3571
  %3635 = vmatpush1.bf16.msra.mxu0 %v3570
  %3636 = vmatprep.subr.bf16.mxu0 %v3573
  %3637 = vmatpush1.bf16.msra.mxu0 %v3572
  %3638 = vmatprep.subr.bf16.mxu0 %v3575
  %3639 = vmatpush1.bf16.msra.mxu0 %v3574
  %3640 = vmatprep.subr.bf16.mxu0 %v3577
  %3641 = vmatpush1.bf16.msra.mxu0 %v3576
  %3642 = vmatprep.subr.bf16.mxu0 %v3579
  %3643 = vmatpush1.bf16.msra.mxu0 %v3578
  %3644 = vmatprep.subr.bf16.mxu0 %v3581
  %3645 = vmatpush1.bf16.msra.mxu0 %v3580
  %3646 = vmatprep.subr.bf16.mxu0 %v3583
  %3647 = vmatpush1.bf16.msra.mxu0 %v3582
  %3648 = vmatprep.subr.bf16.mxu0 %v3585
  %3649 = vmatpush1.bf16.msra.mxu0 %v3584
  %3650 = vmatprep.subr.bf16.mxu0 %v3587
  %3651 = vmatpush1.bf16.msra.mxu0 %v3586
  %3652 = vmatprep.subr.bf16.mxu0 %v3589
  %3653 = vmatpush1.bf16.msra.mxu0 %v3588
  %3654 = vmatprep.subr.bf16.mxu0 %v3591
  %3655 = vmatpush1.bf16.msra.mxu0 %v3590
  %3656 = vmatprep.mubr.bf16.mxu0 %v3461
  %3657 = vmatmul.mubr.bf16.gmra.mrb[0].mxu0 %v3453
  %v3658 = vpop.f32.mrb[0].mxu0
  %v3659 = vadd.f32 0.0, %v3658
  %v3660 = vpop.f32.mrb[0].mxu0
  %v3661 = vadd.f32 0.0, %v3660
  %v3662 = vpop.f32.mrb[0].mxu0
  %v3663 = vpop.f32.mrb[0].mxu0
  %3664 = vdwg.mxu0
  %v3665 = vadd.f32 %v3375, %v3659
  %v3666 = vadd.f32 %v3376, %v3661
  %v3667 = vld [vmem:[%s4] sm:$0x3]
  %v3669 = vlaneseq
  %v3670 = vshrl.u32 %v3669, 7
  %v3671 = vsub.s32 0, %v3670
  %v3672 = vrot.slane %v3667, %v3671
  %v3673 = vlaneseq
  %v3674 = vshrl.u32 %v3673, 7
  %v3675 = vsub.s32 1, %v3674
  %v3676 = vrot.slane %v3667, %v3675
  %v3679 = vadd.f32 %v3665, %v3672
  %v3680 = vadd.f32 %v3666, %v3676
  %3681 = vst [vmem:[%s6] sm:$0xff] %v3679
  %3682 = vst [vmem:[%s6 + $0x8] sm:$0xff] %v3680
  // Predicated region
  $region26: #{palm_forward.7} parent=0 // pred_check
    _
  $region27: #{palm_forward.7} parent=0 // pred_check_branch
    %3684 = sbr.rel (0) target = $region29
  $region28: #{palm_forward.7} parent=0 // pred_region
    _
  $region29: #{palm_forward.7} parent=0 // pred_fallthru
    _
  // Predicated region
  $region30: #{palm_forward.7} parent=0 // pred_check
    _
  $region31: #{palm_forward.7} parent=0 // pred_check_branch
    %3686 = sbr.rel (0) target = $region33
  $region32: #{palm_forward.7} parent=0 // pred_region
    _
  $region33: #{palm_forward.7} parent=0 // pred_fallthru
    _

// kernel: palm_forward.8
$region0: #{palm_forward.8}
  #allocation0 [shape = 'u32[]', space=smem, size = 0x4, offset = 0x4, fixed_abs, tag = 'smem constant byte address 0x4 - core index']
  #allocation1 [shape = 'u32[144,128]{1,0:T(1,128)}', space=vmem, size = 0x12000, scoped, tag = 'internal scratch']
  #allocation2 [shape = 'bf16[18,512]{1,0:T(8,128)(2,1)}', space=vmem, size = 0x6000, scoped, tag = 'scratch operand']
  %s0 = inlined_call_operand.vmem [shape: bf16[2,2304], index: 0, kind: input, shape index: {}]
  %s1 = inlined_call_operand.vmem [shape: bf16[2304,512], index: 1, kind: input, shape index: {}]
  %s2 = inlined_call_operand.vmem [shape: f32[1,512], index: 2, kind: input, shape index: {}]
  %s3 = inlined_call_operand.vmem [shape: bf16[9,512,512], index: 3, kind: input, shape index: {}]
  %s4 = inlined_call_operand.vmem [shape: f32[1,512], index: 4, kind: input, shape index: {}]
  %s5 = inlined_call_operand.vmem [shape: bf16[9,2,1], index: 5, kind: input, shape index: {}]
  %s6 = inlined_call_operand.vmem [shape: f32[2,512], index: 6, kind: output, shape index: {}]
  %s7 = sld [smem:[#allocation0]]
  $region34: #{palm_forward.8} parent=0
    _
  %s9 = ssub.s32 1, %s7
  %s10 = scalar_select 0, %s9, %s7
  // Predicated region
  $region2: #{palm_forward.8} parent=0 // pred_check
    _
  $region3: #{palm_forward.8} parent=0 // pred_check_branch
    %12 = sbr.rel (0) target = $region5
  $region4: #{palm_forward.8} parent=0 // pred_region
    _
  $region5: #{palm_forward.8} parent=0 // pred_fallthru
    _
  // Predicated region
  $region6: #{palm_forward.8} parent=0 // pred_check
    _
  $region7: #{palm_forward.8} parent=0 // pred_check_branch
    %14 = sbr.rel (0) target = $region9
  $region8: #{palm_forward.8} parent=0 // pred_region
    _
  $region9: #{palm_forward.8} parent=0 // pred_fallthru
    _
  // Predicated region
  $region10: #{palm_forward.8} parent=0 // pred_check
    _
  $region11: #{palm_forward.8} parent=0 // pred_check_branch
    %16 = sbr.rel (0) target = $region13
  $region12: #{palm_forward.8} parent=0 // pred_region
    _
  $region13: #{palm_forward.8} parent=0 // pred_fallthru
    _
  // Predicated region
  $region14: #{palm_forward.8} parent=0 // pred_check
    _
  $region15: #{palm_forward.8} parent=0 // pred_check_branch
    %18 = sbr.rel (0) target = $region17
  $region16: #{palm_forward.8} parent=0 // pred_region
    _
  $region17: #{palm_forward.8} parent=0 // pred_fallthru
    _
  // Predicated region
  $region18: #{palm_forward.8} parent=0 // pred_check
    _
  $region19: #{palm_forward.8} parent=0 // pred_check_branch
    %20 = sbr.rel (0) target = $region21
  $region20: #{palm_forward.8} parent=0 // pred_region
    _
  $region21: #{palm_forward.8} parent=0 // pred_fallthru
    _
  // Predicated region
  $region22: #{palm_forward.8} parent=0 // pred_check
    _
  $region23: #{palm_forward.8} parent=0 // pred_check_branch
    %22 = sbr.rel (0) target = $region25
  $region24: #{palm_forward.8} parent=0 // pred_region
    _
  $region25: #{palm_forward.8} parent=0 // pred_fallthru
    _
  %v24 = vld [vmem:[%s0] sm:$0xff]
  %v25 = vld [vmem:[%s0 + $0x8] sm:$0xff]
  %v26 = vld [vmem:[%s0 + $0x10] sm:$0x3]
  %v27 = vld [vmem:[%s1] sm:$0xff]
  %v28 = vld [vmem:[%s1 + $0x8] sm:$0xff]
  %v29 = vld [vmem:[%s1 + $0x10] sm:$0xff]
  %v30 = vld [vmem:[%s1 + $0x18] sm:$0xff]
  %v31 = vld [vmem:[%s1 + $0x20] sm:$0xff]
  %v32 = vld [vmem:[%s1 + $0x28] sm:$0xff]
  %v33 = vld [vmem:[%s1 + $0x30] sm:$0xff]
  %v34 = vld [vmem:[%s1 + $0x38] sm:$0xff]
  %v35 = vld [vmem:[%s1 + $0x40] sm:$0xff]
  %v36 = vld [vmem:[%s1 + $0x48] sm:$0xff]
  %v37 = vld [vmem:[%s1 + $0x50] sm:$0xff]
  %v38 = vld [vmem:[%s1 + $0x58] sm:$0xff]
  %v39 = vld [vmem:[%s1 + $0x60] sm:$0xff]
  %v40 = vld [vmem:[%s1 + $0x68] sm:$0xff]
  %v41 = vld [vmem:[%s1 + $0x70] sm:$0xff]
  %v42 = vld [vmem:[%s1 + $0x78] sm:$0xff]
  %v43 = vld [vmem:[%s1 + $0x80] sm:$0xff]
  %v44 = vld [vmem:[%s1 + $0x88] sm:$0xff]
  %v45 = vld [vmem:[%s1 + $0x90] sm:$0xff]
  %v46 = vld [vmem:[%s1 + $0x98] sm:$0xff]
  %v47 = vld [vmem:[%s1 + $0xa0] sm:$0xff]
  %v48 = vld [vmem:[%s1 + $0xa8] sm:$0xff]
  %v49 = vld [vmem:[%s1 + $0xb0] sm:$0xff]
  %v50 = vld [vmem:[%s1 + $0xb8] sm:$0xff]
  %v51 = vld [vmem:[%s1 + $0xc0] sm:$0xff]
  %v52 = vld [vmem:[%s1 + $0xc8] sm:$0xff]
  %v53 = vld [vmem:[%s1 + $0xd0] sm:$0xff]
  %v54 = vld [vmem:[%s1 + $0xd8] sm:$0xff]
  %v55 = vld [vmem:[%s1 + $0xe0] sm:$0xff]
  %v56 = vld [vmem:[%s1 + $0xe8] sm:$0xff]
  %v57 = vld [vmem:[%s1 + $0xf0] sm:$0xff]
  %v58 = vld [vmem:[%s1 + $0xf8] sm:$0xff]
  %v59 = vld [vmem:[%s1 + $0x100] sm:$0xff]
  %v60 = vld [vmem:[%s1 + $0x108] sm:$0xff]
  %v61 = vld [vmem:[%s1 + $0x110] sm:$0xff]
  %v62 = vld [vmem:[%s1 + $0x118] sm:$0xff]
  %v63 = vld [vmem:[%s1 + $0x120] sm:$0xff]
  %v64 = vld [vmem:[%s1 + $0x128] sm:$0xff]
  %v65 = vld [vmem:[%s1 + $0x130] sm:$0xff]
  %v66 = vld [vmem:[%s1 + $0x138] sm:$0xff]
  %v67 = vld [vmem:[%s1 + $0x140] sm:$0xff]
  %v68 = vld [vmem:[%s1 + $0x148] sm:$0xff]
  %v69 = vld [vmem:[%s1 + $0x150] sm:$0xff]
  %v70 = vld [vmem:[%s1 + $0x158] sm:$0xff]
  %v71 = vld [vmem:[%s1 + $0x160] sm:$0xff]
  %v72 = vld [vmem:[%s1 + $0x168] sm:$0xff]
  %v73 = vld [vmem:[%s1 + $0x170] sm:$0xff]
  %v74 = vld [vmem:[%s1 + $0x178] sm:$0xff]
  %v75 = vld [vmem:[%s1 + $0x180] sm:$0xff]
  %v76 = vld [vmem:[%s1 + $0x188] sm:$0xff]
  %v77 = vld [vmem:[%s1 + $0x190] sm:$0xff]
  %v78 = vld [vmem:[%s1 + $0x198] sm:$0xff]
  %v79 = vld [vmem:[%s1 + $0x1a0] sm:$0xff]
  %v80 = vld [vmem:[%s1 + $0x1a8] sm:$0xff]
  %v81 = vld [vmem:[%s1 + $0x1b0] sm:$0xff]
  %v82 = vld [vmem:[%s1 + $0x1b8] sm:$0xff]
  %v83 = vld [vmem:[%s1 + $0x1c0] sm:$0xff]
  %v84 = vld [vmem:[%s1 + $0x1c8] sm:$0xff]
  %v85 = vld [vmem:[%s1 + $0x1d0] sm:$0xff]
  %v86 = vld [vmem:[%s1 + $0x1d8] sm:$0xff]
  %v87 = vld [vmem:[%s1 + $0x1e0] sm:$0xff]
  %v88 = vld [vmem:[%s1 + $0x1e8] sm:$0xff]
  %v89 = vld [vmem:[%s1 + $0x1f0] sm:$0xff]
  %v90 = vld [vmem:[%s1 + $0x1f8] sm:$0xff]
  %v91 = vld [vmem:[%s1 + $0x200] sm:$0xff]
  %v92 = vld [vmem:[%s1 + $0x208] sm:$0xff]
  %v93 = vld [vmem:[%s1 + $0x210] sm:$0xff]
  %v94 = vld [vmem:[%s1 + $0x218] sm:$0xff]
  %v95 = vld [vmem:[%s1 + $0x220] sm:$0xff]
  %v96 = vld [vmem:[%s1 + $0x228] sm:$0xff]
  %v97 = vld [vmem:[%s1 + $0x230] sm:$0xff]
  %v98 = vld [vmem:[%s1 + $0x238] sm:$0xff]
  %v99 = vld [vmem:[%s1 + $0x240] sm:$0xff]
  %v100 = vld [vmem:[%s1 + $0x248] sm:$0xff]
  %v101 = vld [vmem:[%s1 + $0x250] sm:$0xff]
  %v102 = vld [vmem:[%s1 + $0x258] sm:$0xff]
  %v103 = vld [vmem:[%s1 + $0x260] sm:$0xff]
  %v104 = vld [vmem:[%s1 + $0x268] sm:$0xff]
  %v105 = vld [vmem:[%s1 + $0x270] sm:$0xff]
  %v106 = vld [vmem:[%s1 + $0x278] sm:$0xff]
  %v107 = vld [vmem:[%s1 + $0x280] sm:$0xff]
  %v108 = vld [vmem:[%s1 + $0x288] sm:$0xff]
  %v109 = vld [vmem:[%s1 + $0x290] sm:$0xff]
  %v110 = vld [vmem:[%s1 + $0x298] sm:$0xff]
  %v111 = vld [vmem:[%s1 + $0x2a0] sm:$0xff]
  %v112 = vld [vmem:[%s1 + $0x2a8] sm:$0xff]
  %v113 = vld [vmem:[%s1 + $0x2b0] sm:$0xff]
  %v114 = vld [vmem:[%s1 + $0x2b8] sm:$0xff]
  %v115 = vld [vmem:[%s1 + $0x2c0] sm:$0xff]
  %v116 = vld [vmem:[%s1 + $0x2c8] sm:$0xff]
  %v117 = vld [vmem:[%s1 + $0x2d0] sm:$0xff]
  %v118 = vld [vmem:[%s1 + $0x2d8] sm:$0xff]
  %v119 = vld [vmem:[%s1 + $0x2e0] sm:$0xff]
  %v120 = vld [vmem:[%s1 + $0x2e8] sm:$0xff]
  %v121 = vld [vmem:[%s1 + $0x2f0] sm:$0xff]
  %v122 = vld [vmem:[%s1 + $0x2f8] sm:$0xff]
  %v123 = vld [vmem:[%s1 + $0x300] sm:$0xff]
  %v124 = vld [vmem:[%s1 + $0x308] sm:$0xff]
  %v125 = vld [vmem:[%s1 + $0x310] sm:$0xff]
  %v126 = vld [vmem:[%s1 + $0x318] sm:$0xff]
  %v127 = vld [vmem:[%s1 + $0x320] sm:$0xff]
  %v128 = vld [vmem:[%s1 + $0x328] sm:$0xff]
  %v129 = vld [vmem:[%s1 + $0x330] sm:$0xff]
  %v130 = vld [vmem:[%s1 + $0x338] sm:$0xff]
  %v131 = vld [vmem:[%s1 + $0x340] sm:$0xff]
  %v132 = vld [vmem:[%s1 + $0x348] sm:$0xff]
  %v133 = vld [vmem:[%s1 + $0x350] sm:$0xff]
  %v134 = vld [vmem:[%s1 + $0x358] sm:$0xff]
  %v135 = vld [vmem:[%s1 + $0x360] sm:$0xff]
  %v136 = vld [vmem:[%s1 + $0x368] sm:$0xff]
  %v137 = vld [vmem:[%s1 + $0x370] sm:$0xff]
  %v138 = vld [vmem:[%s1 + $0x378] sm:$0xff]
  %v139 = vld [vmem:[%s1 + $0x380] sm:$0xff]
  %v140 = vld [vmem:[%s1 + $0x388] sm:$0xff]
  %v141 = vld [vmem:[%s1 + $0x390] sm:$0xff]
  %v142 = vld [vmem:[%s1 + $0x398] sm:$0xff]
  %v143 = vld [vmem:[%s1 + $0x3a0] sm:$0xff]
  %v144 = vld [vmem:[%s1 + $0x3a8] sm:$0xff]
  %v145 = vld [vmem:[%s1 + $0x3b0] sm:$0xff]
  %v146 = vld [vmem:[%s1 + $0x3b8] sm:$0xff]
  %v147 = vld [vmem:[%s1 + $0x3c0] sm:$0xff]
  %v148 = vld [vmem:[%s1 + $0x3c8] sm:$0xff]
  %v149 = vld [vmem:[%s1 + $0x3d0] sm:$0xff]
  %v150 = vld [vmem:[%s1 + $0x3d8] sm:$0xff]
  %v151 = vld [vmem:[%s1 + $0x3e0] sm:$0xff]
  %v152 = vld [vmem:[%s1 + $0x3e8] sm:$0xff]
  %v153 = vld [vmem:[%s1 + $0x3f0] sm:$0xff]
  %v154 = vld [vmem:[%s1 + $0x3f8] sm:$0xff]
  %v155 = vld [vmem:[%s1 + $0x400] sm:$0xff]
  %v156 = vld [vmem:[%s1 + $0x408] sm:$0xff]
  %v157 = vld [vmem:[%s1 + $0x410] sm:$0xff]
  %v158 = vld [vmem:[%s1 + $0x418] sm:$0xff]
  %v159 = vld [vmem:[%s1 + $0x420] sm:$0xff]
  %v160 = vld [vmem:[%s1 + $0x428] sm:$0xff]
  %v161 = vld [vmem:[%s1 + $0x430] sm:$0xff]
  %v162 = vld [vmem:[%s1 + $0x438] sm:$0xff]
  %v163 = vld [vmem:[%s1 + $0x440] sm:$0xff]
  %v164 = vld [vmem:[%s1 + $0x448] sm:$0xff]
  %v165 = vld [vmem:[%s1 + $0x450] sm:$0xff]
  %v166 = vld [vmem:[%s1 + $0x458] sm:$0xff]
  %v167 = vld [vmem:[%s1 + $0x460] sm:$0xff]
  %v168 = vld [vmem:[%s1 + $0x468] sm:$0xff]
  %v169 = vld [vmem:[%s1 + $0x470] sm:$0xff]
  %v170 = vld [vmem:[%s1 + $0x478] sm:$0xff]
  %v171 = vld [vmem:[%s1 + $0x480] sm:$0xff]
  %v172 = vld [vmem:[%s1 + $0x488] sm:$0xff]
  %v173 = vld [vmem:[%s1 + $0x490] sm:$0xff]
  %v174 = vld [vmem:[%s1 + $0x498] sm:$0xff]
  %v175 = vld [vmem:[%s1 + $0x4a0] sm:$0xff]
  %v176 = vld [vmem:[%s1 + $0x4a8] sm:$0xff]
  %v177 = vld [vmem:[%s1 + $0x4b0] sm:$0xff]
  %v178 = vld [vmem:[%s1 + $0x4b8] sm:$0xff]
  %v179 = vld [vmem:[%s1 + $0x4c0] sm:$0xff]
  %v180 = vld [vmem:[%s1 + $0x4c8] sm:$0xff]
  %v181 = vld [vmem:[%s1 + $0x4d0] sm:$0xff]
  %v182 = vld [vmem:[%s1 + $0x4d8] sm:$0xff]
  %v183 = vld [vmem:[%s1 + $0x4e0] sm:$0xff]
  %v184 = vld [vmem:[%s1 + $0x4e8] sm:$0xff]
  %v185 = vld [vmem:[%s1 + $0x4f0] sm:$0xff]
  %v186 = vld [vmem:[%s1 + $0x4f8] sm:$0xff]
  %v187 = vld [vmem:[%s1 + $0x500] sm:$0xff]
  %v188 = vld [vmem:[%s1 + $0x508] sm:$0xff]
  %v189 = vld [vmem:[%s1 + $0x510] sm:$0xff]
  %v190 = vld [vmem:[%s1 + $0x518] sm:$0xff]
  %v191 = vld [vmem:[%s1 + $0x520] sm:$0xff]
  %v192 = vld [vmem:[%s1 + $0x528] sm:$0xff]
  %v193 = vld [vmem:[%s1 + $0x530] sm:$0xff]
  %v194 = vld [vmem:[%s1 + $0x538] sm:$0xff]
  %v195 = vld [vmem:[%s1 + $0x540] sm:$0xff]
  %v196 = vld [vmem:[%s1 + $0x548] sm:$0xff]
  %v197 = vld [vmem:[%s1 + $0x550] sm:$0xff]
  %v198 = vld [vmem:[%s1 + $0x558] sm:$0xff]
  %v199 = vld [vmem:[%s1 + $0x560] sm:$0xff]
  %v200 = vld [vmem:[%s1 + $0x568] sm:$0xff]
  %v201 = vld [vmem:[%s1 + $0x570] sm:$0xff]
  %v202 = vld [vmem:[%s1 + $0x578] sm:$0xff]
  %v203 = vld [vmem:[%s1 + $0x580] sm:$0xff]
  %v204 = vld [vmem:[%s1 + $0x588] sm:$0xff]
  %v205 = vld [vmem:[%s1 + $0x590] sm:$0xff]
  %v206 = vld [vmem:[%s1 + $0x598] sm:$0xff]
  %v207 = vld [vmem:[%s1 + $0x5a0] sm:$0xff]
  %v208 = vld [vmem:[%s1 + $0x5a8] sm:$0xff]
  %v209 = vld [vmem:[%s1 + $0x5b0] sm:$0xff]
  %v210 = vld [vmem:[%s1 + $0x5b8] sm:$0xff]
  %v211 = vld [vmem:[%s1 + $0x5c0] sm:$0xff]
  %v212 = vld [vmem:[%s1 + $0x5c8] sm:$0xff]
  %v213 = vld [vmem:[%s1 + $0x5d0] sm:$0xff]
  %v214 = vld [vmem:[%s1 + $0x5d8] sm:$0xff]
  %v215 = vld [vmem:[%s1 + $0x5e0] sm:$0xff]
  %v216 = vld [vmem:[%s1 + $0x5e8] sm:$0xff]
  %v217 = vld [vmem:[%s1 + $0x5f0] sm:$0xff]
  %v218 = vld [vmem:[%s1 + $0x5f8] sm:$0xff]
  %v219 = vld [vmem:[%s1 + $0x600] sm:$0xff]
  %v220 = vld [vmem:[%s1 + $0x608] sm:$0xff]
  %v221 = vld [vmem:[%s1 + $0x610] sm:$0xff]
  %v222 = vld [vmem:[%s1 + $0x618] sm:$0xff]
  %v223 = vld [vmem:[%s1 + $0x620] sm:$0xff]
  %v224 = vld [vmem:[%s1 + $0x628] sm:$0xff]
  %v225 = vld [vmem:[%s1 + $0x630] sm:$0xff]
  %v226 = vld [vmem:[%s1 + $0x638] sm:$0xff]
  %v227 = vld [vmem:[%s1 + $0x640] sm:$0xff]
  %v228 = vld [vmem:[%s1 + $0x648] sm:$0xff]
  %v229 = vld [vmem:[%s1 + $0x650] sm:$0xff]
  %v230 = vld [vmem:[%s1 + $0x658] sm:$0xff]
  %v231 = vld [vmem:[%s1 + $0x660] sm:$0xff]
  %v232 = vld [vmem:[%s1 + $0x668] sm:$0xff]
  %v233 = vld [vmem:[%s1 + $0x670] sm:$0xff]
  %v234 = vld [vmem:[%s1 + $0x678] sm:$0xff]
  %v235 = vld [vmem:[%s1 + $0x680] sm:$0xff]
  %v236 = vld [vmem:[%s1 + $0x688] sm:$0xff]
  %v237 = vld [vmem:[%s1 + $0x690] sm:$0xff]
  %v238 = vld [vmem:[%s1 + $0x698] sm:$0xff]
  %v239 = vld [vmem:[%s1 + $0x6a0] sm:$0xff]
  %v240 = vld [vmem:[%s1 + $0x6a8] sm:$0xff]
  %v241 = vld [vmem:[%s1 + $0x6b0] sm:$0xff]
  %v242 = vld [vmem:[%s1 + $0x6b8] sm:$0xff]
  %v243 = vld [vmem:[%s1 + $0x6c0] sm:$0xff]
  %v244 = vld [vmem:[%s1 + $0x6c8] sm:$0xff]
  %v245 = vld [vmem:[%s1 + $0x6d0] sm:$0xff]
  %v246 = vld [vmem:[%s1 + $0x6d8] sm:$0xff]
  %v247 = vld [vmem:[%s1 + $0x6e0] sm:$0xff]
  %v248 = vld [vmem:[%s1 + $0x6e8] sm:$0xff]
  %v249 = vld [vmem:[%s1 + $0x6f0] sm:$0xff]
  %v250 = vld [vmem:[%s1 + $0x6f8] sm:$0xff]
  %v251 = vld [vmem:[%s1 + $0x700] sm:$0xff]
  %v252 = vld [vmem:[%s1 + $0x708] sm:$0xff]
  %v253 = vld [vmem:[%s1 + $0x710] sm:$0xff]
  %v254 = vld [vmem:[%s1 + $0x718] sm:$0xff]
  %v255 = vld [vmem:[%s1 + $0x720] sm:$0xff]
  %v256 = vld [vmem:[%s1 + $0x728] sm:$0xff]
  %v257 = vld [vmem:[%s1 + $0x730] sm:$0xff]
  %v258 = vld [vmem:[%s1 + $0x738] sm:$0xff]
  %v259 = vld [vmem:[%s1 + $0x740] sm:$0xff]
  %v260 = vld [vmem:[%s1 + $0x748] sm:$0xff]
  %v261 = vld [vmem:[%s1 + $0x750] sm:$0xff]
  %v262 = vld [vmem:[%s1 + $0x758] sm:$0xff]
  %v263 = vld [vmem:[%s1 + $0x760] sm:$0xff]
  %v264 = vld [vmem:[%s1 + $0x768] sm:$0xff]
  %v265 = vld [vmem:[%s1 + $0x770] sm:$0xff]
  %v266 = vld [vmem:[%s1 + $0x778] sm:$0xff]
  %v267 = vld [vmem:[%s1 + $0x780] sm:$0xff]
  %v268 = vld [vmem:[%s1 + $0x788] sm:$0xff]
  %v269 = vld [vmem:[%s1 + $0x790] sm:$0xff]
  %v270 = vld [vmem:[%s1 + $0x798] sm:$0xff]
  %v271 = vld [vmem:[%s1 + $0x7a0] sm:$0xff]
  %v272 = vld [vmem:[%s1 + $0x7a8] sm:$0xff]
  %v273 = vld [vmem:[%s1 + $0x7b0] sm:$0xff]
  %v274 = vld [vmem:[%s1 + $0x7b8] sm:$0xff]
  %v275 = vld [vmem:[%s1 + $0x7c0] sm:$0xff]
  %v276 = vld [vmem:[%s1 + $0x7c8] sm:$0xff]
  %v277 = vld [vmem:[%s1 + $0x7d0] sm:$0xff]
  %v278 = vld [vmem:[%s1 + $0x7d8] sm:$0xff]
  %v279 = vld [vmem:[%s1 + $0x7e0] sm:$0xff]
  %v280 = vld [vmem:[%s1 + $0x7e8] sm:$0xff]
  %v281 = vld [vmem:[%s1 + $0x7f0] sm:$0xff]
  %v282 = vld [vmem:[%s1 + $0x7f8] sm:$0xff]
  %v283 = vld [vmem:[%s1 + $0x800] sm:$0xff]
  %v284 = vld [vmem:[%s1 + $0x808] sm:$0xff]
  %v285 = vld [vmem:[%s1 + $0x810] sm:$0xff]
  %v286 = vld [vmem:[%s1 + $0x818] sm:$0xff]
  %v287 = vld [vmem:[%s1 + $0x820] sm:$0xff]
  %v288 = vld [vmem:[%s1 + $0x828] sm:$0xff]
  %v289 = vld [vmem:[%s1 + $0x830] sm:$0xff]
  %v290 = vld [vmem:[%s1 + $0x838] sm:$0xff]
  %v291 = vld [vmem:[%s1 + $0x840] sm:$0xff]
  %v292 = vld [vmem:[%s1 + $0x848] sm:$0xff]
  %v293 = vld [vmem:[%s1 + $0x850] sm:$0xff]
  %v294 = vld [vmem:[%s1 + $0x858] sm:$0xff]
  %v295 = vld [vmem:[%s1 + $0x860] sm:$0xff]
  %v296 = vld [vmem:[%s1 + $0x868] sm:$0xff]
  %v297 = vld [vmem:[%s1 + $0x870] sm:$0xff]
  %v298 = vld [vmem:[%s1 + $0x878] sm:$0xff]
  %v299 = vld [vmem:[%s1 + $0x880] sm:$0xff]
  %v300 = vld [vmem:[%s1 + $0x888] sm:$0xff]
  %v301 = vld [vmem:[%s1 + $0x890] sm:$0xff]
  %v302 = vld [vmem:[%s1 + $0x898] sm:$0xff]
  %v303 = vld [vmem:[%s1 + $0x8a0] sm:$0xff]
  %v304 = vld [vmem:[%s1 + $0x8a8] sm:$0xff]
  %v305 = vld [vmem:[%s1 + $0x8b0] sm:$0xff]
  %v306 = vld [vmem:[%s1 + $0x8b8] sm:$0xff]
  %v307 = vld [vmem:[%s1 + $0x8c0] sm:$0xff]
  %v308 = vld [vmem:[%s1 + $0x8c8] sm:$0xff]
  %v309 = vld [vmem:[%s1 + $0x8d0] sm:$0xff]
  %v310 = vld [vmem:[%s1 + $0x8d8] sm:$0xff]
  %v311 = vld [vmem:[%s1 + $0x8e0] sm:$0xff]
  %v312 = vld [vmem:[%s1 + $0x8e8] sm:$0xff]
  %v313 = vld [vmem:[%s1 + $0x8f0] sm:$0xff]
  %v314 = vld [vmem:[%s1 + $0x8f8] sm:$0xff]
  %v315 = vld [vmem:[%s1 + $0x900] sm:$0xff]
  %v316 = vld [vmem:[%s1 + $0x908] sm:$0xff]
  %v317 = vld [vmem:[%s1 + $0x910] sm:$0xff]
  %v318 = vld [vmem:[%s1 + $0x918] sm:$0xff]
  %v319 = vld [vmem:[%s1 + $0x920] sm:$0xff]
  %v320 = vld [vmem:[%s1 + $0x928] sm:$0xff]
  %v321 = vld [vmem:[%s1 + $0x930] sm:$0xff]
  %v322 = vld [vmem:[%s1 + $0x938] sm:$0xff]
  %v323 = vld [vmem:[%s1 + $0x940] sm:$0xff]
  %v324 = vld [vmem:[%s1 + $0x948] sm:$0xff]
  %v325 = vld [vmem:[%s1 + $0x950] sm:$0xff]
  %v326 = vld [vmem:[%s1 + $0x958] sm:$0xff]
  %v327 = vld [vmem:[%s1 + $0x960] sm:$0xff]
  %v328 = vld [vmem:[%s1 + $0x968] sm:$0xff]
  %v329 = vld [vmem:[%s1 + $0x970] sm:$0xff]
  %v330 = vld [vmem:[%s1 + $0x978] sm:$0xff]
  %v331 = vld [vmem:[%s1 + $0x980] sm:$0xff]
  %v332 = vld [vmem:[%s1 + $0x988] sm:$0xff]
  %v333 = vld [vmem:[%s1 + $0x990] sm:$0xff]
  %v334 = vld [vmem:[%s1 + $0x998] sm:$0xff]
  %v335 = vld [vmem:[%s1 + $0x9a0] sm:$0xff]
  %v336 = vld [vmem:[%s1 + $0x9a8] sm:$0xff]
  %v337 = vld [vmem:[%s1 + $0x9b0] sm:$0xff]
  %v338 = vld [vmem:[%s1 + $0x9b8] sm:$0xff]
  %v339 = vld [vmem:[%s1 + $0x9c0] sm:$0xff]
  %v340 = vld [vmem:[%s1 + $0x9c8] sm:$0xff]
  %v341 = vld [vmem:[%s1 + $0x9d0] sm:$0xff]
  %v342 = vld [vmem:[%s1 + $0x9d8] sm:$0xff]
  %v343 = vld [vmem:[%s1 + $0x9e0] sm:$0xff]
  %v344 = vld [vmem:[%s1 + $0x9e8] sm:$0xff]
  %v345 = vld [vmem:[%s1 + $0x9f0] sm:$0xff]
  %v346 = vld [vmem:[%s1 + $0x9f8] sm:$0xff]
  %v347 = vld [vmem:[%s1 + $0xa00] sm:$0xff]
  %v348 = vld [vmem:[%s1 + $0xa08] sm:$0xff]
  %v349 = vld [vmem:[%s1 + $0xa10] sm:$0xff]
  %v350 = vld [vmem:[%s1 + $0xa18] sm:$0xff]
  %v351 = vld [vmem:[%s1 + $0xa20] sm:$0xff]
  %v352 = vld [vmem:[%s1 + $0xa28] sm:$0xff]
  %v353 = vld [vmem:[%s1 + $0xa30] sm:$0xff]
  %v354 = vld [vmem:[%s1 + $0xa38] sm:$0xff]
  %v355 = vld [vmem:[%s1 + $0xa40] sm:$0xff]
  %v356 = vld [vmem:[%s1 + $0xa48] sm:$0xff]
  %v357 = vld [vmem:[%s1 + $0xa50] sm:$0xff]
  %v358 = vld [vmem:[%s1 + $0xa58] sm:$0xff]
  %v359 = vld [vmem:[%s1 + $0xa60] sm:$0xff]
  %v360 = vld [vmem:[%s1 + $0xa68] sm:$0xff]
  %v361 = vld [vmem:[%s1 + $0xa70] sm:$0xff]
  %v362 = vld [vmem:[%s1 + $0xa78] sm:$0xff]
  %v363 = vld [vmem:[%s1 + $0xa80] sm:$0xff]
  %v364 = vld [vmem:[%s1 + $0xa88] sm:$0xff]
  %v365 = vld [vmem:[%s1 + $0xa90] sm:$0xff]
  %v366 = vld [vmem:[%s1 + $0xa98] sm:$0xff]
  %v367 = vld [vmem:[%s1 + $0xaa0] sm:$0xff]
  %v368 = vld [vmem:[%s1 + $0xaa8] sm:$0xff]
  %v369 = vld [vmem:[%s1 + $0xab0] sm:$0xff]
  %v370 = vld [vmem:[%s1 + $0xab8] sm:$0xff]
  %v371 = vld [vmem:[%s1 + $0xac0] sm:$0xff]
  %v372 = vld [vmem:[%s1 + $0xac8] sm:$0xff]
  %v373 = vld [vmem:[%s1 + $0xad0] sm:$0xff]
  %v374 = vld [vmem:[%s1 + $0xad8] sm:$0xff]
  %v375 = vld [vmem:[%s1 + $0xae0] sm:$0xff]
  %v376 = vld [vmem:[%s1 + $0xae8] sm:$0xff]
  %v377 = vld [vmem:[%s1 + $0xaf0] sm:$0xff]
  %v378 = vld [vmem:[%s1 + $0xaf8] sm:$0xff]
  %v379 = vld [vmem:[%s1 + $0xb00] sm:$0xff]
  %v380 = vld [vmem:[%s1 + $0xb08] sm:$0xff]
  %v381 = vld [vmem:[%s1 + $0xb10] sm:$0xff]
  %v382 = vld [vmem:[%s1 + $0xb18] sm:$0xff]
  %v383 = vld [vmem:[%s1 + $0xb20] sm:$0xff]
  %v384 = vld [vmem:[%s1 + $0xb28] sm:$0xff]
  %v385 = vld [vmem:[%s1 + $0xb30] sm:$0xff]
  %v386 = vld [vmem:[%s1 + $0xb38] sm:$0xff]
  %v387 = vld [vmem:[%s1 + $0xb40] sm:$0xff]
  %v388 = vld [vmem:[%s1 + $0xb48] sm:$0xff]
  %v389 = vld [vmem:[%s1 + $0xb50] sm:$0xff]
  %v390 = vld [vmem:[%s1 + $0xb58] sm:$0xff]
  %v391 = vld [vmem:[%s1 + $0xb60] sm:$0xff]
  %v392 = vld [vmem:[%s1 + $0xb68] sm:$0xff]
  %v393 = vld [vmem:[%s1 + $0xb70] sm:$0xff]
  %v394 = vld [vmem:[%s1 + $0xb78] sm:$0xff]
  %v395 = vld [vmem:[%s1 + $0xb80] sm:$0xff]
  %v396 = vld [vmem:[%s1 + $0xb88] sm:$0xff]
  %v397 = vld [vmem:[%s1 + $0xb90] sm:$0xff]
  %v398 = vld [vmem:[%s1 + $0xb98] sm:$0xff]
  %v399 = vld [vmem:[%s1 + $0xba0] sm:$0xff]
  %v400 = vld [vmem:[%s1 + $0xba8] sm:$0xff]
  %v401 = vld [vmem:[%s1 + $0xbb0] sm:$0xff]
  %v402 = vld [vmem:[%s1 + $0xbb8] sm:$0xff]
  %v403 = vld [vmem:[%s1 + $0xbc0] sm:$0xff]
  %v404 = vld [vmem:[%s1 + $0xbc8] sm:$0xff]
  %v405 = vld [vmem:[%s1 + $0xbd0] sm:$0xff]
  %v406 = vld [vmem:[%s1 + $0xbd8] sm:$0xff]
  %v407 = vld [vmem:[%s1 + $0xbe0] sm:$0xff]
  %v408 = vld [vmem:[%s1 + $0xbe8] sm:$0xff]
  %v409 = vld [vmem:[%s1 + $0xbf0] sm:$0xff]
  %v410 = vld [vmem:[%s1 + $0xbf8] sm:$0xff]
  %v411 = vld [vmem:[%s1 + $0xc00] sm:$0xff]
  %v412 = vld [vmem:[%s1 + $0xc08] sm:$0xff]
  %v413 = vld [vmem:[%s1 + $0xc10] sm:$0xff]
  %v414 = vld [vmem:[%s1 + $0xc18] sm:$0xff]
  %v415 = vld [vmem:[%s1 + $0xc20] sm:$0xff]
  %v416 = vld [vmem:[%s1 + $0xc28] sm:$0xff]
  %v417 = vld [vmem:[%s1 + $0xc30] sm:$0xff]
  %v418 = vld [vmem:[%s1 + $0xc38] sm:$0xff]
  %v419 = vld [vmem:[%s1 + $0xc40] sm:$0xff]
  %v420 = vld [vmem:[%s1 + $0xc48] sm:$0xff]
  %v421 = vld [vmem:[%s1 + $0xc50] sm:$0xff]
  %v422 = vld [vmem:[%s1 + $0xc58] sm:$0xff]
  %v423 = vld [vmem:[%s1 + $0xc60] sm:$0xff]
  %v424 = vld [vmem:[%s1 + $0xc68] sm:$0xff]
  %v425 = vld [vmem:[%s1 + $0xc70] sm:$0xff]
  %v426 = vld [vmem:[%s1 + $0xc78] sm:$0xff]
  %v427 = vld [vmem:[%s1 + $0xc80] sm:$0xff]
  %v428 = vld [vmem:[%s1 + $0xc88] sm:$0xff]
  %v429 = vld [vmem:[%s1 + $0xc90] sm:$0xff]
  %v430 = vld [vmem:[%s1 + $0xc98] sm:$0xff]
  %v431 = vld [vmem:[%s1 + $0xca0] sm:$0xff]
  %v432 = vld [vmem:[%s1 + $0xca8] sm:$0xff]
  %v433 = vld [vmem:[%s1 + $0xcb0] sm:$0xff]
  %v434 = vld [vmem:[%s1 + $0xcb8] sm:$0xff]
  %v435 = vld [vmem:[%s1 + $0xcc0] sm:$0xff]
  %v436 = vld [vmem:[%s1 + $0xcc8] sm:$0xff]
  %v437 = vld [vmem:[%s1 + $0xcd0] sm:$0xff]
  %v438 = vld [vmem:[%s1 + $0xcd8] sm:$0xff]
  %v439 = vld [vmem:[%s1 + $0xce0] sm:$0xff]
  %v440 = vld [vmem:[%s1 + $0xce8] sm:$0xff]
  %v441 = vld [vmem:[%s1 + $0xcf0] sm:$0xff]
  %v442 = vld [vmem:[%s1 + $0xcf8] sm:$0xff]
  %v443 = vld [vmem:[%s1 + $0xd00] sm:$0xff]
  %v444 = vld [vmem:[%s1 + $0xd08] sm:$0xff]
  %v445 = vld [vmem:[%s1 + $0xd10] sm:$0xff]
  %v446 = vld [vmem:[%s1 + $0xd18] sm:$0xff]
  %v447 = vld [vmem:[%s1 + $0xd20] sm:$0xff]
  %v448 = vld [vmem:[%s1 + $0xd28] sm:$0xff]
  %v449 = vld [vmem:[%s1 + $0xd30] sm:$0xff]
  %v450 = vld [vmem:[%s1 + $0xd38] sm:$0xff]
  %v451 = vld [vmem:[%s1 + $0xd40] sm:$0xff]
  %v452 = vld [vmem:[%s1 + $0xd48] sm:$0xff]
  %v453 = vld [vmem:[%s1 + $0xd50] sm:$0xff]
  %v454 = vld [vmem:[%s1 + $0xd58] sm:$0xff]
  %v455 = vld [vmem:[%s1 + $0xd60] sm:$0xff]
  %v456 = vld [vmem:[%s1 + $0xd68] sm:$0xff]
  %v457 = vld [vmem:[%s1 + $0xd70] sm:$0xff]
  %v458 = vld [vmem:[%s1 + $0xd78] sm:$0xff]
  %v459 = vld [vmem:[%s1 + $0xd80] sm:$0xff]
  %v460 = vld [vmem:[%s1 + $0xd88] sm:$0xff]
  %v461 = vld [vmem:[%s1 + $0xd90] sm:$0xff]
  %v462 = vld [vmem:[%s1 + $0xd98] sm:$0xff]
  %v463 = vld [vmem:[%s1 + $0xda0] sm:$0xff]
  %v464 = vld [vmem:[%s1 + $0xda8] sm:$0xff]
  %v465 = vld [vmem:[%s1 + $0xdb0] sm:$0xff]
  %v466 = vld [vmem:[%s1 + $0xdb8] sm:$0xff]
  %v467 = vld [vmem:[%s1 + $0xdc0] sm:$0xff]
  %v468 = vld [vmem:[%s1 + $0xdc8] sm:$0xff]
  %v469 = vld [vmem:[%s1 + $0xdd0] sm:$0xff]
  %v470 = vld [vmem:[%s1 + $0xdd8] sm:$0xff]
  %v471 = vld [vmem:[%s1 + $0xde0] sm:$0xff]
  %v472 = vld [vmem:[%s1 + $0xde8] sm:$0xff]
  %v473 = vld [vmem:[%s1 + $0xdf0] sm:$0xff]
  %v474 = vld [vmem:[%s1 + $0xdf8] sm:$0xff]
  %v475 = vld [vmem:[%s1 + $0xe00] sm:$0xff]
  %v476 = vld [vmem:[%s1 + $0xe08] sm:$0xff]
  %v477 = vld [vmem:[%s1 + $0xe10] sm:$0xff]
  %v478 = vld [vmem:[%s1 + $0xe18] sm:$0xff]
  %v479 = vld [vmem:[%s1 + $0xe20] sm:$0xff]
  %v480 = vld [vmem:[%s1 + $0xe28] sm:$0xff]
  %v481 = vld [vmem:[%s1 + $0xe30] sm:$0xff]
  %v482 = vld [vmem:[%s1 + $0xe38] sm:$0xff]
  %v483 = vld [vmem:[%s1 + $0xe40] sm:$0xff]
  %v484 = vld [vmem:[%s1 + $0xe48] sm:$0xff]
  %v485 = vld [vmem:[%s1 + $0xe50] sm:$0xff]
  %v486 = vld [vmem:[%s1 + $0xe58] sm:$0xff]
  %v487 = vld [vmem:[%s1 + $0xe60] sm:$0xff]
  %v488 = vld [vmem:[%s1 + $0xe68] sm:$0xff]
  %v489 = vld [vmem:[%s1 + $0xe70] sm:$0xff]
  %v490 = vld [vmem:[%s1 + $0xe78] sm:$0xff]
  %v491 = vld [vmem:[%s1 + $0xe80] sm:$0xff]
  %v492 = vld [vmem:[%s1 + $0xe88] sm:$0xff]
  %v493 = vld [vmem:[%s1 + $0xe90] sm:$0xff]
  %v494 = vld [vmem:[%s1 + $0xe98] sm:$0xff]
  %v495 = vld [vmem:[%s1 + $0xea0] sm:$0xff]
  %v496 = vld [vmem:[%s1 + $0xea8] sm:$0xff]
  %v497 = vld [vmem:[%s1 + $0xeb0] sm:$0xff]
  %v498 = vld [vmem:[%s1 + $0xeb8] sm:$0xff]
  %v499 = vld [vmem:[%s1 + $0xec0] sm:$0xff]
  %v500 = vld [vmem:[%s1 + $0xec8] sm:$0xff]
  %v501 = vld [vmem:[%s1 + $0xed0] sm:$0xff]
  %v502 = vld [vmem:[%s1 + $0xed8] sm:$0xff]
  %v503 = vld [vmem:[%s1 + $0xee0] sm:$0xff]
  %v504 = vld [vmem:[%s1 + $0xee8] sm:$0xff]
  %v505 = vld [vmem:[%s1 + $0xef0] sm:$0xff]
  %v506 = vld [vmem:[%s1 + $0xef8] sm:$0xff]
  %v507 = vld [vmem:[%s1 + $0xf00] sm:$0xff]
  %v508 = vld [vmem:[%s1 + $0xf08] sm:$0xff]
  %v509 = vld [vmem:[%s1 + $0xf10] sm:$0xff]
  %v510 = vld [vmem:[%s1 + $0xf18] sm:$0xff]
  %v511 = vld [vmem:[%s1 + $0xf20] sm:$0xff]
  %v512 = vld [vmem:[%s1 + $0xf28] sm:$0xff]
  %v513 = vld [vmem:[%s1 + $0xf30] sm:$0xff]
  %v514 = vld [vmem:[%s1 + $0xf38] sm:$0xff]
  %v515 = vld [vmem:[%s1 + $0xf40] sm:$0xff]
  %v516 = vld [vmem:[%s1 + $0xf48] sm:$0xff]
  %v517 = vld [vmem:[%s1 + $0xf50] sm:$0xff]
  %v518 = vld [vmem:[%s1 + $0xf58] sm:$0xff]
  %v519 = vld [vmem:[%s1 + $0xf60] sm:$0xff]
  %v520 = vld [vmem:[%s1 + $0xf68] sm:$0xff]
  %v521 = vld [vmem:[%s1 + $0xf70] sm:$0xff]
  %v522 = vld [vmem:[%s1 + $0xf78] sm:$0xff]
  %v523 = vld [vmem:[%s1 + $0xf80] sm:$0xff]
  %v524 = vld [vmem:[%s1 + $0xf88] sm:$0xff]
  %v525 = vld [vmem:[%s1 + $0xf90] sm:$0xff]
  %v526 = vld [vmem:[%s1 + $0xf98] sm:$0xff]
  %v527 = vld [vmem:[%s1 + $0xfa0] sm:$0xff]
  %v528 = vld [vmem:[%s1 + $0xfa8] sm:$0xff]
  %v529 = vld [vmem:[%s1 + $0xfb0] sm:$0xff]
  %v530 = vld [vmem:[%s1 + $0xfb8] sm:$0xff]
  %v531 = vld [vmem:[%s1 + $0xfc0] sm:$0xff]
  %v532 = vld [vmem:[%s1 + $0xfc8] sm:$0xff]
  %v533 = vld [vmem:[%s1 + $0xfd0] sm:$0xff]
  %v534 = vld [vmem:[%s1 + $0xfd8] sm:$0xff]
  %v535 = vld [vmem:[%s1 + $0xfe0] sm:$0xff]
  %v536 = vld [vmem:[%s1 + $0xfe8] sm:$0xff]
  %v537 = vld [vmem:[%s1 + $0xff0] sm:$0xff]
  %v538 = vld [vmem:[%s1 + $0xff8] sm:$0xff]
  %v539 = vld [vmem:[%s1 + $0x1000] sm:$0xff]
  %v540 = vld [vmem:[%s1 + $0x1008] sm:$0xff]
  %v541 = vld [vmem:[%s1 + $0x1010] sm:$0xff]
  %v542 = vld [vmem:[%s1 + $0x1018] sm:$0xff]
  %v543 = vld [vmem:[%s1 + $0x1020] sm:$0xff]
  %v544 = vld [vmem:[%s1 + $0x1028] sm:$0xff]
  %v545 = vld [vmem:[%s1 + $0x1030] sm:$0xff]
  %v546 = vld [vmem:[%s1 + $0x1038] sm:$0xff]
  %v547 = vld [vmem:[%s1 + $0x1040] sm:$0xff]
  %v548 = vld [vmem:[%s1 + $0x1048] sm:$0xff]
  %v549 = vld [vmem:[%s1 + $0x1050] sm:$0xff]
  %v550 = vld [vmem:[%s1 + $0x1058] sm:$0xff]
  %v551 = vld [vmem:[%s1 + $0x1060] sm:$0xff]
  %v552 = vld [vmem:[%s1 + $0x1068] sm:$0xff]
  %v553 = vld [vmem:[%s1 + $0x1070] sm:$0xff]
  %v554 = vld [vmem:[%s1 + $0x1078] sm:$0xff]
  %v555 = vld [vmem:[%s1 + $0x1080] sm:$0xff]
  %v556 = vld [vmem:[%s1 + $0x1088] sm:$0xff]
  %v557 = vld [vmem:[%s1 + $0x1090] sm:$0xff]
  %v558 = vld [vmem:[%s1 + $0x1098] sm:$0xff]
  %v559 = vld [vmem:[%s1 + $0x10a0] sm:$0xff]
  %v560 = vld [vmem:[%s1 + $0x10a8] sm:$0xff]
  %v561 = vld [vmem:[%s1 + $0x10b0] sm:$0xff]
  %v562 = vld [vmem:[%s1 + $0x10b8] sm:$0xff]
  %v563 = vld [vmem:[%s1 + $0x10c0] sm:$0xff]
  %v564 = vld [vmem:[%s1 + $0x10c8] sm:$0xff]
  %v565 = vld [vmem:[%s1 + $0x10d0] sm:$0xff]
  %v566 = vld [vmem:[%s1 + $0x10d8] sm:$0xff]
  %v567 = vld [vmem:[%s1 + $0x10e0] sm:$0xff]
  %v568 = vld [vmem:[%s1 + $0x10e8] sm:$0xff]
  %v569 = vld [vmem:[%s1 + $0x10f0] sm:$0xff]
  %v570 = vld [vmem:[%s1 + $0x10f8] sm:$0xff]
  %v571 = vld [vmem:[%s1 + $0x1100] sm:$0xff]
  %v572 = vld [vmem:[%s1 + $0x1108] sm:$0xff]
  %v573 = vld [vmem:[%s1 + $0x1110] sm:$0xff]
  %v574 = vld [vmem:[%s1 + $0x1118] sm:$0xff]
  %v575 = vld [vmem:[%s1 + $0x1120] sm:$0xff]
  %v576 = vld [vmem:[%s1 + $0x1128] sm:$0xff]
  %v577 = vld [vmem:[%s1 + $0x1130] sm:$0xff]
  %v578 = vld [vmem:[%s1 + $0x1138] sm:$0xff]
  %v579 = vld [vmem:[%s1 + $0x1140] sm:$0xff]
  %v580 = vld [vmem:[%s1 + $0x1148] sm:$0xff]
  %v581 = vld [vmem:[%s1 + $0x1150] sm:$0xff]
  %v582 = vld [vmem:[%s1 + $0x1158] sm:$0xff]
  %v583 = vld [vmem:[%s1 + $0x1160] sm:$0xff]
  %v584 = vld [vmem:[%s1 + $0x1168] sm:$0xff]
  %v585 = vld [vmem:[%s1 + $0x1170] sm:$0xff]
  %v586 = vld [vmem:[%s1 + $0x1178] sm:$0xff]
  %v587 = vld [vmem:[%s1 + $0x1180] sm:$0xff]
  %v588 = vld [vmem:[%s1 + $0x1188] sm:$0xff]
  %v589 = vld [vmem:[%s1 + $0x1190] sm:$0xff]
  %v590 = vld [vmem:[%s1 + $0x1198] sm:$0xff]
  %v591 = vld [vmem:[%s1 + $0x11a0] sm:$0xff]
  %v592 = vld [vmem:[%s1 + $0x11a8] sm:$0xff]
  %v593 = vld [vmem:[%s1 + $0x11b0] sm:$0xff]
  %v594 = vld [vmem:[%s1 + $0x11b8] sm:$0xff]
  %v595 = vld [vmem:[%s1 + $0x11c0] sm:$0xff]
  %v596 = vld [vmem:[%s1 + $0x11c8] sm:$0xff]
  %v597 = vld [vmem:[%s1 + $0x11d0] sm:$0xff]
  %v598 = vld [vmem:[%s1 + $0x11d8] sm:$0xff]
  %v599 = vld [vmem:[%s1 + $0x11e0] sm:$0xff]
  %v600 = vld [vmem:[%s1 + $0x11e8] sm:$0xff]
  %v601 = vld [vmem:[%s1 + $0x11f0] sm:$0xff]
  %v602 = vld [vmem:[%s1 + $0x11f8] sm:$0xff]
  %v603 = vld [vmem:[%s2] sm:$0xf]
  %v605 = vlaneseq
  %v606 = vshrl.u32 %v605, 7
  %v607 = vsub.s32 0, %v606
  %v608 = vrot.slane %v603, %v607
  %v609 = vlaneseq
  %v610 = vshrl.u32 %v609, 7
  %v611 = vsub.s32 1, %v610
  %v612 = vrot.slane %v603, %v611
  %v613 = vlaneseq
  %v614 = vshrl.u32 %v613, 7
  %v615 = vsub.s32 2, %v614
  %v616 = vrot.slane %v603, %v615
  %v617 = vlaneseq
  %v618 = vshrl.u32 %v617, 7
  %v619 = vsub.s32 3, %v618
  %v620 = vrot.slane %v603, %v619
  %v628 = vcombine.high %v24, %v24
  %v630 = vunpack.c.l.s4 1966171168
  %v631 = vunpack.c.0.s8 %v630
  %v632 = vlaneseq
  %v633 = vshrl.u32 %v632, 7
  %v634 = vsub.s32 %v631, %v633
  %v635 = vrot.slane %v24, %v634
  %v637 = vunpack.c.l.s4 1966171168
  %v638 = vunpack.c.0.s8 %v637
  %v639 = vlaneseq
  %v640 = vshrl.u32 %v639, 7
  %v641 = vsub.s32 %v638, %v640
  %v642 = vrot.slane %v628, %v641
  %v643 = vcombine.high %v635, %v635
  %v644 = vcombine.high %v642, %v642
  %v646 = vunpack.c.l.s4 1966171168
  %v647 = vunpack.c.0.s8 %v646
  %v648 = vlaneseq
  %v649 = vshrl.u32 %v648, 7
  %v650 = vsub.s32 %v647, %v649
  %v651 = vrot.slane %v635, %v650
  %v653 = vunpack.c.l.s4 1966171168
  %v654 = vunpack.c.0.s8 %v653
  %v655 = vlaneseq
  %v656 = vshrl.u32 %v655, 7
  %v657 = vsub.s32 %v654, %v656
  %v658 = vrot.slane %v642, %v657
  %v660 = vunpack.c.l.s4 1966171168
  %v661 = vunpack.c.0.s8 %v660
  %v662 = vlaneseq
  %v663 = vshrl.u32 %v662, 7
  %v664 = vsub.s32 %v661, %v663
  %v665 = vrot.slane %v643, %v664
  %v667 = vunpack.c.l.s4 1966171168
  %v668 = vunpack.c.0.s8 %v667
  %v669 = vlaneseq
  %v670 = vshrl.u32 %v669, 7
  %v671 = vsub.s32 %v668, %v670
  %v672 = vrot.slane %v644, %v671
  %v673 = vcombine.high %v651, %v651
  %v674 = vcombine.high %v658, %v658
  %v675 = vcombine.high %v665, %v665
  %v676 = vcombine.high %v672, %v672
  %v677 = vcombine.high %v25, %v25
  %v679 = vunpack.c.l.s4 1966171168
  %v680 = vunpack.c.0.s8 %v679
  %v681 = vlaneseq
  %v682 = vshrl.u32 %v681, 7
  %v683 = vsub.s32 %v680, %v682
  %v684 = vrot.slane %v25, %v683
  %v686 = vunpack.c.l.s4 1966171168
  %v687 = vunpack.c.0.s8 %v686
  %v688 = vlaneseq
  %v689 = vshrl.u32 %v688, 7
  %v690 = vsub.s32 %v687, %v689
  %v691 = vrot.slane %v677, %v690
  %v692 = vcombine.high %v684, %v684
  %v693 = vcombine.high %v691, %v691
  %v695 = vunpack.c.l.s4 1966171168
  %v696 = vunpack.c.0.s8 %v695
  %v697 = vlaneseq
  %v698 = vshrl.u32 %v697, 7
  %v699 = vsub.s32 %v696, %v698
  %v700 = vrot.slane %v684, %v699
  %v702 = vunpack.c.l.s4 1966171168
  %v703 = vunpack.c.0.s8 %v702
  %v704 = vlaneseq
  %v705 = vshrl.u32 %v704, 7
  %v706 = vsub.s32 %v703, %v705
  %v707 = vrot.slane %v691, %v706
  %v709 = vunpack.c.l.s4 1966171168
  %v710 = vunpack.c.0.s8 %v709
  %v711 = vlaneseq
  %v712 = vshrl.u32 %v711, 7
  %v713 = vsub.s32 %v710, %v712
  %v714 = vrot.slane %v692, %v713
  %v716 = vunpack.c.l.s4 1966171168
  %v717 = vunpack.c.0.s8 %v716
  %v718 = vlaneseq
  %v719 = vshrl.u32 %v718, 7
  %v720 = vsub.s32 %v717, %v719
  %v721 = vrot.slane %v693, %v720
  %v722 = vcombine.high %v700, %v700
  %v723 = vcombine.high %v707, %v707
  %v724 = vcombine.high %v714, %v714
  %v725 = vcombine.high %v721, %v721
  %v727 = vunpack.c.l.s4 1966171168
  %v728 = vunpack.c.0.s8 %v727
  %v729 = vlaneseq
  %v730 = vshrl.u32 %v729, 7
  %v731 = vsub.s32 %v728, %v730
  %v732 = vrot.slane %v26, %v731
  %v733 = vcombine.high %v732, %v732
  %v735 = vunpack.c.l.s4 1966171168
  %v736 = vunpack.c.0.s8 %v735
  %v737 = vlaneseq
  %v738 = vshrl.u32 %v737, 7
  %v739 = vsub.s32 %v736, %v738
  %v740 = vrot.slane %v732, %v739
  %v742 = vunpack.c.l.s4 1966171168
  %v743 = vunpack.c.0.s8 %v742
  %v744 = vlaneseq
  %v745 = vshrl.u32 %v744, 7
  %v746 = vsub.s32 %v743, %v745
  %v747 = vrot.slane %v733, %v746
  %v1342 = vunpack.c.l.b16 %v27
  %v1343 = vunpack.c.h.b16 %v27
  %v1344 = vunpack.c.l.b16 %v28
  %v1345 = vunpack.c.h.b16 %v28
  %v1346 = vunpack.c.l.b16 %v29
  %v1347 = vunpack.c.h.b16 %v29
  %v1348 = vunpack.c.l.b16 %v30
  %v1349 = vunpack.c.h.b16 %v30
  %v1350 = vunpack.c.l.b16 %v31
  %v1351 = vunpack.c.h.b16 %v31
  %v1352 = vunpack.c.l.b16 %v32
  %v1353 = vunpack.c.h.b16 %v32
  %v1354 = vunpack.c.l.b16 %v33
  %v1355 = vunpack.c.h.b16 %v33
  %v1356 = vunpack.c.l.b16 %v34
  %v1357 = vunpack.c.h.b16 %v34
  %v1358 = vunpack.c.l.b16 %v35
  %v1359 = vunpack.c.h.b16 %v35
  %v1360 = vunpack.c.l.b16 %v36
  %v1361 = vunpack.c.h.b16 %v36
  %v1362 = vunpack.c.l.b16 %v37
  %v1363 = vunpack.c.h.b16 %v37
  %v1364 = vunpack.c.l.b16 %v38
  %v1365 = vunpack.c.h.b16 %v38
  %v1366 = vunpack.c.l.b16 %v39
  %v1367 = vunpack.c.h.b16 %v39
  %v1368 = vunpack.c.l.b16 %v40
  %v1369 = vunpack.c.h.b16 %v40
  %v1370 = vunpack.c.l.b16 %v41
  %v1371 = vunpack.c.h.b16 %v41
  %v1372 = vunpack.c.l.b16 %v42
  %v1373 = vunpack.c.h.b16 %v42
  %v1374 = vunpack.c.l.b16 %v43
  %v1375 = vunpack.c.h.b16 %v43
  %v1376 = vunpack.c.l.b16 %v44
  %v1377 = vunpack.c.h.b16 %v44
  %v1378 = vunpack.c.l.b16 %v45
  %v1379 = vunpack.c.h.b16 %v45
  %v1380 = vunpack.c.l.b16 %v46
  %v1381 = vunpack.c.h.b16 %v46
  %v1382 = vunpack.c.l.b16 %v47
  %v1383 = vunpack.c.h.b16 %v47
  %v1384 = vunpack.c.l.b16 %v48
  %v1385 = vunpack.c.h.b16 %v48
  %v1386 = vunpack.c.l.b16 %v49
  %v1387 = vunpack.c.h.b16 %v49
  %v1388 = vunpack.c.l.b16 %v50
  %v1389 = vunpack.c.h.b16 %v50
  %v1390 = vunpack.c.l.b16 %v51
  %v1391 = vunpack.c.h.b16 %v51
  %v1392 = vunpack.c.l.b16 %v52
  %v1393 = vunpack.c.h.b16 %v52
  %v1394 = vunpack.c.l.b16 %v53
  %v1395 = vunpack.c.h.b16 %v53
  %v1396 = vunpack.c.l.b16 %v54
  %v1397 = vunpack.c.h.b16 %v54
  %v1398 = vunpack.c.l.b16 %v55
  %v1399 = vunpack.c.h.b16 %v55
  %v1400 = vunpack.c.l.b16 %v56
  %v1401 = vunpack.c.h.b16 %v56
  %v1402 = vunpack.c.l.b16 %v57
  %v1403 = vunpack.c.h.b16 %v57
  %v1404 = vunpack.c.l.b16 %v58
  %v1405 = vunpack.c.h.b16 %v58
  %v1406 = vunpack.c.l.b16 %v59
  %v1407 = vunpack.c.h.b16 %v59
  %v1408 = vunpack.c.l.b16 %v60
  %v1409 = vunpack.c.h.b16 %v60
  %v1410 = vunpack.c.l.b16 %v61
  %v1411 = vunpack.c.h.b16 %v61
  %v1412 = vunpack.c.l.b16 %v62
  %v1413 = vunpack.c.h.b16 %v62
  %v1414 = vunpack.c.l.b16 %v63
  %v1415 = vunpack.c.h.b16 %v63
  %v1416 = vunpack.c.l.b16 %v64
  %v1417 = vunpack.c.h.b16 %v64
  %v1418 = vunpack.c.l.b16 %v65
  %v1419 = vunpack.c.h.b16 %v65
  %v1420 = vunpack.c.l.b16 %v66
  %v1421 = vunpack.c.h.b16 %v66
  %v1422 = vunpack.c.l.b16 %v67
  %v1423 = vunpack.c.h.b16 %v67
  %v1424 = vunpack.c.l.b16 %v68
  %v1425 = vunpack.c.h.b16 %v68
  %v1426 = vunpack.c.l.b16 %v69
  %v1427 = vunpack.c.h.b16 %v69
  %v1428 = vunpack.c.l.b16 %v70
  %v1429 = vunpack.c.h.b16 %v70
  %v1430 = vunpack.c.l.b16 %v71
  %v1431 = vunpack.c.h.b16 %v71
  %v1432 = vunpack.c.l.b16 %v72
  %v1433 = vunpack.c.h.b16 %v72
  %v1434 = vunpack.c.l.b16 %v73
  %v1435 = vunpack.c.h.b16 %v73
  %v1436 = vunpack.c.l.b16 %v74
  %v1437 = vunpack.c.h.b16 %v74
  %v1438 = vunpack.c.l.b16 %v75
  %v1439 = vunpack.c.h.b16 %v75
  %v1440 = vunpack.c.l.b16 %v76
  %v1441 = vunpack.c.h.b16 %v76
  %v1442 = vunpack.c.l.b16 %v77
  %v1443 = vunpack.c.h.b16 %v77
  %v1444 = vunpack.c.l.b16 %v78
  %v1445 = vunpack.c.h.b16 %v78
  %v1446 = vunpack.c.l.b16 %v79
  %v1447 = vunpack.c.h.b16 %v79
  %v1448 = vunpack.c.l.b16 %v80
  %v1449 = vunpack.c.h.b16 %v80
  %v1450 = vunpack.c.l.b16 %v81
  %v1451 = vunpack.c.h.b16 %v81
  %v1452 = vunpack.c.l.b16 %v82
  %v1453 = vunpack.c.h.b16 %v82
  %v1454 = vunpack.c.l.b16 %v83
  %v1455 = vunpack.c.h.b16 %v83
  %v1456 = vunpack.c.l.b16 %v84
  %v1457 = vunpack.c.h.b16 %v84
  %v1458 = vunpack.c.l.b16 %v85
  %v1459 = vunpack.c.h.b16 %v85
  %v1460 = vunpack.c.l.b16 %v86
  %v1461 = vunpack.c.h.b16 %v86
  %v1462 = vunpack.c.l.b16 %v87
  %v1463 = vunpack.c.h.b16 %v87
  %v1464 = vunpack.c.l.b16 %v88
  %v1465 = vunpack.c.h.b16 %v88
  %v1466 = vunpack.c.l.b16 %v89
  %v1467 = vunpack.c.h.b16 %v89
  %v1468 = vunpack.c.l.b16 %v90
  %v1469 = vunpack.c.h.b16 %v90
  %v1470 = vunpack.c.l.b16 %v91
  %v1471 = vunpack.c.h.b16 %v91
  %v1472 = vunpack.c.l.b16 %v92
  %v1473 = vunpack.c.h.b16 %v92
  %v1474 = vunpack.c.l.b16 %v93
  %v1475 = vunpack.c.h.b16 %v93
  %v1476 = vunpack.c.l.b16 %v94
  %v1477 = vunpack.c.h.b16 %v94
  %v1478 = vunpack.c.l.b16 %v95
  %v1479 = vunpack.c.h.b16 %v95
  %v1480 = vunpack.c.l.b16 %v96
  %v1481 = vunpack.c.h.b16 %v96
  %v1482 = vunpack.c.l.b16 %v97
  %v1483 = vunpack.c.h.b16 %v97
  %v1484 = vunpack.c.l.b16 %v98
  %v1485 = vunpack.c.h.b16 %v98
  %v1486 = vunpack.c.l.b16 %v99
  %v1487 = vunpack.c.h.b16 %v99
  %v1488 = vunpack.c.l.b16 %v100
  %v1489 = vunpack.c.h.b16 %v100
  %v1490 = vunpack.c.l.b16 %v101
  %v1491 = vunpack.c.h.b16 %v101
  %v1492 = vunpack.c.l.b16 %v102
  %v1493 = vunpack.c.h.b16 %v102
  %v1494 = vunpack.c.l.b16 %v103
  %v1495 = vunpack.c.h.b16 %v103
  %v1496 = vunpack.c.l.b16 %v104
  %v1497 = vunpack.c.h.b16 %v104
  %v1498 = vunpack.c.l.b16 %v105
  %v1499 = vunpack.c.h.b16 %v105
  %v1500 = vunpack.c.l.b16 %v106
  %v1501 = vunpack.c.h.b16 %v106
  %v1502 = vunpack.c.l.b16 %v107
  %v1503 = vunpack.c.h.b16 %v107
  %v1504 = vunpack.c.l.b16 %v108
  %v1505 = vunpack.c.h.b16 %v108
  %v1506 = vunpack.c.l.b16 %v109
  %v1507 = vunpack.c.h.b16 %v109
  %v1508 = vunpack.c.l.b16 %v110
  %v1509 = vunpack.c.h.b16 %v110
  %v1510 = vunpack.c.l.b16 %v111
  %v1511 = vunpack.c.h.b16 %v111
  %v1512 = vunpack.c.l.b16 %v112
  %v1513 = vunpack.c.h.b16 %v112
  %v1514 = vunpack.c.l.b16 %v113
  %v1515 = vunpack.c.h.b16 %v113
  %v1516 = vunpack.c.l.b16 %v114
  %v1517 = vunpack.c.h.b16 %v114
  %v1518 = vunpack.c.l.b16 %v115
  %v1519 = vunpack.c.h.b16 %v115
  %v1520 = vunpack.c.l.b16 %v116
  %v1521 = vunpack.c.h.b16 %v116
  %v1522 = vunpack.c.l.b16 %v117
  %v1523 = vunpack.c.h.b16 %v117
  %v1524 = vunpack.c.l.b16 %v118
  %v1525 = vunpack.c.h.b16 %v118
  %v1526 = vunpack.c.l.b16 %v119
  %v1527 = vunpack.c.h.b16 %v119
  %v1528 = vunpack.c.l.b16 %v120
  %v1529 = vunpack.c.h.b16 %v120
  %v1530 = vunpack.c.l.b16 %v121
  %v1531 = vunpack.c.h.b16 %v121
  %v1532 = vunpack.c.l.b16 %v122
  %v1533 = vunpack.c.h.b16 %v122
  %v1534 = vunpack.c.l.b16 %v123
  %v1535 = vunpack.c.h.b16 %v123
  %v1536 = vunpack.c.l.b16 %v124
  %v1537 = vunpack.c.h.b16 %v124
  %v1538 = vunpack.c.l.b16 %v125
  %v1539 = vunpack.c.h.b16 %v125
  %v1540 = vunpack.c.l.b16 %v126
  %v1541 = vunpack.c.h.b16 %v126
  %v1542 = vunpack.c.l.b16 %v127
  %v1543 = vunpack.c.h.b16 %v127
  %v1544 = vunpack.c.l.b16 %v128
  %v1545 = vunpack.c.h.b16 %v128
  %v1546 = vunpack.c.l.b16 %v129
  %v1547 = vunpack.c.h.b16 %v129
  %v1548 = vunpack.c.l.b16 %v130
  %v1549 = vunpack.c.h.b16 %v130
  %v1550 = vunpack.c.l.b16 %v131
  %v1551 = vunpack.c.h.b16 %v131
  %v1552 = vunpack.c.l.b16 %v132
  %v1553 = vunpack.c.h.b16 %v132
  %v1554 = vunpack.c.l.b16 %v133
  %v1555 = vunpack.c.h.b16 %v133
  %v1556 = vunpack.c.l.b16 %v134
  %v1557 = vunpack.c.h.b16 %v134
  %v1558 = vunpack.c.l.b16 %v135
  %v1559 = vunpack.c.h.b16 %v135
  %v1560 = vunpack.c.l.b16 %v136
  %v1561 = vunpack.c.h.b16 %v136
  %v1562 = vunpack.c.l.b16 %v137
  %v1563 = vunpack.c.h.b16 %v137
  %v1564 = vunpack.c.l.b16 %v138
  %v1565 = vunpack.c.h.b16 %v138
  %v1566 = vunpack.c.l.b16 %v139
  %v1567 = vunpack.c.h.b16 %v139
  %v1568 = vunpack.c.l.b16 %v140
  %v1569 = vunpack.c.h.b16 %v140
  %v1570 = vunpack.c.l.b16 %v141
  %v1571 = vunpack.c.h.b16 %v141
  %v1572 = vunpack.c.l.b16 %v142
  %v1573 = vunpack.c.h.b16 %v142
  %v1574 = vunpack.c.l.b16 %v143
  %v1575 = vunpack.c.h.b16 %v143
  %v1576 = vunpack.c.l.b16 %v144
  %v1577 = vunpack.c.h.b16 %v144
  %v1578 = vunpack.c.l.b16 %v145
  %v1579 = vunpack.c.h.b16 %v145
  %v1580 = vunpack.c.l.b16 %v146
  %v1581 = vunpack.c.h.b16 %v146
  %v1582 = vunpack.c.l.b16 %v147
  %v1583 = vunpack.c.h.b16 %v147
  %v1584 = vunpack.c.l.b16 %v148
  %v1585 = vunpack.c.h.b16 %v148
  %v1586 = vunpack.c.l.b16 %v149
  %v1587 = vunpack.c.h.b16 %v149
  %v1588 = vunpack.c.l.b16 %v150
  %v1589 = vunpack.c.h.b16 %v150
  %v1590 = vunpack.c.l.b16 %v151
  %v1591 = vunpack.c.h.b16 %v151
  %v1592 = vunpack.c.l.b16 %v152
  %v1593 = vunpack.c.h.b16 %v152
  %v1594 = vunpack.c.l.b16 %v153
  %v1595 = vunpack.c.h.b16 %v153
  %v1596 = vunpack.c.l.b16 %v154
  %v1597 = vunpack.c.h.b16 %v154
  %v1598 = vunpack.c.l.b16 %v155
  %v1599 = vunpack.c.h.b16 %v155
  %v1600 = vunpack.c.l.b16 %v156
  %v1601 = vunpack.c.h.b16 %v156
  %v1602 = vunpack.c.l.b16 %v157
  %v1603 = vunpack.c.h.b16 %v157
  %v1604 = vunpack.c.l.b16 %v158
  %v1605 = vunpack.c.h.b16 %v158
  %v1606 = vunpack.c.l.b16 %v159
  %v1607 = vunpack.c.h.b16 %v159
  %v1608 = vunpack.c.l.b16 %v160
  %v1609 = vunpack.c.h.b16 %v160
  %v1610 = vunpack.c.l.b16 %v161
  %v1611 = vunpack.c.h.b16 %v161
  %v1612 = vunpack.c.l.b16 %v162
  %v1613 = vunpack.c.h.b16 %v162
  %v1614 = vunpack.c.l.b16 %v163
  %v1615 = vunpack.c.h.b16 %v163
  %v1616 = vunpack.c.l.b16 %v164
  %v1617 = vunpack.c.h.b16 %v164
  %v1618 = vunpack.c.l.b16 %v165
  %v1619 = vunpack.c.h.b16 %v165
  %v1620 = vunpack.c.l.b16 %v166
  %v1621 = vunpack.c.h.b16 %v166
  %v1622 = vunpack.c.l.b16 %v167
  %v1623 = vunpack.c.h.b16 %v167
  %v1624 = vunpack.c.l.b16 %v168
  %v1625 = vunpack.c.h.b16 %v168
  %v1626 = vunpack.c.l.b16 %v169
  %v1627 = vunpack.c.h.b16 %v169
  %v1628 = vunpack.c.l.b16 %v170
  %v1629 = vunpack.c.h.b16 %v170
  %v1630 = vunpack.c.l.b16 %v171
  %v1631 = vunpack.c.h.b16 %v171
  %v1632 = vunpack.c.l.b16 %v172
  %v1633 = vunpack.c.h.b16 %v172
  %v1634 = vunpack.c.l.b16 %v173
  %v1635 = vunpack.c.h.b16 %v173
  %v1636 = vunpack.c.l.b16 %v174
  %v1637 = vunpack.c.h.b16 %v174
  %v1638 = vunpack.c.l.b16 %v175
  %v1639 = vunpack.c.h.b16 %v175
  %v1640 = vunpack.c.l.b16 %v176
  %v1641 = vunpack.c.h.b16 %v176
  %v1642 = vunpack.c.l.b16 %v177
  %v1643 = vunpack.c.h.b16 %v177
  %v1644 = vunpack.c.l.b16 %v178
  %v1645 = vunpack.c.h.b16 %v178
  %v1646 = vunpack.c.l.b16 %v179
  %v1647 = vunpack.c.h.b16 %v179
  %v1648 = vunpack.c.l.b16 %v180
  %v1649 = vunpack.c.h.b16 %v180
  %v1650 = vunpack.c.l.b16 %v181
  %v1651 = vunpack.c.h.b16 %v181
  %v1652 = vunpack.c.l.b16 %v182
  %v1653 = vunpack.c.h.b16 %v182
  %v1654 = vunpack.c.l.b16 %v183
  %v1655 = vunpack.c.h.b16 %v183
  %v1656 = vunpack.c.l.b16 %v184
  %v1657 = vunpack.c.h.b16 %v184
  %v1658 = vunpack.c.l.b16 %v185
  %v1659 = vunpack.c.h.b16 %v185
  %v1660 = vunpack.c.l.b16 %v186
  %v1661 = vunpack.c.h.b16 %v186
  %v1662 = vunpack.c.l.b16 %v187
  %v1663 = vunpack.c.h.b16 %v187
  %v1664 = vunpack.c.l.b16 %v188
  %v1665 = vunpack.c.h.b16 %v188
  %v1666 = vunpack.c.l.b16 %v189
  %v1667 = vunpack.c.h.b16 %v189
  %v1668 = vunpack.c.l.b16 %v190
  %v1669 = vunpack.c.h.b16 %v190
  %v1670 = vunpack.c.l.b16 %v191
  %v1671 = vunpack.c.h.b16 %v191
  %v1672 = vunpack.c.l.b16 %v192
  %v1673 = vunpack.c.h.b16 %v192
  %v1674 = vunpack.c.l.b16 %v193
  %v1675 = vunpack.c.h.b16 %v193
  %v1676 = vunpack.c.l.b16 %v194
  %v1677 = vunpack.c.h.b16 %v194
  %v1678 = vunpack.c.l.b16 %v195
  %v1679 = vunpack.c.h.b16 %v195
  %v1680 = vunpack.c.l.b16 %v196
  %v1681 = vunpack.c.h.b16 %v196
  %v1682 = vunpack.c.l.b16 %v197
  %v1683 = vunpack.c.h.b16 %v197
  %v1684 = vunpack.c.l.b16 %v198
  %v1685 = vunpack.c.h.b16 %v198
  %v1686 = vunpack.c.l.b16 %v199
  %v1687 = vunpack.c.h.b16 %v199
  %v1688 = vunpack.c.l.b16 %v200
  %v1689 = vunpack.c.h.b16 %v200
  %v1690 = vunpack.c.l.b16 %v201
  %v1691 = vunpack.c.h.b16 %v201
  %v1692 = vunpack.c.l.b16 %v202
  %v1693 = vunpack.c.h.b16 %v202
  %v1694 = vunpack.c.l.b16 %v203
  %v1695 = vunpack.c.h.b16 %v203
  %v1696 = vunpack.c.l.b16 %v204
  %v1697 = vunpack.c.h.b16 %v204
  %v1698 = vunpack.c.l.b16 %v205
  %v1699 = vunpack.c.h.b16 %v205
  %v1700 = vunpack.c.l.b16 %v206
  %v1701 = vunpack.c.h.b16 %v206
  %v1702 = vunpack.c.l.b16 %v207
  %v1703 = vunpack.c.h.b16 %v207
  %v1704 = vunpack.c.l.b16 %v208
  %v1705 = vunpack.c.h.b16 %v208
  %v1706 = vunpack.c.l.b16 %v209
  %v1707 = vunpack.c.h.b16 %v209
  %v1708 = vunpack.c.l.b16 %v210
  %v1709 = vunpack.c.h.b16 %v210
  %v1710 = vunpack.c.l.b16 %v211
  %v1711 = vunpack.c.h.b16 %v211
  %v1712 = vunpack.c.l.b16 %v212
  %v1713 = vunpack.c.h.b16 %v212
  %v1714 = vunpack.c.l.b16 %v213
  %v1715 = vunpack.c.h.b16 %v213
  %v1716 = vunpack.c.l.b16 %v214
  %v1717 = vunpack.c.h.b16 %v214
  %v1718 = vunpack.c.l.b16 %v215
  %v1719 = vunpack.c.h.b16 %v215
  %v1720 = vunpack.c.l.b16 %v216
  %v1721 = vunpack.c.h.b16 %v216
  %v1722 = vunpack.c.l.b16 %v217
  %v1723 = vunpack.c.h.b16 %v217
  %v1724 = vunpack.c.l.b16 %v218
  %v1725 = vunpack.c.h.b16 %v218
  %v1726 = vunpack.c.l.b16 %v219
  %v1727 = vunpack.c.h.b16 %v219
  %v1728 = vunpack.c.l.b16 %v220
  %v1729 = vunpack.c.h.b16 %v220
  %v1730 = vunpack.c.l.b16 %v221
  %v1731 = vunpack.c.h.b16 %v221
  %v1732 = vunpack.c.l.b16 %v222
  %v1733 = vunpack.c.h.b16 %v222
  %v1734 = vunpack.c.l.b16 %v223
  %v1735 = vunpack.c.h.b16 %v223
  %v1736 = vunpack.c.l.b16 %v224
  %v1737 = vunpack.c.h.b16 %v224
  %v1738 = vunpack.c.l.b16 %v225
  %v1739 = vunpack.c.h.b16 %v225
  %v1740 = vunpack.c.l.b16 %v226
  %v1741 = vunpack.c.h.b16 %v226
  %v1742 = vunpack.c.l.b16 %v227
  %v1743 = vunpack.c.h.b16 %v227
  %v1744 = vunpack.c.l.b16 %v228
  %v1745 = vunpack.c.h.b16 %v228
  %v1746 = vunpack.c.l.b16 %v229
  %v1747 = vunpack.c.h.b16 %v229
  %v1748 = vunpack.c.l.b16 %v230
  %v1749 = vunpack.c.h.b16 %v230
  %v1750 = vunpack.c.l.b16 %v231
  %v1751 = vunpack.c.h.b16 %v231
  %v1752 = vunpack.c.l.b16 %v232
  %v1753 = vunpack.c.h.b16 %v232
  %v1754 = vunpack.c.l.b16 %v233
  %v1755 = vunpack.c.h.b16 %v233
  %v1756 = vunpack.c.l.b16 %v234
  %v1757 = vunpack.c.h.b16 %v234
  %v1758 = vunpack.c.l.b16 %v235
  %v1759 = vunpack.c.h.b16 %v235
  %v1760 = vunpack.c.l.b16 %v236
  %v1761 = vunpack.c.h.b16 %v236
  %v1762 = vunpack.c.l.b16 %v237
  %v1763 = vunpack.c.h.b16 %v237
  %v1764 = vunpack.c.l.b16 %v238
  %v1765 = vunpack.c.h.b16 %v238
  %v1766 = vunpack.c.l.b16 %v239
  %v1767 = vunpack.c.h.b16 %v239
  %v1768 = vunpack.c.l.b16 %v240
  %v1769 = vunpack.c.h.b16 %v240
  %v1770 = vunpack.c.l.b16 %v241
  %v1771 = vunpack.c.h.b16 %v241
  %v1772 = vunpack.c.l.b16 %v242
  %v1773 = vunpack.c.h.b16 %v242
  %v1774 = vunpack.c.l.b16 %v243
  %v1775 = vunpack.c.h.b16 %v243
  %v1776 = vunpack.c.l.b16 %v244
  %v1777 = vunpack.c.h.b16 %v244
  %v1778 = vunpack.c.l.b16 %v245
  %v1779 = vunpack.c.h.b16 %v245
  %v1780 = vunpack.c.l.b16 %v246
  %v1781 = vunpack.c.h.b16 %v246
  %v1782 = vunpack.c.l.b16 %v247
  %v1783 = vunpack.c.h.b16 %v247
  %v1784 = vunpack.c.l.b16 %v248
  %v1785 = vunpack.c.h.b16 %v248
  %v1786 = vunpack.c.l.b16 %v249
  %v1787 = vunpack.c.h.b16 %v249
  %v1788 = vunpack.c.l.b16 %v250
  %v1789 = vunpack.c.h.b16 %v250
  %v1790 = vunpack.c.l.b16 %v251
  %v1791 = vunpack.c.h.b16 %v251
  %v1792 = vunpack.c.l.b16 %v252
  %v1793 = vunpack.c.h.b16 %v252
  %v1794 = vunpack.c.l.b16 %v253
  %v1795 = vunpack.c.h.b16 %v253
  %v1796 = vunpack.c.l.b16 %v254
  %v1797 = vunpack.c.h.b16 %v254
  %v1798 = vunpack.c.l.b16 %v255
  %v1799 = vunpack.c.h.b16 %v255
  %v1800 = vunpack.c.l.b16 %v256
  %v1801 = vunpack.c.h.b16 %v256
  %v1802 = vunpack.c.l.b16 %v257
  %v1803 = vunpack.c.h.b16 %v257
  %v1804 = vunpack.c.l.b16 %v258
  %v1805 = vunpack.c.h.b16 %v258
  %v1806 = vunpack.c.l.b16 %v259
  %v1807 = vunpack.c.h.b16 %v259
  %v1808 = vunpack.c.l.b16 %v260
  %v1809 = vunpack.c.h.b16 %v260
  %v1810 = vunpack.c.l.b16 %v261
  %v1811 = vunpack.c.h.b16 %v261
  %v1812 = vunpack.c.l.b16 %v262
  %v1813 = vunpack.c.h.b16 %v262
  %v1814 = vunpack.c.l.b16 %v263
  %v1815 = vunpack.c.h.b16 %v263
  %v1816 = vunpack.c.l.b16 %v264
  %v1817 = vunpack.c.h.b16 %v264
  %v1818 = vunpack.c.l.b16 %v265
  %v1819 = vunpack.c.h.b16 %v265
  %v1820 = vunpack.c.l.b16 %v266
  %v1821 = vunpack.c.h.b16 %v266
  %v1822 = vunpack.c.l.b16 %v267
  %v1823 = vunpack.c.h.b16 %v267
  %v1824 = vunpack.c.l.b16 %v268
  %v1825 = vunpack.c.h.b16 %v268
  %v1826 = vunpack.c.l.b16 %v269
  %v1827 = vunpack.c.h.b16 %v269
  %v1828 = vunpack.c.l.b16 %v270
  %v1829 = vunpack.c.h.b16 %v270
  %v1830 = vunpack.c.l.b16 %v271
  %v1831 = vunpack.c.h.b16 %v271
  %v1832 = vunpack.c.l.b16 %v272
  %v1833 = vunpack.c.h.b16 %v272
  %v1834 = vunpack.c.l.b16 %v273
  %v1835 = vunpack.c.h.b16 %v273
  %v1836 = vunpack.c.l.b16 %v274
  %v1837 = vunpack.c.h.b16 %v274
  %v1838 = vunpack.c.l.b16 %v275
  %v1839 = vunpack.c.h.b16 %v275
  %v1840 = vunpack.c.l.b16 %v276
  %v1841 = vunpack.c.h.b16 %v276
  %v1842 = vunpack.c.l.b16 %v277
  %v1843 = vunpack.c.h.b16 %v277
  %v1844 = vunpack.c.l.b16 %v278
  %v1845 = vunpack.c.h.b16 %v278
  %v1846 = vunpack.c.l.b16 %v279
  %v1847 = vunpack.c.h.b16 %v279
  %v1848 = vunpack.c.l.b16 %v280
  %v1849 = vunpack.c.h.b16 %v280
  %v1850 = vunpack.c.l.b16 %v281
  %v1851 = vunpack.c.h.b16 %v281
  %v1852 = vunpack.c.l.b16 %v282
  %v1853 = vunpack.c.h.b16 %v282
  %v1854 = vunpack.c.l.b16 %v283
  %v1855 = vunpack.c.h.b16 %v283
  %v1856 = vunpack.c.l.b16 %v284
  %v1857 = vunpack.c.h.b16 %v284
  %v1858 = vunpack.c.l.b16 %v285
  %v1859 = vunpack.c.h.b16 %v285
  %v1860 = vunpack.c.l.b16 %v286
  %v1861 = vunpack.c.h.b16 %v286
  %v1862 = vunpack.c.l.b16 %v287
  %v1863 = vunpack.c.h.b16 %v287
  %v1864 = vunpack.c.l.b16 %v288
  %v1865 = vunpack.c.h.b16 %v288
  %v1866 = vunpack.c.l.b16 %v289
  %v1867 = vunpack.c.h.b16 %v289
  %v1868 = vunpack.c.l.b16 %v290
  %v1869 = vunpack.c.h.b16 %v290
  %v1870 = vunpack.c.l.b16 %v291
  %v1871 = vunpack.c.h.b16 %v291
  %v1872 = vunpack.c.l.b16 %v292
  %v1873 = vunpack.c.h.b16 %v292
  %v1874 = vunpack.c.l.b16 %v293
  %v1875 = vunpack.c.h.b16 %v293
  %v1876 = vunpack.c.l.b16 %v294
  %v1877 = vunpack.c.h.b16 %v294
  %v1878 = vunpack.c.l.b16 %v295
  %v1879 = vunpack.c.h.b16 %v295
  %v1880 = vunpack.c.l.b16 %v296
  %v1881 = vunpack.c.h.b16 %v296
  %v1882 = vunpack.c.l.b16 %v297
  %v1883 = vunpack.c.h.b16 %v297
  %v1884 = vunpack.c.l.b16 %v298
  %v1885 = vunpack.c.h.b16 %v298
  %v1886 = vunpack.c.l.b16 %v299
  %v1887 = vunpack.c.h.b16 %v299
  %v1888 = vunpack.c.l.b16 %v300
  %v1889 = vunpack.c.h.b16 %v300
  %v1890 = vunpack.c.l.b16 %v301
  %v1891 = vunpack.c.h.b16 %v301
  %v1892 = vunpack.c.l.b16 %v302
  %v1893 = vunpack.c.h.b16 %v302
  %v1894 = vunpack.c.l.b16 %v303
  %v1895 = vunpack.c.h.b16 %v303
  %v1896 = vunpack.c.l.b16 %v304
  %v1897 = vunpack.c.h.b16 %v304
  %v1898 = vunpack.c.l.b16 %v305
  %v1899 = vunpack.c.h.b16 %v305
  %v1900 = vunpack.c.l.b16 %v306
  %v1901 = vunpack.c.h.b16 %v306
  %v1902 = vunpack.c.l.b16 %v307
  %v1903 = vunpack.c.h.b16 %v307
  %v1904 = vunpack.c.l.b16 %v308
  %v1905 = vunpack.c.h.b16 %v308
  %v1906 = vunpack.c.l.b16 %v309
  %v1907 = vunpack.c.h.b16 %v309
  %v1908 = vunpack.c.l.b16 %v310
  %v1909 = vunpack.c.h.b16 %v310
  %v1910 = vunpack.c.l.b16 %v311
  %v1911 = vunpack.c.h.b16 %v311
  %v1912 = vunpack.c.l.b16 %v312
  %v1913 = vunpack.c.h.b16 %v312
  %v1914 = vunpack.c.l.b16 %v313
  %v1915 = vunpack.c.h.b16 %v313
  %v1916 = vunpack.c.l.b16 %v314
  %v1917 = vunpack.c.h.b16 %v314
  %v1918 = vunpack.c.l.b16 %v315
  %v1919 = vunpack.c.h.b16 %v315
  %v1920 = vunpack.c.l.b16 %v316
  %v1921 = vunpack.c.h.b16 %v316
  %v1922 = vunpack.c.l.b16 %v317
  %v1923 = vunpack.c.h.b16 %v317
  %v1924 = vunpack.c.l.b16 %v318
  %v1925 = vunpack.c.h.b16 %v318
  %v1926 = vunpack.c.l.b16 %v319
  %v1927 = vunpack.c.h.b16 %v319
  %v1928 = vunpack.c.l.b16 %v320
  %v1929 = vunpack.c.h.b16 %v320
  %v1930 = vunpack.c.l.b16 %v321
  %v1931 = vunpack.c.h.b16 %v321
  %v1932 = vunpack.c.l.b16 %v322
  %v1933 = vunpack.c.h.b16 %v322
  %v1934 = vunpack.c.l.b16 %v323
  %v1935 = vunpack.c.h.b16 %v323
  %v1936 = vunpack.c.l.b16 %v324
  %v1937 = vunpack.c.h.b16 %v324
  %v1938 = vunpack.c.l.b16 %v325
  %v1939 = vunpack.c.h.b16 %v325
  %v1940 = vunpack.c.l.b16 %v326
  %v1941 = vunpack.c.h.b16 %v326
  %v1942 = vunpack.c.l.b16 %v327
  %v1943 = vunpack.c.h.b16 %v327
  %v1944 = vunpack.c.l.b16 %v328
  %v1945 = vunpack.c.h.b16 %v328
  %v1946 = vunpack.c.l.b16 %v329
  %v1947 = vunpack.c.h.b16 %v329
  %v1948 = vunpack.c.l.b16 %v330
  %v1949 = vunpack.c.h.b16 %v330
  %v1950 = vunpack.c.l.b16 %v331
  %v1951 = vunpack.c.h.b16 %v331
  %v1952 = vunpack.c.l.b16 %v332
  %v1953 = vunpack.c.h.b16 %v332
  %v1954 = vunpack.c.l.b16 %v333
  %v1955 = vunpack.c.h.b16 %v333
  %v1956 = vunpack.c.l.b16 %v334
  %v1957 = vunpack.c.h.b16 %v334
  %v1958 = vunpack.c.l.b16 %v335
  %v1959 = vunpack.c.h.b16 %v335
  %v1960 = vunpack.c.l.b16 %v336
  %v1961 = vunpack.c.h.b16 %v336
  %v1962 = vunpack.c.l.b16 %v337
  %v1963 = vunpack.c.h.b16 %v337
  %v1964 = vunpack.c.l.b16 %v338
  %v1965 = vunpack.c.h.b16 %v338
  %v1966 = vunpack.c.l.b16 %v339
  %v1967 = vunpack.c.h.b16 %v339
  %v1968 = vunpack.c.l.b16 %v340
  %v1969 = vunpack.c.h.b16 %v340
  %v1970 = vunpack.c.l.b16 %v341
  %v1971 = vunpack.c.h.b16 %v341
  %v1972 = vunpack.c.l.b16 %v342
  %v1973 = vunpack.c.h.b16 %v342
  %v1974 = vunpack.c.l.b16 %v343
  %v1975 = vunpack.c.h.b16 %v343
  %v1976 = vunpack.c.l.b16 %v344
  %v1977 = vunpack.c.h.b16 %v344
  %v1978 = vunpack.c.l.b16 %v345
  %v1979 = vunpack.c.h.b16 %v345
  %v1980 = vunpack.c.l.b16 %v346
  %v1981 = vunpack.c.h.b16 %v346
  %v1982 = vunpack.c.l.b16 %v347
  %v1983 = vunpack.c.h.b16 %v347
  %v1984 = vunpack.c.l.b16 %v348
  %v1985 = vunpack.c.h.b16 %v348
  %v1986 = vunpack.c.l.b16 %v349
  %v1987 = vunpack.c.h.b16 %v349
  %v1988 = vunpack.c.l.b16 %v350
  %v1989 = vunpack.c.h.b16 %v350
  %v1990 = vunpack.c.l.b16 %v351
  %v1991 = vunpack.c.h.b16 %v351
  %v1992 = vunpack.c.l.b16 %v352
  %v1993 = vunpack.c.h.b16 %v352
  %v1994 = vunpack.c.l.b16 %v353
  %v1995 = vunpack.c.h.b16 %v353
  %v1996 = vunpack.c.l.b16 %v354
  %v1997 = vunpack.c.h.b16 %v354
  %v1998 = vunpack.c.l.b16 %v355
  %v1999 = vunpack.c.h.b16 %v355
  %v2000 = vunpack.c.l.b16 %v356
  %v2001 = vunpack.c.h.b16 %v356
  %v2002 = vunpack.c.l.b16 %v357
  %v2003 = vunpack.c.h.b16 %v357
  %v2004 = vunpack.c.l.b16 %v358
  %v2005 = vunpack.c.h.b16 %v358
  %v2006 = vunpack.c.l.b16 %v359
  %v2007 = vunpack.c.h.b16 %v359
  %v2008 = vunpack.c.l.b16 %v360
  %v2009 = vunpack.c.h.b16 %v360
  %v2010 = vunpack.c.l.b16 %v361
  %v2011 = vunpack.c.h.b16 %v361
  %v2012 = vunpack.c.l.b16 %v362
  %v2013 = vunpack.c.h.b16 %v362
  %v2014 = vunpack.c.l.b16 %v363
  %v2015 = vunpack.c.h.b16 %v363
  %v2016 = vunpack.c.l.b16 %v364
  %v2017 = vunpack.c.h.b16 %v364
  %v2018 = vunpack.c.l.b16 %v365
  %v2019 = vunpack.c.h.b16 %v365
  %v2020 = vunpack.c.l.b16 %v366
  %v2021 = vunpack.c.h.b16 %v366
  %v2022 = vunpack.c.l.b16 %v367
  %v2023 = vunpack.c.h.b16 %v367
  %v2024 = vunpack.c.l.b16 %v368
  %v2025 = vunpack.c.h.b16 %v368
  %v2026 = vunpack.c.l.b16 %v369
  %v2027 = vunpack.c.h.b16 %v369
  %v2028 = vunpack.c.l.b16 %v370
  %v2029 = vunpack.c.h.b16 %v370
  %v2030 = vunpack.c.l.b16 %v371
  %v2031 = vunpack.c.h.b16 %v371
  %v2032 = vunpack.c.l.b16 %v372
  %v2033 = vunpack.c.h.b16 %v372
  %v2034 = vunpack.c.l.b16 %v373
  %v2035 = vunpack.c.h.b16 %v373
  %v2036 = vunpack.c.l.b16 %v374
  %v2037 = vunpack.c.h.b16 %v374
  %v2038 = vunpack.c.l.b16 %v375
  %v2039 = vunpack.c.h.b16 %v375
  %v2040 = vunpack.c.l.b16 %v376
  %v2041 = vunpack.c.h.b16 %v376
  %v2042 = vunpack.c.l.b16 %v377
  %v2043 = vunpack.c.h.b16 %v377
  %v2044 = vunpack.c.l.b16 %v378
  %v2045 = vunpack.c.h.b16 %v378
  %v2046 = vunpack.c.l.b16 %v379
  %v2047 = vunpack.c.h.b16 %v379
  %v2048 = vunpack.c.l.b16 %v380
  %v2049 = vunpack.c.h.b16 %v380
  %v2050 = vunpack.c.l.b16 %v381
  %v2051 = vunpack.c.h.b16 %v381
  %v2052 = vunpack.c.l.b16 %v382
  %v2053 = vunpack.c.h.b16 %v382
  %v2054 = vunpack.c.l.b16 %v383
  %v2055 = vunpack.c.h.b16 %v383
  %v2056 = vunpack.c.l.b16 %v384
  %v2057 = vunpack.c.h.b16 %v384
  %v2058 = vunpack.c.l.b16 %v385
  %v2059 = vunpack.c.h.b16 %v385
  %v2060 = vunpack.c.l.b16 %v386
  %v2061 = vunpack.c.h.b16 %v386
  %v2062 = vunpack.c.l.b16 %v387
  %v2063 = vunpack.c.h.b16 %v387
  %v2064 = vunpack.c.l.b16 %v388
  %v2065 = vunpack.c.h.b16 %v388
  %v2066 = vunpack.c.l.b16 %v389
  %v2067 = vunpack.c.h.b16 %v389
  %v2068 = vunpack.c.l.b16 %v390
  %v2069 = vunpack.c.h.b16 %v390
  %v2070 = vunpack.c.l.b16 %v391
  %v2071 = vunpack.c.h.b16 %v391
  %v2072 = vunpack.c.l.b16 %v392
  %v2073 = vunpack.c.h.b16 %v392
  %v2074 = vunpack.c.l.b16 %v393
  %v2075 = vunpack.c.h.b16 %v393
  %v2076 = vunpack.c.l.b16 %v394
  %v2077 = vunpack.c.h.b16 %v394
  %v2078 = vunpack.c.l.b16 %v395
  %v2079 = vunpack.c.h.b16 %v395
  %v2080 = vunpack.c.l.b16 %v396
  %v2081 = vunpack.c.h.b16 %v396
  %v2082 = vunpack.c.l.b16 %v397
  %v2083 = vunpack.c.h.b16 %v397
  %v2084 = vunpack.c.l.b16 %v398
  %v2085 = vunpack.c.h.b16 %v398
  %v2086 = vunpack.c.l.b16 %v399
  %v2087 = vunpack.c.h.b16 %v399
  %v2088 = vunpack.c.l.b16 %v400
  %v2089 = vunpack.c.h.b16 %v400
  %v2090 = vunpack.c.l.b16 %v401
  %v2091 = vunpack.c.h.b16 %v401
  %v2092 = vunpack.c.l.b16 %v402
  %v2093 = vunpack.c.h.b16 %v402
  %v2094 = vunpack.c.l.b16 %v403
  %v2095 = vunpack.c.h.b16 %v403
  %v2096 = vunpack.c.l.b16 %v404
  %v2097 = vunpack.c.h.b16 %v404
  %v2098 = vunpack.c.l.b16 %v405
  %v2099 = vunpack.c.h.b16 %v405
  %v2100 = vunpack.c.l.b16 %v406
  %v2101 = vunpack.c.h.b16 %v406
  %v2102 = vunpack.c.l.b16 %v407
  %v2103 = vunpack.c.h.b16 %v407
  %v2104 = vunpack.c.l.b16 %v408
  %v2105 = vunpack.c.h.b16 %v408
  %v2106 = vunpack.c.l.b16 %v409
  %v2107 = vunpack.c.h.b16 %v409
  %v2108 = vunpack.c.l.b16 %v410
  %v2109 = vunpack.c.h.b16 %v410
  %v2110 = vunpack.c.l.b16 %v411
  %v2111 = vunpack.c.h.b16 %v411
  %v2112 = vunpack.c.l.b16 %v412
  %v2113 = vunpack.c.h.b16 %v412
  %v2114 = vunpack.c.l.b16 %v413
  %v2115 = vunpack.c.h.b16 %v413
  %v2116 = vunpack.c.l.b16 %v414
  %v2117 = vunpack.c.h.b16 %v414
  %v2118 = vunpack.c.l.b16 %v415
  %v2119 = vunpack.c.h.b16 %v415
  %v2120 = vunpack.c.l.b16 %v416
  %v2121 = vunpack.c.h.b16 %v416
  %v2122 = vunpack.c.l.b16 %v417
  %v2123 = vunpack.c.h.b16 %v417
  %v2124 = vunpack.c.l.b16 %v418
  %v2125 = vunpack.c.h.b16 %v418
  %v2126 = vunpack.c.l.b16 %v419
  %v2127 = vunpack.c.h.b16 %v419
  %v2128 = vunpack.c.l.b16 %v420
  %v2129 = vunpack.c.h.b16 %v420
  %v2130 = vunpack.c.l.b16 %v421
  %v2131 = vunpack.c.h.b16 %v421
  %v2132 = vunpack.c.l.b16 %v422
  %v2133 = vunpack.c.h.b16 %v422
  %v2134 = vunpack.c.l.b16 %v423
  %v2135 = vunpack.c.h.b16 %v423
  %v2136 = vunpack.c.l.b16 %v424
  %v2137 = vunpack.c.h.b16 %v424
  %v2138 = vunpack.c.l.b16 %v425
  %v2139 = vunpack.c.h.b16 %v425
  %v2140 = vunpack.c.l.b16 %v426
  %v2141 = vunpack.c.h.b16 %v426
  %v2142 = vunpack.c.l.b16 %v427
  %v2143 = vunpack.c.h.b16 %v427
  %v2144 = vunpack.c.l.b16 %v428
  %v2145 = vunpack.c.h.b16 %v428
  %v2146 = vunpack.c.l.b16 %v429
  %v2147 = vunpack.c.h.b16 %v429
  %v2148 = vunpack.c.l.b16 %v430
  %v2149 = vunpack.c.h.b16 %v430
  %v2150 = vunpack.c.l.b16 %v431
  %v2151 = vunpack.c.h.b16 %v431
  %v2152 = vunpack.c.l.b16 %v432
  %v2153 = vunpack.c.h.b16 %v432
  %v2154 = vunpack.c.l.b16 %v433
  %v2155 = vunpack.c.h.b16 %v433
  %v2156 = vunpack.c.l.b16 %v434
  %v2157 = vunpack.c.h.b16 %v434
  %v2158 = vunpack.c.l.b16 %v435
  %v2159 = vunpack.c.h.b16 %v435
  %v2160 = vunpack.c.l.b16 %v436
  %v2161 = vunpack.c.h.b16 %v436
  %v2162 = vunpack.c.l.b16 %v437
  %v2163 = vunpack.c.h.b16 %v437
  %v2164 = vunpack.c.l.b16 %v438
  %v2165 = vunpack.c.h.b16 %v438
  %v2166 = vunpack.c.l.b16 %v439
  %v2167 = vunpack.c.h.b16 %v439
  %v2168 = vunpack.c.l.b16 %v440
  %v2169 = vunpack.c.h.b16 %v440
  %v2170 = vunpack.c.l.b16 %v441
  %v2171 = vunpack.c.h.b16 %v441
  %v2172 = vunpack.c.l.b16 %v442
  %v2173 = vunpack.c.h.b16 %v442
  %v2174 = vunpack.c.l.b16 %v443
  %v2175 = vunpack.c.h.b16 %v443
  %v2176 = vunpack.c.l.b16 %v444
  %v2177 = vunpack.c.h.b16 %v444
  %v2178 = vunpack.c.l.b16 %v445
  %v2179 = vunpack.c.h.b16 %v445
  %v2180 = vunpack.c.l.b16 %v446
  %v2181 = vunpack.c.h.b16 %v446
  %v2182 = vunpack.c.l.b16 %v447
  %v2183 = vunpack.c.h.b16 %v447
  %v2184 = vunpack.c.l.b16 %v448
  %v2185 = vunpack.c.h.b16 %v448
  %v2186 = vunpack.c.l.b16 %v449
  %v2187 = vunpack.c.h.b16 %v449
  %v2188 = vunpack.c.l.b16 %v450
  %v2189 = vunpack.c.h.b16 %v450
  %v2190 = vunpack.c.l.b16 %v451
  %v2191 = vunpack.c.h.b16 %v451
  %v2192 = vunpack.c.l.b16 %v452
  %v2193 = vunpack.c.h.b16 %v452
  %v2194 = vunpack.c.l.b16 %v453
  %v2195 = vunpack.c.h.b16 %v453
  %v2196 = vunpack.c.l.b16 %v454
  %v2197 = vunpack.c.h.b16 %v454
  %v2198 = vunpack.c.l.b16 %v455
  %v2199 = vunpack.c.h.b16 %v455
  %v2200 = vunpack.c.l.b16 %v456
  %v2201 = vunpack.c.h.b16 %v456
  %v2202 = vunpack.c.l.b16 %v457
  %v2203 = vunpack.c.h.b16 %v457
  %v2204 = vunpack.c.l.b16 %v458
  %v2205 = vunpack.c.h.b16 %v458
  %v2206 = vunpack.c.l.b16 %v459
  %v2207 = vunpack.c.h.b16 %v459
  %v2208 = vunpack.c.l.b16 %v460
  %v2209 = vunpack.c.h.b16 %v460
  %v2210 = vunpack.c.l.b16 %v461
  %v2211 = vunpack.c.h.b16 %v461
  %v2212 = vunpack.c.l.b16 %v462
  %v2213 = vunpack.c.h.b16 %v462
  %v2214 = vunpack.c.l.b16 %v463
  %v2215 = vunpack.c.h.b16 %v463
  %v2216 = vunpack.c.l.b16 %v464
  %v2217 = vunpack.c.h.b16 %v464
  %v2218 = vunpack.c.l.b16 %v465
  %v2219 = vunpack.c.h.b16 %v465
  %v2220 = vunpack.c.l.b16 %v466
  %v2221 = vunpack.c.h.b16 %v466
  %v2222 = vunpack.c.l.b16 %v467
  %v2223 = vunpack.c.h.b16 %v467
  %v2224 = vunpack.c.l.b16 %v468
  %v2225 = vunpack.c.h.b16 %v468
  %v2226 = vunpack.c.l.b16 %v469
  %v2227 = vunpack.c.h.b16 %v469
  %v2228 = vunpack.c.l.b16 %v470
  %v2229 = vunpack.c.h.b16 %v470
  %v2230 = vunpack.c.l.b16 %v471
  %v2231 = vunpack.c.h.b16 %v471
  %v2232 = vunpack.c.l.b16 %v472
  %v2233 = vunpack.c.h.b16 %v472
  %v2234 = vunpack.c.l.b16 %v473
  %v2235 = vunpack.c.h.b16 %v473
  %v2236 = vunpack.c.l.b16 %v474
  %v2237 = vunpack.c.h.b16 %v474
  %v2238 = vunpack.c.l.b16 %v475
  %v2239 = vunpack.c.h.b16 %v475
  %v2240 = vunpack.c.l.b16 %v476
  %v2241 = vunpack.c.h.b16 %v476
  %v2242 = vunpack.c.l.b16 %v477
  %v2243 = vunpack.c.h.b16 %v477
  %v2244 = vunpack.c.l.b16 %v478
  %v2245 = vunpack.c.h.b16 %v478
  %v2246 = vunpack.c.l.b16 %v479
  %v2247 = vunpack.c.h.b16 %v479
  %v2248 = vunpack.c.l.b16 %v480
  %v2249 = vunpack.c.h.b16 %v480
  %v2250 = vunpack.c.l.b16 %v481
  %v2251 = vunpack.c.h.b16 %v481
  %v2252 = vunpack.c.l.b16 %v482
  %v2253 = vunpack.c.h.b16 %v482
  %v2254 = vunpack.c.l.b16 %v483
  %v2255 = vunpack.c.h.b16 %v483
  %v2256 = vunpack.c.l.b16 %v484
  %v2257 = vunpack.c.h.b16 %v484
  %v2258 = vunpack.c.l.b16 %v485
  %v2259 = vunpack.c.h.b16 %v485
  %v2260 = vunpack.c.l.b16 %v486
  %v2261 = vunpack.c.h.b16 %v486
  %v2262 = vunpack.c.l.b16 %v487
  %v2263 = vunpack.c.h.b16 %v487
  %v2264 = vunpack.c.l.b16 %v488
  %v2265 = vunpack.c.h.b16 %v488
  %v2266 = vunpack.c.l.b16 %v489
  %v2267 = vunpack.c.h.b16 %v489
  %v2268 = vunpack.c.l.b16 %v490
  %v2269 = vunpack.c.h.b16 %v490
  %v2270 = vunpack.c.l.b16 %v491
  %v2271 = vunpack.c.h.b16 %v491
  %v2272 = vunpack.c.l.b16 %v492
  %v2273 = vunpack.c.h.b16 %v492
  %v2274 = vunpack.c.l.b16 %v493
  %v2275 = vunpack.c.h.b16 %v493
  %v2276 = vunpack.c.l.b16 %v494
  %v2277 = vunpack.c.h.b16 %v494
  %v2278 = vunpack.c.l.b16 %v495
  %v2279 = vunpack.c.h.b16 %v495
  %v2280 = vunpack.c.l.b16 %v496
  %v2281 = vunpack.c.h.b16 %v496
  %v2282 = vunpack.c.l.b16 %v497
  %v2283 = vunpack.c.h.b16 %v497
  %v2284 = vunpack.c.l.b16 %v498
  %v2285 = vunpack.c.h.b16 %v498
  %v2286 = vunpack.c.l.b16 %v499
  %v2287 = vunpack.c.h.b16 %v499
  %v2288 = vunpack.c.l.b16 %v500
  %v2289 = vunpack.c.h.b16 %v500
  %v2290 = vunpack.c.l.b16 %v501
  %v2291 = vunpack.c.h.b16 %v501
  %v2292 = vunpack.c.l.b16 %v502
  %v2293 = vunpack.c.h.b16 %v502
  %v2294 = vunpack.c.l.b16 %v503
  %v2295 = vunpack.c.h.b16 %v503
  %v2296 = vunpack.c.l.b16 %v504
  %v2297 = vunpack.c.h.b16 %v504
  %v2298 = vunpack.c.l.b16 %v505
  %v2299 = vunpack.c.h.b16 %v505
  %v2300 = vunpack.c.l.b16 %v506
  %v2301 = vunpack.c.h.b16 %v506
  %v2302 = vunpack.c.l.b16 %v507
  %v2303 = vunpack.c.h.b16 %v507
  %v2304 = vunpack.c.l.b16 %v508
  %v2305 = vunpack.c.h.b16 %v508
  %v2306 = vunpack.c.l.b16 %v509
  %v2307 = vunpack.c.h.b16 %v509
  %v2308 = vunpack.c.l.b16 %v510
  %v2309 = vunpack.c.h.b16 %v510
  %v2310 = vunpack.c.l.b16 %v511
  %v2311 = vunpack.c.h.b16 %v511
  %v2312 = vunpack.c.l.b16 %v512
  %v2313 = vunpack.c.h.b16 %v512
  %v2314 = vunpack.c.l.b16 %v513
  %v2315 = vunpack.c.h.b16 %v513
  %v2316 = vunpack.c.l.b16 %v514
  %v2317 = vunpack.c.h.b16 %v514
  %v2318 = vunpack.c.l.b16 %v515
  %v2319 = vunpack.c.h.b16 %v515
  %v2320 = vunpack.c.l.b16 %v516
  %v2321 = vunpack.c.h.b16 %v516
  %v2322 = vunpack.c.l.b16 %v517
  %v2323 = vunpack.c.h.b16 %v517
  %v2324 = vunpack.c.l.b16 %v518
  %v2325 = vunpack.c.h.b16 %v518
  %v2326 = vunpack.c.l.b16 %v519
  %v2327 = vunpack.c.h.b16 %v519
  %v2328 = vunpack.c.l.b16 %v520
  %v2329 = vunpack.c.h.b16 %v520
  %v2330 = vunpack.c.l.b16 %v521
  %v2331 = vunpack.c.h.b16 %v521
  %v2332 = vunpack.c.l.b16 %v522
  %v2333 = vunpack.c.h.b16 %v522
  %v2334 = vunpack.c.l.b16 %v523
  %v2335 = vunpack.c.h.b16 %v523
  %v2336 = vunpack.c.l.b16 %v524
  %v2337 = vunpack.c.h.b16 %v524
  %v2338 = vunpack.c.l.b16 %v525
  %v2339 = vunpack.c.h.b16 %v525
  %v2340 = vunpack.c.l.b16 %v526
  %v2341 = vunpack.c.h.b16 %v526
  %v2342 = vunpack.c.l.b16 %v527
  %v2343 = vunpack.c.h.b16 %v527
  %v2344 = vunpack.c.l.b16 %v528
  %v2345 = vunpack.c.h.b16 %v528
  %v2346 = vunpack.c.l.b16 %v529
  %v2347 = vunpack.c.h.b16 %v529
  %v2348 = vunpack.c.l.b16 %v530
  %v2349 = vunpack.c.h.b16 %v530
  %v2350 = vunpack.c.l.b16 %v531
  %v2351 = vunpack.c.h.b16 %v531
  %v2352 = vunpack.c.l.b16 %v532
  %v2353 = vunpack.c.h.b16 %v532
  %v2354 = vunpack.c.l.b16 %v533
  %v2355 = vunpack.c.h.b16 %v533
  %v2356 = vunpack.c.l.b16 %v534
  %v2357 = vunpack.c.h.b16 %v534
  %v2358 = vunpack.c.l.b16 %v535
  %v2359 = vunpack.c.h.b16 %v535
  %v2360 = vunpack.c.l.b16 %v536
  %v2361 = vunpack.c.h.b16 %v536
  %v2362 = vunpack.c.l.b16 %v537
  %v2363 = vunpack.c.h.b16 %v537
  %v2364 = vunpack.c.l.b16 %v538
  %v2365 = vunpack.c.h.b16 %v538
  %v2366 = vunpack.c.l.b16 %v539
  %v2367 = vunpack.c.h.b16 %v539
  %v2368 = vunpack.c.l.b16 %v540
  %v2369 = vunpack.c.h.b16 %v540
  %v2370 = vunpack.c.l.b16 %v541
  %v2371 = vunpack.c.h.b16 %v541
  %v2372 = vunpack.c.l.b16 %v542
  %v2373 = vunpack.c.h.b16 %v542
  %v2374 = vunpack.c.l.b16 %v543
  %v2375 = vunpack.c.h.b16 %v543
  %v2376 = vunpack.c.l.b16 %v544
  %v2377 = vunpack.c.h.b16 %v544
  %v2378 = vunpack.c.l.b16 %v545
  %v2379 = vunpack.c.h.b16 %v545
  %v2380 = vunpack.c.l.b16 %v546
  %v2381 = vunpack.c.h.b16 %v546
  %v2382 = vunpack.c.l.b16 %v547
  %v2383 = vunpack.c.h.b16 %v547
  %v2384 = vunpack.c.l.b16 %v548
  %v2385 = vunpack.c.h.b16 %v548
  %v2386 = vunpack.c.l.b16 %v549
  %v2387 = vunpack.c.h.b16 %v549
  %v2388 = vunpack.c.l.b16 %v550
  %v2389 = vunpack.c.h.b16 %v550
  %v2390 = vunpack.c.l.b16 %v551
  %v2391 = vunpack.c.h.b16 %v551
  %v2392 = vunpack.c.l.b16 %v552
  %v2393 = vunpack.c.h.b16 %v552
  %v2394 = vunpack.c.l.b16 %v553
  %v2395 = vunpack.c.h.b16 %v553
  %v2396 = vunpack.c.l.b16 %v554
  %v2397 = vunpack.c.h.b16 %v554
  %v2398 = vunpack.c.l.b16 %v555
  %v2399 = vunpack.c.h.b16 %v555
  %v2400 = vunpack.c.l.b16 %v556
  %v2401 = vunpack.c.h.b16 %v556
  %v2402 = vunpack.c.l.b16 %v557
  %v2403 = vunpack.c.h.b16 %v557
  %v2404 = vunpack.c.l.b16 %v558
  %v2405 = vunpack.c.h.b16 %v558
  %v2406 = vunpack.c.l.b16 %v559
  %v2407 = vunpack.c.h.b16 %v559
  %v2408 = vunpack.c.l.b16 %v560
  %v2409 = vunpack.c.h.b16 %v560
  %v2410 = vunpack.c.l.b16 %v561
  %v2411 = vunpack.c.h.b16 %v561
  %v2412 = vunpack.c.l.b16 %v562
  %v2413 = vunpack.c.h.b16 %v562
  %v2414 = vunpack.c.l.b16 %v563
  %v2415 = vunpack.c.h.b16 %v563
  %v2416 = vunpack.c.l.b16 %v564
  %v2417 = vunpack.c.h.b16 %v564
  %v2418 = vunpack.c.l.b16 %v565
  %v2419 = vunpack.c.h.b16 %v565
  %v2420 = vunpack.c.l.b16 %v566
  %v2421 = vunpack.c.h.b16 %v566
  %v2422 = vunpack.c.l.b16 %v567
  %v2423 = vunpack.c.h.b16 %v567
  %v2424 = vunpack.c.l.b16 %v568
  %v2425 = vunpack.c.h.b16 %v568
  %v2426 = vunpack.c.l.b16 %v569
  %v2427 = vunpack.c.h.b16 %v569
  %v2428 = vunpack.c.l.b16 %v570
  %v2429 = vunpack.c.h.b16 %v570
  %v2430 = vunpack.c.l.b16 %v571
  %v2431 = vunpack.c.h.b16 %v571
  %v2432 = vunpack.c.l.b16 %v572
  %v2433 = vunpack.c.h.b16 %v572
  %v2434 = vunpack.c.l.b16 %v573
  %v2435 = vunpack.c.h.b16 %v573
  %v2436 = vunpack.c.l.b16 %v574
  %v2437 = vunpack.c.h.b16 %v574
  %v2438 = vunpack.c.l.b16 %v575
  %v2439 = vunpack.c.h.b16 %v575
  %v2440 = vunpack.c.l.b16 %v576
  %v2441 = vunpack.c.h.b16 %v576
  %v2442 = vunpack.c.l.b16 %v577
  %v2443 = vunpack.c.h.b16 %v577
  %v2444 = vunpack.c.l.b16 %v578
  %v2445 = vunpack.c.h.b16 %v578
  %v2446 = vunpack.c.l.b16 %v579
  %v2447 = vunpack.c.h.b16 %v579
  %v2448 = vunpack.c.l.b16 %v580
  %v2449 = vunpack.c.h.b16 %v580
  %v2450 = vunpack.c.l.b16 %v581
  %v2451 = vunpack.c.h.b16 %v581
  %v2452 = vunpack.c.l.b16 %v582
  %v2453 = vunpack.c.h.b16 %v582
  %v2454 = vunpack.c.l.b16 %v583
  %v2455 = vunpack.c.h.b16 %v583
  %v2456 = vunpack.c.l.b16 %v584
  %v2457 = vunpack.c.h.b16 %v584
  %v2458 = vunpack.c.l.b16 %v585
  %v2459 = vunpack.c.h.b16 %v585
  %v2460 = vunpack.c.l.b16 %v586
  %v2461 = vunpack.c.h.b16 %v586
  %v2462 = vunpack.c.l.b16 %v587
  %v2463 = vunpack.c.h.b16 %v587
  %v2464 = vunpack.c.l.b16 %v588
  %v2465 = vunpack.c.h.b16 %v588
  %v2466 = vunpack.c.l.b16 %v589
  %v2467 = vunpack.c.h.b16 %v589
  %v2468 = vunpack.c.l.b16 %v590
  %v2469 = vunpack.c.h.b16 %v590
  %v2470 = vunpack.c.l.b16 %v591
  %v2471 = vunpack.c.h.b16 %v591
  %v2472 = vunpack.c.l.b16 %v592
  %v2473 = vunpack.c.h.b16 %v592
  %v2474 = vunpack.c.l.b16 %v593
  %v2475 = vunpack.c.h.b16 %v593
  %v2476 = vunpack.c.l.b16 %v594
  %v2477 = vunpack.c.h.b16 %v594
  %v2478 = vunpack.c.l.b16 %v595
  %v2479 = vunpack.c.h.b16 %v595
  %v2480 = vunpack.c.l.b16 %v596
  %v2481 = vunpack.c.h.b16 %v596
  %v2482 = vunpack.c.l.b16 %v597
  %v2483 = vunpack.c.h.b16 %v597
  %v2484 = vunpack.c.l.b16 %v598
  %v2485 = vunpack.c.h.b16 %v598
  %v2486 = vunpack.c.l.b16 %v599
  %v2487 = vunpack.c.h.b16 %v599
  %v2488 = vunpack.c.l.b16 %v600
  %v2489 = vunpack.c.h.b16 %v600
  %v2490 = vunpack.c.l.b16 %v601
  %v2491 = vunpack.c.h.b16 %v601
  %v2492 = vunpack.c.l.b16 %v602
  %v2493 = vunpack.c.h.b16 %v602
  %v2494 = vpack.c.b16 %v1346, %v1342
  %v2495 = vpack.c.b16 %v1347, %v1343
  %v2496 = vpack.c.b16 %v1348, %v1344
  %v2497 = vpack.c.b16 %v1349, %v1345
  %v2498 = vpack.c.b16 %v1354, %v1350
  %v2499 = vpack.c.b16 %v1355, %v1351
  %v2500 = vpack.c.b16 %v1356, %v1352
  %v2501 = vpack.c.b16 %v1357, %v1353
  %v2502 = vpack.c.b16 %v1362, %v1358
  %v2503 = vpack.c.b16 %v1363, %v1359
  %v2504 = vpack.c.b16 %v1364, %v1360
  %v2505 = vpack.c.b16 %v1365, %v1361
  %v2506 = vpack.c.b16 %v1370, %v1366
  %v2507 = vpack.c.b16 %v1371, %v1367
  %v2508 = vpack.c.b16 %v1372, %v1368
  %v2509 = vpack.c.b16 %v1373, %v1369
  %v2510 = vpack.c.b16 %v1378, %v1374
  %v2511 = vpack.c.b16 %v1379, %v1375
  %v2512 = vpack.c.b16 %v1380, %v1376
  %v2513 = vpack.c.b16 %v1381, %v1377
  %v2514 = vpack.c.b16 %v1386, %v1382
  %v2515 = vpack.c.b16 %v1387, %v1383
  %v2516 = vpack.c.b16 %v1388, %v1384
  %v2517 = vpack.c.b16 %v1389, %v1385
  %v2518 = vpack.c.b16 %v1394, %v1390
  %v2519 = vpack.c.b16 %v1395, %v1391
  %v2520 = vpack.c.b16 %v1396, %v1392
  %v2521 = vpack.c.b16 %v1397, %v1393
  %v2522 = vpack.c.b16 %v1402, %v1398
  %v2523 = vpack.c.b16 %v1403, %v1399
  %v2524 = vpack.c.b16 %v1404, %v1400
  %v2525 = vpack.c.b16 %v1405, %v1401
  %v2526 = vpack.c.b16 %v1410, %v1406
  %v2527 = vpack.c.b16 %v1411, %v1407
  %v2528 = vpack.c.b16 %v1412, %v1408
  %v2529 = vpack.c.b16 %v1413, %v1409
  %v2530 = vpack.c.b16 %v1418, %v1414
  %v2531 = vpack.c.b16 %v1419, %v1415
  %v2532 = vpack.c.b16 %v1420, %v1416
  %v2533 = vpack.c.b16 %v1421, %v1417
  %v2534 = vpack.c.b16 %v1426, %v1422
  %v2535 = vpack.c.b16 %v1427, %v1423
  %v2536 = vpack.c.b16 %v1428, %v1424
  %v2537 = vpack.c.b16 %v1429, %v1425
  %v2538 = vpack.c.b16 %v1434, %v1430
  %v2539 = vpack.c.b16 %v1435, %v1431
  %v2540 = vpack.c.b16 %v1436, %v1432
  %v2541 = vpack.c.b16 %v1437, %v1433
  %v2542 = vpack.c.b16 %v1442, %v1438
  %v2543 = vpack.c.b16 %v1443, %v1439
  %v2544 = vpack.c.b16 %v1444, %v1440
  %v2545 = vpack.c.b16 %v1445, %v1441
  %v2546 = vpack.c.b16 %v1450, %v1446
  %v2547 = vpack.c.b16 %v1451, %v1447
  %v2548 = vpack.c.b16 %v1452, %v1448
  %v2549 = vpack.c.b16 %v1453, %v1449
  %v2550 = vpack.c.b16 %v1458, %v1454
  %v2551 = vpack.c.b16 %v1459, %v1455
  %v2552 = vpack.c.b16 %v1460, %v1456
  %v2553 = vpack.c.b16 %v1461, %v1457
  %v2554 = vpack.c.b16 %v1466, %v1462
  %v2555 = vpack.c.b16 %v1467, %v1463
  %v2556 = vpack.c.b16 %v1468, %v1464
  %v2557 = vpack.c.b16 %v1469, %v1465
  %v2558 = vpack.c.b16 %v1474, %v1470
  %v2559 = vpack.c.b16 %v1475, %v1471
  %v2560 = vpack.c.b16 %v1476, %v1472
  %v2561 = vpack.c.b16 %v1477, %v1473
  %v2562 = vpack.c.b16 %v1482, %v1478
  %v2563 = vpack.c.b16 %v1483, %v1479
  %v2564 = vpack.c.b16 %v1484, %v1480
  %v2565 = vpack.c.b16 %v1485, %v1481
  %v2566 = vpack.c.b16 %v1490, %v1486
  %v2567 = vpack.c.b16 %v1491, %v1487
  %v2568 = vpack.c.b16 %v1492, %v1488
  %v2569 = vpack.c.b16 %v1493, %v1489
  %v2570 = vpack.c.b16 %v1498, %v1494
  %v2571 = vpack.c.b16 %v1499, %v1495
  %v2572 = vpack.c.b16 %v1500, %v1496
  %v2573 = vpack.c.b16 %v1501, %v1497
  %v2574 = vpack.c.b16 %v1506, %v1502
  %v2575 = vpack.c.b16 %v1507, %v1503
  %v2576 = vpack.c.b16 %v1508, %v1504
  %v2577 = vpack.c.b16 %v1509, %v1505
  %v2578 = vpack.c.b16 %v1514, %v1510
  %v2579 = vpack.c.b16 %v1515, %v1511
  %v2580 = vpack.c.b16 %v1516, %v1512
  %v2581 = vpack.c.b16 %v1517, %v1513
  %v2582 = vpack.c.b16 %v1522, %v1518
  %v2583 = vpack.c.b16 %v1523, %v1519
  %v2584 = vpack.c.b16 %v1524, %v1520
  %v2585 = vpack.c.b16 %v1525, %v1521
  %v2586 = vpack.c.b16 %v1530, %v1526
  %v2587 = vpack.c.b16 %v1531, %v1527
  %v2588 = vpack.c.b16 %v1532, %v1528
  %v2589 = vpack.c.b16 %v1533, %v1529
  %v2590 = vpack.c.b16 %v1538, %v1534
  %v2591 = vpack.c.b16 %v1539, %v1535
  %v2592 = vpack.c.b16 %v1540, %v1536
  %v2593 = vpack.c.b16 %v1541, %v1537
  %v2594 = vpack.c.b16 %v1546, %v1542
  %v2595 = vpack.c.b16 %v1547, %v1543
  %v2596 = vpack.c.b16 %v1548, %v1544
  %v2597 = vpack.c.b16 %v1549, %v1545
  %v2598 = vpack.c.b16 %v1554, %v1550
  %v2599 = vpack.c.b16 %v1555, %v1551
  %v2600 = vpack.c.b16 %v1556, %v1552
  %v2601 = vpack.c.b16 %v1557, %v1553
  %v2602 = vpack.c.b16 %v1562, %v1558
  %v2603 = vpack.c.b16 %v1563, %v1559
  %v2604 = vpack.c.b16 %v1564, %v1560
  %v2605 = vpack.c.b16 %v1565, %v1561
  %v2606 = vpack.c.b16 %v1570, %v1566
  %v2607 = vpack.c.b16 %v1571, %v1567
  %v2608 = vpack.c.b16 %v1572, %v1568
  %v2609 = vpack.c.b16 %v1573, %v1569
  %v2610 = vpack.c.b16 %v1578, %v1574
  %v2611 = vpack.c.b16 %v1579, %v1575
  %v2612 = vpack.c.b16 %v1580, %v1576
  %v2613 = vpack.c.b16 %v1581, %v1577
  %v2614 = vpack.c.b16 %v1586, %v1582
  %v2615 = vpack.c.b16 %v1587, %v1583
  %v2616 = vpack.c.b16 %v1588, %v1584
  %v2617 = vpack.c.b16 %v1589, %v1585
  %v2618 = vpack.c.b16 %v1594, %v1590
  %v2619 = vpack.c.b16 %v1595, %v1591
  %v2620 = vpack.c.b16 %v1596, %v1592
  %v2621 = vpack.c.b16 %v1597, %v1593
  %v2622 = vpack.c.b16 %v1602, %v1598
  %v2623 = vpack.c.b16 %v1603, %v1599
  %v2624 = vpack.c.b16 %v1604, %v1600
  %v2625 = vpack.c.b16 %v1605, %v1601
  %v2626 = vpack.c.b16 %v1610, %v1606
  %v2627 = vpack.c.b16 %v1611, %v1607
  %v2628 = vpack.c.b16 %v1612, %v1608
  %v2629 = vpack.c.b16 %v1613, %v1609
  %v2630 = vpack.c.b16 %v1618, %v1614
  %v2631 = vpack.c.b16 %v1619, %v1615
  %v2632 = vpack.c.b16 %v1620, %v1616
  %v2633 = vpack.c.b16 %v1621, %v1617
  %v2634 = vpack.c.b16 %v1626, %v1622
  %v2635 = vpack.c.b16 %v1627, %v1623
  %v2636 = vpack.c.b16 %v1628, %v1624
  %v2637 = vpack.c.b16 %v1629, %v1625
  %v2638 = vpack.c.b16 %v1634, %v1630
  %v2639 = vpack.c.b16 %v1635, %v1631
  %v2640 = vpack.c.b16 %v1636, %v1632
  %v2641 = vpack.c.b16 %v1637, %v1633
  %v2642 = vpack.c.b16 %v1642, %v1638
  %v2643 = vpack.c.b16 %v1643, %v1639
  %v2644 = vpack.c.b16 %v1644, %v1640
  %v2645 = vpack.c.b16 %v1645, %v1641
  %v2646 = vpack.c.b16 %v1650, %v1646
  %v2647 = vpack.c.b16 %v1651, %v1647
  %v2648 = vpack.c.b16 %v1652, %v1648
  %v2649 = vpack.c.b16 %v1653, %v1649
  %v2650 = vpack.c.b16 %v1658, %v1654
  %v2651 = vpack.c.b16 %v1659, %v1655
  %v2652 = vpack.c.b16 %v1660, %v1656
  %v2653 = vpack.c.b16 %v1661, %v1657
  %v2654 = vpack.c.b16 %v1666, %v1662
  %v2655 = vpack.c.b16 %v1667, %v1663
  %v2656 = vpack.c.b16 %v1668, %v1664
  %v2657 = vpack.c.b16 %v1669, %v1665
  %v2658 = vpack.c.b16 %v1674, %v1670
  %v2659 = vpack.c.b16 %v1675, %v1671
  %v2660 = vpack.c.b16 %v1676, %v1672
  %v2661 = vpack.c.b16 %v1677, %v1673
  %v2662 = vpack.c.b16 %v1682, %v1678
  %v2663 = vpack.c.b16 %v1683, %v1679
  %v2664 = vpack.c.b16 %v1684, %v1680
  %v2665 = vpack.c.b16 %v1685, %v1681
  %v2666 = vpack.c.b16 %v1690, %v1686
  %v2667 = vpack.c.b16 %v1691, %v1687
  %v2668 = vpack.c.b16 %v1692, %v1688
  %v2669 = vpack.c.b16 %v1693, %v1689
  %v2670 = vpack.c.b16 %v1698, %v1694
  %v2671 = vpack.c.b16 %v1699, %v1695
  %v2672 = vpack.c.b16 %v1700, %v1696
  %v2673 = vpack.c.b16 %v1701, %v1697
  %v2674 = vpack.c.b16 %v1706, %v1702
  %v2675 = vpack.c.b16 %v1707, %v1703
  %v2676 = vpack.c.b16 %v1708, %v1704
  %v2677 = vpack.c.b16 %v1709, %v1705
  %v2678 = vpack.c.b16 %v1714, %v1710
  %v2679 = vpack.c.b16 %v1715, %v1711
  %v2680 = vpack.c.b16 %v1716, %v1712
  %v2681 = vpack.c.b16 %v1717, %v1713
  %v2682 = vpack.c.b16 %v1722, %v1718
  %v2683 = vpack.c.b16 %v1723, %v1719
  %v2684 = vpack.c.b16 %v1724, %v1720
  %v2685 = vpack.c.b16 %v1725, %v1721
  %v2686 = vpack.c.b16 %v1730, %v1726
  %v2687 = vpack.c.b16 %v1731, %v1727
  %v2688 = vpack.c.b16 %v1732, %v1728
  %v2689 = vpack.c.b16 %v1733, %v1729
  %v2690 = vpack.c.b16 %v1738, %v1734
  %v2691 = vpack.c.b16 %v1739, %v1735
  %v2692 = vpack.c.b16 %v1740, %v1736
  %v2693 = vpack.c.b16 %v1741, %v1737
  %v2694 = vpack.c.b16 %v1746, %v1742
  %v2695 = vpack.c.b16 %v1747, %v1743
  %v2696 = vpack.c.b16 %v1748, %v1744
  %v2697 = vpack.c.b16 %v1749, %v1745
  %v2698 = vpack.c.b16 %v1754, %v1750
  %v2699 = vpack.c.b16 %v1755, %v1751
  %v2700 = vpack.c.b16 %v1756, %v1752
  %v2701 = vpack.c.b16 %v1757, %v1753
  %v2702 = vpack.c.b16 %v1762, %v1758
  %v2703 = vpack.c.b16 %v1763, %v1759
  %v2704 = vpack.c.b16 %v1764, %v1760
  %v2705 = vpack.c.b16 %v1765, %v1761
  %v2706 = vpack.c.b16 %v1770, %v1766
  %v2707 = vpack.c.b16 %v1771, %v1767
  %v2708 = vpack.c.b16 %v1772, %v1768
  %v2709 = vpack.c.b16 %v1773, %v1769
  %v2710 = vpack.c.b16 %v1778, %v1774
  %v2711 = vpack.c.b16 %v1779, %v1775
  %v2712 = vpack.c.b16 %v1780, %v1776
  %v2713 = vpack.c.b16 %v1781, %v1777
  %v2714 = vpack.c.b16 %v1786, %v1782
  %v2715 = vpack.c.b16 %v1787, %v1783
  %v2716 = vpack.c.b16 %v1788, %v1784
  %v2717 = vpack.c.b16 %v1789, %v1785
  %v2718 = vpack.c.b16 %v1794, %v1790
  %v2719 = vpack.c.b16 %v1795, %v1791
  %v2720 = vpack.c.b16 %v1796, %v1792
  %v2721 = vpack.c.b16 %v1797, %v1793
  %v2722 = vpack.c.b16 %v1802, %v1798
  %v2723 = vpack.c.b16 %v1803, %v1799
  %v2724 = vpack.c.b16 %v1804, %v1800
  %v2725 = vpack.c.b16 %v1805, %v1801
  %v2726 = vpack.c.b16 %v1810, %v1806
  %v2727 = vpack.c.b16 %v1811, %v1807
  %v2728 = vpack.c.b16 %v1812, %v1808
  %v2729 = vpack.c.b16 %v1813, %v1809
  %v2730 = vpack.c.b16 %v1818, %v1814
  %v2731 = vpack.c.b16 %v1819, %v1815
  %v2732 = vpack.c.b16 %v1820, %v1816
  %v2733 = vpack.c.b16 %v1821, %v1817
  %v2734 = vpack.c.b16 %v1826, %v1822
  %v2735 = vpack.c.b16 %v1827, %v1823
  %v2736 = vpack.c.b16 %v1828, %v1824
  %v2737 = vpack.c.b16 %v1829, %v1825
  %v2738 = vpack.c.b16 %v1834, %v1830
  %v2739 = vpack.c.b16 %v1835, %v1831
  %v2740 = vpack.c.b16 %v1836, %v1832
  %v2741 = vpack.c.b16 %v1837, %v1833
  %v2742 = vpack.c.b16 %v1842, %v1838
  %v2743 = vpack.c.b16 %v1843, %v1839
  %v2744 = vpack.c.b16 %v1844, %v1840
  %v2745 = vpack.c.b16 %v1845, %v1841
  %v2746 = vpack.c.b16 %v1850, %v1846
  %v2747 = vpack.c.b16 %v1851, %v1847
  %v2748 = vpack.c.b16 %v1852, %v1848
  %v2749 = vpack.c.b16 %v1853, %v1849
  %v2750 = vpack.c.b16 %v1858, %v1854
  %v2751 = vpack.c.b16 %v1859, %v1855
  %v2752 = vpack.c.b16 %v1860, %v1856
  %v2753 = vpack.c.b16 %v1861, %v1857
  %v2754 = vpack.c.b16 %v1866, %v1862
  %v2755 = vpack.c.b16 %v1867, %v1863
  %v2756 = vpack.c.b16 %v1868, %v1864
  %v2757 = vpack.c.b16 %v1869, %v1865
  %v2758 = vpack.c.b16 %v1874, %v1870
  %v2759 = vpack.c.b16 %v1875, %v1871
  %v2760 = vpack.c.b16 %v1876, %v1872
  %v2761 = vpack.c.b16 %v1877, %v1873
  %v2762 = vpack.c.b16 %v1882, %v1878
  %v2763 = vpack.c.b16 %v1883, %v1879
  %v2764 = vpack.c.b16 %v1884, %v1880
  %v2765 = vpack.c.b16 %v1885, %v1881
  %v2766 = vpack.c.b16 %v1890, %v1886
  %v2767 = vpack.c.b16 %v1891, %v1887
  %v2768 = vpack.c.b16 %v1892, %v1888
  %v2769 = vpack.c.b16 %v1893, %v1889
  %v2770 = vpack.c.b16 %v1898, %v1894
  %v2771 = vpack.c.b16 %v1899, %v1895
  %v2772 = vpack.c.b16 %v1900, %v1896
  %v2773 = vpack.c.b16 %v1901, %v1897
  %v2774 = vpack.c.b16 %v1906, %v1902
  %v2775 = vpack.c.b16 %v1907, %v1903
  %v2776 = vpack.c.b16 %v1908, %v1904
  %v2777 = vpack.c.b16 %v1909, %v1905
  %v2778 = vpack.c.b16 %v1914, %v1910
  %v2779 = vpack.c.b16 %v1915, %v1911
  %v2780 = vpack.c.b16 %v1916, %v1912
  %v2781 = vpack.c.b16 %v1917, %v1913
  %v2782 = vpack.c.b16 %v1922, %v1918
  %v2783 = vpack.c.b16 %v1923, %v1919
  %v2784 = vpack.c.b16 %v1924, %v1920
  %v2785 = vpack.c.b16 %v1925, %v1921
  %v2786 = vpack.c.b16 %v1930, %v1926
  %v2787 = vpack.c.b16 %v1931, %v1927
  %v2788 = vpack.c.b16 %v1932, %v1928
  %v2789 = vpack.c.b16 %v1933, %v1929
  %v2790 = vpack.c.b16 %v1938, %v1934
  %v2791 = vpack.c.b16 %v1939, %v1935
  %v2792 = vpack.c.b16 %v1940, %v1936
  %v2793 = vpack.c.b16 %v1941, %v1937
  %v2794 = vpack.c.b16 %v1946, %v1942
  %v2795 = vpack.c.b16 %v1947, %v1943
  %v2796 = vpack.c.b16 %v1948, %v1944
  %v2797 = vpack.c.b16 %v1949, %v1945
  %v2798 = vpack.c.b16 %v1954, %v1950
  %v2799 = vpack.c.b16 %v1955, %v1951
  %v2800 = vpack.c.b16 %v1956, %v1952
  %v2801 = vpack.c.b16 %v1957, %v1953
  %v2802 = vpack.c.b16 %v1962, %v1958
  %v2803 = vpack.c.b16 %v1963, %v1959
  %v2804 = vpack.c.b16 %v1964, %v1960
  %v2805 = vpack.c.b16 %v1965, %v1961
  %v2806 = vpack.c.b16 %v1970, %v1966
  %v2807 = vpack.c.b16 %v1971, %v1967
  %v2808 = vpack.c.b16 %v1972, %v1968
  %v2809 = vpack.c.b16 %v1973, %v1969
  %v2810 = vpack.c.b16 %v1978, %v1974
  %v2811 = vpack.c.b16 %v1979, %v1975
  %v2812 = vpack.c.b16 %v1980, %v1976
  %v2813 = vpack.c.b16 %v1981, %v1977
  %v2814 = vpack.c.b16 %v1986, %v1982
  %v2815 = vpack.c.b16 %v1987, %v1983
  %v2816 = vpack.c.b16 %v1988, %v1984
  %v2817 = vpack.c.b16 %v1989, %v1985
  %v2818 = vpack.c.b16 %v1994, %v1990
  %v2819 = vpack.c.b16 %v1995, %v1991
  %v2820 = vpack.c.b16 %v1996, %v1992
  %v2821 = vpack.c.b16 %v1997, %v1993
  %v2822 = vpack.c.b16 %v2002, %v1998
  %v2823 = vpack.c.b16 %v2003, %v1999
  %v2824 = vpack.c.b16 %v2004, %v2000
  %v2825 = vpack.c.b16 %v2005, %v2001
  %v2826 = vpack.c.b16 %v2010, %v2006
  %v2827 = vpack.c.b16 %v2011, %v2007
  %v2828 = vpack.c.b16 %v2012, %v2008
  %v2829 = vpack.c.b16 %v2013, %v2009
  %v2830 = vpack.c.b16 %v2018, %v2014
  %v2831 = vpack.c.b16 %v2019, %v2015
  %v2832 = vpack.c.b16 %v2020, %v2016
  %v2833 = vpack.c.b16 %v2021, %v2017
  %v2834 = vpack.c.b16 %v2026, %v2022
  %v2835 = vpack.c.b16 %v2027, %v2023
  %v2836 = vpack.c.b16 %v2028, %v2024
  %v2837 = vpack.c.b16 %v2029, %v2025
  %v2838 = vpack.c.b16 %v2034, %v2030
  %v2839 = vpack.c.b16 %v2035, %v2031
  %v2840 = vpack.c.b16 %v2036, %v2032
  %v2841 = vpack.c.b16 %v2037, %v2033
  %v2842 = vpack.c.b16 %v2042, %v2038
  %v2843 = vpack.c.b16 %v2043, %v2039
  %v2844 = vpack.c.b16 %v2044, %v2040
  %v2845 = vpack.c.b16 %v2045, %v2041
  %v2846 = vpack.c.b16 %v2050, %v2046
  %v2847 = vpack.c.b16 %v2051, %v2047
  %v2848 = vpack.c.b16 %v2052, %v2048
  %v2849 = vpack.c.b16 %v2053, %v2049
  %v2850 = vpack.c.b16 %v2058, %v2054
  %v2851 = vpack.c.b16 %v2059, %v2055
  %v2852 = vpack.c.b16 %v2060, %v2056
  %v2853 = vpack.c.b16 %v2061, %v2057
  %v2854 = vpack.c.b16 %v2066, %v2062
  %v2855 = vpack.c.b16 %v2067, %v2063
  %v2856 = vpack.c.b16 %v2068, %v2064
  %v2857 = vpack.c.b16 %v2069, %v2065
  %v2858 = vpack.c.b16 %v2074, %v2070
  %v2859 = vpack.c.b16 %v2075, %v2071
  %v2860 = vpack.c.b16 %v2076, %v2072
  %v2861 = vpack.c.b16 %v2077, %v2073
  %v2862 = vpack.c.b16 %v2082, %v2078
  %v2863 = vpack.c.b16 %v2083, %v2079
  %v2864 = vpack.c.b16 %v2084, %v2080
  %v2865 = vpack.c.b16 %v2085, %v2081
  %v2866 = vpack.c.b16 %v2090, %v2086
  %v2867 = vpack.c.b16 %v2091, %v2087
  %v2868 = vpack.c.b16 %v2092, %v2088
  %v2869 = vpack.c.b16 %v2093, %v2089
  %v2870 = vpack.c.b16 %v2098, %v2094
  %v2871 = vpack.c.b16 %v2099, %v2095
  %v2872 = vpack.c.b16 %v2100, %v2096
  %v2873 = vpack.c.b16 %v2101, %v2097
  %v2874 = vpack.c.b16 %v2106, %v2102
  %v2875 = vpack.c.b16 %v2107, %v2103
  %v2876 = vpack.c.b16 %v2108, %v2104
  %v2877 = vpack.c.b16 %v2109, %v2105
  %v2878 = vpack.c.b16 %v2114, %v2110
  %v2879 = vpack.c.b16 %v2115, %v2111
  %v2880 = vpack.c.b16 %v2116, %v2112
  %v2881 = vpack.c.b16 %v2117, %v2113
  %v2882 = vpack.c.b16 %v2122, %v2118
  %v2883 = vpack.c.b16 %v2123, %v2119
  %v2884 = vpack.c.b16 %v2124, %v2120
  %v2885 = vpack.c.b16 %v2125, %v2121
  %v2886 = vpack.c.b16 %v2130, %v2126
  %v2887 = vpack.c.b16 %v2131, %v2127
  %v2888 = vpack.c.b16 %v2132, %v2128
  %v2889 = vpack.c.b16 %v2133, %v2129
  %v2890 = vpack.c.b16 %v2138, %v2134
  %v2891 = vpack.c.b16 %v2139, %v2135
  %v2892 = vpack.c.b16 %v2140, %v2136
  %v2893 = vpack.c.b16 %v2141, %v2137
  %v2894 = vpack.c.b16 %v2146, %v2142
  %v2895 = vpack.c.b16 %v2147, %v2143
  %v2896 = vpack.c.b16 %v2148, %v2144
  %v2897 = vpack.c.b16 %v2149, %v2145
  %v2898 = vpack.c.b16 %v2154, %v2150
  %v2899 = vpack.c.b16 %v2155, %v2151
  %v2900 = vpack.c.b16 %v2156, %v2152
  %v2901 = vpack.c.b16 %v2157, %v2153
  %v2902 = vpack.c.b16 %v2162, %v2158
  %v2903 = vpack.c.b16 %v2163, %v2159
  %v2904 = vpack.c.b16 %v2164, %v2160
  %v2905 = vpack.c.b16 %v2165, %v2161
  %v2906 = vpack.c.b16 %v2170, %v2166
  %v2907 = vpack.c.b16 %v2171, %v2167
  %v2908 = vpack.c.b16 %v2172, %v2168
  %v2909 = vpack.c.b16 %v2173, %v2169
  %v2910 = vpack.c.b16 %v2178, %v2174
  %v2911 = vpack.c.b16 %v2179, %v2175
  %v2912 = vpack.c.b16 %v2180, %v2176
  %v2913 = vpack.c.b16 %v2181, %v2177
  %v2914 = vpack.c.b16 %v2186, %v2182
  %v2915 = vpack.c.b16 %v2187, %v2183
  %v2916 = vpack.c.b16 %v2188, %v2184
  %v2917 = vpack.c.b16 %v2189, %v2185
  %v2918 = vpack.c.b16 %v2194, %v2190
  %v2919 = vpack.c.b16 %v2195, %v2191
  %v2920 = vpack.c.b16 %v2196, %v2192
  %v2921 = vpack.c.b16 %v2197, %v2193
  %v2922 = vpack.c.b16 %v2202, %v2198
  %v2923 = vpack.c.b16 %v2203, %v2199
  %v2924 = vpack.c.b16 %v2204, %v2200
  %v2925 = vpack.c.b16 %v2205, %v2201
  %v2926 = vpack.c.b16 %v2210, %v2206
  %v2927 = vpack.c.b16 %v2211, %v2207
  %v2928 = vpack.c.b16 %v2212, %v2208
  %v2929 = vpack.c.b16 %v2213, %v2209
  %v2930 = vpack.c.b16 %v2218, %v2214
  %v2931 = vpack.c.b16 %v2219, %v2215
  %v2932 = vpack.c.b16 %v2220, %v2216
  %v2933 = vpack.c.b16 %v2221, %v2217
  %v2934 = vpack.c.b16 %v2226, %v2222
  %v2935 = vpack.c.b16 %v2227, %v2223
  %v2936 = vpack.c.b16 %v2228, %v2224
  %v2937 = vpack.c.b16 %v2229, %v2225
  %v2938 = vpack.c.b16 %v2234, %v2230
  %v2939 = vpack.c.b16 %v2235, %v2231
  %v2940 = vpack.c.b16 %v2236, %v2232
  %v2941 = vpack.c.b16 %v2237, %v2233
  %v2942 = vpack.c.b16 %v2242, %v2238
  %v2943 = vpack.c.b16 %v2243, %v2239
  %v2944 = vpack.c.b16 %v2244, %v2240
  %v2945 = vpack.c.b16 %v2245, %v2241
  %v2946 = vpack.c.b16 %v2250, %v2246
  %v2947 = vpack.c.b16 %v2251, %v2247
  %v2948 = vpack.c.b16 %v2252, %v2248
  %v2949 = vpack.c.b16 %v2253, %v2249
  %v2950 = vpack.c.b16 %v2258, %v2254
  %v2951 = vpack.c.b16 %v2259, %v2255
  %v2952 = vpack.c.b16 %v2260, %v2256
  %v2953 = vpack.c.b16 %v2261, %v2257
  %v2954 = vpack.c.b16 %v2266, %v2262
  %v2955 = vpack.c.b16 %v2267, %v2263
  %v2956 = vpack.c.b16 %v2268, %v2264
  %v2957 = vpack.c.b16 %v2269, %v2265
  %v2958 = vpack.c.b16 %v2274, %v2270
  %v2959 = vpack.c.b16 %v2275, %v2271
  %v2960 = vpack.c.b16 %v2276, %v2272
  %v2961 = vpack.c.b16 %v2277, %v2273
  %v2962 = vpack.c.b16 %v2282, %v2278
  %v2963 = vpack.c.b16 %v2283, %v2279
  %v2964 = vpack.c.b16 %v2284, %v2280
  %v2965 = vpack.c.b16 %v2285, %v2281
  %v2966 = vpack.c.b16 %v2290, %v2286
  %v2967 = vpack.c.b16 %v2291, %v2287
  %v2968 = vpack.c.b16 %v2292, %v2288
  %v2969 = vpack.c.b16 %v2293, %v2289
  %v2970 = vpack.c.b16 %v2298, %v2294
  %v2971 = vpack.c.b16 %v2299, %v2295
  %v2972 = vpack.c.b16 %v2300, %v2296
  %v2973 = vpack.c.b16 %v2301, %v2297
  %v2974 = vpack.c.b16 %v2306, %v2302
  %v2975 = vpack.c.b16 %v2307, %v2303
  %v2976 = vpack.c.b16 %v2308, %v2304
  %v2977 = vpack.c.b16 %v2309, %v2305
  %v2978 = vpack.c.b16 %v2314, %v2310
  %v2979 = vpack.c.b16 %v2315, %v2311
  %v2980 = vpack.c.b16 %v2316, %v2312
  %v2981 = vpack.c.b16 %v2317, %v2313
  %v2982 = vpack.c.b16 %v2322, %v2318
  %v2983 = vpack.c.b16 %v2323, %v2319
  %v2984 = vpack.c.b16 %v2324, %v2320
  %v2985 = vpack.c.b16 %v2325, %v2321
  %v2986 = vpack.c.b16 %v2330, %v2326
  %v2987 = vpack.c.b16 %v2331, %v2327
  %v2988 = vpack.c.b16 %v2332, %v2328
  %v2989 = vpack.c.b16 %v2333, %v2329
  %v2990 = vpack.c.b16 %v2338, %v2334
  %v2991 = vpack.c.b16 %v2339, %v2335
  %v2992 = vpack.c.b16 %v2340, %v2336
  %v2993 = vpack.c.b16 %v2341, %v2337
  %v2994 = vpack.c.b16 %v2346, %v2342
  %v2995 = vpack.c.b16 %v2347, %v2343
  %v2996 = vpack.c.b16 %v2348, %v2344
  %v2997 = vpack.c.b16 %v2349, %v2345
  %v2998 = vpack.c.b16 %v2354, %v2350
  %v2999 = vpack.c.b16 %v2355, %v2351
  %v3000 = vpack.c.b16 %v2356, %v2352
  %v3001 = vpack.c.b16 %v2357, %v2353
  %v3002 = vpack.c.b16 %v2362, %v2358
  %v3003 = vpack.c.b16 %v2363, %v2359
  %v3004 = vpack.c.b16 %v2364, %v2360
  %v3005 = vpack.c.b16 %v2365, %v2361
  %v3006 = vpack.c.b16 %v2370, %v2366
  %v3007 = vpack.c.b16 %v2371, %v2367
  %v3008 = vpack.c.b16 %v2372, %v2368
  %v3009 = vpack.c.b16 %v2373, %v2369
  %v3010 = vpack.c.b16 %v2378, %v2374
  %v3011 = vpack.c.b16 %v2379, %v2375
  %v3012 = vpack.c.b16 %v2380, %v2376
  %v3013 = vpack.c.b16 %v2381, %v2377
  %v3014 = vpack.c.b16 %v2386, %v2382
  %v3015 = vpack.c.b16 %v2387, %v2383
  %v3016 = vpack.c.b16 %v2388, %v2384
  %v3017 = vpack.c.b16 %v2389, %v2385
  %v3018 = vpack.c.b16 %v2394, %v2390
  %v3019 = vpack.c.b16 %v2395, %v2391
  %v3020 = vpack.c.b16 %v2396, %v2392
  %v3021 = vpack.c.b16 %v2397, %v2393
  %v3022 = vpack.c.b16 %v2402, %v2398
  %v3023 = vpack.c.b16 %v2403, %v2399
  %v3024 = vpack.c.b16 %v2404, %v2400
  %v3025 = vpack.c.b16 %v2405, %v2401
  %v3026 = vpack.c.b16 %v2410, %v2406
  %v3027 = vpack.c.b16 %v2411, %v2407
  %v3028 = vpack.c.b16 %v2412, %v2408
  %v3029 = vpack.c.b16 %v2413, %v2409
  %v3030 = vpack.c.b16 %v2418, %v2414
  %v3031 = vpack.c.b16 %v2419, %v2415
  %v3032 = vpack.c.b16 %v2420, %v2416
  %v3033 = vpack.c.b16 %v2421, %v2417
  %v3034 = vpack.c.b16 %v2426, %v2422
  %v3035 = vpack.c.b16 %v2427, %v2423
  %v3036 = vpack.c.b16 %v2428, %v2424
  %v3037 = vpack.c.b16 %v2429, %v2425
  %v3038 = vpack.c.b16 %v2434, %v2430
  %v3039 = vpack.c.b16 %v2435, %v2431
  %v3040 = vpack.c.b16 %v2436, %v2432
  %v3041 = vpack.c.b16 %v2437, %v2433
  %v3042 = vpack.c.b16 %v2442, %v2438
  %v3043 = vpack.c.b16 %v2443, %v2439
  %v3044 = vpack.c.b16 %v2444, %v2440
  %v3045 = vpack.c.b16 %v2445, %v2441
  %v3046 = vpack.c.b16 %v2450, %v2446
  %v3047 = vpack.c.b16 %v2451, %v2447
  %v3048 = vpack.c.b16 %v2452, %v2448
  %v3049 = vpack.c.b16 %v2453, %v2449
  %v3050 = vpack.c.b16 %v2458, %v2454
  %v3051 = vpack.c.b16 %v2459, %v2455
  %v3052 = vpack.c.b16 %v2460, %v2456
  %v3053 = vpack.c.b16 %v2461, %v2457
  %v3054 = vpack.c.b16 %v2466, %v2462
  %v3055 = vpack.c.b16 %v2467, %v2463
  %v3056 = vpack.c.b16 %v2468, %v2464
  %v3057 = vpack.c.b16 %v2469, %v2465
  %v3058 = vpack.c.b16 %v2474, %v2470
  %v3059 = vpack.c.b16 %v2475, %v2471
  %v3060 = vpack.c.b16 %v2476, %v2472
  %v3061 = vpack.c.b16 %v2477, %v2473
  %v3062 = vpack.c.b16 %v2482, %v2478
  %v3063 = vpack.c.b16 %v2483, %v2479
  %v3064 = vpack.c.b16 %v2484, %v2480
  %v3065 = vpack.c.b16 %v2485, %v2481
  %v3066 = vpack.c.b16 %v2490, %v2486
  %v3067 = vpack.c.b16 %v2491, %v2487
  %v3068 = vpack.c.b16 %v2492, %v2488
  %v3069 = vpack.c.b16 %v2493, %v2489
  %3646 = vmatprep.subr.bf16.mxu0 %v2495
  %3647 = vmatpush1.bf16.msra.mxu0 %v2494
  %3648 = vmatprep.subr.bf16.mxu0 %v2499
  %3649 = vmatpush1.bf16.msra.mxu0 %v2498
  %3650 = vmatprep.subr.bf16.mxu0 %v2503
  %3651 = vmatpush1.bf16.msra.mxu0 %v2502
  %3652 = vmatprep.subr.bf16.mxu0 %v2507
  %3653 = vmatpush1.bf16.msra.mxu0 %v2506
  %3654 = vmatprep.subr.bf16.mxu0 %v2511
  %3655 = vmatpush1.bf16.msra.mxu0 %v2510
  %3656 = vmatprep.subr.bf16.mxu0 %v2515
  %3657 = vmatpush1.bf16.msra.mxu0 %v2514
  %3658 = vmatprep.subr.bf16.mxu0 %v2519
  %3659 = vmatpush1.bf16.msra.mxu0 %v2518
  %3660 = vmatprep.subr.bf16.mxu0 %v2523
  %3661 = vmatpush1.bf16.msra.mxu0 %v2522
  %3662 = vmatprep.subr.bf16.mxu0 %v2527
  %3663 = vmatpush1.bf16.msra.mxu0 %v2526
  %3664 = vmatprep.subr.bf16.mxu0 %v2531
  %3665 = vmatpush1.bf16.msra.mxu0 %v2530
  %3666 = vmatprep.subr.bf16.mxu0 %v2535
  %3667 = vmatpush1.bf16.msra.mxu0 %v2534
  %3668 = vmatprep.subr.bf16.mxu0 %v2539
  %3669 = vmatpush1.bf16.msra.mxu0 %v2538
  %3670 = vmatprep.subr.bf16.mxu0 %v2543
  %3671 = vmatpush1.bf16.msra.mxu0 %v2542
  %3672 = vmatprep.subr.bf16.mxu0 %v2547
  %3673 = vmatpush1.bf16.msra.mxu0 %v2546
  %3674 = vmatprep.subr.bf16.mxu0 %v2551
  %3675 = vmatpush1.bf16.msra.mxu0 %v2550
  %3676 = vmatprep.subr.bf16.mxu0 %v2555
  %3677 = vmatpush1.bf16.msra.mxu0 %v2554
  %3678 = vmatprep.mubr.bf16.mxu0 %v665
  %3679 = vmatmul.mubr.bf16.gmra.mrb[0].mxu0 %v651
  %v3680 = vpop.f32.mrb[0].mxu0
  %v3681 = vadd.f32 %v608, %v3680
  %v3682 = vpop.f32.mrb[0].mxu0
  %v3683 = vadd.f32 %v612, %v3682
  %v3684 = vpop.f32.mrb[0].mxu0
  %v3685 = vpop.f32.mrb[0].mxu0
  %3686 = vdwg.mxu0
  %3687 = vmatprep.subr.bf16.mxu0 %v2559
  %3688 = vmatpush1.bf16.msra.mxu0 %v2558
  %3689 = vmatprep.subr.bf16.mxu0 %v2563
  %3690 = vmatpush1.bf16.msra.mxu0 %v2562
  %3691 = vmatprep.subr.bf16.mxu0 %v2567
  %3692 = vmatpush1.bf16.msra.mxu0 %v2566
  %3693 = vmatprep.subr.bf16.mxu0 %v2571
  %3694 = vmatpush1.bf16.msra.mxu0 %v2570
  %3695 = vmatprep.subr.bf16.mxu0 %v2575
  %3696 = vmatpush1.bf16.msra.mxu0 %v2574
  %3697 = vmatprep.subr.bf16.mxu0 %v2579
  %3698 = vmatpush1.bf16.msra.mxu0 %v2578
  %3699 = vmatprep.subr.bf16.mxu0 %v2583
  %3700 = vmatpush1.bf16.msra.mxu0 %v2582
  %3701 = vmatprep.subr.bf16.mxu0 %v2587
  %3702 = vmatpush1.bf16.msra.mxu0 %v2586
  %3703 = vmatprep.subr.bf16.mxu0 %v2591
  %3704 = vmatpush1.bf16.msra.mxu0 %v2590
  %3705 = vmatprep.subr.bf16.mxu0 %v2595
  %3706 = vmatpush1.bf16.msra.mxu0 %v2594
  %3707 = vmatprep.subr.bf16.mxu0 %v2599
  %3708 = vmatpush1.bf16.msra.mxu0 %v2598
  %3709 = vmatprep.subr.bf16.mxu0 %v2603
  %3710 = vmatpush1.bf16.msra.mxu0 %v2602
  %3711 = vmatprep.subr.bf16.mxu0 %v2607
  %3712 = vmatpush1.bf16.msra.mxu0 %v2606
  %3713 = vmatprep.subr.bf16.mxu0 %v2611
  %3714 = vmatpush1.bf16.msra.mxu0 %v2610
  %3715 = vmatprep.subr.bf16.mxu0 %v2615
  %3716 = vmatpush1.bf16.msra.mxu0 %v2614
  %3717 = vmatprep.subr.bf16.mxu0 %v2619
  %3718 = vmatpush1.bf16.msra.mxu0 %v2618
  %3719 = vmatprep.mubr.bf16.mxu0 %v675
  %3720 = vmatmul.mubr.bf16.gmra.mrb[0].mxu0 %v673
  %v3721 = vpop.f32.mrb[0].mxu0
  %v3722 = vadd.f32 %v3681, %v3721
  %v3723 = vpop.f32.mrb[0].mxu0
  %v3724 = vadd.f32 %v3683, %v3723
  %v3725 = vpop.f32.mrb[0].mxu0
  %v3726 = vpop.f32.mrb[0].mxu0
  %3727 = vdwg.mxu0
  %3728 = vmatprep.subr.bf16.mxu0 %v2623
  %3729 = vmatpush1.bf16.msra.mxu0 %v2622
  %3730 = vmatprep.subr.bf16.mxu0 %v2627
  %3731 = vmatpush1.bf16.msra.mxu0 %v2626
  %3732 = vmatprep.subr.bf16.mxu0 %v2631
  %3733 = vmatpush1.bf16.msra.mxu0 %v2630
  %3734 = vmatprep.subr.bf16.mxu0 %v2635
  %3735 = vmatpush1.bf16.msra.mxu0 %v2634
  %3736 = vmatprep.subr.bf16.mxu0 %v2639
  %3737 = vmatpush1.bf16.msra.mxu0 %v2638
  %3738 = vmatprep.subr.bf16.mxu0 %v2643
  %3739 = vmatpush1.bf16.msra.mxu0 %v2642
  %3740 = vmatprep.subr.bf16.mxu0 %v2647
  %3741 = vmatpush1.bf16.msra.mxu0 %v2646
  %3742 = vmatprep.subr.bf16.mxu0 %v2651
  %3743 = vmatpush1.bf16.msra.mxu0 %v2650
  %3744 = vmatprep.subr.bf16.mxu0 %v2655
  %3745 = vmatpush1.bf16.msra.mxu0 %v2654
  %3746 = vmatprep.subr.bf16.mxu0 %v2659
  %3747 = vmatpush1.bf16.msra.mxu0 %v2658
  %3748 = vmatprep.subr.bf16.mxu0 %v2663
  %3749 = vmatpush1.bf16.msra.mxu0 %v2662
  %3750 = vmatprep.subr.bf16.mxu0 %v2667
  %3751 = vmatpush1.bf16.msra.mxu0 %v2666
  %3752 = vmatprep.subr.bf16.mxu0 %v2671
  %3753 = vmatpush1.bf16.msra.mxu0 %v2670
  %3754 = vmatprep.subr.bf16.mxu0 %v2675
  %3755 = vmatpush1.bf16.msra.mxu0 %v2674
  %3756 = vmatprep.subr.bf16.mxu0 %v2679
  %3757 = vmatpush1.bf16.msra.mxu0 %v2678
  %3758 = vmatprep.subr.bf16.mxu0 %v2683
  %3759 = vmatpush1.bf16.msra.mxu0 %v2682
  %3760 = vmatprep.mubr.bf16.mxu0 %v672
  %3761 = vmatmul.mubr.bf16.gmra.mrb[0].mxu0 %v658
  %v3762 = vpop.f32.mrb[0].mxu0
  %v3763 = vadd.f32 %v3722, %v3762
  %v3764 = vpop.f32.mrb[0].mxu0
  %v3765 = vadd.f32 %v3724, %v3764
  %v3766 = vpop.f32.mrb[0].mxu0
  %v3767 = vpop.f32.mrb[0].mxu0
  %3768 = vdwg.mxu0
  %3769 = vmatprep.subr.bf16.mxu0 %v2687
  %3770 = vmatpush1.bf16.msra.mxu0 %v2686
  %3771 = vmatprep.subr.bf16.mxu0 %v2691
  %3772 = vmatpush1.bf16.msra.mxu0 %v2690
  %3773 = vmatprep.subr.bf16.mxu0 %v2695
  %3774 = vmatpush1.bf16.msra.mxu0 %v2694
  %3775 = vmatprep.subr.bf16.mxu0 %v2699
  %3776 = vmatpush1.bf16.msra.mxu0 %v2698
  %3777 = vmatprep.subr.bf16.mxu0 %v2703
  %3778 = vmatpush1.bf16.msra.mxu0 %v2702
  %3779 = vmatprep.subr.bf16.mxu0 %v2707
  %3780 = vmatpush1.bf16.msra.mxu0 %v2706
  %3781 = vmatprep.subr.bf16.mxu0 %v2711
  %3782 = vmatpush1.bf16.msra.mxu0 %v2710
  %3783 = vmatprep.subr.bf16.mxu0 %v2715
  %3784 = vmatpush1.bf16.msra.mxu0 %v2714
  %3785 = vmatprep.subr.bf16.mxu0 %v2719
  %3786 = vmatpush1.bf16.msra.mxu0 %v2718
  %3787 = vmatprep.subr.bf16.mxu0 %v2723
  %3788 = vmatpush1.bf16.msra.mxu0 %v2722
  %3789 = vmatprep.subr.bf16.mxu0 %v2727
  %3790 = vmatpush1.bf16.msra.mxu0 %v2726
  %3791 = vmatprep.subr.bf16.mxu0 %v2731
  %3792 = vmatpush1.bf16.msra.mxu0 %v2730
  %3793 = vmatprep.subr.bf16.mxu0 %v2735
  %3794 = vmatpush1.bf16.msra.mxu0 %v2734
  %3795 = vmatprep.subr.bf16.mxu0 %v2739
  %3796 = vmatpush1.bf16.msra.mxu0 %v2738
  %3797 = vmatprep.subr.bf16.mxu0 %v2743
  %3798 = vmatpush1.bf16.msra.mxu0 %v2742
  %3799 = vmatprep.subr.bf16.mxu0 %v2747
  %3800 = vmatpush1.bf16.msra.mxu0 %v2746
  %3801 = vmatprep.mubr.bf16.mxu0 %v676
  %3802 = vmatmul.mubr.bf16.gmra.mrb[0].mxu0 %v674
  %v3803 = vpop.f32.mrb[0].mxu0
  %v3804 = vadd.f32 %v3763, %v3803
  %v3805 = vpop.f32.mrb[0].mxu0
  %v3806 = vadd.f32 %v3765, %v3805
  %v3807 = vpop.f32.mrb[0].mxu0
  %v3808 = vpop.f32.mrb[0].mxu0
  %3809 = vdwg.mxu0
  %3810 = vmatprep.subr.bf16.mxu0 %v2751
  %3811 = vmatpush1.bf16.msra.mxu0 %v2750
  %3812 = vmatprep.subr.bf16.mxu0 %v2755
  %3813 = vmatpush1.bf16.msra.mxu0 %v2754
  %3814 = vmatprep.subr.bf16.mxu0 %v2759
  %3815 = vmatpush1.bf16.msra.mxu0 %v2758
  %3816 = vmatprep.subr.bf16.mxu0 %v2763
  %3817 = vmatpush1.bf16.msra.mxu0 %v2762
  %3818 = vmatprep.subr.bf16.mxu0 %v2767
  %3819 = vmatpush1.bf16.msra.mxu0 %v2766
  %3820 = vmatprep.subr.bf16.mxu0 %v2771
  %3821 = vmatpush1.bf16.msra.mxu0 %v2770
  %3822 = vmatprep.subr.bf16.mxu0 %v2775
  %3823 = vmatpush1.bf16.msra.mxu0 %v2774
  %3824 = vmatprep.subr.bf16.mxu0 %v2779
  %3825 = vmatpush1.bf16.msra.mxu0 %v2778
  %3826 = vmatprep.subr.bf16.mxu0 %v2783
  %3827 = vmatpush1.bf16.msra.mxu0 %v2782
  %3828 = vmatprep.subr.bf16.mxu0 %v2787
  %3829 = vmatpush1.bf16.msra.mxu0 %v2786
  %3830 = vmatprep.subr.bf16.mxu0 %v2791
  %3831 = vmatpush1.bf16.msra.mxu0 %v2790
  %3832 = vmatprep.subr.bf16.mxu0 %v2795
  %3833 = vmatpush1.bf16.msra.mxu0 %v2794
  %3834 = vmatprep.subr.bf16.mxu0 %v2799
  %3835 = vmatpush1.bf16.msra.mxu0 %v2798
  %3836 = vmatprep.subr.bf16.mxu0 %v2803
  %3837 = vmatpush1.bf16.msra.mxu0 %v2802
  %3838 = vmatprep.subr.bf16.mxu0 %v2807
  %3839 = vmatpush1.bf16.msra.mxu0 %v2806
  %3840 = vmatprep.subr.bf16.mxu0 %v2811
  %3841 = vmatpush1.bf16.msra.mxu0 %v2810
  %3842 = vmatprep.mubr.bf16.mxu0 %v714
  %3843 = vmatmul.mubr.bf16.gmra.mrb[0].mxu0 %v700
  %v3844 = vpop.f32.mrb[0].mxu0
  %v3845 = vadd.f32 %v3804, %v3844
  %v3846 = vpop.f32.mrb[0].mxu0
  %v3847 = vadd.f32 %v3806, %v3846
  %v3848 = vpop.f32.mrb[0].mxu0
  %v3849 = vpop.f32.mrb[0].mxu0
  %3850 = vdwg.mxu0
  %3851 = vmatprep.subr.bf16.mxu0 %v2815
  %3852 = vmatpush1.bf16.msra.mxu0 %v2814
  %3853 = vmatprep.subr.bf16.mxu0 %v2819
  %3854 = vmatpush1.bf16.msra.mxu0 %v2818
  %3855 = vmatprep.subr.bf16.mxu0 %v2823
  %3856 = vmatpush1.bf16.msra.mxu0 %v2822
  %3857 = vmatprep.subr.bf16.mxu0 %v2827
  %3858 = vmatpush1.bf16.msra.mxu0 %v2826
  %3859 = vmatprep.subr.bf16.mxu0 %v2831
  %3860 = vmatpush1.bf16.msra.mxu0 %v2830
  %3861 = vmatprep.subr.bf16.mxu0 %v2835
  %3862 = vmatpush1.bf16.msra.mxu0 %v2834
  %3863 = vmatprep.subr.bf16.mxu0 %v2839
  %3864 = vmatpush1.bf16.msra.mxu0 %v2838
  %3865 = vmatprep.subr.bf16.mxu0 %v2843
  %3866 = vmatpush1.bf16.msra.mxu0 %v2842
  %3867 = vmatprep.subr.bf16.mxu0 %v2847
  %3868 = vmatpush1.bf16.msra.mxu0 %v2846
  %3869 = vmatprep.subr.bf16.mxu0 %v2851
  %3870 = vmatpush1.bf16.msra.mxu0 %v2850
  %3871 = vmatprep.subr.bf16.mxu0 %v2855
  %3872 = vmatpush1.bf16.msra.mxu0 %v2854
  %3873 = vmatprep.subr.bf16.mxu0 %v2859
  %3874 = vmatpush1.bf16.msra.mxu0 %v2858
  %3875 = vmatprep.subr.bf16.mxu0 %v2863
  %3876 = vmatpush1.bf16.msra.mxu0 %v2862
  %3877 = vmatprep.subr.bf16.mxu0 %v2867
  %3878 = vmatpush1.bf16.msra.mxu0 %v2866
  %3879 = vmatprep.subr.bf16.mxu0 %v2871
  %3880 = vmatpush1.bf16.msra.mxu0 %v2870
  %3881 = vmatprep.subr.bf16.mxu0 %v2875
  %3882 = vmatpush1.bf16.msra.mxu0 %v2874
  %3883 = vmatprep.mubr.bf16.mxu0 %v724
  %3884 = vmatmul.mubr.bf16.gmra.mrb[0].mxu0 %v722
  %v3885 = vpop.f32.mrb[0].mxu0
  %v3886 = vadd.f32 %v3845, %v3885
  %v3887 = vpop.f32.mrb[0].mxu0
  %v3888 = vadd.f32 %v3847, %v3887
  %v3889 = vpop.f32.mrb[0].mxu0
  %v3890 = vpop.f32.mrb[0].mxu0
  %3891 = vdwg.mxu0
  %3892 = vmatprep.subr.bf16.mxu0 %v2879
  %3893 = vmatpush1.bf16.msra.mxu0 %v2878
  %3894 = vmatprep.subr.bf16.mxu0 %v2883
  %3895 = vmatpush1.bf16.msra.mxu0 %v2882
  %3896 = vmatprep.subr.bf16.mxu0 %v2887
  %3897 = vmatpush1.bf16.msra.mxu0 %v2886
  %3898 = vmatprep.subr.bf16.mxu0 %v2891
  %3899 = vmatpush1.bf16.msra.mxu0 %v2890
  %3900 = vmatprep.subr.bf16.mxu0 %v2895
  %3901 = vmatpush1.bf16.msra.mxu0 %v2894
  %3902 = vmatprep.subr.bf16.mxu0 %v2899
  %3903 = vmatpush1.bf16.msra.mxu0 %v2898
  %3904 = vmatprep.subr.bf16.mxu0 %v2903
  %3905 = vmatpush1.bf16.msra.mxu0 %v2902
  %3906 = vmatprep.subr.bf16.mxu0 %v2907
  %3907 = vmatpush1.bf16.msra.mxu0 %v2906
  %3908 = vmatprep.subr.bf16.mxu0 %v2911
  %3909 = vmatpush1.bf16.msra.mxu0 %v2910
  %3910 = vmatprep.subr.bf16.mxu0 %v2915
  %3911 = vmatpush1.bf16.msra.mxu0 %v2914
  %3912 = vmatprep.subr.bf16.mxu0 %v2919
  %3913 = vmatpush1.bf16.msra.mxu0 %v2918
  %3914 = vmatprep.subr.bf16.mxu0 %v2923
  %3915 = vmatpush1.bf16.msra.mxu0 %v2922
  %3916 = vmatprep.subr.bf16.mxu0 %v2927
  %3917 = vmatpush1.bf16.msra.mxu0 %v2926
  %3918 = vmatprep.subr.bf16.mxu0 %v2931
  %3919 = vmatpush1.bf16.msra.mxu0 %v2930
  %3920 = vmatprep.subr.bf16.mxu0 %v2935
  %3921 = vmatpush1.bf16.msra.mxu0 %v2934
  %3922 = vmatprep.subr.bf16.mxu0 %v2939
  %3923 = vmatpush1.bf16.msra.mxu0 %v2938
  %3924 = vmatprep.mubr.bf16.mxu0 %v721
  %3925 = vmatmul.mubr.bf16.gmra.mrb[0].mxu0 %v707
  %v3926 = vpop.f32.mrb[0].mxu0
  %v3927 = vadd.f32 %v3886, %v3926
  %v3928 = vpop.f32.mrb[0].mxu0
  %v3929 = vadd.f32 %v3888, %v3928
  %v3930 = vpop.f32.mrb[0].mxu0
  %v3931 = vpop.f32.mrb[0].mxu0
  %3932 = vdwg.mxu0
  %3933 = vmatprep.subr.bf16.mxu0 %v2943
  %3934 = vmatpush1.bf16.msra.mxu0 %v2942
  %3935 = vmatprep.subr.bf16.mxu0 %v2947
  %3936 = vmatpush1.bf16.msra.mxu0 %v2946
  %3937 = vmatprep.subr.bf16.mxu0 %v2951
  %3938 = vmatpush1.bf16.msra.mxu0 %v2950
  %3939 = vmatprep.subr.bf16.mxu0 %v2955
  %3940 = vmatpush1.bf16.msra.mxu0 %v2954
  %3941 = vmatprep.subr.bf16.mxu0 %v2959
  %3942 = vmatpush1.bf16.msra.mxu0 %v2958
  %3943 = vmatprep.subr.bf16.mxu0 %v2963
  %3944 = vmatpush1.bf16.msra.mxu0 %v2962
  %3945 = vmatprep.subr.bf16.mxu0 %v2967
  %3946 = vmatpush1.bf16.msra.mxu0 %v2966
  %3947 = vmatprep.subr.bf16.mxu0 %v2971
  %3948 = vmatpush1.bf16.msra.mxu0 %v2970
  %3949 = vmatprep.subr.bf16.mxu0 %v2975
  %3950 = vmatpush1.bf16.msra.mxu0 %v2974
  %3951 = vmatprep.subr.bf16.mxu0 %v2979
  %3952 = vmatpush1.bf16.msra.mxu0 %v2978
  %3953 = vmatprep.subr.bf16.mxu0 %v2983
  %3954 = vmatpush1.bf16.msra.mxu0 %v2982
  %3955 = vmatprep.subr.bf16.mxu0 %v2987
  %3956 = vmatpush1.bf16.msra.mxu0 %v2986
  %3957 = vmatprep.subr.bf16.mxu0 %v2991
  %3958 = vmatpush1.bf16.msra.mxu0 %v2990
  %3959 = vmatprep.subr.bf16.mxu0 %v2995
  %3960 = vmatpush1.bf16.msra.mxu0 %v2994
  %3961 = vmatprep.subr.bf16.mxu0 %v2999
  %3962 = vmatpush1.bf16.msra.mxu0 %v2998
  %3963 = vmatprep.subr.bf16.mxu0 %v3003
  %3964 = vmatpush1.bf16.msra.mxu0 %v3002
  %3965 = vmatprep.mubr.bf16.mxu0 %v725
  %3966 = vmatmul.mubr.bf16.gmra.mrb[0].mxu0 %v723
  %v3967 = vpop.f32.mrb[0].mxu0
  %v3968 = vadd.f32 %v3927, %v3967
  %v3969 = vpop.f32.mrb[0].mxu0
  %v3970 = vadd.f32 %v3929, %v3969
  %v3971 = vpop.f32.mrb[0].mxu0
  %v3972 = vpop.f32.mrb[0].mxu0
  %3973 = vdwg.mxu0
  %3974 = vmatprep.subr.bf16.mxu0 %v3007
  %3975 = vmatpush1.bf16.msra.mxu0 %v3006
  %3976 = vmatprep.subr.bf16.mxu0 %v3011
  %3977 = vmatpush1.bf16.msra.mxu0 %v3010
  %3978 = vmatprep.subr.bf16.mxu0 %v3015
  %3979 = vmatpush1.bf16.msra.mxu0 %v3014
  %3980 = vmatprep.subr.bf16.mxu0 %v3019
  %3981 = vmatpush1.bf16.msra.mxu0 %v3018
  %3982 = vmatprep.subr.bf16.mxu0 %v3023
  %3983 = vmatpush1.bf16.msra.mxu0 %v3022
  %3984 = vmatprep.subr.bf16.mxu0 %v3027
  %3985 = vmatpush1.bf16.msra.mxu0 %v3026
  %3986 = vmatprep.subr.bf16.mxu0 %v3031
  %3987 = vmatpush1.bf16.msra.mxu0 %v3030
  %3988 = vmatprep.subr.bf16.mxu0 %v3035
  %3989 = vmatpush1.bf16.msra.mxu0 %v3034
  %3990 = vmatprep.subr.bf16.mxu0 %v3039
  %3991 = vmatpush1.bf16.msra.mxu0 %v3038
  %3992 = vmatprep.subr.bf16.mxu0 %v3043
  %3993 = vmatpush1.bf16.msra.mxu0 %v3042
  %3994 = vmatprep.subr.bf16.mxu0 %v3047
  %3995 = vmatpush1.bf16.msra.mxu0 %v3046
  %3996 = vmatprep.subr.bf16.mxu0 %v3051
  %3997 = vmatpush1.bf16.msra.mxu0 %v3050
  %3998 = vmatprep.subr.bf16.mxu0 %v3055
  %3999 = vmatpush1.bf16.msra.mxu0 %v3054
  %4000 = vmatprep.subr.bf16.mxu0 %v3059
  %4001 = vmatpush1.bf16.msra.mxu0 %v3058
  %4002 = vmatprep.subr.bf16.mxu0 %v3063
  %4003 = vmatpush1.bf16.msra.mxu0 %v3062
  %4004 = vmatprep.subr.bf16.mxu0 %v3067
  %4005 = vmatpush1.bf16.msra.mxu0 %v3066
  %4006 = vmatprep.mubr.bf16.mxu0 %v747
  %4007 = vmatmul.mubr.bf16.gmra.mrb[0].mxu0 %v740
  %v4008 = vpop.f32.mrb[0].mxu0
  %v4009 = vadd.f32 %v3968, %v4008
  %v4010 = vpop.f32.mrb[0].mxu0
  %v4011 = vadd.f32 %v3970, %v4010
  %v4012 = vpop.f32.mrb[0].mxu0
  %v4013 = vpop.f32.mrb[0].mxu0
  %4014 = vdwg.mxu0
  %4015 = vmatprep.subr.bf16.mxu0 %v2497
  %4016 = vmatpush1.bf16.msra.mxu0 %v2496
  %4017 = vmatprep.subr.bf16.mxu0 %v2501
  %4018 = vmatpush1.bf16.msra.mxu0 %v2500
  %4019 = vmatprep.subr.bf16.mxu0 %v2505
  %4020 = vmatpush1.bf16.msra.mxu0 %v2504
  %4021 = vmatprep.subr.bf16.mxu0 %v2509
  %4022 = vmatpush1.bf16.msra.mxu0 %v2508
  %4023 = vmatprep.subr.bf16.mxu0 %v2513
  %4024 = vmatpush1.bf16.msra.mxu0 %v2512
  %4025 = vmatprep.subr.bf16.mxu0 %v2517
  %4026 = vmatpush1.bf16.msra.mxu0 %v2516
  %4027 = vmatprep.subr.bf16.mxu0 %v2521
  %4028 = vmatpush1.bf16.msra.mxu0 %v2520
  %4029 = vmatprep.subr.bf16.mxu0 %v2525
  %4030 = vmatpush1.bf16.msra.mxu0 %v2524
  %4031 = vmatprep.subr.bf16.mxu0 %v2529
  %4032 = vmatpush1.bf16.msra.mxu0 %v2528
  %4033 = vmatprep.subr.bf16.mxu0 %v2533
  %4034 = vmatpush1.bf16.msra.mxu0 %v2532
  %4035 = vmatprep.subr.bf16.mxu0 %v2537
  %4036 = vmatpush1.bf16.msra.mxu0 %v2536
  %4037 = vmatprep.subr.bf16.mxu0 %v2541
  %4038 = vmatpush1.bf16.msra.mxu0 %v2540
  %4039 = vmatprep.subr.bf16.mxu0 %v2545
  %4040 = vmatpush1.bf16.msra.mxu0 %v2544
  %4041 = vmatprep.subr.bf16.mxu0 %v2549
  %4042 = vmatpush1.bf16.msra.mxu0 %v2548
  %4043 = vmatprep.subr.bf16.mxu0 %v2553
  %4044 = vmatpush1.bf16.msra.mxu0 %v2552
  %4045 = vmatprep.subr.bf16.mxu0 %v2557
  %4046 = vmatpush1.bf16.msra.mxu0 %v2556
  %4047 = vmatprep.mubr.bf16.mxu0 %v665
  %4048 = vmatmul.mubr.bf16.gmra.mrb[0].mxu0 %v651
  %v4049 = vpop.f32.mrb[0].mxu0
  %v4050 = vadd.f32 %v616, %v4049
  %v4051 = vpop.f32.mrb[0].mxu0
  %v4052 = vadd.f32 %v620, %v4051
  %v4053 = vpop.f32.mrb[0].mxu0
  %v4054 = vpop.f32.mrb[0].mxu0
  %4055 = vdwg.mxu0
  %4056 = vmatprep.subr.bf16.mxu0 %v2561
  %4057 = vmatpush1.bf16.msra.mxu0 %v2560
  %4058 = vmatprep.subr.bf16.mxu0 %v2565
  %4059 = vmatpush1.bf16.msra.mxu0 %v2564
  %4060 = vmatprep.subr.bf16.mxu0 %v2569
  %4061 = vmatpush1.bf16.msra.mxu0 %v2568
  %4062 = vmatprep.subr.bf16.mxu0 %v2573
  %4063 = vmatpush1.bf16.msra.mxu0 %v2572
  %4064 = vmatprep.subr.bf16.mxu0 %v2577
  %4065 = vmatpush1.bf16.msra.mxu0 %v2576
  %4066 = vmatprep.subr.bf16.mxu0 %v2581
  %4067 = vmatpush1.bf16.msra.mxu0 %v2580
  %4068 = vmatprep.subr.bf16.mxu0 %v2585
  %4069 = vmatpush1.bf16.msra.mxu0 %v2584
  %4070 = vmatprep.subr.bf16.mxu0 %v2589
  %4071 = vmatpush1.bf16.msra.mxu0 %v2588
  %4072 = vmatprep.subr.bf16.mxu0 %v2593
  %4073 = vmatpush1.bf16.msra.mxu0 %v2592
  %4074 = vmatprep.subr.bf16.mxu0 %v2597
  %4075 = vmatpush1.bf16.msra.mxu0 %v2596
  %4076 = vmatprep.subr.bf16.mxu0 %v2601
  %4077 = vmatpush1.bf16.msra.mxu0 %v2600
  %4078 = vmatprep.subr.bf16.mxu0 %v2605
  %4079 = vmatpush1.bf16.msra.mxu0 %v2604
  %4080 = vmatprep.subr.bf16.mxu0 %v2609
  %4081 = vmatpush1.bf16.msra.mxu0 %v2608
  %4082 = vmatprep.subr.bf16.mxu0 %v2613
  %4083 = vmatpush1.bf16.msra.mxu0 %v2612
  %4084 = vmatprep.subr.bf16.mxu0 %v2617
  %4085 = vmatpush1.bf16.msra.mxu0 %v2616
  %4086 = vmatprep.subr.bf16.mxu0 %v2621
  %4087 = vmatpush1.bf16.msra.mxu0 %v2620
  %4088 = vmatprep.mubr.bf16.mxu0 %v675
  %4089 = vmatmul.mubr.bf16.gmra.mrb[0].mxu0 %v673
  %v4090 = vpop.f32.mrb[0].mxu0
  %v4091 = vadd.f32 %v4050, %v4090
  %v4092 = vpop.f32.mrb[0].mxu0
  %v4093 = vadd.f32 %v4052, %v4092
  %v4094 = vpop.f32.mrb[0].mxu0
  %v4095 = vpop.f32.mrb[0].mxu0
  %4096 = vdwg.mxu0
  %4097 = vmatprep.subr.bf16.mxu0 %v2625
  %4098 = vmatpush1.bf16.msra.mxu0 %v2624
  %4099 = vmatprep.subr.bf16.mxu0 %v2629
  %4100 = vmatpush1.bf16.msra.mxu0 %v2628
  %4101 = vmatprep.subr.bf16.mxu0 %v2633
  %4102 = vmatpush1.bf16.msra.mxu0 %v2632
  %4103 = vmatprep.subr.bf16.mxu0 %v2637
  %4104 = vmatpush1.bf16.msra.mxu0 %v2636
  %4105 = vmatprep.subr.bf16.mxu0 %v2641
  %4106 = vmatpush1.bf16.msra.mxu0 %v2640
  %4107 = vmatprep.subr.bf16.mxu0 %v2645
  %4108 = vmatpush1.bf16.msra.mxu0 %v2644
  %4109 = vmatprep.subr.bf16.mxu0 %v2649
  %4110 = vmatpush1.bf16.msra.mxu0 %v2648
  %4111 = vmatprep.subr.bf16.mxu0 %v2653
  %4112 = vmatpush1.bf16.msra.mxu0 %v2652
  %4113 = vmatprep.subr.bf16.mxu0 %v2657
  %4114 = vmatpush1.bf16.msra.mxu0 %v2656
  %4115 = vmatprep.subr.bf16.mxu0 %v2661
  %4116 = vmatpush1.bf16.msra.mxu0 %v2660
  %4117 = vmatprep.subr.bf16.mxu0 %v2665
  %4118 = vmatpush1.bf16.msra.mxu0 %v2664
  %4119 = vmatprep.subr.bf16.mxu0 %v2669
  %4120 = vmatpush1.bf16.msra.mxu0 %v2668
  %4121 = vmatprep.subr.bf16.mxu0 %v2673
  %4122 = vmatpush1.bf16.msra.mxu0 %v2672
  %4123 = vmatprep.subr.bf16.mxu0 %v2677
  %4124 = vmatpush1.bf16.msra.mxu0 %v2676
  %4125 = vmatprep.subr.bf16.mxu0 %v2681
  %4126 = vmatpush1.bf16.msra.mxu0 %v2680
  %4127 = vmatprep.subr.bf16.mxu0 %v2685
  %4128 = vmatpush1.bf16.msra.mxu0 %v2684
  %4129 = vmatprep.mubr.bf16.mxu0 %v672
  %4130 = vmatmul.mubr.bf16.gmra.mrb[0].mxu0 %v658
  %v4131 = vpop.f32.mrb[0].mxu0
  %v4132 = vadd.f32 %v4091, %v4131
  %v4133 = vpop.f32.mrb[0].mxu0
  %v4134 = vadd.f32 %v4093, %v4133
  %v4135 = vpop.f32.mrb[0].mxu0
  %v4136 = vpop.f32.mrb[0].mxu0
  %4137 = vdwg.mxu0
  %4138 = vmatprep.subr.bf16.mxu0 %v2689
  %4139 = vmatpush1.bf16.msra.mxu0 %v2688
  %4140 = vmatprep.subr.bf16.mxu0 %v2693
  %4141 = vmatpush1.bf16.msra.mxu0 %v2692
  %4142 = vmatprep.subr.bf16.mxu0 %v2697
  %4143 = vmatpush1.bf16.msra.mxu0 %v2696
  %4144 = vmatprep.subr.bf16.mxu0 %v2701
  %4145 = vmatpush1.bf16.msra.mxu0 %v2700
  %4146 = vmatprep.subr.bf16.mxu0 %v2705
  %4147 = vmatpush1.bf16.msra.mxu0 %v2704
  %4148 = vmatprep.subr.bf16.mxu0 %v2709
  %4149 = vmatpush1.bf16.msra.mxu0 %v2708
  %4150 = vmatprep.subr.bf16.mxu0 %v2713
  %4151 = vmatpush1.bf16.msra.mxu0 %v2712
  %4152 = vmatprep.subr.bf16.mxu0 %v2717
  %4153 = vmatpush1.bf16.msra.mxu0 %v2716
  %4154 = vmatprep.subr.bf16.mxu0 %v2721
  %4155 = vmatpush1.bf16.msra.mxu0 %v2720
  %4156 = vmatprep.subr.bf16.mxu0 %v2725
  %4157 = vmatpush1.bf16.msra.mxu0 %v2724
  %4158 = vmatprep.subr.bf16.mxu0 %v2729
  %4159 = vmatpush1.bf16.msra.mxu0 %v2728
  %4160 = vmatprep.subr.bf16.mxu0 %v2733
  %4161 = vmatpush1.bf16.msra.mxu0 %v2732
  %4162 = vmatprep.subr.bf16.mxu0 %v2737
  %4163 = vmatpush1.bf16.msra.mxu0 %v2736
  %4164 = vmatprep.subr.bf16.mxu0 %v2741
  %4165 = vmatpush1.bf16.msra.mxu0 %v2740
  %4166 = vmatprep.subr.bf16.mxu0 %v2745
  %4167 = vmatpush1.bf16.msra.mxu0 %v2744
  %4168 = vmatprep.subr.bf16.mxu0 %v2749
  %4169 = vmatpush1.bf16.msra.mxu0 %v2748
  %4170 = vmatprep.mubr.bf16.mxu0 %v676
  %4171 = vmatmul.mubr.bf16.gmra.mrb[0].mxu0 %v674
  %v4172 = vpop.f32.mrb[0].mxu0
  %v4173 = vadd.f32 %v4132, %v4172
  %v4174 = vpop.f32.mrb[0].mxu0
  %v4175 = vadd.f32 %v4134, %v4174
  %v4176 = vpop.f32.mrb[0].mxu0
  %v4177 = vpop.f32.mrb[0].mxu0
  %4178 = vdwg.mxu0
  %4179 = vmatprep.subr.bf16.mxu0 %v2753
  %4180 = vmatpush1.bf16.msra.mxu0 %v2752
  %4181 = vmatprep.subr.bf16.mxu0 %v2757
  %4182 = vmatpush1.bf16.msra.mxu0 %v2756
  %4183 = vmatprep.subr.bf16.mxu0 %v2761
  %4184 = vmatpush1.bf16.msra.mxu0 %v2760
  %4185 = vmatprep.subr.bf16.mxu0 %v2765
  %4186 = vmatpush1.bf16.msra.mxu0 %v2764
  %4187 = vmatprep.subr.bf16.mxu0 %v2769
  %4188 = vmatpush1.bf16.msra.mxu0 %v2768
  %4189 = vmatprep.subr.bf16.mxu0 %v2773
  %4190 = vmatpush1.bf16.msra.mxu0 %v2772
  %4191 = vmatprep.subr.bf16.mxu0 %v2777
  %4192 = vmatpush1.bf16.msra.mxu0 %v2776
  %4193 = vmatprep.subr.bf16.mxu0 %v2781
  %4194 = vmatpush1.bf16.msra.mxu0 %v2780
  %4195 = vmatprep.subr.bf16.mxu0 %v2785
  %4196 = vmatpush1.bf16.msra.mxu0 %v2784
  %4197 = vmatprep.subr.bf16.mxu0 %v2789
  %4198 = vmatpush1.bf16.msra.mxu0 %v2788
  %4199 = vmatprep.subr.bf16.mxu0 %v2793
  %4200 = vmatpush1.bf16.msra.mxu0 %v2792
  %4201 = vmatprep.subr.bf16.mxu0 %v2797
  %4202 = vmatpush1.bf16.msra.mxu0 %v2796
  %4203 = vmatprep.subr.bf16.mxu0 %v2801
  %4204 = vmatpush1.bf16.msra.mxu0 %v2800
  %4205 = vmatprep.subr.bf16.mxu0 %v2805
  %4206 = vmatpush1.bf16.msra.mxu0 %v2804
  %4207 = vmatprep.subr.bf16.mxu0 %v2809
  %4208 = vmatpush1.bf16.msra.mxu0 %v2808
  %4209 = vmatprep.subr.bf16.mxu0 %v2813
  %4210 = vmatpush1.bf16.msra.mxu0 %v2812
  %4211 = vmatprep.mubr.bf16.mxu0 %v714
  %4212 = vmatmul.mubr.bf16.gmra.mrb[0].mxu0 %v700
  %v4213 = vpop.f32.mrb[0].mxu0
  %v4214 = vadd.f32 %v4173, %v4213
  %v4215 = vpop.f32.mrb[0].mxu0
  %v4216 = vadd.f32 %v4175, %v4215
  %v4217 = vpop.f32.mrb[0].mxu0
  %v4218 = vpop.f32.mrb[0].mxu0
  %4219 = vdwg.mxu0
  %4220 = vmatprep.subr.bf16.mxu0 %v2817
  %4221 = vmatpush1.bf16.msra.mxu0 %v2816
  %4222 = vmatprep.subr.bf16.mxu0 %v2821
  %4223 = vmatpush1.bf16.msra.mxu0 %v2820
  %4224 = vmatprep.subr.bf16.mxu0 %v2825
  %4225 = vmatpush1.bf16.msra.mxu0 %v2824
  %4226 = vmatprep.subr.bf16.mxu0 %v2829
  %4227 = vmatpush1.bf16.msra.mxu0 %v2828
  %4228 = vmatprep.subr.bf16.mxu0 %v2833
  %4229 = vmatpush1.bf16.msra.mxu0 %v2832
  %4230 = vmatprep.subr.bf16.mxu0 %v2837
  %4231 = vmatpush1.bf16.msra.mxu0 %v2836
  %4232 = vmatprep.subr.bf16.mxu0 %v2841
  %4233 = vmatpush1.bf16.msra.mxu0 %v2840
  %4234 = vmatprep.subr.bf16.mxu0 %v2845
  %4235 = vmatpush1.bf16.msra.mxu0 %v2844
  %4236 = vmatprep.subr.bf16.mxu0 %v2849
  %4237 = vmatpush1.bf16.msra.mxu0 %v2848
  %4238 = vmatprep.subr.bf16.mxu0 %v2853
  %4239 = vmatpush1.bf16.msra.mxu0 %v2852
  %4240 = vmatprep.subr.bf16.mxu0 %v2857
  %4241 = vmatpush1.bf16.msra.mxu0 %v2856
  %4242 = vmatprep.subr.bf16.mxu0 %v2861
  %4243 = vmatpush1.bf16.msra.mxu0 %v2860
  %4244 = vmatprep.subr.bf16.mxu0 %v2865
  %4245 = vmatpush1.bf16.msra.mxu0 %v2864
  %4246 = vmatprep.subr.bf16.mxu0 %v2869
  %4247 = vmatpush1.bf16.msra.mxu0 %v2868
  %4248 = vmatprep.subr.bf16.mxu0 %v2873
  %4249 = vmatpush1.bf16.msra.mxu0 %v2872
  %4250 = vmatprep.subr.bf16.mxu0 %v2877
  %4251 = vmatpush1.bf16.msra.mxu0 %v2876
  %4252 = vmatprep.mubr.bf16.mxu0 %v724
  %4253 = vmatmul.mubr.bf16.gmra.mrb[0].mxu0 %v722
  %v4254 = vpop.f32.mrb[0].mxu0
  %v4255 = vadd.f32 %v4214, %v4254
  %v4256 = vpop.f32.mrb[0].mxu0
  %v4257 = vadd.f32 %v4216, %v4256
  %v4258 = vpop.f32.mrb[0].mxu0
  %v4259 = vpop.f32.mrb[0].mxu0
  %4260 = vdwg.mxu0
  %4261 = vmatprep.subr.bf16.mxu0 %v2881
  %4262 = vmatpush1.bf16.msra.mxu0 %v2880
  %4263 = vmatprep.subr.bf16.mxu0 %v2885
  %4264 = vmatpush1.bf16.msra.mxu0 %v2884
  %4265 = vmatprep.subr.bf16.mxu0 %v2889
  %4266 = vmatpush1.bf16.msra.mxu0 %v2888
  %4267 = vmatprep.subr.bf16.mxu0 %v2893
  %4268 = vmatpush1.bf16.msra.mxu0 %v2892
  %4269 = vmatprep.subr.bf16.mxu0 %v2897
  %4270 = vmatpush1.bf16.msra.mxu0 %v2896
  %4271 = vmatprep.subr.bf16.mxu0 %v2901
  %4272 = vmatpush1.bf16.msra.mxu0 %v2900
  %4273 = vmatprep.subr.bf16.mxu0 %v2905
  %4274 = vmatpush1.bf16.msra.mxu0 %v2904
  %4275 = vmatprep.subr.bf16.mxu0 %v2909
  %4276 = vmatpush1.bf16.msra.mxu0 %v2908
  %4277 = vmatprep.subr.bf16.mxu0 %v2913
  %4278 = vmatpush1.bf16.msra.mxu0 %v2912
  %4279 = vmatprep.subr.bf16.mxu0 %v2917
  %4280 = vmatpush1.bf16.msra.mxu0 %v2916
  %4281 = vmatprep.subr.bf16.mxu0 %v2921
  %4282 = vmatpush1.bf16.msra.mxu0 %v2920
  %4283 = vmatprep.subr.bf16.mxu0 %v2925
  %4284 = vmatpush1.bf16.msra.mxu0 %v2924
  %4285 = vmatprep.subr.bf16.mxu0 %v2929
  %4286 = vmatpush1.bf16.msra.mxu0 %v2928
  %4287 = vmatprep.subr.bf16.mxu0 %v2933
  %4288 = vmatpush1.bf16.msra.mxu0 %v2932
  %4289 = vmatprep.subr.bf16.mxu0 %v2937
  %4290 = vmatpush1.bf16.msra.mxu0 %v2936
  %4291 = vmatprep.subr.bf16.mxu0 %v2941
  %4292 = vmatpush1.bf16.msra.mxu0 %v2940
  %4293 = vmatprep.mubr.bf16.mxu0 %v721
  %4294 = vmatmul.mubr.bf16.gmra.mrb[0].mxu0 %v707
  %v4295 = vpop.f32.mrb[0].mxu0
  %v4296 = vadd.f32 %v4255, %v4295
  %v4297 = vpop.f32.mrb[0].mxu0
  %v4298 = vadd.f32 %v4257, %v4297
  %v4299 = vpop.f32.mrb[0].mxu0
  %v4300 = vpop.f32.mrb[0].mxu0
  %4301 = vdwg.mxu0
  %4302 = vmatprep.subr.bf16.mxu0 %v2945
  %4303 = vmatpush1.bf16.msra.mxu0 %v2944
  %4304 = vmatprep.subr.bf16.mxu0 %v2949
  %4305 = vmatpush1.bf16.msra.mxu0 %v2948
  %4306 = vmatprep.subr.bf16.mxu0 %v2953
  %4307 = vmatpush1.bf16.msra.mxu0 %v2952
  %4308 = vmatprep.subr.bf16.mxu0 %v2957
  %4309 = vmatpush1.bf16.msra.mxu0 %v2956
  %4310 = vmatprep.subr.bf16.mxu0 %v2961
  %4311 = vmatpush1.bf16.msra.mxu0 %v2960
  %4312 = vmatprep.subr.bf16.mxu0 %v2965
  %4313 = vmatpush1.bf16.msra.mxu0 %v2964
  %4314 = vmatprep.subr.bf16.mxu0 %v2969
  %4315 = vmatpush1.bf16.msra.mxu0 %v2968
  %4316 = vmatprep.subr.bf16.mxu0 %v2973
  %4317 = vmatpush1.bf16.msra.mxu0 %v2972
  %4318 = vmatprep.subr.bf16.mxu0 %v2977
  %4319 = vmatpush1.bf16.msra.mxu0 %v2976
  %4320 = vmatprep.subr.bf16.mxu0 %v2981
  %4321 = vmatpush1.bf16.msra.mxu0 %v2980
  %4322 = vmatprep.subr.bf16.mxu0 %v2985
  %4323 = vmatpush1.bf16.msra.mxu0 %v2984
  %4324 = vmatprep.subr.bf16.mxu0 %v2989
  %4325 = vmatpush1.bf16.msra.mxu0 %v2988
  %4326 = vmatprep.subr.bf16.mxu0 %v2993
  %4327 = vmatpush1.bf16.msra.mxu0 %v2992
  %4328 = vmatprep.subr.bf16.mxu0 %v2997
  %4329 = vmatpush1.bf16.msra.mxu0 %v2996
  %4330 = vmatprep.subr.bf16.mxu0 %v3001
  %4331 = vmatpush1.bf16.msra.mxu0 %v3000
  %4332 = vmatprep.subr.bf16.mxu0 %v3005
  %4333 = vmatpush1.bf16.msra.mxu0 %v3004
  %4334 = vmatprep.mubr.bf16.mxu0 %v725
  %4335 = vmatmul.mubr.bf16.gmra.mrb[0].mxu0 %v723
  %v4336 = vpop.f32.mrb[0].mxu0
  %v4337 = vadd.f32 %v4296, %v4336
  %v4338 = vpop.f32.mrb[0].mxu0
  %v4339 = vadd.f32 %v4298, %v4338
  %v4340 = vpop.f32.mrb[0].mxu0
  %v4341 = vpop.f32.mrb[0].mxu0
  %4342 = vdwg.mxu0
  %4343 = vmatprep.subr.bf16.mxu0 %v3009
  %4344 = vmatpush1.bf16.msra.mxu0 %v3008
  %4345 = vmatprep.subr.bf16.mxu0 %v3013
  %4346 = vmatpush1.bf16.msra.mxu0 %v3012
  %4347 = vmatprep.subr.bf16.mxu0 %v3017
  %4348 = vmatpush1.bf16.msra.mxu0 %v3016
  %4349 = vmatprep.subr.bf16.mxu0 %v3021
  %4350 = vmatpush1.bf16.msra.mxu0 %v3020
  %4351 = vmatprep.subr.bf16.mxu0 %v3025
  %4352 = vmatpush1.bf16.msra.mxu0 %v3024
  %4353 = vmatprep.subr.bf16.mxu0 %v3029
  %4354 = vmatpush1.bf16.msra.mxu0 %v3028
  %4355 = vmatprep.subr.bf16.mxu0 %v3033
  %4356 = vmatpush1.bf16.msra.mxu0 %v3032
  %4357 = vmatprep.subr.bf16.mxu0 %v3037
  %4358 = vmatpush1.bf16.msra.mxu0 %v3036
  %4359 = vmatprep.subr.bf16.mxu0 %v3041
  %4360 = vmatpush1.bf16.msra.mxu0 %v3040
  %4361 = vmatprep.subr.bf16.mxu0 %v3045
  %4362 = vmatpush1.bf16.msra.mxu0 %v3044
  %4363 = vmatprep.subr.bf16.mxu0 %v3049
  %4364 = vmatpush1.bf16.msra.mxu0 %v3048
  %4365 = vmatprep.subr.bf16.mxu0 %v3053
  %4366 = vmatpush1.bf16.msra.mxu0 %v3052
  %4367 = vmatprep.subr.bf16.mxu0 %v3057
  %4368 = vmatpush1.bf16.msra.mxu0 %v3056
  %4369 = vmatprep.subr.bf16.mxu0 %v3061
  %4370 = vmatpush1.bf16.msra.mxu0 %v3060
  %4371 = vmatprep.subr.bf16.mxu0 %v3065
  %4372 = vmatpush1.bf16.msra.mxu0 %v3064
  %4373 = vmatprep.subr.bf16.mxu0 %v3069
  %4374 = vmatpush1.bf16.msra.mxu0 %v3068
  %4375 = vmatprep.mubr.bf16.mxu0 %v747
  %4376 = vmatmul.mubr.bf16.gmra.mrb[0].mxu0 %v740
  %v4377 = vpop.f32.mrb[0].mxu0
  %v4378 = vadd.f32 %v4337, %v4377
  %v4379 = vpop.f32.mrb[0].mxu0
  %v4380 = vadd.f32 %v4339, %v4379
  %v4381 = vpop.f32.mrb[0].mxu0
  %v4382 = vpop.f32.mrb[0].mxu0
  %4383 = vdwg.mxu0
  %v4384 = vmax.f32 %v4009, 0.0
  %v4385 = vmax.f32 %v4011, 0.0
  %v4386 = vmax.f32 %v4378, 0.0
  %v4387 = vmax.f32 %v4380, 0.0
  %4388 = vst [vmem:[#allocation2] sm:$0xff] 0
  %4389 = vst [vmem:[#allocation2 + $0x8] sm:$0xff] 0
  %4390 = vst [vmem:[#allocation2 + $0x10] sm:$0xff] 0
  %4391 = vst [vmem:[#allocation2 + $0x18] sm:$0xff] 0
  %4392 = vst [vmem:[#allocation2 + $0x20] sm:$0x11] 0
  %4393 = vst [vmem:[#allocation2 + $0x28] sm:$0x11] 0
  %v4394 = vpack.c.bf16 %v4384, %v4384
  %v4395 = vpack.c.bf16 %v4385, %v4385
  %v4396 = vpack.c.bf16 %v4386, %v4386
  %v4397 = vpack.c.bf16 %v4387, %v4387
  %v4402 = vunpack.c.l.b16 %v4394
  %v4403 = vunpack.c.l.b16 %v4395
  %v4404 = vunpack.c.l.b16 %v4396
  %v4405 = vunpack.c.l.b16 %v4397
  %v4406 = vpack.c.b16 %v4403, %v4402
  %v4407 = vpack.c.b16 %v4405, %v4404
  %4410 = vst [vmem:[#allocation2 + $0x10] sm:$0x11] %v4406
  %4411 = vst [vmem:[#allocation2 + $0x18] sm:$0x11] %v4407
  %v4412 = vld [vmem:[#allocation2 + $0x10] sm:$0x11]
  %v4413 = vld [vmem:[#allocation2 + $0x18] sm:$0x11]
  %s4414 = scalar_lea.vmem %s3, 4096
  %v4415 = vld [vmem:[%s4414] sm:$0xff]
  %v4416 = vld [vmem:[%s4414 + $0x8] sm:$0xff]
  %v4417 = vld [vmem:[%s4414 + $0x10] sm:$0xff]
  %v4418 = vld [vmem:[%s4414 + $0x18] sm:$0xff]
  %v4419 = vld [vmem:[%s4414 + $0x20] sm:$0xff]
  %v4420 = vld [vmem:[%s4414 + $0x28] sm:$0xff]
  %v4421 = vld [vmem:[%s4414 + $0x30] sm:$0xff]
  %v4422 = vld [vmem:[%s4414 + $0x38] sm:$0xff]
  %v4423 = vld [vmem:[%s4414 + $0x40] sm:$0xff]
  %v4424 = vld [vmem:[%s4414 + $0x48] sm:$0xff]
  %v4425 = vld [vmem:[%s4414 + $0x50] sm:$0xff]
  %v4426 = vld [vmem:[%s4414 + $0x58] sm:$0xff]
  %v4427 = vld [vmem:[%s4414 + $0x60] sm:$0xff]
  %v4428 = vld [vmem:[%s4414 + $0x68] sm:$0xff]
  %v4429 = vld [vmem:[%s4414 + $0x70] sm:$0xff]
  %v4430 = vld [vmem:[%s4414 + $0x78] sm:$0xff]
  %v4431 = vld [vmem:[%s4414 + $0x80] sm:$0xff]
  %v4432 = vld [vmem:[%s4414 + $0x88] sm:$0xff]
  %v4433 = vld [vmem:[%s4414 + $0x90] sm:$0xff]
  %v4434 = vld [vmem:[%s4414 + $0x98] sm:$0xff]
  %v4435 = vld [vmem:[%s4414 + $0xa0] sm:$0xff]
  %v4436 = vld [vmem:[%s4414 + $0xa8] sm:$0xff]
  %v4437 = vld [vmem:[%s4414 + $0xb0] sm:$0xff]
  %v4438 = vld [vmem:[%s4414 + $0xb8] sm:$0xff]
  %v4439 = vld [vmem:[%s4414 + $0xc0] sm:$0xff]
  %v4440 = vld [vmem:[%s4414 + $0xc8] sm:$0xff]
  %v4441 = vld [vmem:[%s4414 + $0xd0] sm:$0xff]
  %v4442 = vld [vmem:[%s4414 + $0xd8] sm:$0xff]
  %v4443 = vld [vmem:[%s4414 + $0xe0] sm:$0xff]
  %v4444 = vld [vmem:[%s4414 + $0xe8] sm:$0xff]
  %v4445 = vld [vmem:[%s4414 + $0xf0] sm:$0xff]
  %v4446 = vld [vmem:[%s4414 + $0xf8] sm:$0xff]
  %v4447 = vld [vmem:[%s4414 + $0x100] sm:$0xff]
  %v4448 = vld [vmem:[%s4414 + $0x108] sm:$0xff]
  %v4449 = vld [vmem:[%s4414 + $0x110] sm:$0xff]
  %v4450 = vld [vmem:[%s4414 + $0x118] sm:$0xff]
  %v4451 = vld [vmem:[%s4414 + $0x120] sm:$0xff]
  %v4452 = vld [vmem:[%s4414 + $0x128] sm:$0xff]
  %v4453 = vld [vmem:[%s4414 + $0x130] sm:$0xff]
  %v4454 = vld [vmem:[%s4414 + $0x138] sm:$0xff]
  %v4455 = vld [vmem:[%s4414 + $0x140] sm:$0xff]
  %v4456 = vld [vmem:[%s4414 + $0x148] sm:$0xff]
  %v4457 = vld [vmem:[%s4414 + $0x150] sm:$0xff]
  %v4458 = vld [vmem:[%s4414 + $0x158] sm:$0xff]
  %v4459 = vld [vmem:[%s4414 + $0x160] sm:$0xff]
  %v4460 = vld [vmem:[%s4414 + $0x168] sm:$0xff]
  %v4461 = vld [vmem:[%s4414 + $0x170] sm:$0xff]
  %v4462 = vld [vmem:[%s4414 + $0x178] sm:$0xff]
  %v4463 = vld [vmem:[%s4414 + $0x180] sm:$0xff]
  %v4464 = vld [vmem:[%s4414 + $0x188] sm:$0xff]
  %v4465 = vld [vmem:[%s4414 + $0x190] sm:$0xff]
  %v4466 = vld [vmem:[%s4414 + $0x198] sm:$0xff]
  %v4467 = vld [vmem:[%s4414 + $0x1a0] sm:$0xff]
  %v4468 = vld [vmem:[%s4414 + $0x1a8] sm:$0xff]
  %v4469 = vld [vmem:[%s4414 + $0x1b0] sm:$0xff]
  %v4470 = vld [vmem:[%s4414 + $0x1b8] sm:$0xff]
  %v4471 = vld [vmem:[%s4414 + $0x1c0] sm:$0xff]
  %v4472 = vld [vmem:[%s4414 + $0x1c8] sm:$0xff]
  %v4473 = vld [vmem:[%s4414 + $0x1d0] sm:$0xff]
  %v4474 = vld [vmem:[%s4414 + $0x1d8] sm:$0xff]
  %v4475 = vld [vmem:[%s4414 + $0x1e0] sm:$0xff]
  %v4476 = vld [vmem:[%s4414 + $0x1e8] sm:$0xff]
  %v4477 = vld [vmem:[%s4414 + $0x1f0] sm:$0xff]
  %v4478 = vld [vmem:[%s4414 + $0x1f8] sm:$0xff]
  %v4479 = vld [vmem:[%s4414 + $0x200] sm:$0xff]
  %v4480 = vld [vmem:[%s4414 + $0x208] sm:$0xff]
  %v4481 = vld [vmem:[%s4414 + $0x210] sm:$0xff]
  %v4482 = vld [vmem:[%s4414 + $0x218] sm:$0xff]
  %v4483 = vld [vmem:[%s4414 + $0x220] sm:$0xff]
  %v4484 = vld [vmem:[%s4414 + $0x228] sm:$0xff]
  %v4485 = vld [vmem:[%s4414 + $0x230] sm:$0xff]
  %v4486 = vld [vmem:[%s4414 + $0x238] sm:$0xff]
  %v4487 = vld [vmem:[%s4414 + $0x240] sm:$0xff]
  %v4488 = vld [vmem:[%s4414 + $0x248] sm:$0xff]
  %v4489 = vld [vmem:[%s4414 + $0x250] sm:$0xff]
  %v4490 = vld [vmem:[%s4414 + $0x258] sm:$0xff]
  %v4491 = vld [vmem:[%s4414 + $0x260] sm:$0xff]
  %v4492 = vld [vmem:[%s4414 + $0x268] sm:$0xff]
  %v4493 = vld [vmem:[%s4414 + $0x270] sm:$0xff]
  %v4494 = vld [vmem:[%s4414 + $0x278] sm:$0xff]
  %v4495 = vld [vmem:[%s4414 + $0x280] sm:$0xff]
  %v4496 = vld [vmem:[%s4414 + $0x288] sm:$0xff]
  %v4497 = vld [vmem:[%s4414 + $0x290] sm:$0xff]
  %v4498 = vld [vmem:[%s4414 + $0x298] sm:$0xff]
  %v4499 = vld [vmem:[%s4414 + $0x2a0] sm:$0xff]
  %v4500 = vld [vmem:[%s4414 + $0x2a8] sm:$0xff]
  %v4501 = vld [vmem:[%s4414 + $0x2b0] sm:$0xff]
  %v4502 = vld [vmem:[%s4414 + $0x2b8] sm:$0xff]
  %v4503 = vld [vmem:[%s4414 + $0x2c0] sm:$0xff]
  %v4504 = vld [vmem:[%s4414 + $0x2c8] sm:$0xff]
  %v4505 = vld [vmem:[%s4414 + $0x2d0] sm:$0xff]
  %v4506 = vld [vmem:[%s4414 + $0x2d8] sm:$0xff]
  %v4507 = vld [vmem:[%s4414 + $0x2e0] sm:$0xff]
  %v4508 = vld [vmem:[%s4414 + $0x2e8] sm:$0xff]
  %v4509 = vld [vmem:[%s4414 + $0x2f0] sm:$0xff]
  %v4510 = vld [vmem:[%s4414 + $0x2f8] sm:$0xff]
  %v4511 = vld [vmem:[%s4414 + $0x300] sm:$0xff]
  %v4512 = vld [vmem:[%s4414 + $0x308] sm:$0xff]
  %v4513 = vld [vmem:[%s4414 + $0x310] sm:$0xff]
  %v4514 = vld [vmem:[%s4414 + $0x318] sm:$0xff]
  %v4515 = vld [vmem:[%s4414 + $0x320] sm:$0xff]
  %v4516 = vld [vmem:[%s4414 + $0x328] sm:$0xff]
  %v4517 = vld [vmem:[%s4414 + $0x330] sm:$0xff]
  %v4518 = vld [vmem:[%s4414 + $0x338] sm:$0xff]
  %v4519 = vld [vmem:[%s4414 + $0x340] sm:$0xff]
  %v4520 = vld [vmem:[%s4414 + $0x348] sm:$0xff]
  %v4521 = vld [vmem:[%s4414 + $0x350] sm:$0xff]
  %v4522 = vld [vmem:[%s4414 + $0x358] sm:$0xff]
  %v4523 = vld [vmem:[%s4414 + $0x360] sm:$0xff]
  %v4524 = vld [vmem:[%s4414 + $0x368] sm:$0xff]
  %v4525 = vld [vmem:[%s4414 + $0x370] sm:$0xff]
  %v4526 = vld [vmem:[%s4414 + $0x378] sm:$0xff]
  %v4527 = vld [vmem:[%s4414 + $0x380] sm:$0xff]
  %v4528 = vld [vmem:[%s4414 + $0x388] sm:$0xff]
  %v4529 = vld [vmem:[%s4414 + $0x390] sm:$0xff]
  %v4530 = vld [vmem:[%s4414 + $0x398] sm:$0xff]
  %v4531 = vld [vmem:[%s4414 + $0x3a0] sm:$0xff]
  %v4532 = vld [vmem:[%s4414 + $0x3a8] sm:$0xff]
  %v4533 = vld [vmem:[%s4414 + $0x3b0] sm:$0xff]
  %v4534 = vld [vmem:[%s4414 + $0x3b8] sm:$0xff]
  %v4535 = vld [vmem:[%s4414 + $0x3c0] sm:$0xff]
  %v4536 = vld [vmem:[%s4414 + $0x3c8] sm:$0xff]
  %v4537 = vld [vmem:[%s4414 + $0x3d0] sm:$0xff]
  %v4538 = vld [vmem:[%s4414 + $0x3d8] sm:$0xff]
  %v4539 = vld [vmem:[%s4414 + $0x3e0] sm:$0xff]
  %v4540 = vld [vmem:[%s4414 + $0x3e8] sm:$0xff]
  %v4541 = vld [vmem:[%s4414 + $0x3f0] sm:$0xff]
  %v4542 = vld [vmem:[%s4414 + $0x3f8] sm:$0xff]
  %v4543 = vld [vmem:[%s4] sm:$0xf]
  %v4545 = vlaneseq
  %v4546 = vshrl.u32 %v4545, 7
  %v4547 = vsub.s32 0, %v4546
  %v4548 = vrot.slane %v4543, %v4547
  %v4549 = vlaneseq
  %v4550 = vshrl.u32 %v4549, 7
  %v4551 = vsub.s32 1, %v4550
  %v4552 = vrot.slane %v4543, %v4551
  %v4553 = vlaneseq
  %v4554 = vshrl.u32 %v4553, 7
  %v4555 = vsub.s32 2, %v4554
  %v4556 = vrot.slane %v4543, %v4555
  %v4557 = vlaneseq
  %v4558 = vshrl.u32 %v4557, 7
  %v4559 = vsub.s32 3, %v4558
  %v4560 = vrot.slane %v4543, %v4559
  %v4567 = vunpack.c.l.b16 %v4412
  %v4568 = vunpack.c.h.b16 %v4412
  %v4569 = vunpack.c.l.b16 %v4413
  %v4570 = vunpack.c.h.b16 %v4413
  %v4571 = vpack.c.b16 %v4567, %v4567
  %v4572 = vpack.c.b16 %v4568, %v4568
  %v4573 = vpack.c.b16 %v4569, %v4569
  %v4574 = vpack.c.b16 %v4570, %v4570
  %v4707 = vunpack.c.l.b16 %v4415
  %v4708 = vunpack.c.h.b16 %v4415
  %v4709 = vunpack.c.l.b16 %v4416
  %v4710 = vunpack.c.h.b16 %v4416
  %v4711 = vunpack.c.l.b16 %v4417
  %v4712 = vunpack.c.h.b16 %v4417
  %v4713 = vunpack.c.l.b16 %v4418
  %v4714 = vunpack.c.h.b16 %v4418
  %v4715 = vunpack.c.l.b16 %v4419
  %v4716 = vunpack.c.h.b16 %v4419
  %v4717 = vunpack.c.l.b16 %v4420
  %v4718 = vunpack.c.h.b16 %v4420
  %v4719 = vunpack.c.l.b16 %v4421
  %v4720 = vunpack.c.h.b16 %v4421
  %v4721 = vunpack.c.l.b16 %v4422
  %v4722 = vunpack.c.h.b16 %v4422
  %v4723 = vunpack.c.l.b16 %v4423
  %v4724 = vunpack.c.h.b16 %v4423
  %v4725 = vunpack.c.l.b16 %v4424
  %v4726 = vunpack.c.h.b16 %v4424
  %v4727 = vunpack.c.l.b16 %v4425
  %v4728 = vunpack.c.h.b16 %v4425
  %v4729 = vunpack.c.l.b16 %v4426
  %v4730 = vunpack.c.h.b16 %v4426
  %v4731 = vunpack.c.l.b16 %v4427
  %v4732 = vunpack.c.h.b16 %v4427
  %v4733 = vunpack.c.l.b16 %v4428
  %v4734 = vunpack.c.h.b16 %v4428
  %v4735 = vunpack.c.l.b16 %v4429
  %v4736 = vunpack.c.h.b16 %v4429
  %v4737 = vunpack.c.l.b16 %v4430
  %v4738 = vunpack.c.h.b16 %v4430
  %v4739 = vunpack.c.l.b16 %v4431
  %v4740 = vunpack.c.h.b16 %v4431
  %v4741 = vunpack.c.l.b16 %v4432
  %v4742 = vunpack.c.h.b16 %v4432
  %v4743 = vunpack.c.l.b16 %v4433
  %v4744 = vunpack.c.h.b16 %v4433
  %v4745 = vunpack.c.l.b16 %v4434
  %v4746 = vunpack.c.h.b16 %v4434
  %v4747 = vunpack.c.l.b16 %v4435
  %v4748 = vunpack.c.h.b16 %v4435
  %v4749 = vunpack.c.l.b16 %v4436
  %v4750 = vunpack.c.h.b16 %v4436
  %v4751 = vunpack.c.l.b16 %v4437
  %v4752 = vunpack.c.h.b16 %v4437
  %v4753 = vunpack.c.l.b16 %v4438
  %v4754 = vunpack.c.h.b16 %v4438
  %v4755 = vunpack.c.l.b16 %v4439
  %v4756 = vunpack.c.h.b16 %v4439
  %v4757 = vunpack.c.l.b16 %v4440
  %v4758 = vunpack.c.h.b16 %v4440
  %v4759 = vunpack.c.l.b16 %v4441
  %v4760 = vunpack.c.h.b16 %v4441
  %v4761 = vunpack.c.l.b16 %v4442
  %v4762 = vunpack.c.h.b16 %v4442
  %v4763 = vunpack.c.l.b16 %v4443
  %v4764 = vunpack.c.h.b16 %v4443
  %v4765 = vunpack.c.l.b16 %v4444
  %v4766 = vunpack.c.h.b16 %v4444
  %v4767 = vunpack.c.l.b16 %v4445
  %v4768 = vunpack.c.h.b16 %v4445
  %v4769 = vunpack.c.l.b16 %v4446
  %v4770 = vunpack.c.h.b16 %v4446
  %v4771 = vunpack.c.l.b16 %v4447
  %v4772 = vunpack.c.h.b16 %v4447
  %v4773 = vunpack.c.l.b16 %v4448
  %v4774 = vunpack.c.h.b16 %v4448
  %v4775 = vunpack.c.l.b16 %v4449
  %v4776 = vunpack.c.h.b16 %v4449
  %v4777 = vunpack.c.l.b16 %v4450
  %v4778 = vunpack.c.h.b16 %v4450
  %v4779 = vunpack.c.l.b16 %v4451
  %v4780 = vunpack.c.h.b16 %v4451
  %v4781 = vunpack.c.l.b16 %v4452
  %v4782 = vunpack.c.h.b16 %v4452
  %v4783 = vunpack.c.l.b16 %v4453
  %v4784 = vunpack.c.h.b16 %v4453
  %v4785 = vunpack.c.l.b16 %v4454
  %v4786 = vunpack.c.h.b16 %v4454
  %v4787 = vunpack.c.l.b16 %v4455
  %v4788 = vunpack.c.h.b16 %v4455
  %v4789 = vunpack.c.l.b16 %v4456
  %v4790 = vunpack.c.h.b16 %v4456
  %v4791 = vunpack.c.l.b16 %v4457
  %v4792 = vunpack.c.h.b16 %v4457
  %v4793 = vunpack.c.l.b16 %v4458
  %v4794 = vunpack.c.h.b16 %v4458
  %v4795 = vunpack.c.l.b16 %v4459
  %v4796 = vunpack.c.h.b16 %v4459
  %v4797 = vunpack.c.l.b16 %v4460
  %v4798 = vunpack.c.h.b16 %v4460
  %v4799 = vunpack.c.l.b16 %v4461
  %v4800 = vunpack.c.h.b16 %v4461
  %v4801 = vunpack.c.l.b16 %v4462
  %v4802 = vunpack.c.h.b16 %v4462
  %v4803 = vunpack.c.l.b16 %v4463
  %v4804 = vunpack.c.h.b16 %v4463
  %v4805 = vunpack.c.l.b16 %v4464
  %v4806 = vunpack.c.h.b16 %v4464
  %v4807 = vunpack.c.l.b16 %v4465
  %v4808 = vunpack.c.h.b16 %v4465
  %v4809 = vunpack.c.l.b16 %v4466
  %v4810 = vunpack.c.h.b16 %v4466
  %v4811 = vunpack.c.l.b16 %v4467
  %v4812 = vunpack.c.h.b16 %v4467
  %v4813 = vunpack.c.l.b16 %v4468
  %v4814 = vunpack.c.h.b16 %v4468
  %v4815 = vunpack.c.l.b16 %v4469
  %v4816 = vunpack.c.h.b16 %v4469
  %v4817 = vunpack.c.l.b16 %v4470
  %v4818 = vunpack.c.h.b16 %v4470
  %v4819 = vunpack.c.l.b16 %v4471
  %v4820 = vunpack.c.h.b16 %v4471
  %v4821 = vunpack.c.l.b16 %v4472
  %v4822 = vunpack.c.h.b16 %v4472
  %v4823 = vunpack.c.l.b16 %v4473
  %v4824 = vunpack.c.h.b16 %v4473
  %v4825 = vunpack.c.l.b16 %v4474
  %v4826 = vunpack.c.h.b16 %v4474
  %v4827 = vunpack.c.l.b16 %v4475
  %v4828 = vunpack.c.h.b16 %v4475
  %v4829 = vunpack.c.l.b16 %v4476
  %v4830 = vunpack.c.h.b16 %v4476
  %v4831 = vunpack.c.l.b16 %v4477
  %v4832 = vunpack.c.h.b16 %v4477
  %v4833 = vunpack.c.l.b16 %v4478
  %v4834 = vunpack.c.h.b16 %v4478
  %v4835 = vunpack.c.l.b16 %v4479
  %v4836 = vunpack.c.h.b16 %v4479
  %v4837 = vunpack.c.l.b16 %v4480
  %v4838 = vunpack.c.h.b16 %v4480
  %v4839 = vunpack.c.l.b16 %v4481
  %v4840 = vunpack.c.h.b16 %v4481
  %v4841 = vunpack.c.l.b16 %v4482
  %v4842 = vunpack.c.h.b16 %v4482
  %v4843 = vunpack.c.l.b16 %v4483
  %v4844 = vunpack.c.h.b16 %v4483
  %v4845 = vunpack.c.l.b16 %v4484
  %v4846 = vunpack.c.h.b16 %v4484
  %v4847 = vunpack.c.l.b16 %v4485
  %v4848 = vunpack.c.h.b16 %v4485
  %v4849 = vunpack.c.l.b16 %v4486
  %v4850 = vunpack.c.h.b16 %v4486
  %v4851 = vunpack.c.l.b16 %v4487
  %v4852 = vunpack.c.h.b16 %v4487
  %v4853 = vunpack.c.l.b16 %v4488
  %v4854 = vunpack.c.h.b16 %v4488
  %v4855 = vunpack.c.l.b16 %v4489
  %v4856 = vunpack.c.h.b16 %v4489
  %v4857 = vunpack.c.l.b16 %v4490
  %v4858 = vunpack.c.h.b16 %v4490
  %v4859 = vunpack.c.l.b16 %v4491
  %v4860 = vunpack.c.h.b16 %v4491
  %v4861 = vunpack.c.l.b16 %v4492
  %v4862 = vunpack.c.h.b16 %v4492
  %v4863 = vunpack.c.l.b16 %v4493
  %v4864 = vunpack.c.h.b16 %v4493
  %v4865 = vunpack.c.l.b16 %v4494
  %v4866 = vunpack.c.h.b16 %v4494
  %v4867 = vunpack.c.l.b16 %v4495
  %v4868 = vunpack.c.h.b16 %v4495
  %v4869 = vunpack.c.l.b16 %v4496
  %v4870 = vunpack.c.h.b16 %v4496
  %v4871 = vunpack.c.l.b16 %v4497
  %v4872 = vunpack.c.h.b16 %v4497
  %v4873 = vunpack.c.l.b16 %v4498
  %v4874 = vunpack.c.h.b16 %v4498
  %v4875 = vunpack.c.l.b16 %v4499
  %v4876 = vunpack.c.h.b16 %v4499
  %v4877 = vunpack.c.l.b16 %v4500
  %v4878 = vunpack.c.h.b16 %v4500
  %v4879 = vunpack.c.l.b16 %v4501
  %v4880 = vunpack.c.h.b16 %v4501
  %v4881 = vunpack.c.l.b16 %v4502
  %v4882 = vunpack.c.h.b16 %v4502
  %v4883 = vunpack.c.l.b16 %v4503
  %v4884 = vunpack.c.h.b16 %v4503
  %v4885 = vunpack.c.l.b16 %v4504
  %v4886 = vunpack.c.h.b16 %v4504
  %v4887 = vunpack.c.l.b16 %v4505
  %v4888 = vunpack.c.h.b16 %v4505
  %v4889 = vunpack.c.l.b16 %v4506
  %v4890 = vunpack.c.h.b16 %v4506
  %v4891 = vunpack.c.l.b16 %v4507
  %v4892 = vunpack.c.h.b16 %v4507
  %v4893 = vunpack.c.l.b16 %v4508
  %v4894 = vunpack.c.h.b16 %v4508
  %v4895 = vunpack.c.l.b16 %v4509
  %v4896 = vunpack.c.h.b16 %v4509
  %v4897 = vunpack.c.l.b16 %v4510
  %v4898 = vunpack.c.h.b16 %v4510
  %v4899 = vunpack.c.l.b16 %v4511
  %v4900 = vunpack.c.h.b16 %v4511
  %v4901 = vunpack.c.l.b16 %v4512
  %v4902 = vunpack.c.h.b16 %v4512
  %v4903 = vunpack.c.l.b16 %v4513
  %v4904 = vunpack.c.h.b16 %v4513
  %v4905 = vunpack.c.l.b16 %v4514
  %v4906 = vunpack.c.h.b16 %v4514
  %v4907 = vunpack.c.l.b16 %v4515
  %v4908 = vunpack.c.h.b16 %v4515
  %v4909 = vunpack.c.l.b16 %v4516
  %v4910 = vunpack.c.h.b16 %v4516
  %v4911 = vunpack.c.l.b16 %v4517
  %v4912 = vunpack.c.h.b16 %v4517
  %v4913 = vunpack.c.l.b16 %v4518
  %v4914 = vunpack.c.h.b16 %v4518
  %v4915 = vunpack.c.l.b16 %v4519
  %v4916 = vunpack.c.h.b16 %v4519
  %v4917 = vunpack.c.l.b16 %v4520
  %v4918 = vunpack.c.h.b16 %v4520
  %v4919 = vunpack.c.l.b16 %v4521
  %v4920 = vunpack.c.h.b16 %v4521
  %v4921 = vunpack.c.l.b16 %v4522
  %v4922 = vunpack.c.h.b16 %v4522
  %v4923 = vunpack.c.l.b16 %v4523
  %v4924 = vunpack.c.h.b16 %v4523
  %v4925 = vunpack.c.l.b16 %v4524
  %v4926 = vunpack.c.h.b16 %v4524
  %v4927 = vunpack.c.l.b16 %v4525
  %v4928 = vunpack.c.h.b16 %v4525
  %v4929 = vunpack.c.l.b16 %v4526
  %v4930 = vunpack.c.h.b16 %v4526
  %v4931 = vunpack.c.l.b16 %v4527
  %v4932 = vunpack.c.h.b16 %v4527
  %v4933 = vunpack.c.l.b16 %v4528
  %v4934 = vunpack.c.h.b16 %v4528
  %v4935 = vunpack.c.l.b16 %v4529
  %v4936 = vunpack.c.h.b16 %v4529
  %v4937 = vunpack.c.l.b16 %v4530
  %v4938 = vunpack.c.h.b16 %v4530
  %v4939 = vunpack.c.l.b16 %v4531
  %v4940 = vunpack.c.h.b16 %v4531
  %v4941 = vunpack.c.l.b16 %v4532
  %v4942 = vunpack.c.h.b16 %v4532
  %v4943 = vunpack.c.l.b16 %v4533
  %v4944 = vunpack.c.h.b16 %v4533
  %v4945 = vunpack.c.l.b16 %v4534
  %v4946 = vunpack.c.h.b16 %v4534
  %v4947 = vunpack.c.l.b16 %v4535
  %v4948 = vunpack.c.h.b16 %v4535
  %v4949 = vunpack.c.l.b16 %v4536
  %v4950 = vunpack.c.h.b16 %v4536
  %v4951 = vunpack.c.l.b16 %v4537
  %v4952 = vunpack.c.h.b16 %v4537
  %v4953 = vunpack.c.l.b16 %v4538
  %v4954 = vunpack.c.h.b16 %v4538
  %v4955 = vunpack.c.l.b16 %v4539
  %v4956 = vunpack.c.h.b16 %v4539
  %v4957 = vunpack.c.l.b16 %v4540
  %v4958 = vunpack.c.h.b16 %v4540
  %v4959 = vunpack.c.l.b16 %v4541
  %v4960 = vunpack.c.h.b16 %v4541
  %v4961 = vunpack.c.l.b16 %v4542
  %v4962 = vunpack.c.h.b16 %v4542
  %v4963 = vpack.c.b16 %v4711, %v4707
  %v4964 = vpack.c.b16 %v4712, %v4708
  %v4965 = vpack.c.b16 %v4713, %v4709
  %v4966 = vpack.c.b16 %v4714, %v4710
  %v4967 = vpack.c.b16 %v4719, %v4715
  %v4968 = vpack.c.b16 %v4720, %v4716
  %v4969 = vpack.c.b16 %v4721, %v4717
  %v4970 = vpack.c.b16 %v4722, %v4718
  %v4971 = vpack.c.b16 %v4727, %v4723
  %v4972 = vpack.c.b16 %v4728, %v4724
  %v4973 = vpack.c.b16 %v4729, %v4725
  %v4974 = vpack.c.b16 %v4730, %v4726
  %v4975 = vpack.c.b16 %v4735, %v4731
  %v4976 = vpack.c.b16 %v4736, %v4732
  %v4977 = vpack.c.b16 %v4737, %v4733
  %v4978 = vpack.c.b16 %v4738, %v4734
  %v4979 = vpack.c.b16 %v4743, %v4739
  %v4980 = vpack.c.b16 %v4744, %v4740
  %v4981 = vpack.c.b16 %v4745, %v4741
  %v4982 = vpack.c.b16 %v4746, %v4742
  %v4983 = vpack.c.b16 %v4751, %v4747
  %v4984 = vpack.c.b16 %v4752, %v4748
  %v4985 = vpack.c.b16 %v4753, %v4749
  %v4986 = vpack.c.b16 %v4754, %v4750
  %v4987 = vpack.c.b16 %v4759, %v4755
  %v4988 = vpack.c.b16 %v4760, %v4756
  %v4989 = vpack.c.b16 %v4761, %v4757
  %v4990 = vpack.c.b16 %v4762, %v4758
  %v4991 = vpack.c.b16 %v4767, %v4763
  %v4992 = vpack.c.b16 %v4768, %v4764
  %v4993 = vpack.c.b16 %v4769, %v4765
  %v4994 = vpack.c.b16 %v4770, %v4766
  %v4995 = vpack.c.b16 %v4775, %v4771
  %v4996 = vpack.c.b16 %v4776, %v4772
  %v4997 = vpack.c.b16 %v4777, %v4773
  %v4998 = vpack.c.b16 %v4778, %v4774
  %v4999 = vpack.c.b16 %v4783, %v4779
  %v5000 = vpack.c.b16 %v4784, %v4780
  %v5001 = vpack.c.b16 %v4785, %v4781
  %v5002 = vpack.c.b16 %v4786, %v4782
  %v5003 = vpack.c.b16 %v4791, %v4787
  %v5004 = vpack.c.b16 %v4792, %v4788
  %v5005 = vpack.c.b16 %v4793, %v4789
  %v5006 = vpack.c.b16 %v4794, %v4790
  %v5007 = vpack.c.b16 %v4799, %v4795
  %v5008 = vpack.c.b16 %v4800, %v4796
  %v5009 = vpack.c.b16 %v4801, %v4797
  %v5010 = vpack.c.b16 %v4802, %v4798
  %v5011 = vpack.c.b16 %v4807, %v4803
  %v5012 = vpack.c.b16 %v4808, %v4804
  %v5013 = vpack.c.b16 %v4809, %v4805
  %v5014 = vpack.c.b16 %v4810, %v4806
  %v5015 = vpack.c.b16 %v4815, %v4811
  %v5016 = vpack.c.b16 %v4816, %v4812
  %v5017 = vpack.c.b16 %v4817, %v4813
  %v5018 = vpack.c.b16 %v4818, %v4814
  %v5019 = vpack.c.b16 %v4823, %v4819
  %v5020 = vpack.c.b16 %v4824, %v4820
  %v5021 = vpack.c.b16 %v4825, %v4821
  %v5022 = vpack.c.b16 %v4826, %v4822
  %v5023 = vpack.c.b16 %v4831, %v4827
  %v5024 = vpack.c.b16 %v4832, %v4828
  %v5025 = vpack.c.b16 %v4833, %v4829
  %v5026 = vpack.c.b16 %v4834, %v4830
  %v5027 = vpack.c.b16 %v4839, %v4835
  %v5028 = vpack.c.b16 %v4840, %v4836
  %v5029 = vpack.c.b16 %v4841, %v4837
  %v5030 = vpack.c.b16 %v4842, %v4838
  %v5031 = vpack.c.b16 %v4847, %v4843
  %v5032 = vpack.c.b16 %v4848, %v4844
  %v5033 = vpack.c.b16 %v4849, %v4845
  %v5034 = vpack.c.b16 %v4850, %v4846
  %v5035 = vpack.c.b16 %v4855, %v4851
  %v5036 = vpack.c.b16 %v4856, %v4852
  %v5037 = vpack.c.b16 %v4857, %v4853
  %v5038 = vpack.c.b16 %v4858, %v4854
  %v5039 = vpack.c.b16 %v4863, %v4859
  %v5040 = vpack.c.b16 %v4864, %v4860
  %v5041 = vpack.c.b16 %v4865, %v4861
  %v5042 = vpack.c.b16 %v4866, %v4862
  %v5043 = vpack.c.b16 %v4871, %v4867
  %v5044 = vpack.c.b16 %v4872, %v4868
  %v5045 = vpack.c.b16 %v4873, %v4869
  %v5046 = vpack.c.b16 %v4874, %v4870
  %v5047 = vpack.c.b16 %v4879, %v4875
  %v5048 = vpack.c.b16 %v4880, %v4876
  %v5049 = vpack.c.b16 %v4881, %v4877
  %v5050 = vpack.c.b16 %v4882, %v4878
  %v5051 = vpack.c.b16 %v4887, %v4883
  %v5052 = vpack.c.b16 %v4888, %v4884
  %v5053 = vpack.c.b16 %v4889, %v4885
  %v5054 = vpack.c.b16 %v4890, %v4886
  %v5055 = vpack.c.b16 %v4895, %v4891
  %v5056 = vpack.c.b16 %v4896, %v4892
  %v5057 = vpack.c.b16 %v4897, %v4893
  %v5058 = vpack.c.b16 %v4898, %v4894
  %v5059 = vpack.c.b16 %v4903, %v4899
  %v5060 = vpack.c.b16 %v4904, %v4900
  %v5061 = vpack.c.b16 %v4905, %v4901
  %v5062 = vpack.c.b16 %v4906, %v4902
  %v5063 = vpack.c.b16 %v4911, %v4907
  %v5064 = vpack.c.b16 %v4912, %v4908
  %v5065 = vpack.c.b16 %v4913, %v4909
  %v5066 = vpack.c.b16 %v4914, %v4910
  %v5067 = vpack.c.b16 %v4919, %v4915
  %v5068 = vpack.c.b16 %v4920, %v4916
  %v5069 = vpack.c.b16 %v4921, %v4917
  %v5070 = vpack.c.b16 %v4922, %v4918
  %v5071 = vpack.c.b16 %v4927, %v4923
  %v5072 = vpack.c.b16 %v4928, %v4924
  %v5073 = vpack.c.b16 %v4929, %v4925
  %v5074 = vpack.c.b16 %v4930, %v4926
  %v5075 = vpack.c.b16 %v4935, %v4931
  %v5076 = vpack.c.b16 %v4936, %v4932
  %v5077 = vpack.c.b16 %v4937, %v4933
  %v5078 = vpack.c.b16 %v4938, %v4934
  %v5079 = vpack.c.b16 %v4943, %v4939
  %v5080 = vpack.c.b16 %v4944, %v4940
  %v5081 = vpack.c.b16 %v4945, %v4941
  %v5082 = vpack.c.b16 %v4946, %v4942
  %v5083 = vpack.c.b16 %v4951, %v4947
  %v5084 = vpack.c.b16 %v4952, %v4948
  %v5085 = vpack.c.b16 %v4953, %v4949
  %v5086 = vpack.c.b16 %v4954, %v4950
  %v5087 = vpack.c.b16 %v4959, %v4955
  %v5088 = vpack.c.b16 %v4960, %v4956
  %v5089 = vpack.c.b16 %v4961, %v4957
  %v5090 = vpack.c.b16 %v4962, %v4958
  %5219 = vmatprep.subr.bf16.mxu0 %v4964
  %5220 = vmatpush1.bf16.msra.mxu0 %v4963
  %5221 = vmatprep.subr.bf16.mxu0 %v4968
  %5222 = vmatpush1.bf16.msra.mxu0 %v4967
  %5223 = vmatprep.subr.bf16.mxu0 %v4972
  %5224 = vmatpush1.bf16.msra.mxu0 %v4971
  %5225 = vmatprep.subr.bf16.mxu0 %v4976
  %5226 = vmatpush1.bf16.msra.mxu0 %v4975
  %5227 = vmatprep.subr.bf16.mxu0 %v4980
  %5228 = vmatpush1.bf16.msra.mxu0 %v4979
  %5229 = vmatprep.subr.bf16.mxu0 %v4984
  %5230 = vmatpush1.bf16.msra.mxu0 %v4983
  %5231 = vmatprep.subr.bf16.mxu0 %v4988
  %5232 = vmatpush1.bf16.msra.mxu0 %v4987
  %5233 = vmatprep.subr.bf16.mxu0 %v4992
  %5234 = vmatpush1.bf16.msra.mxu0 %v4991
  %5235 = vmatprep.subr.bf16.mxu0 %v4996
  %5236 = vmatpush1.bf16.msra.mxu0 %v4995
  %5237 = vmatprep.subr.bf16.mxu0 %v5000
  %5238 = vmatpush1.bf16.msra.mxu0 %v4999
  %5239 = vmatprep.subr.bf16.mxu0 %v5004
  %5240 = vmatpush1.bf16.msra.mxu0 %v5003
  %5241 = vmatprep.subr.bf16.mxu0 %v5008
  %5242 = vmatpush1.bf16.msra.mxu0 %v5007
  %5243 = vmatprep.subr.bf16.mxu0 %v5012
  %5244 = vmatpush1.bf16.msra.mxu0 %v5011
  %5245 = vmatprep.subr.bf16.mxu0 %v5016
  %5246 = vmatpush1.bf16.msra.mxu0 %v5015
  %5247 = vmatprep.subr.bf16.mxu0 %v5020
  %5248 = vmatpush1.bf16.msra.mxu0 %v5019
  %5249 = vmatprep.subr.bf16.mxu0 %v5024
  %5250 = vmatpush1.bf16.msra.mxu0 %v5023
  %5251 = vmatprep.mubr.bf16.mxu0 %v4572
  %5252 = vmatmul.mubr.bf16.gmra.mrb[0].mxu0 %v4571
  %v5253 = vpop.f32.mrb[0].mxu0
  %v5254 = vadd.f32 %v4548, %v5253
  %v5255 = vpop.f32.mrb[0].mxu0
  %v5256 = vadd.f32 %v4552, %v5255
  %v5257 = vpop.f32.mrb[0].mxu0
  %v5258 = vpop.f32.mrb[0].mxu0
  %5259 = vdwg.mxu0
  %5260 = vmatprep.subr.bf16.mxu0 %v5028
  %5261 = vmatpush1.bf16.msra.mxu0 %v5027
  %5262 = vmatprep.subr.bf16.mxu0 %v5032
  %5263 = vmatpush1.bf16.msra.mxu0 %v5031
  %5264 = vmatprep.subr.bf16.mxu0 %v5036
  %5265 = vmatpush1.bf16.msra.mxu0 %v5035
  %5266 = vmatprep.subr.bf16.mxu0 %v5040
  %5267 = vmatpush1.bf16.msra.mxu0 %v5039
  %5268 = vmatprep.subr.bf16.mxu0 %v5044
  %5269 = vmatpush1.bf16.msra.mxu0 %v5043
  %5270 = vmatprep.subr.bf16.mxu0 %v5048
  %5271 = vmatpush1.bf16.msra.mxu0 %v5047
  %5272 = vmatprep.subr.bf16.mxu0 %v5052
  %5273 = vmatpush1.bf16.msra.mxu0 %v5051
  %5274 = vmatprep.subr.bf16.mxu0 %v5056
  %5275 = vmatpush1.bf16.msra.mxu0 %v5055
  %5276 = vmatprep.subr.bf16.mxu0 %v5060
  %5277 = vmatpush1.bf16.msra.mxu0 %v5059
  %5278 = vmatprep.subr.bf16.mxu0 %v5064
  %5279 = vmatpush1.bf16.msra.mxu0 %v5063
  %5280 = vmatprep.subr.bf16.mxu0 %v5068
  %5281 = vmatpush1.bf16.msra.mxu0 %v5067
  %5282 = vmatprep.subr.bf16.mxu0 %v5072
  %5283 = vmatpush1.bf16.msra.mxu0 %v5071
  %5284 = vmatprep.subr.bf16.mxu0 %v5076
  %5285 = vmatpush1.bf16.msra.mxu0 %v5075
  %5286 = vmatprep.subr.bf16.mxu0 %v5080
  %5287 = vmatpush1.bf16.msra.mxu0 %v5079
  %5288 = vmatprep.subr.bf16.mxu0 %v5084
  %5289 = vmatpush1.bf16.msra.mxu0 %v5083
  %5290 = vmatprep.subr.bf16.mxu0 %v5088
  %5291 = vmatpush1.bf16.msra.mxu0 %v5087
  %5292 = vmatprep.mubr.bf16.mxu0 %v4574
  %5293 = vmatmul.mubr.bf16.gmra.mrb[0].mxu0 %v4573
  %v5294 = vpop.f32.mrb[0].mxu0
  %v5295 = vadd.f32 %v5254, %v5294
  %v5296 = vpop.f32.mrb[0].mxu0
  %v5297 = vadd.f32 %v5256, %v5296
  %v5298 = vpop.f32.mrb[0].mxu0
  %v5299 = vpop.f32.mrb[0].mxu0
  %5300 = vdwg.mxu0
  %5301 = vmatprep.subr.bf16.mxu0 %v4966
  %5302 = vmatpush1.bf16.msra.mxu0 %v4965
  %5303 = vmatprep.subr.bf16.mxu0 %v4970
  %5304 = vmatpush1.bf16.msra.mxu0 %v4969
  %5305 = vmatprep.subr.bf16.mxu0 %v4974
  %5306 = vmatpush1.bf16.msra.mxu0 %v4973
  %5307 = vmatprep.subr.bf16.mxu0 %v4978
  %5308 = vmatpush1.bf16.msra.mxu0 %v4977
  %5309 = vmatprep.subr.bf16.mxu0 %v4982
  %5310 = vmatpush1.bf16.msra.mxu0 %v4981
  %5311 = vmatprep.subr.bf16.mxu0 %v4986
  %5312 = vmatpush1.bf16.msra.mxu0 %v4985
  %5313 = vmatprep.subr.bf16.mxu0 %v4990
  %5314 = vmatpush1.bf16.msra.mxu0 %v4989
  %5315 = vmatprep.subr.bf16.mxu0 %v4994
  %5316 = vmatpush1.bf16.msra.mxu0 %v4993
  %5317 = vmatprep.subr.bf16.mxu0 %v4998
  %5318 = vmatpush1.bf16.msra.mxu0 %v4997
  %5319 = vmatprep.subr.bf16.mxu0 %v5002
  %5320 = vmatpush1.bf16.msra.mxu0 %v5001
  %5321 = vmatprep.subr.bf16.mxu0 %v5006
  %5322 = vmatpush1.bf16.msra.mxu0 %v5005
  %5323 = vmatprep.subr.bf16.mxu0 %v5010
  %5324 = vmatpush1.bf16.msra.mxu0 %v5009
  %5325 = vmatprep.subr.bf16.mxu0 %v5014
  %5326 = vmatpush1.bf16.msra.mxu0 %v5013
  %5327 = vmatprep.subr.bf16.mxu0 %v5018
  %5328 = vmatpush1.bf16.msra.mxu0 %v5017
  %5329 = vmatprep.subr.bf16.mxu0 %v5022
  %5330 = vmatpush1.bf16.msra.mxu0 %v5021
  %5331 = vmatprep.subr.bf16.mxu0 %v5026
  %5332 = vmatpush1.bf16.msra.mxu0 %v5025
  %5333 = vmatprep.mubr.bf16.mxu0 %v4572
  %5334 = vmatmul.mubr.bf16.gmra.mrb[0].mxu0 %v4571
  %v5335 = vpop.f32.mrb[0].mxu0
  %v5336 = vadd.f32 %v4556, %v5335
  %v5337 = vpop.f32.mrb[0].mxu0
  %v5338 = vadd.f32 %v4560, %v5337
  %v5339 = vpop.f32.mrb[0].mxu0
  %v5340 = vpop.f32.mrb[0].mxu0
  %5341 = vdwg.mxu0
  %5342 = vmatprep.subr.bf16.mxu0 %v5030
  %5343 = vmatpush1.bf16.msra.mxu0 %v5029
  %5344 = vmatprep.subr.bf16.mxu0 %v5034
  %5345 = vmatpush1.bf16.msra.mxu0 %v5033
  %5346 = vmatprep.subr.bf16.mxu0 %v5038
  %5347 = vmatpush1.bf16.msra.mxu0 %v5037
  %5348 = vmatprep.subr.bf16.mxu0 %v5042
  %5349 = vmatpush1.bf16.msra.mxu0 %v5041
  %5350 = vmatprep.subr.bf16.mxu0 %v5046
  %5351 = vmatpush1.bf16.msra.mxu0 %v5045
  %5352 = vmatprep.subr.bf16.mxu0 %v5050
  %5353 = vmatpush1.bf16.msra.mxu0 %v5049
  %5354 = vmatprep.subr.bf16.mxu0 %v5054
  %5355 = vmatpush1.bf16.msra.mxu0 %v5053
  %5356 = vmatprep.subr.bf16.mxu0 %v5058
  %5357 = vmatpush1.bf16.msra.mxu0 %v5057
  %5358 = vmatprep.subr.bf16.mxu0 %v5062
  %5359 = vmatpush1.bf16.msra.mxu0 %v5061
  %5360 = vmatprep.subr.bf16.mxu0 %v5066
  %5361 = vmatpush1.bf16.msra.mxu0 %v5065
  %5362 = vmatprep.subr.bf16.mxu0 %v5070
  %5363 = vmatpush1.bf16.msra.mxu0 %v5069
  %5364 = vmatprep.subr.bf16.mxu0 %v5074
  %5365 = vmatpush1.bf16.msra.mxu0 %v5073
  %5366 = vmatprep.subr.bf16.mxu0 %v5078
  %5367 = vmatpush1.bf16.msra.mxu0 %v5077
  %5368 = vmatprep.subr.bf16.mxu0 %v5082
  %5369 = vmatpush1.bf16.msra.mxu0 %v5081
  %5370 = vmatprep.subr.bf16.mxu0 %v5086
  %5371 = vmatpush1.bf16.msra.mxu0 %v5085
  %5372 = vmatprep.subr.bf16.mxu0 %v5090
  %5373 = vmatpush1.bf16.msra.mxu0 %v5089
  %5374 = vmatprep.mubr.bf16.mxu0 %v4574
  %5375 = vmatmul.mubr.bf16.gmra.mrb[0].mxu0 %v4573
  %v5376 = vpop.f32.mrb[0].mxu0
  %v5377 = vadd.f32 %v5336, %v5376
  %v5378 = vpop.f32.mrb[0].mxu0
  %v5379 = vadd.f32 %v5338, %v5378
  %v5380 = vpop.f32.mrb[0].mxu0
  %v5381 = vpop.f32.mrb[0].mxu0
  %5382 = vdwg.mxu0
  %v5387 = vcombine.low %v5295, %v5297
  %v5388 = vcombine.low %v5377, %v5379
  %v5390 = vunpack.c.l.s4 1983009808
  %v5391 = vunpack.c.0.s8 %v5390
  %v5392 = vlaneseq
  %v5393 = vshrl.u32 %v5392, 7
  %v5394 = vsub.s32 %v5391, %v5393
  %v5395 = vrot.slane %v5387, %v5394
  %v5397 = vunpack.c.l.s4 1983009808
  %v5398 = vunpack.c.0.s8 %v5397
  %v5399 = vlaneseq
  %v5400 = vshrl.u32 %v5399, 7
  %v5401 = vsub.s32 %v5398, %v5400
  %v5402 = vrot.slane %v5388, %v5401
  %v5403 = vcombine.low %v5395, %v5402
  %5405 = vst [vmem:[%s6] sm:$0xff] %v5403
  // Predicated region
  $region26: #{palm_forward.8} parent=0 // pred_check
    _
  $region27: #{palm_forward.8} parent=0 // pred_check_branch
    %5407 = sbr.rel (0) target = $region29
  $region28: #{palm_forward.8} parent=0 // pred_region
    _
  $region29: #{palm_forward.8} parent=0 // pred_fallthru
    _
  // Predicated region
  $region30: #{palm_forward.8} parent=0 // pred_check
    _
  $region31: #{palm_forward.8} parent=0 // pred_check_branch
    %5409 = sbr.rel (0) target = $region33
  $region32: #{palm_forward.8} parent=0 // pred_region
    _
  $region33: #{palm_forward.8} parent=0 // pred_fallthru
    _

</llo_original>
